<compile_context>
chip_gen: v6e
topology: v6e:2x2x1
jax: 0.10.0
libtpu: 0.0.40
codegen_flags: <defaults>
</compile_context>

<pallas_src>
import functools

import jax
import jax.numpy as jnp
from jax import lax
from jax.experimental import pallas as pl
from jax.experimental.pallas import tpu as pltpu

EPS = 1e-5
LANE = 128


# --------------------------------------------------------------------------
# helpers
# --------------------------------------------------------------------------
def _round_up(x, m):
  return (x + m - 1) // m * m


def _vmem_limit_bytes():
  """Generation-aware VMEM budget: ~40 MiB on v7x (64 MiB physical),
  ~100 MiB on v5e/v6e (128 MiB physical).  Falls back conservatively."""
  cap = 64 * 1024 * 1024
  try:
    cap = int(pltpu.get_tpu_info().vmem_capacity_bytes)
  except Exception:
    pass
  return max(min(int(cap * 0.8), cap - 24 * 1024 * 1024), 16 * 1024 * 1024)


# --------------------------------------------------------------------------
# kernels
# --------------------------------------------------------------------------
def _conv_bn_stats_kernel(x_ref, w_ref, scale_ref, shift_ref,
                          out_ref, stats_ref, pad_scratch, acc_scratch,
                          *, img_h, img_w, apply_relu):
  """One batch-image step: [prev-BN affine (+relu)] -> 3x3 conv -> BN partials.

  x_ref      : (H, W, Cin_p) bf16     full-image input block
  w_ref      : (3, 3, Cin_p, Cout_p) bf16 conv weights
  scale/shift: (1, Cin_p) f32         folded BN affine of the previous layer
  out_ref    : (H, W, Cout_p) bf16    raw conv output (pre-BN)
  stats_ref  : (2, Cout_p) f32        rows = [sum, sum of squares]
  pad_scratch: (H+2, W+2, Cin_p) bf16 'same'-padded staging buffer
  acc_scratch: (H*W, Cout_p) f32      MXU tap accumulator
  """
  h, w = img_h, img_w
  cin_p = pad_scratch.shape[-1]
  cout_p = acc_scratch.shape[-1]

  # Previous layer's BN folded into a per-channel affine (+ReLU), done in f32,
  # cast once to bf16 for the MXU (no per-tap casts later).
  x = x_ref[...].astype(jnp.float32)
  y = x * scale_ref[...] + shift_ref[...]
  if apply_relu:
    y = jnp.maximum(y, 0.0)

  # 'same' padding built inside VMEM: zero only the four 1-pixel border strips
  # (cheap; interior writes never touch them).
  zero_row = jnp.zeros((1, w + 2, cin_p), pad_scratch.dtype)
  zero_col = jnp.zeros((h + 2, 1, cin_p), pad_scratch.dtype)
  pad_scratch[0:1, :, :] = zero_row
  pad_scratch[h + 1:h + 2, :, :] = zero_row
  pad_scratch[:, 0:1, :] = zero_col
  pad_scratch[:, w + 1:w + 2, :] = zero_col
  pad_scratch[1:h + 1, 1:w + 1, :] = y.astype(pad_scratch.dtype)

  # 3x3 conv = 9 shifted (H*W, Cin_p) x (Cin_p, Cout_p) bf16 matmuls with f32
  # accumulation into a VMEM scratch (in-place MRB accumulation on v7x).
  # dw is the outer loop: only 3 sublane-shifted slabs are materialized and
  # each is reused for the 3 dh taps (leading-dim slices + reshape are cheap
  # since W % 8 == 0).
  # TODO(synk): small-Cin path (9*Cin <= 128): im2col the 9 taps into K and
  # issue one matmul per image instead of nine mostly-zero-K matmuls.
  # TODO(synk): when real channel counts reach 256, block channels at 256
  # lanes on v6e/v7x to fill the 256-wide MXU (keep 128 on v5e).
  first = True
  for dw in range(3):
    slab = pad_scratch[:, dw:dw + w, :]                    # (H+2, W, Cin_p)
    for dh in range(3):
      patch = slab[dh:dh + h].reshape(h * w, cin_p)
      contrib = jnp.dot(patch, w_ref[dh, dw],
                        preferred_element_type=jnp.float32)
      if first:
        acc_scratch[...] = contrib
        first = False
      else:
        acc_scratch[...] += contrib

  acc = acc_scratch[...]
  out_ref[...] = acc.reshape(h, w, cout_p).astype(out_ref.dtype)
  # One-pass BN statistics (sum, sum of squares) from the f32 accumulator.
  stats_ref[0:1, :] = jnp.sum(acc, axis=0, keepdims=True)
  stats_ref[1:2, :] = jnp.sum(acc * acc, axis=0, keepdims=True)


def _bn_relu_kernel(x_ref, scale_ref, shift_ref, out_ref):
  """Elementwise folded-BN affine + ReLU (lane-dense, C padded to 128)."""
  x = x_ref[...].astype(jnp.float32)
  out_ref[...] = jnp.maximum(x * scale_ref[...] + shift_ref[...], 0.0)


# --------------------------------------------------------------------------
# pallas_call wrappers
# --------------------------------------------------------------------------
def _conv_bn_stats_call(x, w, scale, shift, *, img_h, img_w, apply_relu,
                        vmem_limit):
  n = x.shape[0]
  cin_p = x.shape[-1]
  cout_p = w.shape[-1]
  kern = functools.partial(_conv_bn_stats_kernel, img_h=img_h, img_w=img_w,
                           apply_relu=apply_relu)
  conv_out, stats = pl.pallas_call(
      kern,
      grid=(n,),
      in_specs=[
          pl.BlockSpec((None, img_h, img_w, cin_p), lambda i: (i, 0, 0, 0)),
          pl.BlockSpec((3, 3, cin_p, cout_p), lambda i: (0, 0, 0, 0)),
          pl.BlockSpec((1, cin_p), lambda i: (0, 0)),
          pl.BlockSpec((1, cin_p), lambda i: (0, 0)),
      ],
      out_specs=(
          pl.BlockSpec((None, img_h, img_w, cout_p), lambda i: (i, 0, 0, 0)),
          pl.BlockSpec((None, 2, cout_p), lambda i: (i, 0, 0)),
      ),
      out_shape=(
          jax.ShapeDtypeStruct((n, img_h, img_w, cout_p), jnp.bfloat16),
          jax.ShapeDtypeStruct((n, 2, cout_p), jnp.float32),
      ),
      scratch_shapes=[
          pltpu.VMEM((img_h + 2, img_w + 2, cin_p), jnp.bfloat16),
          pltpu.VMEM((img_h * img_w, cout_p), jnp.float32),
      ],
      compiler_params=pltpu.CompilerParams(
          dimension_semantics=("parallel",),
          vmem_limit_bytes=vmem_limit),
  )(x, w, scale, shift)
  return conv_out, stats


def _fold_bn(stats, gamma_p, beta_p, count):
  """Per-channel (scale, shift) such that bn(x) = x * scale + shift."""
  s = jnp.sum(stats, axis=0)                            # (2, C_p)
  mean = s[0] / count
  var = jnp.maximum(s[1] / count - mean * mean, 0.0)
  inv = lax.rsqrt(var + EPS)
  scale = gamma_p * inv                                 # (1, C_p)
  shift = beta_p - mean * scale
  return scale.astype(jnp.float32), shift.astype(jnp.float32)


def unet_block_a(x_nchw, params):
  """Forward pass of UNetBlockA. x_nchw: (N, Cin, H, W) f32 -> (N, Cout, H, W)."""
  n, cin, h, w = x_nchw.shape
  cout = params["w1"].shape[-1]
  cin_p, cout_p = _round_up(cin, LANE), _round_up(cout, LANE)
  count = n * h * w
  vmem_limit = _vmem_limit_bytes()

  # Sanity: full-image blocks (double-buffered in/out, resident weights,
  # pad + acc scratch) must fit the generation-aware VMEM budget.
  def _step_bytes(ci, co):
    blk_in = h * w * ci * 2
    blk_out = h * w * co * 2
    weights = 9 * ci * co * 2
    scratch = (h + 2) * (w + 2) * ci * 2 + h * w * co * 4
    return 2 * (blk_in + blk_out) + weights + scratch + 8 * (ci + co)
  assert max(_step_bytes(cin_p, cout_p), _step_bytes(cout_p, cout_p)) \
      <= vmem_limit, "full-image block does not fit the VMEM budget"
  # TODO(synk): for very large H*W*C add a manual-DMA row-halo path
  # (memory_space=pl.ANY + pltpu.make_async_copy) instead of full-image blocks.

  # layout: NCHW -> NHWC, channels zero-padded to the lane width, bf16 MXU
  # operands.  No spatial padding / window stacking in HBM.
  x = jnp.transpose(x_nchw, (0, 2, 3, 1)).astype(jnp.bfloat16)
  x = jnp.pad(x, ((0, 0), (0, 0), (0, 0), (0, cin_p - cin)))

  w1 = jnp.zeros((3, 3, cin_p, cout_p), jnp.bfloat16)
  w1 = w1.at[:, :, :cin, :cout].set(params["w1"].astype(jnp.bfloat16))
  w2 = jnp.zeros((3, 3, cout_p, cout_p), jnp.bfloat16)
  w2 = w2.at[:, :, :cout, :cout].set(params["w2"].astype(jnp.bfloat16))

  def pad_c(v):
    return jnp.pad(v.reshape(1, -1).astype(jnp.float32),
                   ((0, 0), (0, cout_p - cout)))
  g1, bt1 = pad_c(params["g1"]), pad_c(params["bt1"])
  g2, bt2 = pad_c(params["g2"]), pad_c(params["bt2"])
  # NOTE: conv biases b1/b2 are intentionally unused — they are exactly
  # cancelled by the training-mode BatchNorm mean subtraction.

  ident_scale = jnp.ones((1, cin_p), jnp.float32)
  ident_shift = jnp.zeros((1, cin_p), jnp.float32)

  # phase 1: conv1 + partial BN1 stats
  c1, st1 = _conv_bn_stats_call(x, w1, ident_scale, ident_shift,
                                img_h=h, img_w=w, apply_relu=False,
                                vmem_limit=vmem_limit)
  scale1, shift1 = _fold_bn(st1, g1, bt1, count)

  # phase 2: bn1 + relu + conv2 + partial BN2 stats (c1 read straight back,
  # no re-windowing / padding pass in HBM).
  c2, st2 = _conv_bn_stats_call(c1, w2, scale1, shift1,
                                img_h=h, img_w=w, apply_relu=True,
                                vmem_limit=vmem_limit)
  scale2, shift2 = _fold_bn(st2, g2, bt2, count)

  # phase 3: bn2 + relu (elementwise, lane-dense).  Output kept f32 to match
  # the module's output precision.
  # TODO(synk): fuse this affine into the consumer of the block output (or
  # emit bf16) to halve the final HBM pass when the downstream tolerates it.
  y = pl.pallas_call(
      _bn_relu_kernel,
      grid=(n,),
      in_specs=[
          pl.BlockSpec((None, h, w, cout_p), lambda i: (i, 0, 0, 0)),
          pl.BlockSpec((1, cout_p), lambda i: (0, 0)),
          pl.BlockSpec((1, cout_p), lambda i: (0, 0)),
      ],
      out_specs=pl.BlockSpec((None, h, w, cout_p), lambda i: (i, 0, 0, 0)),
      out_shape=jax.ShapeDtypeStruct((n, h, w, cout_p), jnp.float32),
      compiler_params=pltpu.CompilerParams(
          dimension_semantics=("parallel",),
          vmem_limit_bytes=vmem_limit),
  )(c2, scale2, shift2)

  # back to PyTorch NCHW, dropping the channel padding.
  return jnp.transpose(y[..., :cout], (0, 3, 1, 2))


# --------------------------------------------------------------------------
# parameters & pure-JAX reference
# --------------------------------------------------------------------------
def init_params(key, cin, cout):
  k1, k2, k3, k4, k5, k6, k7, k8 = jax.random.split(key, 8)
  return {
      # conv weights in HWIO layout (3, 3, in, out)
      "w1": jax.random.normal(k1, (3, 3, cin, cout), jnp.float32) * 0.1,
      "b1": jax.random.normal(k2, (1, cout), jnp.float32) * 0.1,
      "w2": jax.random.normal(k3, (3, 3, cout, cout), jnp.float32) * 0.1,
      "b2": jax.random.normal(k4, (1, cout), jnp.float32) * 0.1,
      # BN affine params (randomized to make the check non-trivial)
      "g1": 1.0 + 0.1 * jax.random.normal(k5, (1, cout), jnp.float32),
      "bt1": 0.1 * jax.random.normal(k6, (1, cout), jnp.float32),
      "g2": 1.0 + 0.1 * jax.random.normal(k7, (1, cout), jnp.float32),
      "bt2": 0.1 * jax.random.normal(k8, (1, cout), jnp.float32),
  }


def ref_forward(x_nchw, p):
  """Pure-JAX reference in NCHW mirroring the PyTorch forward (train-mode BN).

  Convs use the same bf16-operand / f32-accumulate precision as the kernel.
  Conv biases ARE applied here — dropping them inside the kernel before a
  training-mode BN is an exact identity, which this check demonstrates.
  """
  def conv(x, w, b):
    y = lax.conv_general_dilated(
        x.astype(jnp.bfloat16), w.astype(jnp.bfloat16),
        window_strides=(1, 1), padding=((1, 1), (1, 1)),
        dimension_numbers=("NCHW", "HWIO", "NCHW"),
        preferred_element_type=jnp.float32)
    return y + b.reshape(1, -1, 1, 1)

  def bn_relu(x, g, bt):
    mean = jnp.mean(x, axis=(0, 2, 3), keepdims=True)
    var = jnp.mean((x - mean) ** 2, axis=(0, 2, 3), keepdims=True)
    y = (x - mean) * lax.rsqrt(var + EPS) * g.reshape(1, -1, 1, 1) \
        + bt.reshape(1, -1, 1, 1)
    return jnp.maximum(y, 0.0)

  y = bn_relu(conv(x_nchw, p["w1"], p["b1"]), p["g1"], p["bt1"])
  y = bn_relu(conv(y, p["w2"], p["b2"]), p["g2"], p["bt2"])
  return y


if __name__ == "__main__":
  N, Cin, Cout, H, W = 2, 4, 8, 16, 16
  key = jax.random.PRNGKey(0)
  kx, kp = jax.random.split(key)

  x = jax.random.normal(kx, (N, Cin, H, W), jnp.float32)   # NCHW, like PyTorch
  params = init_params(kp, Cin, Cout)

  fwd = jax.jit(unet_block_a)
  out = jax.block_until_ready(fwd(x, params))

  ref = ref_forward(x, params)
  assert out.shape == (N, Cout, H, W), out.shape
  max_err = jnp.max(jnp.abs(out - ref))
  # Tolerance accounts for the bf16 inter-phase activations (c1/c2) on top of
  # the bf16-operand convs that both paths share.
  assert jnp.allclose(out, ref, atol=3e-2, rtol=2e-2), f"max abs err {max_err}"

  print("KERNEL_OK")
</pallas_src>

<mosaic_0001>
module attributes {stable_mosaic.version = 11 : i64} {
  func.func @_conv_bn_stats_kernel(%arg0: i32, %arg1: memref<1x16x16x128xbf16, #tpu.memory_space<vmem>>, %arg2: memref<3x3x128x128xbf16, #tpu.memory_space<vmem>>, %arg3: memref<1x128xf32, #tpu.memory_space<vmem>>, %arg4: memref<1x128xf32, #tpu.memory_space<vmem>>, %arg5: memref<1x16x16x128xbf16, #tpu.memory_space<vmem>>, %arg6: memref<1x2x128xf32, #tpu.memory_space<vmem>>, %arg7: memref<18x18x128xbf16, #tpu.memory_space<vmem>>, %arg8: memref<256x128xf32, #tpu.memory_space<vmem>>) attributes {dimension_semantics = [#tpu.dimension_semantics<parallel>], iteration_bounds = array<i64: 2>, scalar_prefetch = 0 : i64, scratch_operands = 2 : i64, tpu.core_type = #tpu.core_type<tc>, window_params = [{transform_indices = @transform_0, window_bounds = array<i64: 1, 16, 16, 128>}, {pipeline_mode = #tpu.pipeline_mode<synchronous>, transform_indices = @transform_1, window_bounds = array<i64: 3, 3, 128, 128>}, {pipeline_mode = #tpu.pipeline_mode<synchronous>, transform_indices = @transform_2, window_bounds = array<i64: 1, 128>}, {pipeline_mode = #tpu.pipeline_mode<synchronous>, transform_indices = @transform_3, window_bounds = array<i64: 1, 128>}, {transform_indices = @transform_4, window_bounds = array<i64: 1, 16, 16, 128>}, {transform_indices = @transform_5, window_bounds = array<i64: 1, 2, 128>}]} {
    %c0 = arith.constant 0 : index
    %c0_0 = arith.constant 0 : index
    %c0_1 = arith.constant 0 : index
    %c0_2 = arith.constant 0 : index
    %0 = vector.load %arg1[%c0, %c0_0, %c0_1, %c0_2] : memref<1x16x16x128xbf16, #tpu.memory_space<vmem>>, vector<1x16x16x128xbf16>
    %1 = vector.shape_cast %0 : vector<1x16x16x128xbf16> to vector<16x16x128xbf16>
    %2 = arith.extf %1 : vector<16x16x128xbf16> to vector<16x16x128xf32>
    %c0_3 = arith.constant 0 : index
    %c0_4 = arith.constant 0 : index
    %3 = vector.load %arg3[%c0_3, %c0_4] : memref<1x128xf32, #tpu.memory_space<vmem>>, vector<1x128xf32>
    %4 = vector.shape_cast %3 : vector<1x128xf32> to vector<1x1x128xf32>
    %5 = vector.broadcast %4 : vector<1x1x128xf32> to vector<16x16x128xf32>
    %6 = arith.mulf %2, %5 : vector<16x16x128xf32>
    %c0_5 = arith.constant 0 : index
    %c0_6 = arith.constant 0 : index
    %7 = vector.load %arg4[%c0_5, %c0_6] : memref<1x128xf32, #tpu.memory_space<vmem>>, vector<1x128xf32>
    %8 = vector.shape_cast %7 : vector<1x128xf32> to vector<1x1x128xf32>
    %9 = vector.broadcast %8 : vector<1x1x128xf32> to vector<16x16x128xf32>
    %10 = arith.addf %6, %9 : vector<16x16x128xf32>
    %cst = arith.constant 0.000000e+00 : bf16
    %11 = vector.broadcast %cst : bf16 to vector<1x18x128xbf16>
    %cst_7 = arith.constant 0.000000e+00 : bf16
    %12 = vector.broadcast %cst_7 : bf16 to vector<18x1x128xbf16>
    %c0_8 = arith.constant 0 : index
    %c0_9 = arith.constant 0 : index
    %c0_10 = arith.constant 0 : index
    %13 = vector.load %arg7[%c0_8, %c0_9, %c0_10] : memref<18x18x128xbf16, #tpu.memory_space<vmem>>, vector<1x18x128xbf16>
    tpu.vector_store %arg7[%c0_8, %c0_9, %c0_10], %11 {strides = array<i32>} : memref<18x18x128xbf16, #tpu.memory_space<vmem>>, vector<1x18x128xbf16>,
    %c17 = arith.constant 17 : index
    %c0_11 = arith.constant 0 : index
    %c0_12 = arith.constant 0 : index
    %14 = vector.load %arg7[%c17, %c0_11, %c0_12] : memref<18x18x128xbf16, #tpu.memory_space<vmem>>, vector<1x18x128xbf16>
    tpu.vector_store %arg7[%c17, %c0_11, %c0_12], %11 {strides = array<i32>} : memref<18x18x128xbf16, #tpu.memory_space<vmem>>, vector<1x18x128xbf16>,
    %c0_13 = arith.constant 0 : index
    %c0_14 = arith.constant 0 : index
    %c0_15 = arith.constant 0 : index
    %15 = vector.load %arg7[%c0_13, %c0_14, %c0_15] : memref<18x18x128xbf16, #tpu.memory_space<vmem>>, vector<18x1x128xbf16>
    tpu.vector_store %arg7[%c0_13, %c0_14, %c0_15], %12 {strides = array<i32>} : memref<18x18x128xbf16, #tpu.memory_space<vmem>>, vector<18x1x128xbf16>,
    %c0_16 = arith.constant 0 : index
    %c17_17 = arith.constant 17 : index
    %c0_18 = arith.constant 0 : index
    %16 = vector.load %arg7[%c0_16, %c17_17, %c0_18] : memref<18x18x128xbf16, #tpu.memory_space<vmem>>, vector<18x1x128xbf16>
    tpu.vector_store %arg7[%c0_16, %c17_17, %c0_18], %12 {strides = array<i32>} : memref<18x18x128xbf16, #tpu.memory_space<vmem>>, vector<18x1x128xbf16>,
    %17 = arith.truncf %10 : vector<16x16x128xf32> to vector<16x16x128xbf16>
    %c1 = arith.constant 1 : index
    %c1_19 = arith.constant 1 : index
    %c0_20 = arith.constant 0 : index
    %18 = vector.load %arg7[%c1, %c1_19, %c0_20] : memref<18x18x128xbf16, #tpu.memory_space<vmem>>, vector<16x16x128xbf16>
    tpu.vector_store %arg7[%c1, %c1_19, %c0_20], %17 {strides = array<i32>} : memref<18x18x128xbf16, #tpu.memory_space<vmem>>, vector<16x16x128xbf16>,
    %c0_21 = arith.constant 0 : index
    %c0_22 = arith.constant 0 : index
    %c0_23 = arith.constant 0 : index
    %19 = vector.load %arg7[%c0_21, %c0_22, %c0_23] : memref<18x18x128xbf16, #tpu.memory_space<vmem>>, vector<18x16x128xbf16>
    %20 = vector.extract_strided_slice %19 {offsets = [0, 0, 0], sizes = [16, 16, 128], strides = [1, 1, 1]} : vector<18x16x128xbf16> to vector<16x16x128xbf16>
    %21 = vector.shape_cast %20 : vector<16x16x128xbf16> to vector<256x128xbf16>
    %c0_24 = arith.constant 0 : index
    %c0_25 = arith.constant 0 : index
    %c0_26 = arith.constant 0 : index
    %c0_27 = arith.constant 0 : index
    %22 = vector.load %arg2[%c0_24, %c0_25, %c0_26, %c0_27] : memref<3x3x128x128xbf16, #tpu.memory_space<vmem>>, vector<1x1x128x128xbf16>
    %23 = vector.shape_cast %22 : vector<1x1x128x128xbf16> to vector<128x128xbf16>
    %cst_28 = arith.constant dense<0.000000e+00> : vector<256x128xf32>
    %24 = tpu.matmul %21, %23, %cst_28 {dimension_numbers = #tpu.dot_dimension_numbers<[1], [0], [0], [1], [0, 0, 1, 1], [], []>} : vector<256x128xbf16>, vector<128x128xbf16>, vector<256x128xf32> -> vector<256x128xf32>
    %c0_29 = arith.constant 0 : index
    %c0_30 = arith.constant 0 : index
    %25 = vector.load %arg8[%c0_29, %c0_30] : memref<256x128xf32, #tpu.memory_space<vmem>>, vector<256x128xf32>
    tpu.vector_store %arg8[%c0_29, %c0_30], %24 {strides = array<i32>} : memref<256x128xf32, #tpu.memory_space<vmem>>, vector<256x128xf32>,
    %26 = vector.extract_strided_slice %19 {offsets = [1, 0, 0], sizes = [16, 16, 128], strides = [1, 1, 1]} : vector<18x16x128xbf16> to vector<16x16x128xbf16>
    %27 = vector.shape_cast %26 : vector<16x16x128xbf16> to vector<256x128xbf16>
    %c1_31 = arith.constant 1 : index
    %c0_32 = arith.constant 0 : index
    %c0_33 = arith.constant 0 : index
    %c0_34 = arith.constant 0 : index
    %28 = vector.load %arg2[%c1_31, %c0_32, %c0_33, %c0_34] : memref<3x3x128x128xbf16, #tpu.memory_space<vmem>>, vector<1x1x128x128xbf16>
    %29 = vector.shape_cast %28 : vector<1x1x128x128xbf16> to vector<128x128xbf16>
    %cst_35 = arith.constant dense<0.000000e+00> : vector<256x128xf32>
    %30 = tpu.matmul %27, %29, %cst_35 {dimension_numbers = #tpu.dot_dimension_numbers<[1], [0], [0], [1], [0, 0, 1, 1], [], []>} : vector<256x128xbf16>, vector<128x128xbf16>, vector<256x128xf32> -> vector<256x128xf32>
    %c0_36 = arith.constant 0 : index
    %c0_37 = arith.constant 0 : index
    %31 = vector.load %arg8[%c0_36, %c0_37] : memref<256x128xf32, #tpu.memory_space<vmem>>, vector<256x128xf32>
    %32 = arith.addf %31, %30 : vector<256x128xf32>
    %c0_38 = arith.constant 0 : index
    %c0_39 = arith.constant 0 : index
    %33 = vector.load %arg8[%c0_38, %c0_39] : memref<256x128xf32, #tpu.memory_space<vmem>>, vector<256x128xf32>
    tpu.vector_store %arg8[%c0_38, %c0_39], %32 {strides = array<i32>} : memref<256x128xf32, #tpu.memory_space<vmem>>, vector<256x128xf32>,
    %34 = vector.extract_strided_slice %19 {offsets = [2, 0, 0], sizes = [16, 16, 128], strides = [1, 1, 1]} : vector<18x16x128xbf16> to vector<16x16x128xbf16>
    %35 = vector.shape_cast %34 : vector<16x16x128xbf16> to vector<256x128xbf16>
    %c2 = arith.constant 2 : index
    %c0_40 = arith.constant 0 : index
    %c0_41 = arith.constant 0 : index
    %c0_42 = arith.constant 0 : index
    %36 = vector.load %arg2[%c2, %c0_40, %c0_41, %c0_42] : memref<3x3x128x128xbf16, #tpu.memory_space<vmem>>, vector<1x1x128x128xbf16>
    %37 = vector.shape_cast %36 : vector<1x1x128x128xbf16> to vector<128x128xbf16>
    %cst_43 = arith.constant dense<0.000000e+00> : vector<256x128xf32>
    %38 = tpu.matmul %35, %37, %cst_43 {dimension_numbers = #tpu.dot_dimension_numbers<[1], [0], [0], [1], [0, 0, 1, 1], [], []>} : vector<256x128xbf16>, vector<128x128xbf16>, vector<256x128xf32> -> vector<256x128xf32>
    %c0_44 = arith.constant 0 : index
    %c0_45 = arith.constant 0 : index
    %39 = vector.load %arg8[%c0_44, %c0_45] : memref<256x128xf32, #tpu.memory_space<vmem>>, vector<256x128xf32>
    %40 = arith.addf %39, %38 : vector<256x128xf32>
    %c0_46 = arith.constant 0 : index
    %c0_47 = arith.constant 0 : index
    %41 = vector.load %arg8[%c0_46, %c0_47] : memref<256x128xf32, #tpu.memory_space<vmem>>, vector<256x128xf32>
    tpu.vector_store %arg8[%c0_46, %c0_47], %40 {strides = array<i32>} : memref<256x128xf32, #tpu.memory_space<vmem>>, vector<256x128xf32>,
    %c0_48 = arith.constant 0 : index
    %c1_49 = arith.constant 1 : index
    %c0_50 = arith.constant 0 : index
    %42 = vector.load %arg7[%c0_48, %c1_49, %c0_50] : memref<18x18x128xbf16, #tpu.memory_space<vmem>>, vector<18x16x128xbf16>
    %43 = vector.extract_strided_slice %42 {offsets = [0, 0, 0], sizes = [16, 16, 128], strides = [1, 1, 1]} : vector<18x16x128xbf16> to vector<16x16x128xbf16>
    %44 = vector.shape_cast %43 : vector<16x16x128xbf16> to vector<256x128xbf16>
    %c0_51 = arith.constant 0 : index
    %c1_52 = arith.constant 1 : index
    %c0_53 = arith.constant 0 : index
    %c0_54 = arith.constant 0 : index
    %45 = vector.load %arg2[%c0_51, %c1_52, %c0_53, %c0_54] : memref<3x3x128x128xbf16, #tpu.memory_space<vmem>>, vector<1x1x128x128xbf16>
    %46 = vector.shape_cast %45 : vector<1x1x128x128xbf16> to vector<128x128xbf16>
    %cst_55 = arith.constant dense<0.000000e+00> : vector<256x128xf32>
    %47 = tpu.matmul %44, %46, %cst_55 {dimension_numbers = #tpu.dot_dimension_numbers<[1], [0], [0], [1], [0, 0, 1, 1], [], []>} : vector<256x128xbf16>, vector<128x128xbf16>, vector<256x128xf32> -> vector<256x128xf32>
    %c0_56 = arith.constant 0 : index
    %c0_57 = arith.constant 0 : index
    %48 = vector.load %arg8[%c0_56, %c0_57] : memref<256x128xf32, #tpu.memory_space<vmem>>, vector<256x128xf32>
    %49 = arith.addf %48, %47 : vector<256x128xf32>
    %c0_58 = arith.constant 0 : index
    %c0_59 = arith.constant 0 : index
    %50 = vector.load %arg8[%c0_58, %c0_59] : memref<256x128xf32, #tpu.memory_space<vmem>>, vector<256x128xf32>
    tpu.vector_store %arg8[%c0_58, %c0_59], %49 {strides = array<i32>} : memref<256x128xf32, #tpu.memory_space<vmem>>, vector<256x128xf32>,
    %51 = vector.extract_strided_slice %42 {offsets = [1, 0, 0], sizes = [16, 16, 128], strides = [1, 1, 1]} : vector<18x16x128xbf16> to vector<16x16x128xbf16>
    %52 = vector.shape_cast %51 : vector<16x16x128xbf16> to vector<256x128xbf16>
    %c1_60 = arith.constant 1 : index
    %c1_61 = arith.constant 1 : index
    %c0_62 = arith.constant 0 : index
    %c0_63 = arith.constant 0 : index
    %53 = vector.load %arg2[%c1_60, %c1_61, %c0_62, %c0_63] : memref<3x3x128x128xbf16, #tpu.memory_space<vmem>>, vector<1x1x128x128xbf16>
    %54 = vector.shape_cast %53 : vector<1x1x128x128xbf16> to vector<128x128xbf16>
    %cst_64 = arith.constant dense<0.000000e+00> : vector<256x128xf32>
    %55 = tpu.matmul %52, %54, %cst_64 {dimension_numbers = #tpu.dot_dimension_numbers<[1], [0], [0], [1], [0, 0, 1, 1], [], []>} : vector<256x128xbf16>, vector<128x128xbf16>, vector<256x128xf32> -> vector<256x128xf32>
    %c0_65 = arith.constant 0 : index
    %c0_66 = arith.constant 0 : index
    %56 = vector.load %arg8[%c0_65, %c0_66] : memref<256x128xf32, #tpu.memory_space<vmem>>, vector<256x128xf32>
    %57 = arith.addf %56, %55 : vector<256x128xf32>
    %c0_67 = arith.constant 0 : index
    %c0_68 = arith.constant 0 : index
    %58 = vector.load %arg8[%c0_67, %c0_68] : memref<256x128xf32, #tpu.memory_space<vmem>>, vector<256x128xf32>
    tpu.vector_store %arg8[%c0_67, %c0_68], %57 {strides = array<i32>} : memref<256x128xf32, #tpu.memory_space<vmem>>, vector<256x128xf32>,
    %59 = vector.extract_strided_slice %42 {offsets = [2, 0, 0], sizes = [16, 16, 128], strides = [1, 1, 1]} : vector<18x16x128xbf16> to vector<16x16x128xbf16>
    %60 = vector.shape_cast %59 : vector<16x16x128xbf16> to vector<256x128xbf16>
    %c2_69 = arith.constant 2 : index
    %c1_70 = arith.constant 1 : index
    %c0_71 = arith.constant 0 : index
    %c0_72 = arith.constant 0 : index
    %61 = vector.load %arg2[%c2_69, %c1_70, %c0_71, %c0_72] : memref<3x3x128x128xbf16, #tpu.memory_space<vmem>>, vector<1x1x128x128xbf16>
    %62 = vector.shape_cast %61 : vector<1x1x128x128xbf16> to vector<128x128xbf16>
    %cst_73 = arith.constant dense<0.000000e+00> : vector<256x128xf32>
    %63 = tpu.matmul %60, %62, %cst_73 {dimension_numbers = #tpu.dot_dimension_numbers<[1], [0], [0], [1], [0, 0, 1, 1], [], []>} : vector<256x128xbf16>, vector<128x128xbf16>, vector<256x128xf32> -> vector<256x128xf32>
    %c0_74 = arith.constant 0 : index
    %c0_75 = arith.constant 0 : index
    %64 = vector.load %arg8[%c0_74, %c0_75] : memref<256x128xf32, #tpu.memory_space<vmem>>, vector<256x128xf32>
    %65 = arith.addf %64, %63 : vector<256x128xf32>
    %c0_76 = arith.constant 0 : index
    %c0_77 = arith.constant 0 : index
    %66 = vector.load %arg8[%c0_76, %c0_77] : memref<256x128xf32, #tpu.memory_space<vmem>>, vector<256x128xf32>
    tpu.vector_store %arg8[%c0_76, %c0_77], %65 {strides = array<i32>} : memref<256x128xf32, #tpu.memory_space<vmem>>, vector<256x128xf32>,
    %c0_78 = arith.constant 0 : index
    %c2_79 = arith.constant 2 : index
    %c0_80 = arith.constant 0 : index
    %67 = vector.load %arg7[%c0_78, %c2_79, %c0_80] : memref<18x18x128xbf16, #tpu.memory_space<vmem>>, vector<18x16x128xbf16>
    %68 = vector.extract_strided_slice %67 {offsets = [0, 0, 0], sizes = [16, 16, 128], strides = [1, 1, 1]} : vector<18x16x128xbf16> to vector<16x16x128xbf16>
    %69 = vector.shape_cast %68 : vector<16x16x128xbf16> to vector<256x128xbf16>
    %c0_81 = arith.constant 0 : index
    %c2_82 = arith.constant 2 : index
    %c0_83 = arith.constant 0 : index
    %c0_84 = arith.constant 0 : index
    %70 = vector.load %arg2[%c0_81, %c2_82, %c0_83, %c0_84] : memref<3x3x128x128xbf16, #tpu.memory_space<vmem>>, vector<1x1x128x128xbf16>
    %71 = vector.shape_cast %70 : vector<1x1x128x128xbf16> to vector<128x128xbf16>
    %cst_85 = arith.constant dense<0.000000e+00> : vector<256x128xf32>
    %72 = tpu.matmul %69, %71, %cst_85 {dimension_numbers = #tpu.dot_dimension_numbers<[1], [0], [0], [1], [0, 0, 1, 1], [], []>} : vector<256x128xbf16>, vector<128x128xbf16>, vector<256x128xf32> -> vector<256x128xf32>
    %c0_86 = arith.constant 0 : index
    %c0_87 = arith.constant 0 : index
    %73 = vector.load %arg8[%c0_86, %c0_87] : memref<256x128xf32, #tpu.memory_space<vmem>>, vector<256x128xf32>
    %74 = arith.addf %73, %72 : vector<256x128xf32>
    %c0_88 = arith.constant 0 : index
    %c0_89 = arith.constant 0 : index
    %75 = vector.load %arg8[%c0_88, %c0_89] : memref<256x128xf32, #tpu.memory_space<vmem>>, vector<256x128xf32>
    tpu.vector_store %arg8[%c0_88, %c0_89], %74 {strides = array<i32>} : memref<256x128xf32, #tpu.memory_space<vmem>>, vector<256x128xf32>,
    %76 = vector.extract_strided_slice %67 {offsets = [1, 0, 0], sizes = [16, 16, 128], strides = [1, 1, 1]} : vector<18x16x128xbf16> to vector<16x16x128xbf16>
    %77 = vector.shape_cast %76 : vector<16x16x128xbf16> to vector<256x128xbf16>
    %c1_90 = arith.constant 1 : index
    %c2_91 = arith.constant 2 : index
    %c0_92 = arith.constant 0 : index
    %c0_93 = arith.constant 0 : index
    %78 = vector.load %arg2[%c1_90, %c2_91, %c0_92, %c0_93] : memref<3x3x128x128xbf16, #tpu.memory_space<vmem>>, vector<1x1x128x128xbf16>
    %79 = vector.shape_cast %78 : vector<1x1x128x128xbf16> to vector<128x128xbf16>
    %cst_94 = arith.constant dense<0.000000e+00> : vector<256x128xf32>
    %80 = tpu.matmul %77, %79, %cst_94 {dimension_numbers = #tpu.dot_dimension_numbers<[1], [0], [0], [1], [0, 0, 1, 1], [], []>} : vector<256x128xbf16>, vector<128x128xbf16>, vector<256x128xf32> -> vector<256x128xf32>
    %c0_95 = arith.constant 0 : index
    %c0_96 = arith.constant 0 : index
    %81 = vector.load %arg8[%c0_95, %c0_96] : memref<256x128xf32, #tpu.memory_space<vmem>>, vector<256x128xf32>
    %82 = arith.addf %81, %80 : vector<256x128xf32>
    %c0_97 = arith.constant 0 : index
    %c0_98 = arith.constant 0 : index
    %83 = vector.load %arg8[%c0_97, %c0_98] : memref<256x128xf32, #tpu.memory_space<vmem>>, vector<256x128xf32>
    tpu.vector_store %arg8[%c0_97, %c0_98], %82 {strides = array<i32>} : memref<256x128xf32, #tpu.memory_space<vmem>>, vector<256x128xf32>,
    %84 = vector.extract_strided_slice %67 {offsets = [2, 0, 0], sizes = [16, 16, 128], strides = [1, 1, 1]} : vector<18x16x128xbf16> to vector<16x16x128xbf16>
    %85 = vector.shape_cast %84 : vector<16x16x128xbf16> to vector<256x128xbf16>
    %c2_99 = arith.constant 2 : index
    %c2_100 = arith.constant 2 : index
    %c0_101 = arith.constant 0 : index
    %c0_102 = arith.constant 0 : index
    %86 = vector.load %arg2[%c2_99, %c2_100, %c0_101, %c0_102] : memref<3x3x128x128xbf16, #tpu.memory_space<vmem>>, vector<1x1x128x128xbf16>
    %87 = vector.shape_cast %86 : vector<1x1x128x128xbf16> to vector<128x128xbf16>
    %cst_103 = arith.constant dense<0.000000e+00> : vector<256x128xf32>
    %88 = tpu.matmul %85, %87, %cst_103 {dimension_numbers = #tpu.dot_dimension_numbers<[1], [0], [0], [1], [0, 0, 1, 1], [], []>} : vector<256x128xbf16>, vector<128x128xbf16>, vector<256x128xf32> -> vector<256x128xf32>
    %c0_104 = arith.constant 0 : index
    %c0_105 = arith.constant 0 : index
    %89 = vector.load %arg8[%c0_104, %c0_105] : memref<256x128xf32, #tpu.memory_space<vmem>>, vector<256x128xf32>
    %90 = arith.addf %89, %88 : vector<256x128xf32>
    %c0_106 = arith.constant 0 : index
    %c0_107 = arith.constant 0 : index
    %91 = vector.load %arg8[%c0_106, %c0_107] : memref<256x128xf32, #tpu.memory_space<vmem>>, vector<256x128xf32>
    tpu.vector_store %arg8[%c0_106, %c0_107], %90 {strides = array<i32>} : memref<256x128xf32, #tpu.memory_space<vmem>>, vector<256x128xf32>,
    %c0_108 = arith.constant 0 : index
    %c0_109 = arith.constant 0 : index
    %92 = vector.load %arg8[%c0_108, %c0_109] : memref<256x128xf32, #tpu.memory_space<vmem>>, vector<256x128xf32>
    %93 = vector.shape_cast %92 : vector<256x128xf32> to vector<16x16x128xf32>
    %94 = arith.truncf %93 : vector<16x16x128xf32> to vector<16x16x128xbf16>
    %c0_110 = arith.constant 0 : index
    %c0_111 = arith.constant 0 : index
    %c0_112 = arith.constant 0 : index
    %c0_113 = arith.constant 0 : index
    %95 = vector.load %arg5[%c0_110, %c0_111, %c0_112, %c0_113] : memref<1x16x16x128xbf16, #tpu.memory_space<vmem>>, vector<1x16x16x128xbf16>
    %96 = vector.shape_cast %95 : vector<1x16x16x128xbf16> to vector<16x16x128xbf16>
    %97 = vector.shape_cast %94 : vector<16x16x128xbf16> to vector<1x16x16x128xbf16>
    tpu.vector_store %arg5[%c0_110, %c0_111, %c0_112, %c0_113], %97 {strides = array<i32>} : memref<1x16x16x128xbf16, #tpu.memory_space<vmem>>, vector<1x16x16x128xbf16>,
    %cst_114 = arith.constant dense<0.000000e+00> : vector<128xf32>
    %98 = vector.multi_reduction <add>, %92, %cst_114 [0] : vector<256x128xf32> to vector<128xf32>
    %99 = vector.shape_cast %98 : vector<128xf32> to vector<1x128xf32>
    %c0_115 = arith.constant 0 : index
    %c0_116 = arith.constant 0 : index
    %c0_117 = arith.constant 0 : index
    %100 = vector.load %arg6[%c0_115, %c0_116, %c0_117] : memref<1x2x128xf32, #tpu.memory_space<vmem>>, vector<1x1x128xf32>
    %101 = vector.shape_cast %100 : vector<1x1x128xf32> to vector<1x128xf32>
    %102 = vector.shape_cast %99 : vector<1x128xf32> to vector<1x1x128xf32>
    tpu.vector_store %arg6[%c0_115, %c0_116, %c0_117], %102 {strides = array<i32>} : memref<1x2x128xf32, #tpu.memory_space<vmem>>, vector<1x1x128xf32>,
    %103 = arith.mulf %92, %92 : vector<256x128xf32>
    %cst_118 = arith.constant dense<0.000000e+00> : vector<128xf32>
    %104 = vector.multi_reduction <add>, %103, %cst_118 [0] : vector<256x128xf32> to vector<128xf32>
    %105 = vector.shape_cast %104 : vector<128xf32> to vector<1x128xf32>
    %c0_119 = arith.constant 0 : index
    %c1_120 = arith.constant 1 : index
    %c0_121 = arith.constant 0 : index
    %106 = vector.load %arg6[%c0_119, %c1_120, %c0_121] : memref<1x2x128xf32, #tpu.memory_space<vmem>>, vector<1x1x128xf32>
    %107 = vector.shape_cast %106 : vector<1x1x128xf32> to vector<1x128xf32>
    %108 = vector.shape_cast %105 : vector<1x128xf32> to vector<1x1x128xf32>
    tpu.vector_store %arg6[%c0_119, %c1_120, %c0_121], %108 {strides = array<i32>} : memref<1x2x128xf32, #tpu.memory_space<vmem>>, vector<1x1x128xf32>,
    return
  }
  func.func @transform_0(%arg0: i32) -> (i32, i32, i32, i32) {
    %c0_i32 = arith.constant 0 : i32
    %c0_i32_0 = arith.constant 0 : i32
    %c0_i32_1 = arith.constant 0 : i32
    %c0_i32_2 = arith.constant 0 : i32
    return %arg0, %c0_i32, %c0_i32_0, %c0_i32_1 : i32, i32, i32, i32
  }
  func.func @transform_1(%arg0: i32) -> (i32, i32, i32, i32) {
    %c0_i32 = arith.constant 0 : i32
    %c0_i32_0 = arith.constant 0 : i32
    %c0_i32_1 = arith.constant 0 : i32
    %c0_i32_2 = arith.constant 0 : i32
    %c0_i32_3 = arith.constant 0 : i32
    return %c0_i32, %c0_i32_0, %c0_i32_1, %c0_i32_2 : i32, i32, i32, i32
  }
  func.func @transform_2(%arg0: i32) -> (i32, i32) {
    %c0_i32 = arith.constant 0 : i32
    %c0_i32_0 = arith.constant 0 : i32
    %c0_i32_1 = arith.constant 0 : i32
    return %c0_i32, %c0_i32_0 : i32, i32
  }
  func.func @transform_3(%arg0: i32) -> (i32, i32) {
    %c0_i32 = arith.constant 0 : i32
    %c0_i32_0 = arith.constant 0 : i32
    %c0_i32_1 = arith.constant 0 : i32
    return %c0_i32, %c0_i32_0 : i32, i32
  }
  func.func @transform_4(%arg0: i32) -> (i32, i32, i32, i32) {
    %c0_i32 = arith.constant 0 : i32
    %c0_i32_0 = arith.constant 0 : i32
    %c0_i32_1 = arith.constant 0 : i32
    %c0_i32_2 = arith.constant 0 : i32
    return %arg0, %c0_i32, %c0_i32_0, %c0_i32_1 : i32, i32, i32, i32
  }
  func.func @transform_5(%arg0: i32) -> (i32, i32, i32) {
    %c0_i32 = arith.constant 0 : i32
    %c0_i32_0 = arith.constant 0 : i32
    %c0_i32_1 = arith.constant 0 : i32
    return %arg0, %c0_i32, %c0_i32_0 : i32, i32, i32
  }
}

module attributes {stable_mosaic.version = 11 : i64} {
  func.func @_bn_relu_kernel(%arg0: i32, %arg1: memref<1x16x16x128xbf16, #tpu.memory_space<vmem>>, %arg2: memref<1x128xf32, #tpu.memory_space<vmem>>, %arg3: memref<1x128xf32, #tpu.memory_space<vmem>>, %arg4: memref<1x16x16x128xf32, #tpu.memory_space<vmem>>) attributes {dimension_semantics = [#tpu.dimension_semantics<parallel>], iteration_bounds = array<i64: 2>, scalar_prefetch = 0 : i64, scratch_operands = 0 : i64, tpu.core_type = #tpu.core_type<tc>, window_params = [{transform_indices = @transform_0, window_bounds = array<i64: 1, 16, 16, 128>}, {pipeline_mode = #tpu.pipeline_mode<synchronous>, transform_indices = @transform_1, window_bounds = array<i64: 1, 128>}, {pipeline_mode = #tpu.pipeline_mode<synchronous>, transform_indices = @transform_2, window_bounds = array<i64: 1, 128>}, {transform_indices = @transform_3, window_bounds = array<i64: 1, 16, 16, 128>}]} {
    %c0 = arith.constant 0 : index
    %c0_0 = arith.constant 0 : index
    %c0_1 = arith.constant 0 : index
    %c0_2 = arith.constant 0 : index
    %0 = vector.load %arg1[%c0, %c0_0, %c0_1, %c0_2] : memref<1x16x16x128xbf16, #tpu.memory_space<vmem>>, vector<1x16x16x128xbf16>
    %1 = vector.shape_cast %0 : vector<1x16x16x128xbf16> to vector<16x16x128xbf16>
    %2 = arith.extf %1 : vector<16x16x128xbf16> to vector<16x16x128xf32>
    %c0_3 = arith.constant 0 : index
    %c0_4 = arith.constant 0 : index
    %3 = vector.load %arg2[%c0_3, %c0_4] : memref<1x128xf32, #tpu.memory_space<vmem>>, vector<1x128xf32>
    %4 = vector.shape_cast %3 : vector<1x128xf32> to vector<1x1x128xf32>
    %5 = vector.broadcast %4 : vector<1x1x128xf32> to vector<16x16x128xf32>
    %6 = arith.mulf %2, %5 : vector<16x16x128xf32>
    %c0_5 = arith.constant 0 : index
    %c0_6 = arith.constant 0 : index
    %7 = vector.load %arg3[%c0_5, %c0_6] : memref<1x128xf32, #tpu.memory_space<vmem>>, vector<1x128xf32>
    %8 = vector.shape_cast %7 : vector<1x128xf32> to vector<1x1x128xf32>
    %9 = vector.broadcast %8 : vector<1x1x128xf32> to vector<16x16x128xf32>
    %10 = arith.addf %6, %9 : vector<16x16x128xf32>
    %cst = arith.constant 0.000000e+00 : f32
    %11 = vector.broadcast %cst : f32 to vector<16x16x128xf32>
    %12 = arith.maximumf %10, %11 : vector<16x16x128xf32>
    %c0_7 = arith.constant 0 : index
    %c0_8 = arith.constant 0 : index
    %c0_9 = arith.constant 0 : index
    %c0_10 = arith.constant 0 : index
    %13 = vector.load %arg4[%c0_7, %c0_8, %c0_9, %c0_10] : memref<1x16x16x128xf32, #tpu.memory_space<vmem>>, vector<1x16x16x128xf32>
    %14 = vector.shape_cast %13 : vector<1x16x16x128xf32> to vector<16x16x128xf32>
    %15 = vector.shape_cast %12 : vector<16x16x128xf32> to vector<1x16x16x128xf32>
    tpu.vector_store %arg4[%c0_7, %c0_8, %c0_9, %c0_10], %15 {strides = array<i32>} : memref<1x16x16x128xf32, #tpu.memory_space<vmem>>, vector<1x16x16x128xf32>,
    return
  }
  func.func @transform_0(%arg0: i32) -> (i32, i32, i32, i32) {
    %c0_i32 = arith.constant 0 : i32
    %c0_i32_0 = arith.constant 0 : i32
    %c0_i32_1 = arith.constant 0 : i32
    %c0_i32_2 = arith.constant 0 : i32
    return %arg0, %c0_i32, %c0_i32_0, %c0_i32_1 : i32, i32, i32, i32
  }
  func.func @transform_1(%arg0: i32) -> (i32, i32) {
    %c0_i32 = arith.constant 0 : i32
    %c0_i32_0 = arith.constant 0 : i32
    %c0_i32_1 = arith.constant 0 : i32
    return %c0_i32, %c0_i32_0 : i32, i32
  }
  func.func @transform_2(%arg0: i32) -> (i32, i32) {
    %c0_i32 = arith.constant 0 : i32
    %c0_i32_0 = arith.constant 0 : i32
    %c0_i32_1 = arith.constant 0 : i32
    return %c0_i32, %c0_i32_0 : i32, i32
  }
  func.func @transform_3(%arg0: i32) -> (i32, i32, i32, i32) {
    %c0_i32 = arith.constant 0 : i32
    %c0_i32_0 = arith.constant 0 : i32
    %c0_i32_1 = arith.constant 0 : i32
    %c0_i32_2 = arith.constant 0 : i32
    return %arg0, %c0_i32, %c0_i32_0, %c0_i32_1 : i32, i32, i32, i32
  }
}

module attributes {stable_mosaic.version = 11 : i64} {
  func.func @_conv_bn_stats_kernel(%arg0: i32, %arg1: memref<1x16x16x128xbf16, #tpu.memory_space<vmem>>, %arg2: memref<3x3x128x128xbf16, #tpu.memory_space<vmem>>, %arg3: memref<1x128xf32, #tpu.memory_space<vmem>>, %arg4: memref<1x128xf32, #tpu.memory_space<vmem>>, %arg5: memref<1x16x16x128xbf16, #tpu.memory_space<vmem>>, %arg6: memref<1x2x128xf32, #tpu.memory_space<vmem>>, %arg7: memref<18x18x128xbf16, #tpu.memory_space<vmem>>, %arg8: memref<256x128xf32, #tpu.memory_space<vmem>>) attributes {dimension_semantics = [#tpu.dimension_semantics<parallel>], iteration_bounds = array<i64: 2>, scalar_prefetch = 0 : i64, scratch_operands = 2 : i64, tpu.core_type = #tpu.core_type<tc>, window_params = [{transform_indices = @transform_0, window_bounds = array<i64: 1, 16, 16, 128>}, {pipeline_mode = #tpu.pipeline_mode<synchronous>, transform_indices = @transform_1, window_bounds = array<i64: 3, 3, 128, 128>}, {pipeline_mode = #tpu.pipeline_mode<synchronous>, transform_indices = @transform_2, window_bounds = array<i64: 1, 128>}, {pipeline_mode = #tpu.pipeline_mode<synchronous>, transform_indices = @transform_3, window_bounds = array<i64: 1, 128>}, {transform_indices = @transform_4, window_bounds = array<i64: 1, 16, 16, 128>}, {transform_indices = @transform_5, window_bounds = array<i64: 1, 2, 128>}]} {
    %c0 = arith.constant 0 : index
    %c0_0 = arith.constant 0 : index
    %c0_1 = arith.constant 0 : index
    %c0_2 = arith.constant 0 : index
    %0 = vector.load %arg1[%c0, %c0_0, %c0_1, %c0_2] : memref<1x16x16x128xbf16, #tpu.memory_space<vmem>>, vector<1x16x16x128xbf16>
    %1 = vector.shape_cast %0 : vector<1x16x16x128xbf16> to vector<16x16x128xbf16>
    %2 = arith.extf %1 : vector<16x16x128xbf16> to vector<16x16x128xf32>
    %c0_3 = arith.constant 0 : index
    %c0_4 = arith.constant 0 : index
    %3 = vector.load %arg3[%c0_3, %c0_4] : memref<1x128xf32, #tpu.memory_space<vmem>>, vector<1x128xf32>
    %4 = vector.shape_cast %3 : vector<1x128xf32> to vector<1x1x128xf32>
    %5 = vector.broadcast %4 : vector<1x1x128xf32> to vector<16x16x128xf32>
    %6 = arith.mulf %2, %5 : vector<16x16x128xf32>
    %c0_5 = arith.constant 0 : index
    %c0_6 = arith.constant 0 : index
    %7 = vector.load %arg4[%c0_5, %c0_6] : memref<1x128xf32, #tpu.memory_space<vmem>>, vector<1x128xf32>
    %8 = vector.shape_cast %7 : vector<1x128xf32> to vector<1x1x128xf32>
    %9 = vector.broadcast %8 : vector<1x1x128xf32> to vector<16x16x128xf32>
    %10 = arith.addf %6, %9 : vector<16x16x128xf32>
    %cst = arith.constant 0.000000e+00 : f32
    %11 = vector.broadcast %cst : f32 to vector<16x16x128xf32>
    %12 = arith.maximumf %10, %11 : vector<16x16x128xf32>
    %cst_7 = arith.constant 0.000000e+00 : bf16
    %13 = vector.broadcast %cst_7 : bf16 to vector<1x18x128xbf16>
    %cst_8 = arith.constant 0.000000e+00 : bf16
    %14 = vector.broadcast %cst_8 : bf16 to vector<18x1x128xbf16>
    %c0_9 = arith.constant 0 : index
    %c0_10 = arith.constant 0 : index
    %c0_11 = arith.constant 0 : index
    %15 = vector.load %arg7[%c0_9, %c0_10, %c0_11] : memref<18x18x128xbf16, #tpu.memory_space<vmem>>, vector<1x18x128xbf16>
    tpu.vector_store %arg7[%c0_9, %c0_10, %c0_11], %13 {strides = array<i32>} : memref<18x18x128xbf16, #tpu.memory_space<vmem>>, vector<1x18x128xbf16>,
    %c17 = arith.constant 17 : index
    %c0_12 = arith.constant 0 : index
    %c0_13 = arith.constant 0 : index
    %16 = vector.load %arg7[%c17, %c0_12, %c0_13] : memref<18x18x128xbf16, #tpu.memory_space<vmem>>, vector<1x18x128xbf16>
    tpu.vector_store %arg7[%c17, %c0_12, %c0_13], %13 {strides = array<i32>} : memref<18x18x128xbf16, #tpu.memory_space<vmem>>, vector<1x18x128xbf16>,
    %c0_14 = arith.constant 0 : index
    %c0_15 = arith.constant 0 : index
    %c0_16 = arith.constant 0 : index
    %17 = vector.load %arg7[%c0_14, %c0_15, %c0_16] : memref<18x18x128xbf16, #tpu.memory_space<vmem>>, vector<18x1x128xbf16>
    tpu.vector_store %arg7[%c0_14, %c0_15, %c0_16], %14 {strides = array<i32>} : memref<18x18x128xbf16, #tpu.memory_space<vmem>>, vector<18x1x128xbf16>,
    %c0_17 = arith.constant 0 : index
    %c17_18 = arith.constant 17 : index
    %c0_19 = arith.constant 0 : index
    %18 = vector.load %arg7[%c0_17, %c17_18, %c0_19] : memref<18x18x128xbf16, #tpu.memory_space<vmem>>, vector<18x1x128xbf16>
    tpu.vector_store %arg7[%c0_17, %c17_18, %c0_19], %14 {strides = array<i32>} : memref<18x18x128xbf16, #tpu.memory_space<vmem>>, vector<18x1x128xbf16>,
    %19 = arith.truncf %12 : vector<16x16x128xf32> to vector<16x16x128xbf16>
    %c1 = arith.constant 1 : index
    %c1_20 = arith.constant 1 : index
    %c0_21 = arith.constant 0 : index
    %20 = vector.load %arg7[%c1, %c1_20, %c0_21] : memref<18x18x128xbf16, #tpu.memory_space<vmem>>, vector<16x16x128xbf16>
    tpu.vector_store %arg7[%c1, %c1_20, %c0_21], %19 {strides = array<i32>} : memref<18x18x128xbf16, #tpu.memory_space<vmem>>, vector<16x16x128xbf16>,
    %c0_22 = arith.constant 0 : index
    %c0_23 = arith.constant 0 : index
    %c0_24 = arith.constant 0 : index
    %21 = vector.load %arg7[%c0_22, %c0_23, %c0_24] : memref<18x18x128xbf16, #tpu.memory_space<vmem>>, vector<18x16x128xbf16>
    %22 = vector.extract_strided_slice %21 {offsets = [0, 0, 0], sizes = [16, 16, 128], strides = [1, 1, 1]} : vector<18x16x128xbf16> to vector<16x16x128xbf16>
    %23 = vector.shape_cast %22 : vector<16x16x128xbf16> to vector<256x128xbf16>
    %c0_25 = arith.constant 0 : index
    %c0_26 = arith.constant 0 : index
    %c0_27 = arith.constant 0 : index
    %c0_28 = arith.constant 0 : index
    %24 = vector.load %arg2[%c0_25, %c0_26, %c0_27, %c0_28] : memref<3x3x128x128xbf16, #tpu.memory_space<vmem>>, vector<1x1x128x128xbf16>
    %25 = vector.shape_cast %24 : vector<1x1x128x128xbf16> to vector<128x128xbf16>
    %cst_29 = arith.constant dense<0.000000e+00> : vector<256x128xf32>
    %26 = tpu.matmul %23, %25, %cst_29 {dimension_numbers = #tpu.dot_dimension_numbers<[1], [0], [0], [1], [0, 0, 1, 1], [], []>} : vector<256x128xbf16>, vector<128x128xbf16>, vector<256x128xf32> -> vector<256x128xf32>
    %c0_30 = arith.constant 0 : index
    %c0_31 = arith.constant 0 : index
    %27 = vector.load %arg8[%c0_30, %c0_31] : memref<256x128xf32, #tpu.memory_space<vmem>>, vector<256x128xf32>
    tpu.vector_store %arg8[%c0_30, %c0_31], %26 {strides = array<i32>} : memref<256x128xf32, #tpu.memory_space<vmem>>, vector<256x128xf32>,
    %28 = vector.extract_strided_slice %21 {offsets = [1, 0, 0], sizes = [16, 16, 128], strides = [1, 1, 1]} : vector<18x16x128xbf16> to vector<16x16x128xbf16>
    %29 = vector.shape_cast %28 : vector<16x16x128xbf16> to vector<256x128xbf16>
    %c1_32 = arith.constant 1 : index
    %c0_33 = arith.constant 0 : index
    %c0_34 = arith.constant 0 : index
    %c0_35 = arith.constant 0 : index
    %30 = vector.load %arg2[%c1_32, %c0_33, %c0_34, %c0_35] : memref<3x3x128x128xbf16, #tpu.memory_space<vmem>>, vector<1x1x128x128xbf16>
    %31 = vector.shape_cast %30 : vector<1x1x128x128xbf16> to vector<128x128xbf16>
    %cst_36 = arith.constant dense<0.000000e+00> : vector<256x128xf32>
    %32 = tpu.matmul %29, %31, %cst_36 {dimension_numbers = #tpu.dot_dimension_numbers<[1], [0], [0], [1], [0, 0, 1, 1], [], []>} : vector<256x128xbf16>, vector<128x128xbf16>, vector<256x128xf32> -> vector<256x128xf32>
    %c0_37 = arith.constant 0 : index
    %c0_38 = arith.constant 0 : index
    %33 = vector.load %arg8[%c0_37, %c0_38] : memref<256x128xf32, #tpu.memory_space<vmem>>, vector<256x128xf32>
    %34 = arith.addf %33, %32 : vector<256x128xf32>
    %c0_39 = arith.constant 0 : index
    %c0_40 = arith.constant 0 : index
    %35 = vector.load %arg8[%c0_39, %c0_40] : memref<256x128xf32, #tpu.memory_space<vmem>>, vector<256x128xf32>
    tpu.vector_store %arg8[%c0_39, %c0_40], %34 {strides = array<i32>} : memref<256x128xf32, #tpu.memory_space<vmem>>, vector<256x128xf32>,
    %36 = vector.extract_strided_slice %21 {offsets = [2, 0, 0], sizes = [16, 16, 128], strides = [1, 1, 1]} : vector<18x16x128xbf16> to vector<16x16x128xbf16>
    %37 = vector.shape_cast %36 : vector<16x16x128xbf16> to vector<256x128xbf16>
    %c2 = arith.constant 2 : index
    %c0_41 = arith.constant 0 : index
    %c0_42 = arith.constant 0 : index
    %c0_43 = arith.constant 0 : index
    %38 = vector.load %arg2[%c2, %c0_41, %c0_42, %c0_43] : memref<3x3x128x128xbf16, #tpu.memory_space<vmem>>, vector<1x1x128x128xbf16>
    %39 = vector.shape_cast %38 : vector<1x1x128x128xbf16> to vector<128x128xbf16>
    %cst_44 = arith.constant dense<0.000000e+00> : vector<256x128xf32>
    %40 = tpu.matmul %37, %39, %cst_44 {dimension_numbers = #tpu.dot_dimension_numbers<[1], [0], [0], [1], [0, 0, 1, 1], [], []>} : vector<256x128xbf16>, vector<128x128xbf16>, vector<256x128xf32> -> vector<256x128xf32>
    %c0_45 = arith.constant 0 : index
    %c0_46 = arith.constant 0 : index
    %41 = vector.load %arg8[%c0_45, %c0_46] : memref<256x128xf32, #tpu.memory_space<vmem>>, vector<256x128xf32>
    %42 = arith.addf %41, %40 : vector<256x128xf32>
    %c0_47 = arith.constant 0 : index
    %c0_48 = arith.constant 0 : index
    %43 = vector.load %arg8[%c0_47, %c0_48] : memref<256x128xf32, #tpu.memory_space<vmem>>, vector<256x128xf32>
    tpu.vector_store %arg8[%c0_47, %c0_48], %42 {strides = array<i32>} : memref<256x128xf32, #tpu.memory_space<vmem>>, vector<256x128xf32>,
    %c0_49 = arith.constant 0 : index
    %c1_50 = arith.constant 1 : index
    %c0_51 = arith.constant 0 : index
    %44 = vector.load %arg7[%c0_49, %c1_50, %c0_51] : memref<18x18x128xbf16, #tpu.memory_space<vmem>>, vector<18x16x128xbf16>
    %45 = vector.extract_strided_slice %44 {offsets = [0, 0, 0], sizes = [16, 16, 128], strides = [1, 1, 1]} : vector<18x16x128xbf16> to vector<16x16x128xbf16>
    %46 = vector.shape_cast %45 : vector<16x16x128xbf16> to vector<256x128xbf16>
    %c0_52 = arith.constant 0 : index
    %c1_53 = arith.constant 1 : index
    %c0_54 = arith.constant 0 : index
    %c0_55 = arith.constant 0 : index
    %47 = vector.load %arg2[%c0_52, %c1_53, %c0_54, %c0_55] : memref<3x3x128x128xbf16, #tpu.memory_space<vmem>>, vector<1x1x128x128xbf16>
    %48 = vector.shape_cast %47 : vector<1x1x128x128xbf16> to vector<128x128xbf16>
    %cst_56 = arith.constant dense<0.000000e+00> : vector<256x128xf32>
    %49 = tpu.matmul %46, %48, %cst_56 {dimension_numbers = #tpu.dot_dimension_numbers<[1], [0], [0], [1], [0, 0, 1, 1], [], []>} : vector<256x128xbf16>, vector<128x128xbf16>, vector<256x128xf32> -> vector<256x128xf32>
    %c0_57 = arith.constant 0 : index
    %c0_58 = arith.constant 0 : index
    %50 = vector.load %arg8[%c0_57, %c0_58] : memref<256x128xf32, #tpu.memory_space<vmem>>, vector<256x128xf32>
    %51 = arith.addf %50, %49 : vector<256x128xf32>
    %c0_59 = arith.constant 0 : index
    %c0_60 = arith.constant 0 : index
    %52 = vector.load %arg8[%c0_59, %c0_60] : memref<256x128xf32, #tpu.memory_space<vmem>>, vector<256x128xf32>
    tpu.vector_store %arg8[%c0_59, %c0_60], %51 {strides = array<i32>} : memref<256x128xf32, #tpu.memory_space<vmem>>, vector<256x128xf32>,
    %53 = vector.extract_strided_slice %44 {offsets = [1, 0, 0], sizes = [16, 16, 128], strides = [1, 1, 1]} : vector<18x16x128xbf16> to vector<16x16x128xbf16>
    %54 = vector.shape_cast %53 : vector<16x16x128xbf16> to vector<256x128xbf16>
    %c1_61 = arith.constant 1 : index
    %c1_62 = arith.constant 1 : index
    %c0_63 = arith.constant 0 : index
    %c0_64 = arith.constant 0 : index
    %55 = vector.load %arg2[%c1_61, %c1_62, %c0_63, %c0_64] : memref<3x3x128x128xbf16, #tpu.memory_space<vmem>>, vector<1x1x128x128xbf16>
    %56 = vector.shape_cast %55 : vector<1x1x128x128xbf16> to vector<128x128xbf16>
    %cst_65 = arith.constant dense<0.000000e+00> : vector<256x128xf32>
    %57 = tpu.matmul %54, %56, %cst_65 {dimension_numbers = #tpu.dot_dimension_numbers<[1], [0], [0], [1], [0, 0, 1, 1], [], []>} : vector<256x128xbf16>, vector<128x128xbf16>, vector<256x128xf32> -> vector<256x128xf32>
    %c0_66 = arith.constant 0 : index
    %c0_67 = arith.constant 0 : index
    %58 = vector.load %arg8[%c0_66, %c0_67] : memref<256x128xf32, #tpu.memory_space<vmem>>, vector<256x128xf32>
    %59 = arith.addf %58, %57 : vector<256x128xf32>
    %c0_68 = arith.constant 0 : index
    %c0_69 = arith.constant 0 : index
    %60 = vector.load %arg8[%c0_68, %c0_69] : memref<256x128xf32, #tpu.memory_space<vmem>>, vector<256x128xf32>
    tpu.vector_store %arg8[%c0_68, %c0_69], %59 {strides = array<i32>} : memref<256x128xf32, #tpu.memory_space<vmem>>, vector<256x128xf32>,
    %61 = vector.extract_strided_slice %44 {offsets = [2, 0, 0], sizes = [16, 16, 128], strides = [1, 1, 1]} : vector<18x16x128xbf16> to vector<16x16x128xbf16>
    %62 = vector.shape_cast %61 : vector<16x16x128xbf16> to vector<256x128xbf16>
    %c2_70 = arith.constant 2 : index
    %c1_71 = arith.constant 1 : index
    %c0_72 = arith.constant 0 : index
    %c0_73 = arith.constant 0 : index
    %63 = vector.load %arg2[%c2_70, %c1_71, %c0_72, %c0_73] : memref<3x3x128x128xbf16, #tpu.memory_space<vmem>>, vector<1x1x128x128xbf16>
    %64 = vector.shape_cast %63 : vector<1x1x128x128xbf16> to vector<128x128xbf16>
    %cst_74 = arith.constant dense<0.000000e+00> : vector<256x128xf32>
    %65 = tpu.matmul %62, %64, %cst_74 {dimension_numbers = #tpu.dot_dimension_numbers<[1], [0], [0], [1], [0, 0, 1, 1], [], []>} : vector<256x128xbf16>, vector<128x128xbf16>, vector<256x128xf32> -> vector<256x128xf32>
    %c0_75 = arith.constant 0 : index
    %c0_76 = arith.constant 0 : index
    %66 = vector.load %arg8[%c0_75, %c0_76] : memref<256x128xf32, #tpu.memory_space<vmem>>, vector<256x128xf32>
    %67 = arith.addf %66, %65 : vector<256x128xf32>
    %c0_77 = arith.constant 0 : index
    %c0_78 = arith.constant 0 : index
    %68 = vector.load %arg8[%c0_77, %c0_78] : memref<256x128xf32, #tpu.memory_space<vmem>>, vector<256x128xf32>
    tpu.vector_store %arg8[%c0_77, %c0_78], %67 {strides = array<i32>} : memref<256x128xf32, #tpu.memory_space<vmem>>, vector<256x128xf32>,
    %c0_79 = arith.constant 0 : index
    %c2_80 = arith.constant 2 : index
    %c0_81 = arith.constant 0 : index
    %69 = vector.load %arg7[%c0_79, %c2_80, %c0_81] : memref<18x18x128xbf16, #tpu.memory_space<vmem>>, vector<18x16x128xbf16>
    %70 = vector.extract_strided_slice %69 {offsets = [0, 0, 0], sizes = [16, 16, 128], strides = [1, 1, 1]} : vector<18x16x128xbf16> to vector<16x16x128xbf16>
    %71 = vector.shape_cast %70 : vector<16x16x128xbf16> to vector<256x128xbf16>
    %c0_82 = arith.constant 0 : index
    %c2_83 = arith.constant 2 : index
    %c0_84 = arith.constant 0 : index
    %c0_85 = arith.constant 0 : index
    %72 = vector.load %arg2[%c0_82, %c2_83, %c0_84, %c0_85] : memref<3x3x128x128xbf16, #tpu.memory_space<vmem>>, vector<1x1x128x128xbf16>
    %73 = vector.shape_cast %72 : vector<1x1x128x128xbf16> to vector<128x128xbf16>
    %cst_86 = arith.constant dense<0.000000e+00> : vector<256x128xf32>
    %74 = tpu.matmul %71, %73, %cst_86 {dimension_numbers = #tpu.dot_dimension_numbers<[1], [0], [0], [1], [0, 0, 1, 1], [], []>} : vector<256x128xbf16>, vector<128x128xbf16>, vector<256x128xf32> -> vector<256x128xf32>
    %c0_87 = arith.constant 0 : index
    %c0_88 = arith.constant 0 : index
    %75 = vector.load %arg8[%c0_87, %c0_88] : memref<256x128xf32, #tpu.memory_space<vmem>>, vector<256x128xf32>
    %76 = arith.addf %75, %74 : vector<256x128xf32>
    %c0_89 = arith.constant 0 : index
    %c0_90 = arith.constant 0 : index
    %77 = vector.load %arg8[%c0_89, %c0_90] : memref<256x128xf32, #tpu.memory_space<vmem>>, vector<256x128xf32>
    tpu.vector_store %arg8[%c0_89, %c0_90], %76 {strides = array<i32>} : memref<256x128xf32, #tpu.memory_space<vmem>>, vector<256x128xf32>,
    %78 = vector.extract_strided_slice %69 {offsets = [1, 0, 0], sizes = [16, 16, 128], strides = [1, 1, 1]} : vector<18x16x128xbf16> to vector<16x16x128xbf16>
    %79 = vector.shape_cast %78 : vector<16x16x128xbf16> to vector<256x128xbf16>
    %c1_91 = arith.constant 1 : index
    %c2_92 = arith.constant 2 : index
    %c0_93 = arith.constant 0 : index
    %c0_94 = arith.constant 0 : index
    %80 = vector.load %arg2[%c1_91, %c2_92, %c0_93, %c0_94] : memref<3x3x128x128xbf16, #tpu.memory_space<vmem>>, vector<1x1x128x128xbf16>
    %81 = vector.shape_cast %80 : vector<1x1x128x128xbf16> to vector<128x128xbf16>
    %cst_95 = arith.constant dense<0.000000e+00> : vector<256x128xf32>
    %82 = tpu.matmul %79, %81, %cst_95 {dimension_numbers = #tpu.dot_dimension_numbers<[1], [0], [0], [1], [0, 0, 1, 1], [], []>} : vector<256x128xbf16>, vector<128x128xbf16>, vector<256x128xf32> -> vector<256x128xf32>
    %c0_96 = arith.constant 0 : index
    %c0_97 = arith.constant 0 : index
    %83 = vector.load %arg8[%c0_96, %c0_97] : memref<256x128xf32, #tpu.memory_space<vmem>>, vector<256x128xf32>
    %84 = arith.addf %83, %82 : vector<256x128xf32>
    %c0_98 = arith.constant 0 : index
    %c0_99 = arith.constant 0 : index
    %85 = vector.load %arg8[%c0_98, %c0_99] : memref<256x128xf32, #tpu.memory_space<vmem>>, vector<256x128xf32>
    tpu.vector_store %arg8[%c0_98, %c0_99], %84 {strides = array<i32>} : memref<256x128xf32, #tpu.memory_space<vmem>>, vector<256x128xf32>,
    %86 = vector.extract_strided_slice %69 {offsets = [2, 0, 0], sizes = [16, 16, 128], strides = [1, 1, 1]} : vector<18x16x128xbf16> to vector<16x16x128xbf16>
    %87 = vector.shape_cast %86 : vector<16x16x128xbf16> to vector<256x128xbf16>
    %c2_100 = arith.constant 2 : index
    %c2_101 = arith.constant 2 : index
    %c0_102 = arith.constant 0 : index
    %c0_103 = arith.constant 0 : index
    %88 = vector.load %arg2[%c2_100, %c2_101, %c0_102, %c0_103] : memref<3x3x128x128xbf16, #tpu.memory_space<vmem>>, vector<1x1x128x128xbf16>
    %89 = vector.shape_cast %88 : vector<1x1x128x128xbf16> to vector<128x128xbf16>
    %cst_104 = arith.constant dense<0.000000e+00> : vector<256x128xf32>
    %90 = tpu.matmul %87, %89, %cst_104 {dimension_numbers = #tpu.dot_dimension_numbers<[1], [0], [0], [1], [0, 0, 1, 1], [], []>} : vector<256x128xbf16>, vector<128x128xbf16>, vector<256x128xf32> -> vector<256x128xf32>
    %c0_105 = arith.constant 0 : index
    %c0_106 = arith.constant 0 : index
    %91 = vector.load %arg8[%c0_105, %c0_106] : memref<256x128xf32, #tpu.memory_space<vmem>>, vector<256x128xf32>
    %92 = arith.addf %91, %90 : vector<256x128xf32>
    %c0_107 = arith.constant 0 : index
    %c0_108 = arith.constant 0 : index
    %93 = vector.load %arg8[%c0_107, %c0_108] : memref<256x128xf32, #tpu.memory_space<vmem>>, vector<256x128xf32>
    tpu.vector_store %arg8[%c0_107, %c0_108], %92 {strides = array<i32>} : memref<256x128xf32, #tpu.memory_space<vmem>>, vector<256x128xf32>,
    %c0_109 = arith.constant 0 : index
    %c0_110 = arith.constant 0 : index
    %94 = vector.load %arg8[%c0_109, %c0_110] : memref<256x128xf32, #tpu.memory_space<vmem>>, vector<256x128xf32>
    %95 = vector.shape_cast %94 : vector<256x128xf32> to vector<16x16x128xf32>
    %96 = arith.truncf %95 : vector<16x16x128xf32> to vector<16x16x128xbf16>
    %c0_111 = arith.constant 0 : index
    %c0_112 = arith.constant 0 : index
    %c0_113 = arith.constant 0 : index
    %c0_114 = arith.constant 0 : index
    %97 = vector.load %arg5[%c0_111, %c0_112, %c0_113, %c0_114] : memref<1x16x16x128xbf16, #tpu.memory_space<vmem>>, vector<1x16x16x128xbf16>
    %98 = vector.shape_cast %97 : vector<1x16x16x128xbf16> to vector<16x16x128xbf16>
    %99 = vector.shape_cast %96 : vector<16x16x128xbf16> to vector<1x16x16x128xbf16>
    tpu.vector_store %arg5[%c0_111, %c0_112, %c0_113, %c0_114], %99 {strides = array<i32>} : memref<1x16x16x128xbf16, #tpu.memory_space<vmem>>, vector<1x16x16x128xbf16>,
    %cst_115 = arith.constant dense<0.000000e+00> : vector<128xf32>
    %100 = vector.multi_reduction <add>, %94, %cst_115 [0] : vector<256x128xf32> to vector<128xf32>
    %101 = vector.shape_cast %100 : vector<128xf32> to vector<1x128xf32>
    %c0_116 = arith.constant 0 : index
    %c0_117 = arith.constant 0 : index
    %c0_118 = arith.constant 0 : index
    %102 = vector.load %arg6[%c0_116, %c0_117, %c0_118] : memref<1x2x128xf32, #tpu.memory_space<vmem>>, vector<1x1x128xf32>
    %103 = vector.shape_cast %102 : vector<1x1x128xf32> to vector<1x128xf32>
    %104 = vector.shape_cast %101 : vector<1x128xf32> to vector<1x1x128xf32>
    tpu.vector_store %arg6[%c0_116, %c0_117, %c0_118], %104 {strides = array<i32>} : memref<1x2x128xf32, #tpu.memory_space<vmem>>, vector<1x1x128xf32>,
    %105 = arith.mulf %94, %94 : vector<256x128xf32>
    %cst_119 = arith.constant dense<0.000000e+00> : vector<128xf32>
    %106 = vector.multi_reduction <add>, %105, %cst_119 [0] : vector<256x128xf32> to vector<128xf32>
    %107 = vector.shape_cast %106 : vector<128xf32> to vector<1x128xf32>
    %c0_120 = arith.constant 0 : index
    %c1_121 = arith.constant 1 : index
    %c0_122 = arith.constant 0 : index
    %108 = vector.load %arg6[%c0_120, %c1_121, %c0_122] : memref<1x2x128xf32, #tpu.memory_space<vmem>>, vector<1x1x128xf32>
    %109 = vector.shape_cast %108 : vector<1x1x128xf32> to vector<1x128xf32>
    %110 = vector.shape_cast %107 : vector<1x128xf32> to vector<1x1x128xf32>
    tpu.vector_store %arg6[%c0_120, %c1_121, %c0_122], %110 {strides = array<i32>} : memref<1x2x128xf32, #tpu.memory_space<vmem>>, vector<1x1x128xf32>,
    return
  }
  func.func @transform_0(%arg0: i32) -> (i32, i32, i32, i32) {
    %c0_i32 = arith.constant 0 : i32
    %c0_i32_0 = arith.constant 0 : i32
    %c0_i32_1 = arith.constant 0 : i32
    %c0_i32_2 = arith.constant 0 : i32
    return %arg0, %c0_i32, %c0_i32_0, %c0_i32_1 : i32, i32, i32, i32
  }
  func.func @transform_1(%arg0: i32) -> (i32, i32, i32, i32) {
    %c0_i32 = arith.constant 0 : i32
    %c0_i32_0 = arith.constant 0 : i32
    %c0_i32_1 = arith.constant 0 : i32
    %c0_i32_2 = arith.constant 0 : i32
    %c0_i32_3 = arith.constant 0 : i32
    return %c0_i32, %c0_i32_0, %c0_i32_1, %c0_i32_2 : i32, i32, i32, i32
  }
  func.func @transform_2(%arg0: i32) -> (i32, i32) {
    %c0_i32 = arith.constant 0 : i32
    %c0_i32_0 = arith.constant 0 : i32
    %c0_i32_1 = arith.constant 0 : i32
    return %c0_i32, %c0_i32_0 : i32, i32
  }
  func.func @transform_3(%arg0: i32) -> (i32, i32) {
    %c0_i32 = arith.constant 0 : i32
    %c0_i32_0 = arith.constant 0 : i32
    %c0_i32_1 = arith.constant 0 : i32
    return %c0_i32, %c0_i32_0 : i32, i32
  }
  func.func @transform_4(%arg0: i32) -> (i32, i32, i32, i32) {
    %c0_i32 = arith.constant 0 : i32
    %c0_i32_0 = arith.constant 0 : i32
    %c0_i32_1 = arith.constant 0 : i32
    %c0_i32_2 = arith.constant 0 : i32
    return %arg0, %c0_i32, %c0_i32_0, %c0_i32_1 : i32, i32, i32, i32
  }
  func.func @transform_5(%arg0: i32) -> (i32, i32, i32) {
    %c0_i32 = arith.constant 0 : i32
    %c0_i32_0 = arith.constant 0 : i32
    %c0_i32_1 = arith.constant 0 : i32
    return %arg0, %c0_i32, %c0_i32_0 : i32, i32, i32
  }
}

</mosaic_0001>

<llo_original>
// kernel: unet_block_a.5
$region0: #{unet_block_a.5}
  #allocation0 [shape = 'u32[]', space=smem, size = 0x4, offset = 0x4, fixed_abs, tag = 'smem constant byte address 0x4 - core index']
  #allocation1 [shape = 'u32[144,128]{1,0:T(1,128)}', space=vmem, size = 0x12000, scoped, tag = 'internal scratch']
  %s0 = inlined_call_operand.vmem [shape: bf16[2,16,16,128], index: 0, kind: input, shape index: {}]
  %s1 = inlined_call_operand.vmem [shape: f32[1,128], index: 1, kind: input, shape index: {}]
  %s2 = inlined_call_operand.vmem [shape: f32[1,128], index: 2, kind: input, shape index: {}]
  %s3 = inlined_call_operand.vmem [shape: f32[2,16,16,128], index: 3, kind: output, shape index: {}]
  %s4 = sld [smem:[#allocation0]]
  $region45: #{unet_block_a.5} parent=0
    _
  %s6 = ssub.s32 1, %s4
  %s7 = scalar_select 0, %s6, %s4
  loop: start=0, step=1, limit=4
  $region2: #{unet_block_a.5} parent=0 // loop_pre_header
    _
  $region3: #{unet_block_a.5} parent=0 // loop_header
    %s9 = sphi 0, %s13
    %p10 = scmp.ge.s32.totalorder %s9, 4
    %s19 = sphi 0, %s21
    %s22 = sphi 0, %s19
    %s23 = sphi 0, %s22
    %s39 = sphi 0, %s23
    %s43 = sphi 0, %s43
    %s45 = sphi 0, %s43
    %s46 = sphi 0, %s45
    %s60 = sphi 0, %s46
    %s64 = sphi 0, %s64
    %s66 = sphi 0, %s64
    %s67 = sphi 0, %s66
    %s81 = sphi 0, %s67
    %s87 = sphi 0, %s89
    %s90 = sphi 0, %s87
    %s91 = sphi 0, %s90
    %s107 = sphi 0, %s91
  $region4: #{unet_block_a.5} parent=0 // loop_header_branch
    %12 = sbr.rel (%p10) target = $region8
  $region5: #{unet_block_a.5} parent=0 // loop_body
    %s14 = ssub.s32 %s9, 1
    %s15 = ssub.s32 %s9, 2
    %s16 = sadd.s32 %s9, 1
    %s17 = ssub.s32 %s9, %s16
    %p18 = scmp.eq.s32.totalorder %s17, 0
    %s20 = sadd.s32 %s19, 1
    %s21 = scalar_select %p18, %s19, %s20
    %p24 = pneg %p18
    %p25 = scmp.eq.s32.totalorder %s9, 1
    %p26 = por %p24, %p25
    %p27 = scmp.ne.s32.totalorder %s19, %s22
    %p28 = scmp.eq.s32.totalorder %s9, 0
    %p29 = por %p27, %p28
    %p30 = scmp.ne.s32.totalorder %s19, %s22
    %p31 = scmp.eq.s32.totalorder %s14, 1
    %p32 = por %p30, %p31
    %p33 = scmp.ne.s32.totalorder %s22, %s23
    %p34 = scmp.eq.s32.totalorder %s14, 0
    %p35 = por %p33, %p34
    %p36 = scmp.ne.s32.totalorder %s22, %s23
    %p37 = scmp.eq.s32.totalorder %s15, 1
    %p38 = por %p36, %p37
    %p40 = scmp.ne.s32.totalorder %s23, %s39
    %p41 = scmp.eq.s32.totalorder %s15, 0
    %p42 = por %p40, %p41
    %s44 = sadd.s32 %s43, 1
    %p47 = scmp.eq.s32.totalorder %s9, 1
    %p48 = scmp.ne.s32.totalorder %s43, %s45
    %p49 = scmp.eq.s32.totalorder %s9, 0
    %p50 = por %p48, %p49
    %p51 = scmp.ne.s32.totalorder %s43, %s45
    %p52 = scmp.eq.s32.totalorder %s14, 1
    %p53 = por %p51, %p52
    %p54 = scmp.ne.s32.totalorder %s45, %s46
    %p55 = scmp.eq.s32.totalorder %s14, 0
    %p56 = por %p54, %p55
    %p57 = scmp.ne.s32.totalorder %s45, %s46
    %p58 = scmp.eq.s32.totalorder %s15, 1
    %p59 = por %p57, %p58
    %p61 = scmp.ne.s32.totalorder %s46, %s60
    %p62 = scmp.eq.s32.totalorder %s15, 0
    %p63 = por %p61, %p62
    %s65 = sadd.s32 %s64, 1
    %p68 = scmp.eq.s32.totalorder %s9, 1
    %p69 = scmp.ne.s32.totalorder %s64, %s66
    %p70 = scmp.eq.s32.totalorder %s9, 0
    %p71 = por %p69, %p70
    %p72 = scmp.ne.s32.totalorder %s64, %s66
    %p73 = scmp.eq.s32.totalorder %s14, 1
    %p74 = por %p72, %p73
    %p75 = scmp.ne.s32.totalorder %s66, %s67
    %p76 = scmp.eq.s32.totalorder %s14, 0
    %p77 = por %p75, %p76
    %p78 = scmp.ne.s32.totalorder %s66, %s67
    %p79 = scmp.eq.s32.totalorder %s15, 1
    %p80 = por %p78, %p79
    %p82 = scmp.ne.s32.totalorder %s67, %s81
    %p83 = scmp.eq.s32.totalorder %s15, 0
    %p84 = por %p82, %p83
    %s85 = ssub.s32 %s9, %s16
    %p86 = scmp.eq.s32.totalorder %s85, 0
    %s88 = sadd.s32 %s87, 1
    %s89 = scalar_select %p86, %s87, %s88
    %p92 = pneg %p86
    %p93 = scmp.eq.s32.totalorder %s9, 1
    %p94 = por %p92, %p93
    %p95 = scmp.ne.s32.totalorder %s87, %s90
    %p96 = scmp.eq.s32.totalorder %s9, 0
    %p97 = por %p95, %p96
    %p98 = scmp.ne.s32.totalorder %s87, %s90
    %p99 = scmp.eq.s32.totalorder %s14, 1
    %p100 = por %p98, %p99
    %p101 = scmp.ne.s32.totalorder %s90, %s91
    %p102 = scmp.eq.s32.totalorder %s14, 0
    %p103 = por %p101, %p102
    %p104 = scmp.ne.s32.totalorder %s90, %s91
    %p105 = scmp.eq.s32.totalorder %s15, 1
    %p106 = por %p104, %p105
    %p108 = scmp.ne.s32.totalorder %s91, %s107
    %p109 = scmp.eq.s32.totalorder %s15, 0
    %p110 = por %p108, %p109
    %p111 = scmp.le.s32.totalorder 1, %s9
    %p112 = scmp.lt.s32.totalorder %s9, 3
    %p113 = pnand %p111, %p112
    %p114 = pneg %p113
    // Predicated region
    $region9: #{unet_block_a.5} parent=5 // pred_check
      _
    $region10: #{unet_block_a.5} parent=5 // pred_check_branch
      %116 = sbr.rel (%p113) target = $region12
    $region11: #{unet_block_a.5} parent=5 // pred_region
      %s117 = ssub.s32 %s9, 1
      // Predicated region
      $region13: #{unet_block_a.5} parent=11 // pred_check
        %p118 = pneg %p56
      $region14: #{unet_block_a.5} parent=11 // pred_check_branch
        %120 = sbr.rel (%p118) target = $region16
      $region15: #{unet_block_a.5} parent=11 // pred_region
        _
      $region16: #{unet_block_a.5} parent=11 // pred_fallthru
        _
      // Predicated region
      $region17: #{unet_block_a.5} parent=11 // pred_check
        %p121 = pneg %p77
      $region18: #{unet_block_a.5} parent=11 // pred_check_branch
        %123 = sbr.rel (%p121) target = $region20
      $region19: #{unet_block_a.5} parent=11 // pred_region
        _
      $region20: #{unet_block_a.5} parent=11 // pred_fallthru
        _
    $region12: #{unet_block_a.5} parent=5 // pred_fallthru
      _
    %p124 = scmp.lt.s32.totalorder %s9, 2
    // Predicated region
    $region21: #{unet_block_a.5} parent=5 // pred_check
      %p125 = pneg %p124
    $region22: #{unet_block_a.5} parent=5 // pred_check_branch
      %127 = sbr.rel (%p125) target = $region24
    $region23: #{unet_block_a.5} parent=5 // pred_region
      // Predicated region
      $region25: #{unet_block_a.5} parent=23 // pred_check
        %p128 = pneg %p29
      $region26: #{unet_block_a.5} parent=23 // pred_check_branch
        %130 = sbr.rel (%p128) target = $region28
      $region27: #{unet_block_a.5} parent=23 // pred_region
        %p131 = scmp.lt.s32.totalorder %s9, 1
        %s132 = scalar_select %p131, %s9, 1
        %s133 = smul.addr %s132, 32
        %s134 = smul.addr %s133, 4
        %s135 = scalar_lea.vmem %s0, %s134
      $region28: #{unet_block_a.5} parent=23 // pred_fallthru
        _
    $region24: #{unet_block_a.5} parent=5 // pred_fallthru
      _
    %p136 = scmp.le.s32.totalorder 1, %s9
    %p137 = scmp.lt.s32.totalorder %s9, 3
    %p138 = pnand %p136, %p137
    %p139 = pneg %p138
    // Predicated region
    $region29: #{unet_block_a.5} parent=5 // pred_check
      _
    $region30: #{unet_block_a.5} parent=5 // pred_check_branch
      %141 = sbr.rel (%p138) target = $region32
    $region31: #{unet_block_a.5} parent=5 // pred_region
      %s142 = ssub.s32 %s9, 1
      %p143 = scmp.lt.s32.totalorder %s14, 1
      %s144 = scalar_select %p143, %s14, 1
      %s145 = smul.addr %s144, 32
      %s146 = smul.addr %s145, 4
      %s147 = scalar_lea.vmem %s0, %s146
      %p148 = pneg %p35
      %p149 = pneg %p32
      %p150 = pneg %p56
      %p151 = pneg %p53
      %p152 = pneg %p77
      %p153 = pneg %p74
      %p154 = pneg %p103
      %p155 = pneg %p100
      %p156 = scmp.lt.s32.totalorder %s14, 1
      %s157 = scalar_select %p156, %s14, 1
      %s158 = smul.addr %s157, 32
      %s159 = smul.addr %s158, 8
      %s160 = scalar_lea.vmem %s3, %s159
      %p161 = scmp.lt.s32.totalorder %s14, 1
      %s162 = scalar_select %p161, %s14, 1
      %s163 = smul.addr %s162, 32
      %s164 = smul.addr %s163, 4
      %s165 = scalar_lea.vmem %s0, %s164
      %p166 = scmp.lt.s32.totalorder %s14, 1
      %s167 = scalar_select %p166, %s14, 1
      %s168 = smul.addr %s167, 32
      %s169 = smul.addr %s168, 8
      %s170 = scalar_lea.vmem %s3, %s169
      %v171 = vld [vmem:[%s165] sm:$0xf]
      %v172 = vld [vmem:[%s165 + $0x4] sm:$0xf]
      %v173 = vld [vmem:[%s165 + $0x8] sm:$0xf]
      %v174 = vld [vmem:[%s165 + $0xc] sm:$0xf]
      %v175 = vld [vmem:[%s165 + $0x10] sm:$0xf]
      %v176 = vld [vmem:[%s165 + $0x14] sm:$0xf]
      %v177 = vld [vmem:[%s165 + $0x18] sm:$0xf]
      %v178 = vld [vmem:[%s165 + $0x1c] sm:$0xf]
      %v179 = vld [vmem:[%s165 + $0x20] sm:$0xf]
      %v180 = vld [vmem:[%s165 + $0x24] sm:$0xf]
      %v181 = vld [vmem:[%s165 + $0x28] sm:$0xf]
      %v182 = vld [vmem:[%s165 + $0x2c] sm:$0xf]
      %v183 = vld [vmem:[%s165 + $0x30] sm:$0xf]
      %v184 = vld [vmem:[%s165 + $0x34] sm:$0xf]
      %v185 = vld [vmem:[%s165 + $0x38] sm:$0xf]
      %v186 = vld [vmem:[%s165 + $0x3c] sm:$0xf]
      %v187 = vld [vmem:[%s165 + $0x40] sm:$0xf]
      %v188 = vld [vmem:[%s165 + $0x44] sm:$0xf]
      %v189 = vld [vmem:[%s165 + $0x48] sm:$0xf]
      %v190 = vld [vmem:[%s165 + $0x4c] sm:$0xf]
      %v191 = vld [vmem:[%s165 + $0x50] sm:$0xf]
      %v192 = vld [vmem:[%s165 + $0x54] sm:$0xf]
      %v193 = vld [vmem:[%s165 + $0x58] sm:$0xf]
      %v194 = vld [vmem:[%s165 + $0x5c] sm:$0xf]
      %v195 = vld [vmem:[%s165 + $0x60] sm:$0xf]
      %v196 = vld [vmem:[%s165 + $0x64] sm:$0xf]
      %v197 = vld [vmem:[%s165 + $0x68] sm:$0xf]
      %v198 = vld [vmem:[%s165 + $0x6c] sm:$0xf]
      %v199 = vld [vmem:[%s165 + $0x70] sm:$0xf]
      %v200 = vld [vmem:[%s165 + $0x74] sm:$0xf]
      %v201 = vld [vmem:[%s165 + $0x78] sm:$0xf]
      %v202 = vld [vmem:[%s165 + $0x7c] sm:$0xf]
      %v203 = vunpack.c.l.bf16 %v171
      %v204 = vunpack.c.l.bf16 %v172
      %v205 = vunpack.c.l.bf16 %v173
      %v206 = vunpack.c.l.bf16 %v174
      %v207 = vunpack.c.l.bf16 %v175
      %v208 = vunpack.c.l.bf16 %v176
      %v209 = vunpack.c.l.bf16 %v177
      %v210 = vunpack.c.l.bf16 %v178
      %v211 = vunpack.c.l.bf16 %v179
      %v212 = vunpack.c.l.bf16 %v180
      %v213 = vunpack.c.l.bf16 %v181
      %v214 = vunpack.c.l.bf16 %v182
      %v215 = vunpack.c.l.bf16 %v183
      %v216 = vunpack.c.l.bf16 %v184
      %v217 = vunpack.c.l.bf16 %v185
      %v218 = vunpack.c.l.bf16 %v186
      %v219 = vunpack.c.l.bf16 %v187
      %v220 = vunpack.c.l.bf16 %v188
      %v221 = vunpack.c.l.bf16 %v189
      %v222 = vunpack.c.l.bf16 %v190
      %v223 = vunpack.c.l.bf16 %v191
      %v224 = vunpack.c.l.bf16 %v192
      %v225 = vunpack.c.l.bf16 %v193
      %v226 = vunpack.c.l.bf16 %v194
      %v227 = vunpack.c.l.bf16 %v195
      %v228 = vunpack.c.l.bf16 %v196
      %v229 = vunpack.c.l.bf16 %v197
      %v230 = vunpack.c.l.bf16 %v198
      %v231 = vunpack.c.l.bf16 %v199
      %v232 = vunpack.c.l.bf16 %v200
      %v233 = vunpack.c.l.bf16 %v201
      %v234 = vunpack.c.l.bf16 %v202
      %v235 = vld [vmem:[%s1] sm:$0x1]
      %v237 = vlaneseq
      %v238 = vshrl.u32 %v237, 7
      %v239 = vsub.s32 0, %v238
      %v240 = vrot.slane %v235, %v239
      %v242 = vmul.f32 %v203, %v240
      %v243 = vmul.f32 %v204, %v240
      %v244 = vmul.f32 %v205, %v240
      %v245 = vmul.f32 %v206, %v240
      %v246 = vmul.f32 %v207, %v240
      %v247 = vmul.f32 %v208, %v240
      %v248 = vmul.f32 %v209, %v240
      %v249 = vmul.f32 %v210, %v240
      %v250 = vmul.f32 %v211, %v240
      %v251 = vmul.f32 %v212, %v240
      %v252 = vmul.f32 %v213, %v240
      %v253 = vmul.f32 %v214, %v240
      %v254 = vmul.f32 %v215, %v240
      %v255 = vmul.f32 %v216, %v240
      %v256 = vmul.f32 %v217, %v240
      %v257 = vmul.f32 %v218, %v240
      %v258 = vmul.f32 %v219, %v240
      %v259 = vmul.f32 %v220, %v240
      %v260 = vmul.f32 %v221, %v240
      %v261 = vmul.f32 %v222, %v240
      %v262 = vmul.f32 %v223, %v240
      %v263 = vmul.f32 %v224, %v240
      %v264 = vmul.f32 %v225, %v240
      %v265 = vmul.f32 %v226, %v240
      %v266 = vmul.f32 %v227, %v240
      %v267 = vmul.f32 %v228, %v240
      %v268 = vmul.f32 %v229, %v240
      %v269 = vmul.f32 %v230, %v240
      %v270 = vmul.f32 %v231, %v240
      %v271 = vmul.f32 %v232, %v240
      %v272 = vmul.f32 %v233, %v240
      %v273 = vmul.f32 %v234, %v240
      %v274 = vld [vmem:[%s2] sm:$0x1]
      %v276 = vlaneseq
      %v277 = vshrl.u32 %v276, 7
      %v278 = vsub.s32 0, %v277
      %v279 = vrot.slane %v274, %v278
      %v281 = vadd.f32 %v242, %v279
      %v282 = vadd.f32 %v243, %v279
      %v283 = vadd.f32 %v244, %v279
      %v284 = vadd.f32 %v245, %v279
      %v285 = vadd.f32 %v246, %v279
      %v286 = vadd.f32 %v247, %v279
      %v287 = vadd.f32 %v248, %v279
      %v288 = vadd.f32 %v249, %v279
      %v289 = vadd.f32 %v250, %v279
      %v290 = vadd.f32 %v251, %v279
      %v291 = vadd.f32 %v252, %v279
      %v292 = vadd.f32 %v253, %v279
      %v293 = vadd.f32 %v254, %v279
      %v294 = vadd.f32 %v255, %v279
      %v295 = vadd.f32 %v256, %v279
      %v296 = vadd.f32 %v257, %v279
      %v297 = vadd.f32 %v258, %v279
      %v298 = vadd.f32 %v259, %v279
      %v299 = vadd.f32 %v260, %v279
      %v300 = vadd.f32 %v261, %v279
      %v301 = vadd.f32 %v262, %v279
      %v302 = vadd.f32 %v263, %v279
      %v303 = vadd.f32 %v264, %v279
      %v304 = vadd.f32 %v265, %v279
      %v305 = vadd.f32 %v266, %v279
      %v306 = vadd.f32 %v267, %v279
      %v307 = vadd.f32 %v268, %v279
      %v308 = vadd.f32 %v269, %v279
      %v309 = vadd.f32 %v270, %v279
      %v310 = vadd.f32 %v271, %v279
      %v311 = vadd.f32 %v272, %v279
      %v312 = vadd.f32 %v273, %v279
      %v313 = vmax.f32 %v281, 0.0
      %v314 = vmax.f32 %v282, 0.0
      %v315 = vmax.f32 %v283, 0.0
      %v316 = vmax.f32 %v284, 0.0
      %v317 = vmax.f32 %v285, 0.0
      %v318 = vmax.f32 %v286, 0.0
      %v319 = vmax.f32 %v287, 0.0
      %v320 = vmax.f32 %v288, 0.0
      %v321 = vmax.f32 %v289, 0.0
      %v322 = vmax.f32 %v290, 0.0
      %v323 = vmax.f32 %v291, 0.0
      %v324 = vmax.f32 %v292, 0.0
      %v325 = vmax.f32 %v293, 0.0
      %v326 = vmax.f32 %v294, 0.0
      %v327 = vmax.f32 %v295, 0.0
      %v328 = vmax.f32 %v296, 0.0
      %v329 = vmax.f32 %v297, 0.0
      %v330 = vmax.f32 %v298, 0.0
      %v331 = vmax.f32 %v299, 0.0
      %v332 = vmax.f32 %v300, 0.0
      %v333 = vmax.f32 %v301, 0.0
      %v334 = vmax.f32 %v302, 0.0
      %v335 = vmax.f32 %v303, 0.0
      %v336 = vmax.f32 %v304, 0.0
      %v337 = vmax.f32 %v305, 0.0
      %v338 = vmax.f32 %v306, 0.0
      %v339 = vmax.f32 %v307, 0.0
      %v340 = vmax.f32 %v308, 0.0
      %v341 = vmax.f32 %v309, 0.0
      %v342 = vmax.f32 %v310, 0.0
      %v343 = vmax.f32 %v311, 0.0
      %v344 = vmax.f32 %v312, 0.0
      %345 = vst [vmem:[%s170] sm:$0xff] %v313
      %346 = vst [vmem:[%s170 + $0x8] sm:$0xff] %v314
      %347 = vst [vmem:[%s170 + $0x10] sm:$0xff] %v315
      %348 = vst [vmem:[%s170 + $0x18] sm:$0xff] %v316
      %349 = vst [vmem:[%s170 + $0x20] sm:$0xff] %v317
      %350 = vst [vmem:[%s170 + $0x28] sm:$0xff] %v318
      %351 = vst [vmem:[%s170 + $0x30] sm:$0xff] %v319
      %352 = vst [vmem:[%s170 + $0x38] sm:$0xff] %v320
      %353 = vst [vmem:[%s170 + $0x40] sm:$0xff] %v321
      %354 = vst [vmem:[%s170 + $0x48] sm:$0xff] %v322
      %355 = vst [vmem:[%s170 + $0x50] sm:$0xff] %v323
      %356 = vst [vmem:[%s170 + $0x58] sm:$0xff] %v324
      %357 = vst [vmem:[%s170 + $0x60] sm:$0xff] %v325
      %358 = vst [vmem:[%s170 + $0x68] sm:$0xff] %v326
      %359 = vst [vmem:[%s170 + $0x70] sm:$0xff] %v327
      %360 = vst [vmem:[%s170 + $0x78] sm:$0xff] %v328
      %361 = vst [vmem:[%s170 + $0x80] sm:$0xff] %v329
      %362 = vst [vmem:[%s170 + $0x88] sm:$0xff] %v330
      %363 = vst [vmem:[%s170 + $0x90] sm:$0xff] %v331
      %364 = vst [vmem:[%s170 + $0x98] sm:$0xff] %v332
      %365 = vst [vmem:[%s170 + $0xa0] sm:$0xff] %v333
      %366 = vst [vmem:[%s170 + $0xa8] sm:$0xff] %v334
      %367 = vst [vmem:[%s170 + $0xb0] sm:$0xff] %v335
      %368 = vst [vmem:[%s170 + $0xb8] sm:$0xff] %v336
      %369 = vst [vmem:[%s170 + $0xc0] sm:$0xff] %v337
      %370 = vst [vmem:[%s170 + $0xc8] sm:$0xff] %v338
      %371 = vst [vmem:[%s170 + $0xd0] sm:$0xff] %v339
      %372 = vst [vmem:[%s170 + $0xd8] sm:$0xff] %v340
      %373 = vst [vmem:[%s170 + $0xe0] sm:$0xff] %v341
      %374 = vst [vmem:[%s170 + $0xe8] sm:$0xff] %v342
      %375 = vst [vmem:[%s170 + $0xf0] sm:$0xff] %v343
      %376 = vst [vmem:[%s170 + $0xf8] sm:$0xff] %v344
      %p377 = scmp.lt.s32.totalorder %s14, 1
      %s378 = scalar_select %p377, %s14, 1
      %s379 = smul.addr %s378, 32
      %s380 = smul.addr %s379, 8
      %s381 = scalar_lea.vmem %s3, %s380
      // Predicated region
      $region33: #{unet_block_a.5} parent=31 // pred_check
        %p382 = pneg %p100
      $region34: #{unet_block_a.5} parent=31 // pred_check_branch
        %384 = sbr.rel (%p382) target = $region36
      $region35: #{unet_block_a.5} parent=31 // pred_region
        _
      $region36: #{unet_block_a.5} parent=31 // pred_fallthru
        _
    $region32: #{unet_block_a.5} parent=5 // pred_fallthru
      _
    %p385 = scmp.le.s32.totalorder 2, %s9
    // Predicated region
    $region37: #{unet_block_a.5} parent=5 // pred_check
      %p386 = pneg %p385
    $region38: #{unet_block_a.5} parent=5 // pred_check_branch
      %388 = sbr.rel (%p386) target = $region40
    $region39: #{unet_block_a.5} parent=5 // pred_region
      %s389 = ssub.s32 %s9, 2
      // Predicated region
      $region41: #{unet_block_a.5} parent=39 // pred_check
        %p390 = pneg %p106
      $region42: #{unet_block_a.5} parent=39 // pred_check_branch
        %392 = sbr.rel (%p390) target = $region44
      $region43: #{unet_block_a.5} parent=39 // pred_region
        %p393 = scmp.lt.s32.totalorder %s15, 1
        %s394 = scalar_select %p393, %s15, 1
        %s395 = smul.addr %s394, 32
        %s396 = smul.addr %s395, 8
        %s397 = scalar_lea.vmem %s3, %s396
      $region44: #{unet_block_a.5} parent=39 // pred_fallthru
        _
    $region40: #{unet_block_a.5} parent=5 // pred_fallthru
      _
  $region6: #{unet_block_a.5} parent=0 // loop_footer
    %s13 = sadd.s32 1, %s9
  $region7: #{unet_block_a.5} parent=0 // loop_footer_branch
    %8 = sbr.rel target = $region3
  $region8: #{unet_block_a.5} parent=0 // loop_exit
    _

// kernel: unet_block_a.3
$region0: #{unet_block_a.3}
  #allocation0 [shape = 'u32[]', space=smem, size = 0x4, offset = 0x4, fixed_abs, tag = 'smem constant byte address 0x4 - core index']
  #allocation1 [shape = 'u32[144,128]{1,0:T(1,128)}', space=vmem, size = 0x12000, scoped, tag = 'internal scratch']
  #allocation2 [shape = 'bf16[18,18,128]{2,1,0:T(8,128)(2,1)}', space=vmem, size = 0x1b000, scoped, tag = 'scratch operand']
  #allocation3 [shape = 'f32[256,128]{1,0:T(8,128)}', space=vmem, size = 0x20000, scoped, tag = 'scratch operand']
  %s0 = inlined_call_operand.vmem [shape: bf16[2,16,16,128], index: 0, kind: input, shape index: {}]
  %s1 = inlined_call_operand.vmem [shape: bf16[3,3,128,128], index: 1, kind: input, shape index: {}]
  %s2 = inlined_call_operand.vmem [shape: f32[1,128], index: 2, kind: input, shape index: {}]
  %s3 = inlined_call_operand.vmem [shape: f32[1,128], index: 3, kind: input, shape index: {}]
  %s4 = inlined_call_operand.vmem [shape: bf16[2,16,16,128], index: 4, kind: output, shape index: {0}]
  %s5 = inlined_call_operand.vmem [shape: f32[2,2,128], index: 5, kind: output, shape index: {1}]
  %6 = xla_tuple %s4, %s5
  %s7 = sld [smem:[#allocation0]]
  $region57: #{unet_block_a.3} parent=0
    _
  %s9 = ssub.s32 1, %s7
  %s10 = scalar_select 0, %s9, %s7
  loop: start=0, step=1, limit=4
  $region2: #{unet_block_a.3} parent=0 // loop_pre_header
    _
  $region3: #{unet_block_a.3} parent=0 // loop_header
    %s12 = sphi 0, %s16
    %p13 = scmp.ge.s32.totalorder %s12, 4
    %s22 = sphi 0, %s24
    %s25 = sphi 0, %s22
    %s26 = sphi 0, %s25
    %s42 = sphi 0, %s26
    %s46 = sphi 0, %s46
    %s48 = sphi 0, %s46
    %s49 = sphi 0, %s48
    %s63 = sphi 0, %s49
    %s67 = sphi 0, %s67
    %s69 = sphi 0, %s67
    %s70 = sphi 0, %s69
    %s84 = sphi 0, %s70
    %s88 = sphi 0, %s88
    %s90 = sphi 0, %s88
    %s91 = sphi 0, %s90
    %s105 = sphi 0, %s91
    %s111 = sphi 0, %s113
    %s114 = sphi 0, %s111
    %s115 = sphi 0, %s114
    %s131 = sphi 0, %s115
    %s137 = sphi 0, %s139
    %s140 = sphi 0, %s137
    %s141 = sphi 0, %s140
    %s157 = sphi 0, %s141
  $region4: #{unet_block_a.3} parent=0 // loop_header_branch
    %15 = sbr.rel (%p13) target = $region8
  $region5: #{unet_block_a.3} parent=0 // loop_body
    %s17 = ssub.s32 %s12, 1
    %s18 = ssub.s32 %s12, 2
    %s19 = sadd.s32 %s12, 1
    %s20 = ssub.s32 %s12, %s19
    %p21 = scmp.eq.s32.totalorder %s20, 0
    %s23 = sadd.s32 %s22, 1
    %s24 = scalar_select %p21, %s22, %s23
    %p27 = pneg %p21
    %p28 = scmp.eq.s32.totalorder %s12, 1
    %p29 = por %p27, %p28
    %p30 = scmp.ne.s32.totalorder %s22, %s25
    %p31 = scmp.eq.s32.totalorder %s12, 0
    %p32 = por %p30, %p31
    %p33 = scmp.ne.s32.totalorder %s22, %s25
    %p34 = scmp.eq.s32.totalorder %s17, 1
    %p35 = por %p33, %p34
    %p36 = scmp.ne.s32.totalorder %s25, %s26
    %p37 = scmp.eq.s32.totalorder %s17, 0
    %p38 = por %p36, %p37
    %p39 = scmp.ne.s32.totalorder %s25, %s26
    %p40 = scmp.eq.s32.totalorder %s18, 1
    %p41 = por %p39, %p40
    %p43 = scmp.ne.s32.totalorder %s26, %s42
    %p44 = scmp.eq.s32.totalorder %s18, 0
    %p45 = por %p43, %p44
    %s47 = sadd.s32 %s46, 1
    %p50 = scmp.eq.s32.totalorder %s12, 1
    %p51 = scmp.ne.s32.totalorder %s46, %s48
    %p52 = scmp.eq.s32.totalorder %s12, 0
    %p53 = por %p51, %p52
    %p54 = scmp.ne.s32.totalorder %s46, %s48
    %p55 = scmp.eq.s32.totalorder %s17, 1
    %p56 = por %p54, %p55
    %p57 = scmp.ne.s32.totalorder %s48, %s49
    %p58 = scmp.eq.s32.totalorder %s17, 0
    %p59 = por %p57, %p58
    %p60 = scmp.ne.s32.totalorder %s48, %s49
    %p61 = scmp.eq.s32.totalorder %s18, 1
    %p62 = por %p60, %p61
    %p64 = scmp.ne.s32.totalorder %s49, %s63
    %p65 = scmp.eq.s32.totalorder %s18, 0
    %p66 = por %p64, %p65
    %s68 = sadd.s32 %s67, 1
    %p71 = scmp.eq.s32.totalorder %s12, 1
    %p72 = scmp.ne.s32.totalorder %s67, %s69
    %p73 = scmp.eq.s32.totalorder %s12, 0
    %p74 = por %p72, %p73
    %p75 = scmp.ne.s32.totalorder %s67, %s69
    %p76 = scmp.eq.s32.totalorder %s17, 1
    %p77 = por %p75, %p76
    %p78 = scmp.ne.s32.totalorder %s69, %s70
    %p79 = scmp.eq.s32.totalorder %s17, 0
    %p80 = por %p78, %p79
    %p81 = scmp.ne.s32.totalorder %s69, %s70
    %p82 = scmp.eq.s32.totalorder %s18, 1
    %p83 = por %p81, %p82
    %p85 = scmp.ne.s32.totalorder %s70, %s84
    %p86 = scmp.eq.s32.totalorder %s18, 0
    %p87 = por %p85, %p86
    %s89 = sadd.s32 %s88, 1
    %p92 = scmp.eq.s32.totalorder %s12, 1
    %p93 = scmp.ne.s32.totalorder %s88, %s90
    %p94 = scmp.eq.s32.totalorder %s12, 0
    %p95 = por %p93, %p94
    %p96 = scmp.ne.s32.totalorder %s88, %s90
    %p97 = scmp.eq.s32.totalorder %s17, 1
    %p98 = por %p96, %p97
    %p99 = scmp.ne.s32.totalorder %s90, %s91
    %p100 = scmp.eq.s32.totalorder %s17, 0
    %p101 = por %p99, %p100
    %p102 = scmp.ne.s32.totalorder %s90, %s91
    %p103 = scmp.eq.s32.totalorder %s18, 1
    %p104 = por %p102, %p103
    %p106 = scmp.ne.s32.totalorder %s91, %s105
    %p107 = scmp.eq.s32.totalorder %s18, 0
    %p108 = por %p106, %p107
    %s109 = ssub.s32 %s12, %s19
    %p110 = scmp.eq.s32.totalorder %s109, 0
    %s112 = sadd.s32 %s111, 1
    %s113 = scalar_select %p110, %s111, %s112
    %p116 = pneg %p110
    %p117 = scmp.eq.s32.totalorder %s12, 1
    %p118 = por %p116, %p117
    %p119 = scmp.ne.s32.totalorder %s111, %s114
    %p120 = scmp.eq.s32.totalorder %s12, 0
    %p121 = por %p119, %p120
    %p122 = scmp.ne.s32.totalorder %s111, %s114
    %p123 = scmp.eq.s32.totalorder %s17, 1
    %p124 = por %p122, %p123
    %p125 = scmp.ne.s32.totalorder %s114, %s115
    %p126 = scmp.eq.s32.totalorder %s17, 0
    %p127 = por %p125, %p126
    %p128 = scmp.ne.s32.totalorder %s114, %s115
    %p129 = scmp.eq.s32.totalorder %s18, 1
    %p130 = por %p128, %p129
    %p132 = scmp.ne.s32.totalorder %s115, %s131
    %p133 = scmp.eq.s32.totalorder %s18, 0
    %p134 = por %p132, %p133
    %s135 = ssub.s32 %s12, %s19
    %p136 = scmp.eq.s32.totalorder %s135, 0
    %s138 = sadd.s32 %s137, 1
    %s139 = scalar_select %p136, %s137, %s138
    %p142 = pneg %p136
    %p143 = scmp.eq.s32.totalorder %s12, 1
    %p144 = por %p142, %p143
    %p145 = scmp.ne.s32.totalorder %s137, %s140
    %p146 = scmp.eq.s32.totalorder %s12, 0
    %p147 = por %p145, %p146
    %p148 = scmp.ne.s32.totalorder %s137, %s140
    %p149 = scmp.eq.s32.totalorder %s17, 1
    %p150 = por %p148, %p149
    %p151 = scmp.ne.s32.totalorder %s140, %s141
    %p152 = scmp.eq.s32.totalorder %s17, 0
    %p153 = por %p151, %p152
    %p154 = scmp.ne.s32.totalorder %s140, %s141
    %p155 = scmp.eq.s32.totalorder %s18, 1
    %p156 = por %p154, %p155
    %p158 = scmp.ne.s32.totalorder %s141, %s157
    %p159 = scmp.eq.s32.totalorder %s18, 0
    %p160 = por %p158, %p159
    %p161 = scmp.le.s32.totalorder 1, %s12
    %p162 = scmp.lt.s32.totalorder %s12, 3
    %p163 = pnand %p161, %p162
    %p164 = pneg %p163
    // Predicated region
    $region9: #{unet_block_a.3} parent=5 // pred_check
      _
    $region10: #{unet_block_a.3} parent=5 // pred_check_branch
      %166 = sbr.rel (%p163) target = $region12
    $region11: #{unet_block_a.3} parent=5 // pred_region
      %s167 = ssub.s32 %s12, 1
      // Predicated region
      $region13: #{unet_block_a.3} parent=11 // pred_check
        %p168 = pneg %p59
      $region14: #{unet_block_a.3} parent=11 // pred_check_branch
        %170 = sbr.rel (%p168) target = $region16
      $region15: #{unet_block_a.3} parent=11 // pred_region
        _
      $region16: #{unet_block_a.3} parent=11 // pred_fallthru
        _
      // Predicated region
      $region17: #{unet_block_a.3} parent=11 // pred_check
        %p171 = pneg %p80
      $region18: #{unet_block_a.3} parent=11 // pred_check_branch
        %173 = sbr.rel (%p171) target = $region20
      $region19: #{unet_block_a.3} parent=11 // pred_region
        _
      $region20: #{unet_block_a.3} parent=11 // pred_fallthru
        _
      // Predicated region
      $region21: #{unet_block_a.3} parent=11 // pred_check
        %p174 = pneg %p101
      $region22: #{unet_block_a.3} parent=11 // pred_check_branch
        %176 = sbr.rel (%p174) target = $region24
      $region23: #{unet_block_a.3} parent=11 // pred_region
        _
      $region24: #{unet_block_a.3} parent=11 // pred_fallthru
        _
    $region12: #{unet_block_a.3} parent=5 // pred_fallthru
      _
    %p177 = scmp.lt.s32.totalorder %s12, 2
    // Predicated region
    $region25: #{unet_block_a.3} parent=5 // pred_check
      %p178 = pneg %p177
    $region26: #{unet_block_a.3} parent=5 // pred_check_branch
      %180 = sbr.rel (%p178) target = $region28
    $region27: #{unet_block_a.3} parent=5 // pred_region
      // Predicated region
      $region29: #{unet_block_a.3} parent=27 // pred_check
        %p181 = pneg %p32
      $region30: #{unet_block_a.3} parent=27 // pred_check_branch
        %183 = sbr.rel (%p181) target = $region32
      $region31: #{unet_block_a.3} parent=27 // pred_region
        %p184 = scmp.lt.s32.totalorder %s12, 1
        %s185 = scalar_select %p184, %s12, 1
        %s186 = smul.addr %s185, 32
        %s187 = smul.addr %s186, 4
        %s188 = scalar_lea.vmem %s0, %s187
      $region32: #{unet_block_a.3} parent=27 // pred_fallthru
        _
    $region28: #{unet_block_a.3} parent=5 // pred_fallthru
      _
    %p189 = scmp.le.s32.totalorder 1, %s12
    %p190 = scmp.lt.s32.totalorder %s12, 3
    %p191 = pnand %p189, %p190
    %p192 = pneg %p191
    // Predicated region
    $region33: #{unet_block_a.3} parent=5 // pred_check
      _
    $region34: #{unet_block_a.3} parent=5 // pred_check_branch
      %194 = sbr.rel (%p191) target = $region36
    $region35: #{unet_block_a.3} parent=5 // pred_region
      %s195 = ssub.s32 %s12, 1
      %p196 = scmp.lt.s32.totalorder %s17, 1
      %s197 = scalar_select %p196, %s17, 1
      %s198 = smul.addr %s197, 32
      %s199 = smul.addr %s198, 4
      %s200 = scalar_lea.vmem %s0, %s199
      %p201 = pneg %p38
      %p202 = pneg %p35
      %p203 = pneg %p59
      %p204 = pneg %p56
      %p205 = pneg %p80
      %p206 = pneg %p77
      %p207 = pneg %p101
      %p208 = pneg %p98
      %p209 = pneg %p127
      %p210 = pneg %p124
      %p211 = scmp.lt.s32.totalorder %s17, 1
      %s212 = scalar_select %p211, %s17, 1
      %s213 = smul.addr %s212, 32
      %s214 = smul.addr %s213, 4
      %s215 = scalar_lea.vmem %s4, %s214
      %p216 = pneg %p153
      %p217 = pneg %p150
      %p218 = scmp.lt.s32.totalorder %s17, 1
      %s219 = scalar_select %p218, %s17, 1
      %s220 = smul.addr %s219, 2
      %s221 = scalar_lea.vmem %s5, %s220
      %p222 = scmp.lt.s32.totalorder %s17, 1
      %s223 = scalar_select %p222, %s17, 1
      %s224 = smul.addr %s223, 32
      %s225 = smul.addr %s224, 4
      %s226 = scalar_lea.vmem %s0, %s225
      %p227 = scmp.lt.s32.totalorder %s17, 1
      %s228 = scalar_select %p227, %s17, 1
      %s229 = smul.addr %s228, 32
      %s230 = smul.addr %s229, 4
      %s231 = scalar_lea.vmem %s4, %s230
      %p232 = scmp.lt.s32.totalorder %s17, 1
      %s233 = scalar_select %p232, %s17, 1
      %s234 = smul.addr %s233, 2
      %s235 = scalar_lea.vmem %s5, %s234
      %v237 = vld [vmem:[%s226] sm:$0xf]
      %v238 = vld [vmem:[%s226 + $0x4] sm:$0xf]
      %v239 = vld [vmem:[%s226 + $0x8] sm:$0xf]
      %v240 = vld [vmem:[%s226 + $0xc] sm:$0xf]
      %v241 = vld [vmem:[%s226 + $0x10] sm:$0xf]
      %v242 = vld [vmem:[%s226 + $0x14] sm:$0xf]
      %v243 = vld [vmem:[%s226 + $0x18] sm:$0xf]
      %v244 = vld [vmem:[%s226 + $0x1c] sm:$0xf]
      %v245 = vld [vmem:[%s226 + $0x20] sm:$0xf]
      %v246 = vld [vmem:[%s226 + $0x24] sm:$0xf]
      %v247 = vld [vmem:[%s226 + $0x28] sm:$0xf]
      %v248 = vld [vmem:[%s226 + $0x2c] sm:$0xf]
      %v249 = vld [vmem:[%s226 + $0x30] sm:$0xf]
      %v250 = vld [vmem:[%s226 + $0x34] sm:$0xf]
      %v251 = vld [vmem:[%s226 + $0x38] sm:$0xf]
      %v252 = vld [vmem:[%s226 + $0x3c] sm:$0xf]
      %v253 = vld [vmem:[%s226 + $0x40] sm:$0xf]
      %v254 = vld [vmem:[%s226 + $0x44] sm:$0xf]
      %v255 = vld [vmem:[%s226 + $0x48] sm:$0xf]
      %v256 = vld [vmem:[%s226 + $0x4c] sm:$0xf]
      %v257 = vld [vmem:[%s226 + $0x50] sm:$0xf]
      %v258 = vld [vmem:[%s226 + $0x54] sm:$0xf]
      %v259 = vld [vmem:[%s226 + $0x58] sm:$0xf]
      %v260 = vld [vmem:[%s226 + $0x5c] sm:$0xf]
      %v261 = vld [vmem:[%s226 + $0x60] sm:$0xf]
      %v262 = vld [vmem:[%s226 + $0x64] sm:$0xf]
      %v263 = vld [vmem:[%s226 + $0x68] sm:$0xf]
      %v264 = vld [vmem:[%s226 + $0x6c] sm:$0xf]
      %v265 = vld [vmem:[%s226 + $0x70] sm:$0xf]
      %v266 = vld [vmem:[%s226 + $0x74] sm:$0xf]
      %v267 = vld [vmem:[%s226 + $0x78] sm:$0xf]
      %v268 = vld [vmem:[%s226 + $0x7c] sm:$0xf]
      %v269 = vunpack.c.l.bf16 %v237
      %v270 = vunpack.c.l.bf16 %v238
      %v271 = vunpack.c.l.bf16 %v239
      %v272 = vunpack.c.l.bf16 %v240
      %v273 = vunpack.c.l.bf16 %v241
      %v274 = vunpack.c.l.bf16 %v242
      %v275 = vunpack.c.l.bf16 %v243
      %v276 = vunpack.c.l.bf16 %v244
      %v277 = vunpack.c.l.bf16 %v245
      %v278 = vunpack.c.l.bf16 %v246
      %v279 = vunpack.c.l.bf16 %v247
      %v280 = vunpack.c.l.bf16 %v248
      %v281 = vunpack.c.l.bf16 %v249
      %v282 = vunpack.c.l.bf16 %v250
      %v283 = vunpack.c.l.bf16 %v251
      %v284 = vunpack.c.l.bf16 %v252
      %v285 = vunpack.c.l.bf16 %v253
      %v286 = vunpack.c.l.bf16 %v254
      %v287 = vunpack.c.l.bf16 %v255
      %v288 = vunpack.c.l.bf16 %v256
      %v289 = vunpack.c.l.bf16 %v257
      %v290 = vunpack.c.l.bf16 %v258
      %v291 = vunpack.c.l.bf16 %v259
      %v292 = vunpack.c.l.bf16 %v260
      %v293 = vunpack.c.l.bf16 %v261
      %v294 = vunpack.c.l.bf16 %v262
      %v295 = vunpack.c.l.bf16 %v263
      %v296 = vunpack.c.l.bf16 %v264
      %v297 = vunpack.c.l.bf16 %v265
      %v298 = vunpack.c.l.bf16 %v266
      %v299 = vunpack.c.l.bf16 %v267
      %v300 = vunpack.c.l.bf16 %v268
      %v301 = vld [vmem:[%s2] sm:$0x1]
      %v303 = vlaneseq
      %v304 = vshrl.u32 %v303, 7
      %v305 = vsub.s32 0, %v304
      %v306 = vrot.slane %v301, %v305
      %v308 = vmul.f32 %v269, %v306
      %v309 = vmul.f32 %v270, %v306
      %v310 = vmul.f32 %v271, %v306
      %v311 = vmul.f32 %v272, %v306
      %v312 = vmul.f32 %v273, %v306
      %v313 = vmul.f32 %v274, %v306
      %v314 = vmul.f32 %v275, %v306
      %v315 = vmul.f32 %v276, %v306
      %v316 = vmul.f32 %v277, %v306
      %v317 = vmul.f32 %v278, %v306
      %v318 = vmul.f32 %v279, %v306
      %v319 = vmul.f32 %v280, %v306
      %v320 = vmul.f32 %v281, %v306
      %v321 = vmul.f32 %v282, %v306
      %v322 = vmul.f32 %v283, %v306
      %v323 = vmul.f32 %v284, %v306
      %v324 = vmul.f32 %v285, %v306
      %v325 = vmul.f32 %v286, %v306
      %v326 = vmul.f32 %v287, %v306
      %v327 = vmul.f32 %v288, %v306
      %v328 = vmul.f32 %v289, %v306
      %v329 = vmul.f32 %v290, %v306
      %v330 = vmul.f32 %v291, %v306
      %v331 = vmul.f32 %v292, %v306
      %v332 = vmul.f32 %v293, %v306
      %v333 = vmul.f32 %v294, %v306
      %v334 = vmul.f32 %v295, %v306
      %v335 = vmul.f32 %v296, %v306
      %v336 = vmul.f32 %v297, %v306
      %v337 = vmul.f32 %v298, %v306
      %v338 = vmul.f32 %v299, %v306
      %v339 = vmul.f32 %v300, %v306
      %v340 = vld [vmem:[%s3] sm:$0x1]
      %v342 = vlaneseq
      %v343 = vshrl.u32 %v342, 7
      %v344 = vsub.s32 0, %v343
      %v345 = vrot.slane %v340, %v344
      %v347 = vadd.f32 %v308, %v345
      %v348 = vadd.f32 %v309, %v345
      %v349 = vadd.f32 %v310, %v345
      %v350 = vadd.f32 %v311, %v345
      %v351 = vadd.f32 %v312, %v345
      %v352 = vadd.f32 %v313, %v345
      %v353 = vadd.f32 %v314, %v345
      %v354 = vadd.f32 %v315, %v345
      %v355 = vadd.f32 %v316, %v345
      %v356 = vadd.f32 %v317, %v345
      %v357 = vadd.f32 %v318, %v345
      %v358 = vadd.f32 %v319, %v345
      %v359 = vadd.f32 %v320, %v345
      %v360 = vadd.f32 %v321, %v345
      %v361 = vadd.f32 %v322, %v345
      %v362 = vadd.f32 %v323, %v345
      %v363 = vadd.f32 %v324, %v345
      %v364 = vadd.f32 %v325, %v345
      %v365 = vadd.f32 %v326, %v345
      %v366 = vadd.f32 %v327, %v345
      %v367 = vadd.f32 %v328, %v345
      %v368 = vadd.f32 %v329, %v345
      %v369 = vadd.f32 %v330, %v345
      %v370 = vadd.f32 %v331, %v345
      %v371 = vadd.f32 %v332, %v345
      %v372 = vadd.f32 %v333, %v345
      %v373 = vadd.f32 %v334, %v345
      %v374 = vadd.f32 %v335, %v345
      %v375 = vadd.f32 %v336, %v345
      %v376 = vadd.f32 %v337, %v345
      %v377 = vadd.f32 %v338, %v345
      %v378 = vadd.f32 %v339, %v345
      %379 = vst [vmem:[#allocation2] sm:$0xf] 0
      %380 = vst [vmem:[#allocation2 + $0x4] sm:$0xf] 0
      %381 = vst [vmem:[#allocation2 + $0x8] sm:$0x1] 0
      %s382 = scalar_lea.vmem [#allocation2], 204
      %383 = vst [vmem:[%s382] sm:$0xf] 0
      %384 = vst [vmem:[%s382 + $0x4] sm:$0xf] 0
      %385 = vst [vmem:[%s382 + $0x8] sm:$0x1] 0
      %vm386 = vcmask 1040384
      %vm387 = vsmask.f32 256
      %vm388 = vmand %vm386, %vm387
      %v389 = vld [vmem:[#allocation2] sm:$0x1]
      %v390 = vsel %vm388, 0, %v389
      %391 = vst [vmem:[#allocation2] sm:$0x1] %v390
      %v392 = vld [vmem:[#allocation2 + $0xc] sm:$0x1]
      %v393 = vsel %vm388, 0, %v392
      %394 = vst [vmem:[#allocation2 + $0xc] sm:$0x1] %v393
      %v395 = vld [vmem:[#allocation2 + $0x18] sm:$0x1]
      %v396 = vsel %vm388, 0, %v395
      %397 = vst [vmem:[#allocation2 + $0x18] sm:$0x1] %v396
      %v398 = vld [vmem:[#allocation2 + $0x24] sm:$0x1]
      %v399 = vsel %vm388, 0, %v398
      %400 = vst [vmem:[#allocation2 + $0x24] sm:$0x1] %v399
      %v401 = vld [vmem:[#allocation2 + $0x30] sm:$0x1]
      %v402 = vsel %vm388, 0, %v401
      %403 = vst [vmem:[#allocation2 + $0x30] sm:$0x1] %v402
      %v404 = vld [vmem:[#allocation2 + $0x3c] sm:$0x1]
      %v405 = vsel %vm388, 0, %v404
      %406 = vst [vmem:[#allocation2 + $0x3c] sm:$0x1] %v405
      %v407 = vld [vmem:[#allocation2 + $0x48] sm:$0x1]
      %v408 = vsel %vm388, 0, %v407
      %409 = vst [vmem:[#allocation2 + $0x48] sm:$0x1] %v408
      %v410 = vld [vmem:[#allocation2 + $0x54] sm:$0x1]
      %v411 = vsel %vm388, 0, %v410
      %412 = vst [vmem:[#allocation2 + $0x54] sm:$0x1] %v411
      %v413 = vld [vmem:[#allocation2 + $0x60] sm:$0x1]
      %v414 = vsel %vm388, 0, %v413
      %415 = vst [vmem:[#allocation2 + $0x60] sm:$0x1] %v414
      %v416 = vld [vmem:[#allocation2 + $0x6c] sm:$0x1]
      %v417 = vsel %vm388, 0, %v416
      %418 = vst [vmem:[#allocation2 + $0x6c] sm:$0x1] %v417
      %v419 = vld [vmem:[#allocation2 + $0x78] sm:$0x1]
      %v420 = vsel %vm388, 0, %v419
      %421 = vst [vmem:[#allocation2 + $0x78] sm:$0x1] %v420
      %v422 = vld [vmem:[#allocation2 + $0x84] sm:$0x1]
      %v423 = vsel %vm388, 0, %v422
      %424 = vst [vmem:[#allocation2 + $0x84] sm:$0x1] %v423
      %v425 = vld [vmem:[#allocation2 + $0x90] sm:$0x1]
      %v426 = vsel %vm388, 0, %v425
      %427 = vst [vmem:[#allocation2 + $0x90] sm:$0x1] %v426
      %v428 = vld [vmem:[#allocation2 + $0x9c] sm:$0x1]
      %v429 = vsel %vm388, 0, %v428
      %430 = vst [vmem:[#allocation2 + $0x9c] sm:$0x1] %v429
      %v431 = vld [vmem:[#allocation2 + $0xa8] sm:$0x1]
      %v432 = vsel %vm388, 0, %v431
      %433 = vst [vmem:[#allocation2 + $0xa8] sm:$0x1] %v432
      %v434 = vld [vmem:[#allocation2 + $0xb4] sm:$0x1]
      %v435 = vsel %vm388, 0, %v434
      %436 = vst [vmem:[#allocation2 + $0xb4] sm:$0x1] %v435
      %v437 = vld [vmem:[#allocation2 + $0xc0] sm:$0x1]
      %v438 = vsel %vm388, 0, %v437
      %439 = vst [vmem:[#allocation2 + $0xc0] sm:$0x1] %v438
      %v440 = vld [vmem:[#allocation2 + $0xcc] sm:$0x1]
      %v441 = vsel %vm388, 0, %v440
      %442 = vst [vmem:[#allocation2 + $0xcc] sm:$0x1] %v441
      %vm443 = vsmask.f32 7938
      %vm444 = vmand %vm386, %vm443
      %v445 = vld [vmem:[#allocation2 + $0x8] sm:$0x1]
      %v446 = vsel %vm444, 0, %v445
      %447 = vst [vmem:[#allocation2 + $0x8] sm:$0x1] %v446
      %v448 = vld [vmem:[#allocation2 + $0x14] sm:$0x1]
      %v449 = vsel %vm444, 0, %v448
      %450 = vst [vmem:[#allocation2 + $0x14] sm:$0x1] %v449
      %v451 = vld [vmem:[#allocation2 + $0x20] sm:$0x1]
      %v452 = vsel %vm444, 0, %v451
      %453 = vst [vmem:[#allocation2 + $0x20] sm:$0x1] %v452
      %v454 = vld [vmem:[#allocation2 + $0x2c] sm:$0x1]
      %v455 = vsel %vm444, 0, %v454
      %456 = vst [vmem:[#allocation2 + $0x2c] sm:$0x1] %v455
      %v457 = vld [vmem:[#allocation2 + $0x38] sm:$0x1]
      %v458 = vsel %vm444, 0, %v457
      %459 = vst [vmem:[#allocation2 + $0x38] sm:$0x1] %v458
      %v460 = vld [vmem:[#allocation2 + $0x44] sm:$0x1]
      %v461 = vsel %vm444, 0, %v460
      %462 = vst [vmem:[#allocation2 + $0x44] sm:$0x1] %v461
      %v463 = vld [vmem:[#allocation2 + $0x50] sm:$0x1]
      %v464 = vsel %vm444, 0, %v463
      %465 = vst [vmem:[#allocation2 + $0x50] sm:$0x1] %v464
      %v466 = vld [vmem:[#allocation2 + $0x5c] sm:$0x1]
      %v467 = vsel %vm444, 0, %v466
      %468 = vst [vmem:[#allocation2 + $0x5c] sm:$0x1] %v467
      %v469 = vld [vmem:[#allocation2 + $0x68] sm:$0x1]
      %v470 = vsel %vm444, 0, %v469
      %471 = vst [vmem:[#allocation2 + $0x68] sm:$0x1] %v470
      %v472 = vld [vmem:[#allocation2 + $0x74] sm:$0x1]
      %v473 = vsel %vm444, 0, %v472
      %474 = vst [vmem:[#allocation2 + $0x74] sm:$0x1] %v473
      %v475 = vld [vmem:[#allocation2 + $0x80] sm:$0x1]
      %v476 = vsel %vm444, 0, %v475
      %477 = vst [vmem:[#allocation2 + $0x80] sm:$0x1] %v476
      %v478 = vld [vmem:[#allocation2 + $0x8c] sm:$0x1]
      %v479 = vsel %vm444, 0, %v478
      %480 = vst [vmem:[#allocation2 + $0x8c] sm:$0x1] %v479
      %v481 = vld [vmem:[#allocation2 + $0x98] sm:$0x1]
      %v482 = vsel %vm444, 0, %v481
      %483 = vst [vmem:[#allocation2 + $0x98] sm:$0x1] %v482
      %v484 = vld [vmem:[#allocation2 + $0xa4] sm:$0x1]
      %v485 = vsel %vm444, 0, %v484
      %486 = vst [vmem:[#allocation2 + $0xa4] sm:$0x1] %v485
      %v487 = vld [vmem:[#allocation2 + $0xb0] sm:$0x1]
      %v488 = vsel %vm444, 0, %v487
      %489 = vst [vmem:[#allocation2 + $0xb0] sm:$0x1] %v488
      %v490 = vld [vmem:[#allocation2 + $0xbc] sm:$0x1]
      %v491 = vsel %vm444, 0, %v490
      %492 = vst [vmem:[#allocation2 + $0xbc] sm:$0x1] %v491
      %v493 = vld [vmem:[#allocation2 + $0xc8] sm:$0x1]
      %v494 = vsel %vm444, 0, %v493
      %495 = vst [vmem:[#allocation2 + $0xc8] sm:$0x1] %v494
      %v496 = vld [vmem:[#allocation2 + $0xd4] sm:$0x1]
      %v497 = vsel %vm444, 0, %v496
      %498 = vst [vmem:[#allocation2 + $0xd4] sm:$0x1] %v497
      %v499 = vpack.c.bf16 %v348, %v347
      %v500 = vpack.c.bf16 %v350, %v349
      %v501 = vpack.c.bf16 %v352, %v351
      %v502 = vpack.c.bf16 %v354, %v353
      %v503 = vpack.c.bf16 %v356, %v355
      %v504 = vpack.c.bf16 %v358, %v357
      %v505 = vpack.c.bf16 %v360, %v359
      %v506 = vpack.c.bf16 %v362, %v361
      %v507 = vpack.c.bf16 %v364, %v363
      %v508 = vpack.c.bf16 %v366, %v365
      %v509 = vpack.c.bf16 %v368, %v367
      %v510 = vpack.c.bf16 %v370, %v369
      %v511 = vpack.c.bf16 %v372, %v371
      %v512 = vpack.c.bf16 %v374, %v373
      %v513 = vpack.c.bf16 %v376, %v375
      %v514 = vpack.c.bf16 %v378, %v377
      %v531 = vunpack.c.l.b16 %v499
      %v532 = vunpack.c.h.b16 %v499
      %v533 = vunpack.c.l.b16 %v500
      %v534 = vunpack.c.h.b16 %v500
      %v535 = vunpack.c.l.b16 %v501
      %v536 = vunpack.c.h.b16 %v501
      %v537 = vunpack.c.l.b16 %v502
      %v538 = vunpack.c.h.b16 %v502
      %v539 = vunpack.c.l.b16 %v503
      %v540 = vunpack.c.h.b16 %v503
      %v541 = vunpack.c.l.b16 %v504
      %v542 = vunpack.c.h.b16 %v504
      %v543 = vunpack.c.l.b16 %v505
      %v544 = vunpack.c.h.b16 %v505
      %v545 = vunpack.c.l.b16 %v506
      %v546 = vunpack.c.h.b16 %v506
      %v547 = vunpack.c.l.b16 %v507
      %v548 = vunpack.c.h.b16 %v507
      %v549 = vunpack.c.l.b16 %v508
      %v550 = vunpack.c.h.b16 %v508
      %v551 = vunpack.c.l.b16 %v509
      %v552 = vunpack.c.h.b16 %v509
      %v553 = vunpack.c.l.b16 %v510
      %v554 = vunpack.c.h.b16 %v510
      %v555 = vunpack.c.l.b16 %v511
      %v556 = vunpack.c.h.b16 %v511
      %v557 = vunpack.c.l.b16 %v512
      %v558 = vunpack.c.h.b16 %v512
      %v559 = vunpack.c.l.b16 %v513
      %v560 = vunpack.c.h.b16 %v513
      %v561 = vunpack.c.l.b16 %v514
      %v562 = vunpack.c.h.b16 %v514
      %v563 = vpack.c.b16 %v531, %v531
      %v564 = vpack.c.b16 %v532, %v532
      %v565 = vpack.c.b16 %v533, %v533
      %v566 = vpack.c.b16 %v534, %v534
      %v567 = vpack.c.b16 %v535, %v535
      %v568 = vpack.c.b16 %v536, %v536
      %v569 = vpack.c.b16 %v537, %v537
      %v570 = vpack.c.b16 %v538, %v538
      %v571 = vpack.c.b16 %v539, %v539
      %v572 = vpack.c.b16 %v540, %v540
      %v573 = vpack.c.b16 %v541, %v541
      %v574 = vpack.c.b16 %v542, %v542
      %v575 = vpack.c.b16 %v543, %v543
      %v576 = vpack.c.b16 %v544, %v544
      %v577 = vpack.c.b16 %v545, %v545
      %v578 = vpack.c.b16 %v546, %v546
      %v579 = vpack.c.b16 %v547, %v547
      %v580 = vpack.c.b16 %v548, %v548
      %v581 = vpack.c.b16 %v549, %v549
      %v582 = vpack.c.b16 %v550, %v550
      %v583 = vpack.c.b16 %v551, %v551
      %v584 = vpack.c.b16 %v552, %v552
      %v585 = vpack.c.b16 %v553, %v553
      %v586 = vpack.c.b16 %v554, %v554
      %v587 = vpack.c.b16 %v555, %v555
      %v588 = vpack.c.b16 %v556, %v556
      %v589 = vpack.c.b16 %v557, %v557
      %v590 = vpack.c.b16 %v558, %v558
      %v591 = vpack.c.b16 %v559, %v559
      %v592 = vpack.c.b16 %v560, %v560
      %v593 = vpack.c.b16 %v561, %v561
      %v594 = vpack.c.b16 %v562, %v562
      %vm595 = vsmask.f32 4368
      %vm596 = vmor %vm387, %vm595
      %v598 = vshrl.u32 %v563, 16
      %v600 = vrot.slane %v598, 7
      %v601 = vshll.u32 %v563, 16
      %v603 = vor.u32 %v600, %v601
      %v604 = vrot.slane %v600, 4
      %v606 = vshrl.u32 %v564, 16
      %v608 = vrot.slane %v606, 7
      %v609 = vshll.u32 %v564, 16
      %v611 = vor.u32 %v608, %v609
      %v612 = vsel %vm596, %v604, %v611
      %v613 = vrot.slane %v608, 4
      %v615 = vshrl.u32 %v565, 16
      %v617 = vrot.slane %v615, 7
      %v618 = vshll.u32 %v565, 16
      %v620 = vor.u32 %v617, %v618
      %v621 = vrot.slane %v617, 4
      %v623 = vshrl.u32 %v566, 16
      %v625 = vrot.slane %v623, 7
      %v626 = vshll.u32 %v566, 16
      %v628 = vor.u32 %v625, %v626
      %v629 = vsel %vm596, %v621, %v628
      %v630 = vrot.slane %v625, 4
      %v632 = vshrl.u32 %v567, 16
      %v634 = vrot.slane %v632, 7
      %v635 = vshll.u32 %v567, 16
      %v637 = vor.u32 %v634, %v635
      %v638 = vrot.slane %v634, 4
      %v640 = vshrl.u32 %v568, 16
      %v642 = vrot.slane %v640, 7
      %v643 = vshll.u32 %v568, 16
      %v645 = vor.u32 %v642, %v643
      %v646 = vsel %vm596, %v638, %v645
      %v647 = vrot.slane %v642, 4
      %v649 = vshrl.u32 %v569, 16
      %v651 = vrot.slane %v649, 7
      %v652 = vshll.u32 %v569, 16
      %v654 = vor.u32 %v651, %v652
      %v655 = vrot.slane %v651, 4
      %v657 = vshrl.u32 %v570, 16
      %v659 = vrot.slane %v657, 7
      %v660 = vshll.u32 %v570, 16
      %v662 = vor.u32 %v659, %v660
      %v663 = vsel %vm596, %v655, %v662
      %v664 = vrot.slane %v659, 4
      %v666 = vshrl.u32 %v571, 16
      %v668 = vrot.slane %v666, 7
      %v669 = vshll.u32 %v571, 16
      %v671 = vor.u32 %v668, %v669
      %v672 = vrot.slane %v668, 4
      %v674 = vshrl.u32 %v572, 16
      %v676 = vrot.slane %v674, 7
      %v677 = vshll.u32 %v572, 16
      %v679 = vor.u32 %v676, %v677
      %v680 = vsel %vm596, %v672, %v679
      %v681 = vrot.slane %v676, 4
      %v683 = vshrl.u32 %v573, 16
      %v685 = vrot.slane %v683, 7
      %v686 = vshll.u32 %v573, 16
      %v688 = vor.u32 %v685, %v686
      %v689 = vrot.slane %v685, 4
      %v691 = vshrl.u32 %v574, 16
      %v693 = vrot.slane %v691, 7
      %v694 = vshll.u32 %v574, 16
      %v696 = vor.u32 %v693, %v694
      %v697 = vsel %vm596, %v689, %v696
      %v698 = vrot.slane %v693, 4
      %v700 = vshrl.u32 %v575, 16
      %v702 = vrot.slane %v700, 7
      %v703 = vshll.u32 %v575, 16
      %v705 = vor.u32 %v702, %v703
      %v706 = vrot.slane %v702, 4
      %v708 = vshrl.u32 %v576, 16
      %v710 = vrot.slane %v708, 7
      %v711 = vshll.u32 %v576, 16
      %v713 = vor.u32 %v710, %v711
      %v714 = vsel %vm596, %v706, %v713
      %v715 = vrot.slane %v710, 4
      %v717 = vshrl.u32 %v577, 16
      %v719 = vrot.slane %v717, 7
      %v720 = vshll.u32 %v577, 16
      %v722 = vor.u32 %v719, %v720
      %v723 = vrot.slane %v719, 4
      %v725 = vshrl.u32 %v578, 16
      %v727 = vrot.slane %v725, 7
      %v728 = vshll.u32 %v578, 16
      %v730 = vor.u32 %v727, %v728
      %v731 = vsel %vm596, %v723, %v730
      %v732 = vrot.slane %v727, 4
      %v734 = vshrl.u32 %v579, 16
      %v736 = vrot.slane %v734, 7
      %v737 = vshll.u32 %v579, 16
      %v739 = vor.u32 %v736, %v737
      %v740 = vrot.slane %v736, 4
      %v742 = vshrl.u32 %v580, 16
      %v744 = vrot.slane %v742, 7
      %v745 = vshll.u32 %v580, 16
      %v747 = vor.u32 %v744, %v745
      %v748 = vsel %vm596, %v740, %v747
      %v749 = vrot.slane %v744, 4
      %v751 = vshrl.u32 %v581, 16
      %v753 = vrot.slane %v751, 7
      %v754 = vshll.u32 %v581, 16
      %v756 = vor.u32 %v753, %v754
      %v757 = vrot.slane %v753, 4
      %v759 = vshrl.u32 %v582, 16
      %v761 = vrot.slane %v759, 7
      %v762 = vshll.u32 %v582, 16
      %v764 = vor.u32 %v761, %v762
      %v765 = vsel %vm596, %v757, %v764
      %v766 = vrot.slane %v761, 4
      %v768 = vshrl.u32 %v583, 16
      %v770 = vrot.slane %v768, 7
      %v771 = vshll.u32 %v583, 16
      %v773 = vor.u32 %v770, %v771
      %v774 = vrot.slane %v770, 4
      %v776 = vshrl.u32 %v584, 16
      %v778 = vrot.slane %v776, 7
      %v779 = vshll.u32 %v584, 16
      %v781 = vor.u32 %v778, %v779
      %v782 = vsel %vm596, %v774, %v781
      %v783 = vrot.slane %v778, 4
      %v785 = vshrl.u32 %v585, 16
      %v787 = vrot.slane %v785, 7
      %v788 = vshll.u32 %v585, 16
      %v790 = vor.u32 %v787, %v788
      %v791 = vrot.slane %v787, 4
      %v793 = vshrl.u32 %v586, 16
      %v795 = vrot.slane %v793, 7
      %v796 = vshll.u32 %v586, 16
      %v798 = vor.u32 %v795, %v796
      %v799 = vsel %vm596, %v791, %v798
      %v800 = vrot.slane %v795, 4
      %v802 = vshrl.u32 %v587, 16
      %v804 = vrot.slane %v802, 7
      %v805 = vshll.u32 %v587, 16
      %v807 = vor.u32 %v804, %v805
      %v808 = vrot.slane %v804, 4
      %v810 = vshrl.u32 %v588, 16
      %v812 = vrot.slane %v810, 7
      %v813 = vshll.u32 %v588, 16
      %v815 = vor.u32 %v812, %v813
      %v816 = vsel %vm596, %v808, %v815
      %v817 = vrot.slane %v812, 4
      %v819 = vshrl.u32 %v589, 16
      %v821 = vrot.slane %v819, 7
      %v822 = vshll.u32 %v589, 16
      %v824 = vor.u32 %v821, %v822
      %v825 = vrot.slane %v821, 4
      %v827 = vshrl.u32 %v590, 16
      %v829 = vrot.slane %v827, 7
      %v830 = vshll.u32 %v590, 16
      %v832 = vor.u32 %v829, %v830
      %v833 = vsel %vm596, %v825, %v832
      %v834 = vrot.slane %v829, 4
      %v836 = vshrl.u32 %v591, 16
      %v838 = vrot.slane %v836, 7
      %v839 = vshll.u32 %v591, 16
      %v841 = vor.u32 %v838, %v839
      %v842 = vrot.slane %v838, 4
      %v844 = vshrl.u32 %v592, 16
      %v846 = vrot.slane %v844, 7
      %v847 = vshll.u32 %v592, 16
      %v849 = vor.u32 %v846, %v847
      %v850 = vsel %vm596, %v842, %v849
      %v851 = vrot.slane %v846, 4
      %v853 = vshrl.u32 %v593, 16
      %v855 = vrot.slane %v853, 7
      %v856 = vshll.u32 %v593, 16
      %v858 = vor.u32 %v855, %v856
      %v859 = vrot.slane %v855, 4
      %v861 = vshrl.u32 %v594, 16
      %v863 = vrot.slane %v861, 7
      %v864 = vshll.u32 %v594, 16
      %v866 = vor.u32 %v863, %v864
      %v867 = vsel %vm596, %v859, %v866
      %v868 = vrot.slane %v863, 4
      %s917 = scalar_lea.vmem [#allocation2], 12
      %vm918 = vcmask 1043456
      %vm919 = vmand %vm918, %vm443
      %v920 = vld [vmem:[%s917] sm:$0xf]
      %v921 = vsel %vm919, %v603, %v920
      %922 = vst [vmem:[%s917] sm:$0xf] %v921
      %923 = vst [vmem:[%s917 + $0x4] sm:$0xf] %v612
      %v924 = vld [vmem:[%s917 + $0x8] sm:$0x1]
      %v925 = vsel %vm388, %v613, %v924
      %926 = vst [vmem:[%s917 + $0x8] sm:$0x1] %v925
      %v927 = vld [vmem:[%s917 + $0xc] sm:$0xf]
      %v928 = vsel %vm919, %v620, %v927
      %929 = vst [vmem:[%s917 + $0xc] sm:$0xf] %v928
      %930 = vst [vmem:[%s917 + $0x10] sm:$0xf] %v629
      %v931 = vld [vmem:[%s917 + $0x14] sm:$0x1]
      %v932 = vsel %vm388, %v630, %v931
      %933 = vst [vmem:[%s917 + $0x14] sm:$0x1] %v932
      %v934 = vld [vmem:[%s917 + $0x18] sm:$0xf]
      %v935 = vsel %vm919, %v637, %v934
      %936 = vst [vmem:[%s917 + $0x18] sm:$0xf] %v935
      %937 = vst [vmem:[%s917 + $0x1c] sm:$0xf] %v646
      %v938 = vld [vmem:[%s917 + $0x20] sm:$0x1]
      %v939 = vsel %vm388, %v647, %v938
      %940 = vst [vmem:[%s917 + $0x20] sm:$0x1] %v939
      %v941 = vld [vmem:[%s917 + $0x24] sm:$0xf]
      %v942 = vsel %vm919, %v654, %v941
      %943 = vst [vmem:[%s917 + $0x24] sm:$0xf] %v942
      %944 = vst [vmem:[%s917 + $0x28] sm:$0xf] %v663
      %v945 = vld [vmem:[%s917 + $0x2c] sm:$0x1]
      %v946 = vsel %vm388, %v664, %v945
      %947 = vst [vmem:[%s917 + $0x2c] sm:$0x1] %v946
      %v948 = vld [vmem:[%s917 + $0x30] sm:$0xf]
      %v949 = vsel %vm919, %v671, %v948
      %950 = vst [vmem:[%s917 + $0x30] sm:$0xf] %v949
      %951 = vst [vmem:[%s917 + $0x34] sm:$0xf] %v680
      %v952 = vld [vmem:[%s917 + $0x38] sm:$0x1]
      %v953 = vsel %vm388, %v681, %v952
      %954 = vst [vmem:[%s917 + $0x38] sm:$0x1] %v953
      %v955 = vld [vmem:[%s917 + $0x3c] sm:$0xf]
      %v956 = vsel %vm919, %v688, %v955
      %957 = vst [vmem:[%s917 + $0x3c] sm:$0xf] %v956
      %958 = vst [vmem:[%s917 + $0x40] sm:$0xf] %v697
      %v959 = vld [vmem:[%s917 + $0x44] sm:$0x1]
      %v960 = vsel %vm388, %v698, %v959
      %961 = vst [vmem:[%s917 + $0x44] sm:$0x1] %v960
      %v962 = vld [vmem:[%s917 + $0x48] sm:$0xf]
      %v963 = vsel %vm919, %v705, %v962
      %964 = vst [vmem:[%s917 + $0x48] sm:$0xf] %v963
      %965 = vst [vmem:[%s917 + $0x4c] sm:$0xf] %v714
      %v966 = vld [vmem:[%s917 + $0x50] sm:$0x1]
      %v967 = vsel %vm388, %v715, %v966
      %968 = vst [vmem:[%s917 + $0x50] sm:$0x1] %v967
      %v969 = vld [vmem:[%s917 + $0x54] sm:$0xf]
      %v970 = vsel %vm919, %v722, %v969
      %971 = vst [vmem:[%s917 + $0x54] sm:$0xf] %v970
      %972 = vst [vmem:[%s917 + $0x58] sm:$0xf] %v731
      %v973 = vld [vmem:[%s917 + $0x5c] sm:$0x1]
      %v974 = vsel %vm388, %v732, %v973
      %975 = vst [vmem:[%s917 + $0x5c] sm:$0x1] %v974
      %v976 = vld [vmem:[%s917 + $0x60] sm:$0xf]
      %v977 = vsel %vm919, %v739, %v976
      %978 = vst [vmem:[%s917 + $0x60] sm:$0xf] %v977
      %979 = vst [vmem:[%s917 + $0x64] sm:$0xf] %v748
      %v980 = vld [vmem:[%s917 + $0x68] sm:$0x1]
      %v981 = vsel %vm388, %v749, %v980
      %982 = vst [vmem:[%s917 + $0x68] sm:$0x1] %v981
      %v983 = vld [vmem:[%s917 + $0x6c] sm:$0xf]
      %v984 = vsel %vm919, %v756, %v983
      %985 = vst [vmem:[%s917 + $0x6c] sm:$0xf] %v984
      %986 = vst [vmem:[%s917 + $0x70] sm:$0xf] %v765
      %v987 = vld [vmem:[%s917 + $0x74] sm:$0x1]
      %v988 = vsel %vm388, %v766, %v987
      %989 = vst [vmem:[%s917 + $0x74] sm:$0x1] %v988
      %v990 = vld [vmem:[%s917 + $0x78] sm:$0xf]
      %v991 = vsel %vm919, %v773, %v990
      %992 = vst [vmem:[%s917 + $0x78] sm:$0xf] %v991
      %993 = vst [vmem:[%s917 + $0x7c] sm:$0xf] %v782
      %v994 = vld [vmem:[%s917 + $0x80] sm:$0x1]
      %v995 = vsel %vm388, %v783, %v994
      %996 = vst [vmem:[%s917 + $0x80] sm:$0x1] %v995
      %v997 = vld [vmem:[%s917 + $0x84] sm:$0xf]
      %v998 = vsel %vm919, %v790, %v997
      %999 = vst [vmem:[%s917 + $0x84] sm:$0xf] %v998
      %1000 = vst [vmem:[%s917 + $0x88] sm:$0xf] %v799
      %v1001 = vld [vmem:[%s917 + $0x8c] sm:$0x1]
      %v1002 = vsel %vm388, %v800, %v1001
      %1003 = vst [vmem:[%s917 + $0x8c] sm:$0x1] %v1002
      %v1004 = vld [vmem:[%s917 + $0x90] sm:$0xf]
      %v1005 = vsel %vm919, %v807, %v1004
      %1006 = vst [vmem:[%s917 + $0x90] sm:$0xf] %v1005
      %1007 = vst [vmem:[%s917 + $0x94] sm:$0xf] %v816
      %v1008 = vld [vmem:[%s917 + $0x98] sm:$0x1]
      %v1009 = vsel %vm388, %v817, %v1008
      %1010 = vst [vmem:[%s917 + $0x98] sm:$0x1] %v1009
      %v1011 = vld [vmem:[%s917 + $0x9c] sm:$0xf]
      %v1012 = vsel %vm919, %v824, %v1011
      %1013 = vst [vmem:[%s917 + $0x9c] sm:$0xf] %v1012
      %1014 = vst [vmem:[%s917 + $0xa0] sm:$0xf] %v833
      %v1015 = vld [vmem:[%s917 + $0xa4] sm:$0x1]
      %v1016 = vsel %vm388, %v834, %v1015
      %1017 = vst [vmem:[%s917 + $0xa4] sm:$0x1] %v1016
      %v1018 = vld [vmem:[%s917 + $0xa8] sm:$0xf]
      %v1019 = vsel %vm919, %v841, %v1018
      %1020 = vst [vmem:[%s917 + $0xa8] sm:$0xf] %v1019
      %1021 = vst [vmem:[%s917 + $0xac] sm:$0xf] %v850
      %v1022 = vld [vmem:[%s917 + $0xb0] sm:$0x1]
      %v1023 = vsel %vm388, %v851, %v1022
      %1024 = vst [vmem:[%s917 + $0xb0] sm:$0x1] %v1023
      %v1025 = vld [vmem:[%s917 + $0xb4] sm:$0xf]
      %v1026 = vsel %vm919, %v858, %v1025
      %1027 = vst [vmem:[%s917 + $0xb4] sm:$0xf] %v1026
      %1028 = vst [vmem:[%s917 + $0xb8] sm:$0xf] %v867
      %v1029 = vld [vmem:[%s917 + $0xbc] sm:$0x1]
      %v1030 = vsel %vm388, %v868, %v1029
      %1031 = vst [vmem:[%s917 + $0xbc] sm:$0x1] %v1030
      %v1032 = vld [vmem:[#allocation2] sm:$0xf]
      %v1033 = vld [vmem:[#allocation2 + $0x4] sm:$0xf]
      %v1034 = vld [vmem:[#allocation2 + $0xc] sm:$0xf]
      %v1035 = vld [vmem:[#allocation2 + $0x10] sm:$0xf]
      %v1036 = vld [vmem:[#allocation2 + $0x18] sm:$0xf]
      %v1037 = vld [vmem:[#allocation2 + $0x1c] sm:$0xf]
      %v1038 = vld [vmem:[#allocation2 + $0x24] sm:$0xf]
      %v1039 = vld [vmem:[#allocation2 + $0x28] sm:$0xf]
      %v1040 = vld [vmem:[#allocation2 + $0x30] sm:$0xf]
      %v1041 = vld [vmem:[#allocation2 + $0x34] sm:$0xf]
      %v1042 = vld [vmem:[#allocation2 + $0x3c] sm:$0xf]
      %v1043 = vld [vmem:[#allocation2 + $0x40] sm:$0xf]
      %v1044 = vld [vmem:[#allocation2 + $0x48] sm:$0xf]
      %v1045 = vld [vmem:[#allocation2 + $0x4c] sm:$0xf]
      %v1046 = vld [vmem:[#allocation2 + $0x54] sm:$0xf]
      %v1047 = vld [vmem:[#allocation2 + $0x58] sm:$0xf]
      %v1048 = vld [vmem:[#allocation2 + $0x60] sm:$0xf]
      %v1049 = vld [vmem:[#allocation2 + $0x64] sm:$0xf]
      %v1050 = vld [vmem:[#allocation2 + $0x6c] sm:$0xf]
      %v1051 = vld [vmem:[#allocation2 + $0x70] sm:$0xf]
      %v1052 = vld [vmem:[#allocation2 + $0x78] sm:$0xf]
      %v1053 = vld [vmem:[#allocation2 + $0x7c] sm:$0xf]
      %v1054 = vld [vmem:[#allocation2 + $0x84] sm:$0xf]
      %v1055 = vld [vmem:[#allocation2 + $0x88] sm:$0xf]
      %v1056 = vld [vmem:[#allocation2 + $0x90] sm:$0xf]
      %v1057 = vld [vmem:[#allocation2 + $0x94] sm:$0xf]
      %v1058 = vld [vmem:[#allocation2 + $0x9c] sm:$0xf]
      %v1059 = vld [vmem:[#allocation2 + $0xa0] sm:$0xf]
      %v1060 = vld [vmem:[#allocation2 + $0xa8] sm:$0xf]
      %v1061 = vld [vmem:[#allocation2 + $0xac] sm:$0xf]
      %v1062 = vld [vmem:[#allocation2 + $0xb4] sm:$0xf]
      %v1063 = vld [vmem:[#allocation2 + $0xb8] sm:$0xf]
      %v1064 = vld [vmem:[#allocation2 + $0xc0] sm:$0xf]
      %v1065 = vld [vmem:[#allocation2 + $0xc4] sm:$0xf]
      %v1066 = vld [vmem:[#allocation2 + $0xcc] sm:$0xf]
      %v1067 = vld [vmem:[#allocation2 + $0xd0] sm:$0xf]
      %v1068 = vld [vmem:[%s1] sm:$0xf]
      %v1069 = vld [vmem:[%s1 + $0x4] sm:$0xf]
      %v1070 = vld [vmem:[%s1 + $0x8] sm:$0xf]
      %v1071 = vld [vmem:[%s1 + $0xc] sm:$0xf]
      %v1072 = vld [vmem:[%s1 + $0x10] sm:$0xf]
      %v1073 = vld [vmem:[%s1 + $0x14] sm:$0xf]
      %v1074 = vld [vmem:[%s1 + $0x18] sm:$0xf]
      %v1075 = vld [vmem:[%s1 + $0x1c] sm:$0xf]
      %v1076 = vld [vmem:[%s1 + $0x20] sm:$0xf]
      %v1077 = vld [vmem:[%s1 + $0x24] sm:$0xf]
      %v1078 = vld [vmem:[%s1 + $0x28] sm:$0xf]
      %v1079 = vld [vmem:[%s1 + $0x2c] sm:$0xf]
      %v1080 = vld [vmem:[%s1 + $0x30] sm:$0xf]
      %v1081 = vld [vmem:[%s1 + $0x34] sm:$0xf]
      %v1082 = vld [vmem:[%s1 + $0x38] sm:$0xf]
      %v1083 = vld [vmem:[%s1 + $0x3c] sm:$0xf]
      %v1116 = vunpack.c.l.b16 %v1032
      %v1117 = vunpack.c.l.b16 %v1033
      %v1118 = vunpack.c.l.b16 %v1034
      %v1119 = vunpack.c.l.b16 %v1035
      %v1120 = vunpack.c.l.b16 %v1036
      %v1121 = vunpack.c.l.b16 %v1037
      %v1122 = vunpack.c.l.b16 %v1038
      %v1123 = vunpack.c.l.b16 %v1039
      %v1124 = vunpack.c.l.b16 %v1040
      %v1125 = vunpack.c.l.b16 %v1041
      %v1126 = vunpack.c.l.b16 %v1042
      %v1127 = vunpack.c.l.b16 %v1043
      %v1128 = vunpack.c.l.b16 %v1044
      %v1129 = vunpack.c.l.b16 %v1045
      %v1130 = vunpack.c.l.b16 %v1046
      %v1131 = vunpack.c.l.b16 %v1047
      %v1132 = vunpack.c.l.b16 %v1048
      %v1133 = vunpack.c.l.b16 %v1049
      %v1134 = vunpack.c.l.b16 %v1050
      %v1135 = vunpack.c.l.b16 %v1051
      %v1136 = vunpack.c.l.b16 %v1052
      %v1137 = vunpack.c.l.b16 %v1053
      %v1138 = vunpack.c.l.b16 %v1054
      %v1139 = vunpack.c.l.b16 %v1055
      %v1140 = vunpack.c.l.b16 %v1056
      %v1141 = vunpack.c.l.b16 %v1057
      %v1142 = vunpack.c.l.b16 %v1058
      %v1143 = vunpack.c.l.b16 %v1059
      %v1144 = vunpack.c.l.b16 %v1060
      %v1145 = vunpack.c.l.b16 %v1061
      %v1146 = vunpack.c.l.b16 %v1062
      %v1147 = vunpack.c.l.b16 %v1063
      %v1148 = vpack.c.b16 %v1117, %v1116
      %v1149 = vpack.c.b16 %v1119, %v1118
      %v1150 = vpack.c.b16 %v1121, %v1120
      %v1151 = vpack.c.b16 %v1123, %v1122
      %v1152 = vpack.c.b16 %v1125, %v1124
      %v1153 = vpack.c.b16 %v1127, %v1126
      %v1154 = vpack.c.b16 %v1129, %v1128
      %v1155 = vpack.c.b16 %v1131, %v1130
      %v1156 = vpack.c.b16 %v1133, %v1132
      %v1157 = vpack.c.b16 %v1135, %v1134
      %v1158 = vpack.c.b16 %v1137, %v1136
      %v1159 = vpack.c.b16 %v1139, %v1138
      %v1160 = vpack.c.b16 %v1141, %v1140
      %v1161 = vpack.c.b16 %v1143, %v1142
      %v1162 = vpack.c.b16 %v1145, %v1144
      %v1163 = vpack.c.b16 %v1147, %v1146
      %v1196 = vunpack.c.l.b16 %v1068
      %v1197 = vunpack.c.l.b16 %v1069
      %v1198 = vunpack.c.l.b16 %v1070
      %v1199 = vunpack.c.l.b16 %v1071
      %v1200 = vunpack.c.l.b16 %v1072
      %v1201 = vunpack.c.l.b16 %v1073
      %v1202 = vunpack.c.l.b16 %v1074
      %v1203 = vunpack.c.l.b16 %v1075
      %v1204 = vunpack.c.l.b16 %v1076
      %v1205 = vunpack.c.l.b16 %v1077
      %v1206 = vunpack.c.l.b16 %v1078
      %v1207 = vunpack.c.l.b16 %v1079
      %v1208 = vunpack.c.l.b16 %v1080
      %v1209 = vunpack.c.l.b16 %v1081
      %v1210 = vunpack.c.l.b16 %v1082
      %v1211 = vunpack.c.l.b16 %v1083
      %v1212 = vpack.c.b16 %v1197, %v1196
      %v1213 = vpack.c.b16 %v1199, %v1198
      %v1214 = vpack.c.b16 %v1201, %v1200
      %v1215 = vpack.c.b16 %v1203, %v1202
      %v1216 = vpack.c.b16 %v1205, %v1204
      %v1217 = vpack.c.b16 %v1207, %v1206
      %v1218 = vpack.c.b16 %v1209, %v1208
      %v1219 = vpack.c.b16 %v1211, %v1210
      %1228 = vmatprep.subr.bf16.mxu0 0
      %1229 = vmatpush1.bf16.msra.mxu0 %v1219
      %1230 = vmatprep.subr.bf16.mxu0 0
      %1231 = vmatpush1.bf16.msra.mxu0 %v1218
      %1232 = vmatprep.subr.bf16.mxu0 0
      %1233 = vmatpush1.bf16.msra.mxu0 %v1217
      %1234 = vmatprep.subr.bf16.mxu0 0
      %1235 = vmatpush1.bf16.msra.mxu0 %v1216
      %1236 = vmatprep.subr.bf16.mxu0 0
      %1237 = vmatpush1.bf16.msra.mxu0 %v1215
      %1238 = vmatprep.subr.bf16.mxu0 0
      %1239 = vmatpush1.bf16.msra.mxu0 %v1214
      %1240 = vmatprep.subr.bf16.mxu0 0
      %1241 = vmatpush1.bf16.msra.mxu0 %v1213
      %1242 = vmatprep.subr.bf16.mxu0 0
      %1243 = vmatpush1.bf16.msra.mxu0 %v1212
      %1244 = vmatprep.subr.bf16.mxu0 0
      %1245 = vmatpush2.bf16.msra.mxu0 0
      %1246 = vmatprep.subr.bf16.mxu0 0
      %1247 = vmatpush2.bf16.msra.mxu0 0
      %1248 = vmatprep.subr.bf16.mxu0 0
      %1249 = vmatpush2.bf16.msra.mxu0 0
      %1250 = vmatprep.subr.bf16.mxu0 0
      %1251 = vmatpush2.bf16.msra.mxu0 0
      %1252 = vmatprep.subr.bf16.mxu0 0
      %1253 = vmatpush2.bf16.msra.mxu0 0
      %1254 = vmatprep.subr.bf16.mxu0 0
      %1255 = vmatpush2.bf16.msra.mxu0 0
      %1256 = vmatprep.subr.bf16.mxu0 0
      %1257 = vmatpush2.bf16.msra.mxu0 0
      %1258 = vmatprep.subr.bf16.mxu0 0
      %1259 = vmatpush2.bf16.msra.mxu0 0
      %1260 = vmatprep.mubr.bf16.mxu0 0
      %1261 = vmatmul.mubr.bf16.gmra.mxu0 %v1148
      %v1262 = vpop.f32.mrf.mxu0
      %v1263 = vadd.f32 0.0, %v1262
      %v1264 = vpop.f32.mrf.mxu0
      %v1265 = vpop.f32.mrf.mxu0
      %v1266 = vadd.f32 0.0, %v1265
      %v1267 = vpop.f32.mrf.mxu0
      %1268 = vmatprep.mubr.bf16.mxu0 0
      %1269 = vmatmul.mubr.bf16.gmra.mxu0 %v1149
      %v1270 = vpop.f32.mrf.mxu0
      %v1271 = vadd.f32 0.0, %v1270
      %v1272 = vpop.f32.mrf.mxu0
      %v1273 = vpop.f32.mrf.mxu0
      %v1274 = vadd.f32 0.0, %v1273
      %v1275 = vpop.f32.mrf.mxu0
      %1276 = vmatprep.mubr.bf16.mxu0 0
      %1277 = vmatmul.mubr.bf16.gmra.mxu0 %v1150
      %v1278 = vpop.f32.mrf.mxu0
      %v1279 = vadd.f32 0.0, %v1278
      %v1280 = vpop.f32.mrf.mxu0
      %v1281 = vpop.f32.mrf.mxu0
      %v1282 = vadd.f32 0.0, %v1281
      %v1283 = vpop.f32.mrf.mxu0
      %1284 = vmatprep.mubr.bf16.mxu0 0
      %1285 = vmatmul.mubr.bf16.gmra.mxu0 %v1151
      %v1286 = vpop.f32.mrf.mxu0
      %v1287 = vadd.f32 0.0, %v1286
      %v1288 = vpop.f32.mrf.mxu0
      %v1289 = vpop.f32.mrf.mxu0
      %v1290 = vadd.f32 0.0, %v1289
      %v1291 = vpop.f32.mrf.mxu0
      %1292 = vmatprep.mubr.bf16.mxu0 0
      %1293 = vmatmul.mubr.bf16.gmra.mxu0 %v1152
      %v1294 = vpop.f32.mrf.mxu0
      %v1295 = vadd.f32 0.0, %v1294
      %v1296 = vpop.f32.mrf.mxu0
      %v1297 = vpop.f32.mrf.mxu0
      %v1298 = vadd.f32 0.0, %v1297
      %v1299 = vpop.f32.mrf.mxu0
      %1300 = vmatprep.mubr.bf16.mxu0 0
      %1301 = vmatmul.mubr.bf16.gmra.mxu0 %v1153
      %v1302 = vpop.f32.mrf.mxu0
      %v1303 = vadd.f32 0.0, %v1302
      %v1304 = vpop.f32.mrf.mxu0
      %v1305 = vpop.f32.mrf.mxu0
      %v1306 = vadd.f32 0.0, %v1305
      %v1307 = vpop.f32.mrf.mxu0
      %1308 = vmatprep.mubr.bf16.mxu0 0
      %1309 = vmatmul.mubr.bf16.gmra.mxu0 %v1154
      %v1310 = vpop.f32.mrf.mxu0
      %v1311 = vadd.f32 0.0, %v1310
      %v1312 = vpop.f32.mrf.mxu0
      %v1313 = vpop.f32.mrf.mxu0
      %v1314 = vadd.f32 0.0, %v1313
      %v1315 = vpop.f32.mrf.mxu0
      %1316 = vmatprep.mubr.bf16.mxu0 0
      %1317 = vmatmul.mubr.bf16.gmra.mxu0 %v1155
      %v1318 = vpop.f32.mrf.mxu0
      %v1319 = vadd.f32 0.0, %v1318
      %v1320 = vpop.f32.mrf.mxu0
      %v1321 = vpop.f32.mrf.mxu0
      %v1322 = vadd.f32 0.0, %v1321
      %v1323 = vpop.f32.mrf.mxu0
      %1324 = vmatprep.mubr.bf16.mxu0 0
      %1325 = vmatmul.mubr.bf16.gmra.mxu0 %v1156
      %v1326 = vpop.f32.mrf.mxu0
      %v1327 = vadd.f32 0.0, %v1326
      %v1328 = vpop.f32.mrf.mxu0
      %v1329 = vpop.f32.mrf.mxu0
      %v1330 = vadd.f32 0.0, %v1329
      %v1331 = vpop.f32.mrf.mxu0
      %1332 = vmatprep.mubr.bf16.mxu0 0
      %1333 = vmatmul.mubr.bf16.gmra.mxu0 %v1157
      %v1334 = vpop.f32.mrf.mxu0
      %v1335 = vadd.f32 0.0, %v1334
      %v1336 = vpop.f32.mrf.mxu0
      %v1337 = vpop.f32.mrf.mxu0
      %v1338 = vadd.f32 0.0, %v1337
      %v1339 = vpop.f32.mrf.mxu0
      %1340 = vmatprep.mubr.bf16.mxu0 0
      %1341 = vmatmul.mubr.bf16.gmra.mxu0 %v1158
      %v1342 = vpop.f32.mrf.mxu0
      %v1343 = vadd.f32 0.0, %v1342
      %v1344 = vpop.f32.mrf.mxu0
      %v1345 = vpop.f32.mrf.mxu0
      %v1346 = vadd.f32 0.0, %v1345
      %v1347 = vpop.f32.mrf.mxu0
      %1348 = vmatprep.mubr.bf16.mxu0 0
      %1349 = vmatmul.mubr.bf16.gmra.mxu0 %v1159
      %v1350 = vpop.f32.mrf.mxu0
      %v1351 = vadd.f32 0.0, %v1350
      %v1352 = vpop.f32.mrf.mxu0
      %v1353 = vpop.f32.mrf.mxu0
      %v1354 = vadd.f32 0.0, %v1353
      %v1355 = vpop.f32.mrf.mxu0
      %1356 = vmatprep.mubr.bf16.mxu0 0
      %1357 = vmatmul.mubr.bf16.gmra.mxu0 %v1160
      %v1358 = vpop.f32.mrf.mxu0
      %v1359 = vadd.f32 0.0, %v1358
      %v1360 = vpop.f32.mrf.mxu0
      %v1361 = vpop.f32.mrf.mxu0
      %v1362 = vadd.f32 0.0, %v1361
      %v1363 = vpop.f32.mrf.mxu0
      %1364 = vmatprep.mubr.bf16.mxu0 0
      %1365 = vmatmul.mubr.bf16.gmra.mxu0 %v1161
      %v1366 = vpop.f32.mrf.mxu0
      %v1367 = vadd.f32 0.0, %v1366
      %v1368 = vpop.f32.mrf.mxu0
      %v1369 = vpop.f32.mrf.mxu0
      %v1370 = vadd.f32 0.0, %v1369
      %v1371 = vpop.f32.mrf.mxu0
      %1372 = vmatprep.mubr.bf16.mxu0 0
      %1373 = vmatmul.mubr.bf16.gmra.mxu0 %v1162
      %v1374 = vpop.f32.mrf.mxu0
      %v1375 = vadd.f32 0.0, %v1374
      %v1376 = vpop.f32.mrf.mxu0
      %v1377 = vpop.f32.mrf.mxu0
      %v1378 = vadd.f32 0.0, %v1377
      %v1379 = vpop.f32.mrf.mxu0
      %1380 = vmatprep.mubr.bf16.mxu0 0
      %1381 = vmatmul.mubr.bf16.gmra.mxu0 %v1163
      %v1382 = vpop.f32.mrf.mxu0
      %v1383 = vadd.f32 0.0, %v1382
      %v1384 = vpop.f32.mrf.mxu0
      %v1385 = vpop.f32.mrf.mxu0
      %v1386 = vadd.f32 0.0, %v1385
      %v1387 = vpop.f32.mrf.mxu0
      %1388 = vdwg.mxu0
      %1389 = vst [vmem:[#allocation3] sm:$0xff] %v1263
      %1390 = vst [vmem:[#allocation3 + $0x8] sm:$0xff] %v1266
      %1391 = vst [vmem:[#allocation3 + $0x10] sm:$0xff] %v1271
      %1392 = vst [vmem:[#allocation3 + $0x18] sm:$0xff] %v1274
      %1393 = vst [vmem:[#allocation3 + $0x20] sm:$0xff] %v1279
      %1394 = vst [vmem:[#allocation3 + $0x28] sm:$0xff] %v1282
      %1395 = vst [vmem:[#allocation3 + $0x30] sm:$0xff] %v1287
      %1396 = vst [vmem:[#allocation3 + $0x38] sm:$0xff] %v1290
      %1397 = vst [vmem:[#allocation3 + $0x40] sm:$0xff] %v1295
      %1398 = vst [vmem:[#allocation3 + $0x48] sm:$0xff] %v1298
      %1399 = vst [vmem:[#allocation3 + $0x50] sm:$0xff] %v1303
      %1400 = vst [vmem:[#allocation3 + $0x58] sm:$0xff] %v1306
      %1401 = vst [vmem:[#allocation3 + $0x60] sm:$0xff] %v1311
      %1402 = vst [vmem:[#allocation3 + $0x68] sm:$0xff] %v1314
      %1403 = vst [vmem:[#allocation3 + $0x70] sm:$0xff] %v1319
      %1404 = vst [vmem:[#allocation3 + $0x78] sm:$0xff] %v1322
      %1405 = vst [vmem:[#allocation3 + $0x80] sm:$0xff] %v1327
      %1406 = vst [vmem:[#allocation3 + $0x88] sm:$0xff] %v1330
      %1407 = vst [vmem:[#allocation3 + $0x90] sm:$0xff] %v1335
      %1408 = vst [vmem:[#allocation3 + $0x98] sm:$0xff] %v1338
      %1409 = vst [vmem:[#allocation3 + $0xa0] sm:$0xff] %v1343
      %1410 = vst [vmem:[#allocation3 + $0xa8] sm:$0xff] %v1346
      %1411 = vst [vmem:[#allocation3 + $0xb0] sm:$0xff] %v1351
      %1412 = vst [vmem:[#allocation3 + $0xb8] sm:$0xff] %v1354
      %1413 = vst [vmem:[#allocation3 + $0xc0] sm:$0xff] %v1359
      %1414 = vst [vmem:[#allocation3 + $0xc8] sm:$0xff] %v1362
      %1415 = vst [vmem:[#allocation3 + $0xd0] sm:$0xff] %v1367
      %1416 = vst [vmem:[#allocation3 + $0xd8] sm:$0xff] %v1370
      %1417 = vst [vmem:[#allocation3 + $0xe0] sm:$0xff] %v1375
      %1418 = vst [vmem:[#allocation3 + $0xe8] sm:$0xff] %v1378
      %1419 = vst [vmem:[#allocation3 + $0xf0] sm:$0xff] %v1383
      %1420 = vst [vmem:[#allocation3 + $0xf8] sm:$0xff] %v1386
      %s1421 = scalar_lea.vmem %s1, 192
      %v1422 = vld [vmem:[%s1421] sm:$0xf]
      %v1423 = vld [vmem:[%s1421 + $0x4] sm:$0xf]
      %v1424 = vld [vmem:[%s1421 + $0x8] sm:$0xf]
      %v1425 = vld [vmem:[%s1421 + $0xc] sm:$0xf]
      %v1426 = vld [vmem:[%s1421 + $0x10] sm:$0xf]
      %v1427 = vld [vmem:[%s1421 + $0x14] sm:$0xf]
      %v1428 = vld [vmem:[%s1421 + $0x18] sm:$0xf]
      %v1429 = vld [vmem:[%s1421 + $0x1c] sm:$0xf]
      %v1430 = vld [vmem:[%s1421 + $0x20] sm:$0xf]
      %v1431 = vld [vmem:[%s1421 + $0x24] sm:$0xf]
      %v1432 = vld [vmem:[%s1421 + $0x28] sm:$0xf]
      %v1433 = vld [vmem:[%s1421 + $0x2c] sm:$0xf]
      %v1434 = vld [vmem:[%s1421 + $0x30] sm:$0xf]
      %v1435 = vld [vmem:[%s1421 + $0x34] sm:$0xf]
      %v1436 = vld [vmem:[%s1421 + $0x38] sm:$0xf]
      %v1437 = vld [vmem:[%s1421 + $0x3c] sm:$0xf]
      %v1440 = vunpack.c.l.b16 %v1064
      %v1441 = vunpack.c.l.b16 %v1065
      %v1442 = vpack.c.b16 %v1441, %v1440
      %v1460 = vunpack.c.l.b16 %v1422
      %v1461 = vunpack.c.l.b16 %v1423
      %v1462 = vunpack.c.l.b16 %v1424
      %v1463 = vunpack.c.l.b16 %v1425
      %v1464 = vunpack.c.l.b16 %v1426
      %v1465 = vunpack.c.l.b16 %v1427
      %v1466 = vunpack.c.l.b16 %v1428
      %v1467 = vunpack.c.l.b16 %v1429
      %v1468 = vunpack.c.l.b16 %v1430
      %v1469 = vunpack.c.l.b16 %v1431
      %v1470 = vunpack.c.l.b16 %v1432
      %v1471 = vunpack.c.l.b16 %v1433
      %v1472 = vunpack.c.l.b16 %v1434
      %v1473 = vunpack.c.l.b16 %v1435
      %v1474 = vunpack.c.l.b16 %v1436
      %v1475 = vunpack.c.l.b16 %v1437
      %v1476 = vpack.c.b16 %v1461, %v1460
      %v1477 = vpack.c.b16 %v1463, %v1462
      %v1478 = vpack.c.b16 %v1465, %v1464
      %v1479 = vpack.c.b16 %v1467, %v1466
      %v1480 = vpack.c.b16 %v1469, %v1468
      %v1481 = vpack.c.b16 %v1471, %v1470
      %v1482 = vpack.c.b16 %v1473, %v1472
      %v1483 = vpack.c.b16 %v1475, %v1474
      %1492 = vmatprep.subr.bf16.mxu0 0
      %1493 = vmatpush1.bf16.msra.mxu0 %v1483
      %1494 = vmatprep.subr.bf16.mxu0 0
      %1495 = vmatpush1.bf16.msra.mxu0 %v1482
      %1496 = vmatprep.subr.bf16.mxu0 0
      %1497 = vmatpush1.bf16.msra.mxu0 %v1481
      %1498 = vmatprep.subr.bf16.mxu0 0
      %1499 = vmatpush1.bf16.msra.mxu0 %v1480
      %1500 = vmatprep.subr.bf16.mxu0 0
      %1501 = vmatpush1.bf16.msra.mxu0 %v1479
      %1502 = vmatprep.subr.bf16.mxu0 0
      %1503 = vmatpush1.bf16.msra.mxu0 %v1478
      %1504 = vmatprep.subr.bf16.mxu0 0
      %1505 = vmatpush1.bf16.msra.mxu0 %v1477
      %1506 = vmatprep.subr.bf16.mxu0 0
      %1507 = vmatpush1.bf16.msra.mxu0 %v1476
      %1508 = vmatprep.subr.bf16.mxu0 0
      %1509 = vmatpush2.bf16.msra.mxu0 0
      %1510 = vmatprep.subr.bf16.mxu0 0
      %1511 = vmatpush2.bf16.msra.mxu0 0
      %1512 = vmatprep.subr.bf16.mxu0 0
      %1513 = vmatpush2.bf16.msra.mxu0 0
      %1514 = vmatprep.subr.bf16.mxu0 0
      %1515 = vmatpush2.bf16.msra.mxu0 0
      %1516 = vmatprep.subr.bf16.mxu0 0
      %1517 = vmatpush2.bf16.msra.mxu0 0
      %1518 = vmatprep.subr.bf16.mxu0 0
      %1519 = vmatpush2.bf16.msra.mxu0 0
      %1520 = vmatprep.subr.bf16.mxu0 0
      %1521 = vmatpush2.bf16.msra.mxu0 0
      %1522 = vmatprep.subr.bf16.mxu0 0
      %1523 = vmatpush2.bf16.msra.mxu0 0
      %1524 = vmatprep.mubr.bf16.mxu0 0
      %1525 = vmatmul.mubr.bf16.gmra.mxu0 %v1149
      %v1526 = vpop.f32.mrf.mxu0
      %v1527 = vadd.f32 0.0, %v1526
      %v1528 = vpop.f32.mrf.mxu0
      %v1529 = vpop.f32.mrf.mxu0
      %v1530 = vadd.f32 0.0, %v1529
      %v1531 = vpop.f32.mrf.mxu0
      %1532 = vmatprep.mubr.bf16.mxu0 0
      %1533 = vmatmul.mubr.bf16.gmra.mxu0 %v1150
      %v1534 = vpop.f32.mrf.mxu0
      %v1535 = vadd.f32 0.0, %v1534
      %v1536 = vpop.f32.mrf.mxu0
      %v1537 = vpop.f32.mrf.mxu0
      %v1538 = vadd.f32 0.0, %v1537
      %v1539 = vpop.f32.mrf.mxu0
      %1540 = vmatprep.mubr.bf16.mxu0 0
      %1541 = vmatmul.mubr.bf16.gmra.mxu0 %v1151
      %v1542 = vpop.f32.mrf.mxu0
      %v1543 = vadd.f32 0.0, %v1542
      %v1544 = vpop.f32.mrf.mxu0
      %v1545 = vpop.f32.mrf.mxu0
      %v1546 = vadd.f32 0.0, %v1545
      %v1547 = vpop.f32.mrf.mxu0
      %1548 = vmatprep.mubr.bf16.mxu0 0
      %1549 = vmatmul.mubr.bf16.gmra.mxu0 %v1152
      %v1550 = vpop.f32.mrf.mxu0
      %v1551 = vadd.f32 0.0, %v1550
      %v1552 = vpop.f32.mrf.mxu0
      %v1553 = vpop.f32.mrf.mxu0
      %v1554 = vadd.f32 0.0, %v1553
      %v1555 = vpop.f32.mrf.mxu0
      %1556 = vmatprep.mubr.bf16.mxu0 0
      %1557 = vmatmul.mubr.bf16.gmra.mxu0 %v1153
      %v1558 = vpop.f32.mrf.mxu0
      %v1559 = vadd.f32 0.0, %v1558
      %v1560 = vpop.f32.mrf.mxu0
      %v1561 = vpop.f32.mrf.mxu0
      %v1562 = vadd.f32 0.0, %v1561
      %v1563 = vpop.f32.mrf.mxu0
      %1564 = vmatprep.mubr.bf16.mxu0 0
      %1565 = vmatmul.mubr.bf16.gmra.mxu0 %v1154
      %v1566 = vpop.f32.mrf.mxu0
      %v1567 = vadd.f32 0.0, %v1566
      %v1568 = vpop.f32.mrf.mxu0
      %v1569 = vpop.f32.mrf.mxu0
      %v1570 = vadd.f32 0.0, %v1569
      %v1571 = vpop.f32.mrf.mxu0
      %1572 = vmatprep.mubr.bf16.mxu0 0
      %1573 = vmatmul.mubr.bf16.gmra.mxu0 %v1155
      %v1574 = vpop.f32.mrf.mxu0
      %v1575 = vadd.f32 0.0, %v1574
      %v1576 = vpop.f32.mrf.mxu0
      %v1577 = vpop.f32.mrf.mxu0
      %v1578 = vadd.f32 0.0, %v1577
      %v1579 = vpop.f32.mrf.mxu0
      %1580 = vmatprep.mubr.bf16.mxu0 0
      %1581 = vmatmul.mubr.bf16.gmra.mxu0 %v1156
      %v1582 = vpop.f32.mrf.mxu0
      %v1583 = vadd.f32 0.0, %v1582
      %v1584 = vpop.f32.mrf.mxu0
      %v1585 = vpop.f32.mrf.mxu0
      %v1586 = vadd.f32 0.0, %v1585
      %v1587 = vpop.f32.mrf.mxu0
      %1588 = vmatprep.mubr.bf16.mxu0 0
      %1589 = vmatmul.mubr.bf16.gmra.mxu0 %v1157
      %v1590 = vpop.f32.mrf.mxu0
      %v1591 = vadd.f32 0.0, %v1590
      %v1592 = vpop.f32.mrf.mxu0
      %v1593 = vpop.f32.mrf.mxu0
      %v1594 = vadd.f32 0.0, %v1593
      %v1595 = vpop.f32.mrf.mxu0
      %1596 = vmatprep.mubr.bf16.mxu0 0
      %1597 = vmatmul.mubr.bf16.gmra.mxu0 %v1158
      %v1598 = vpop.f32.mrf.mxu0
      %v1599 = vadd.f32 0.0, %v1598
      %v1600 = vpop.f32.mrf.mxu0
      %v1601 = vpop.f32.mrf.mxu0
      %v1602 = vadd.f32 0.0, %v1601
      %v1603 = vpop.f32.mrf.mxu0
      %1604 = vmatprep.mubr.bf16.mxu0 0
      %1605 = vmatmul.mubr.bf16.gmra.mxu0 %v1159
      %v1606 = vpop.f32.mrf.mxu0
      %v1607 = vadd.f32 0.0, %v1606
      %v1608 = vpop.f32.mrf.mxu0
      %v1609 = vpop.f32.mrf.mxu0
      %v1610 = vadd.f32 0.0, %v1609
      %v1611 = vpop.f32.mrf.mxu0
      %1612 = vmatprep.mubr.bf16.mxu0 0
      %1613 = vmatmul.mubr.bf16.gmra.mxu0 %v1160
      %v1614 = vpop.f32.mrf.mxu0
      %v1615 = vadd.f32 0.0, %v1614
      %v1616 = vpop.f32.mrf.mxu0
      %v1617 = vpop.f32.mrf.mxu0
      %v1618 = vadd.f32 0.0, %v1617
      %v1619 = vpop.f32.mrf.mxu0
      %1620 = vmatprep.mubr.bf16.mxu0 0
      %1621 = vmatmul.mubr.bf16.gmra.mxu0 %v1161
      %v1622 = vpop.f32.mrf.mxu0
      %v1623 = vadd.f32 0.0, %v1622
      %v1624 = vpop.f32.mrf.mxu0
      %v1625 = vpop.f32.mrf.mxu0
      %v1626 = vadd.f32 0.0, %v1625
      %v1627 = vpop.f32.mrf.mxu0
      %1628 = vmatprep.mubr.bf16.mxu0 0
      %1629 = vmatmul.mubr.bf16.gmra.mxu0 %v1162
      %v1630 = vpop.f32.mrf.mxu0
      %v1631 = vadd.f32 0.0, %v1630
      %v1632 = vpop.f32.mrf.mxu0
      %v1633 = vpop.f32.mrf.mxu0
      %v1634 = vadd.f32 0.0, %v1633
      %v1635 = vpop.f32.mrf.mxu0
      %1636 = vmatprep.mubr.bf16.mxu0 0
      %1637 = vmatmul.mubr.bf16.gmra.mxu0 %v1163
      %v1638 = vpop.f32.mrf.mxu0
      %v1639 = vadd.f32 0.0, %v1638
      %v1640 = vpop.f32.mrf.mxu0
      %v1641 = vpop.f32.mrf.mxu0
      %v1642 = vadd.f32 0.0, %v1641
      %v1643 = vpop.f32.mrf.mxu0
      %1644 = vmatprep.mubr.bf16.mxu0 0
      %1645 = vmatmul.mubr.bf16.gmra.mxu0 %v1442
      %v1646 = vpop.f32.mrf.mxu0
      %v1647 = vadd.f32 0.0, %v1646
      %v1648 = vpop.f32.mrf.mxu0
      %v1649 = vpop.f32.mrf.mxu0
      %v1650 = vadd.f32 0.0, %v1649
      %v1651 = vpop.f32.mrf.mxu0
      %1652 = vdwg.mxu0
      %v1653 = vld [vmem:[#allocation3] sm:$0xff]
      %v1654 = vld [vmem:[#allocation3 + $0x8] sm:$0xff]
      %v1655 = vld [vmem:[#allocation3 + $0x10] sm:$0xff]
      %v1656 = vld [vmem:[#allocation3 + $0x18] sm:$0xff]
      %v1657 = vld [vmem:[#allocation3 + $0x20] sm:$0xff]
      %v1658 = vld [vmem:[#allocation3 + $0x28] sm:$0xff]
      %v1659 = vld [vmem:[#allocation3 + $0x30] sm:$0xff]
      %v1660 = vld [vmem:[#allocation3 + $0x38] sm:$0xff]
      %v1661 = vld [vmem:[#allocation3 + $0x40] sm:$0xff]
      %v1662 = vld [vmem:[#allocation3 + $0x48] sm:$0xff]
      %v1663 = vld [vmem:[#allocation3 + $0x50] sm:$0xff]
      %v1664 = vld [vmem:[#allocation3 + $0x58] sm:$0xff]
      %v1665 = vld [vmem:[#allocation3 + $0x60] sm:$0xff]
      %v1666 = vld [vmem:[#allocation3 + $0x68] sm:$0xff]
      %v1667 = vld [vmem:[#allocation3 + $0x70] sm:$0xff]
      %v1668 = vld [vmem:[#allocation3 + $0x78] sm:$0xff]
      %v1669 = vld [vmem:[#allocation3 + $0x80] sm:$0xff]
      %v1670 = vld [vmem:[#allocation3 + $0x88] sm:$0xff]
      %v1671 = vld [vmem:[#allocation3 + $0x90] sm:$0xff]
      %v1672 = vld [vmem:[#allocation3 + $0x98] sm:$0xff]
      %v1673 = vld [vmem:[#allocation3 + $0xa0] sm:$0xff]
      %v1674 = vld [vmem:[#allocation3 + $0xa8] sm:$0xff]
      %v1675 = vld [vmem:[#allocation3 + $0xb0] sm:$0xff]
      %v1676 = vld [vmem:[#allocation3 + $0xb8] sm:$0xff]
      %v1677 = vld [vmem:[#allocation3 + $0xc0] sm:$0xff]
      %v1678 = vld [vmem:[#allocation3 + $0xc8] sm:$0xff]
      %v1679 = vld [vmem:[#allocation3 + $0xd0] sm:$0xff]
      %v1680 = vld [vmem:[#allocation3 + $0xd8] sm:$0xff]
      %v1681 = vld [vmem:[#allocation3 + $0xe0] sm:$0xff]
      %v1682 = vld [vmem:[#allocation3 + $0xe8] sm:$0xff]
      %v1683 = vld [vmem:[#allocation3 + $0xf0] sm:$0xff]
      %v1684 = vld [vmem:[#allocation3 + $0xf8] sm:$0xff]
      %v1685 = vadd.f32 %v1653, %v1527
      %v1686 = vadd.f32 %v1654, %v1530
      %v1687 = vadd.f32 %v1655, %v1535
      %v1688 = vadd.f32 %v1656, %v1538
      %v1689 = vadd.f32 %v1657, %v1543
      %v1690 = vadd.f32 %v1658, %v1546
      %v1691 = vadd.f32 %v1659, %v1551
      %v1692 = vadd.f32 %v1660, %v1554
      %v1693 = vadd.f32 %v1661, %v1559
      %v1694 = vadd.f32 %v1662, %v1562
      %v1695 = vadd.f32 %v1663, %v1567
      %v1696 = vadd.f32 %v1664, %v1570
      %v1697 = vadd.f32 %v1665, %v1575
      %v1698 = vadd.f32 %v1666, %v1578
      %v1699 = vadd.f32 %v1667, %v1583
      %v1700 = vadd.f32 %v1668, %v1586
      %v1701 = vadd.f32 %v1669, %v1591
      %v1702 = vadd.f32 %v1670, %v1594
      %v1703 = vadd.f32 %v1671, %v1599
      %v1704 = vadd.f32 %v1672, %v1602
      %v1705 = vadd.f32 %v1673, %v1607
      %v1706 = vadd.f32 %v1674, %v1610
      %v1707 = vadd.f32 %v1675, %v1615
      %v1708 = vadd.f32 %v1676, %v1618
      %v1709 = vadd.f32 %v1677, %v1623
      %v1710 = vadd.f32 %v1678, %v1626
      %v1711 = vadd.f32 %v1679, %v1631
      %v1712 = vadd.f32 %v1680, %v1634
      %v1713 = vadd.f32 %v1681, %v1639
      %v1714 = vadd.f32 %v1682, %v1642
      %v1715 = vadd.f32 %v1683, %v1647
      %v1716 = vadd.f32 %v1684, %v1650
      %1717 = vst [vmem:[#allocation3] sm:$0xff] %v1685
      %1718 = vst [vmem:[#allocation3 + $0x8] sm:$0xff] %v1686
      %1719 = vst [vmem:[#allocation3 + $0x10] sm:$0xff] %v1687
      %1720 = vst [vmem:[#allocation3 + $0x18] sm:$0xff] %v1688
      %1721 = vst [vmem:[#allocation3 + $0x20] sm:$0xff] %v1689
      %1722 = vst [vmem:[#allocation3 + $0x28] sm:$0xff] %v1690
      %1723 = vst [vmem:[#allocation3 + $0x30] sm:$0xff] %v1691
      %1724 = vst [vmem:[#allocation3 + $0x38] sm:$0xff] %v1692
      %1725 = vst [vmem:[#allocation3 + $0x40] sm:$0xff] %v1693
      %1726 = vst [vmem:[#allocation3 + $0x48] sm:$0xff] %v1694
      %1727 = vst [vmem:[#allocation3 + $0x50] sm:$0xff] %v1695
      %1728 = vst [vmem:[#allocation3 + $0x58] sm:$0xff] %v1696
      %1729 = vst [vmem:[#allocation3 + $0x60] sm:$0xff] %v1697
      %1730 = vst [vmem:[#allocation3 + $0x68] sm:$0xff] %v1698
      %1731 = vst [vmem:[#allocation3 + $0x70] sm:$0xff] %v1699
      %1732 = vst [vmem:[#allocation3 + $0x78] sm:$0xff] %v1700
      %1733 = vst [vmem:[#allocation3 + $0x80] sm:$0xff] %v1701
      %1734 = vst [vmem:[#allocation3 + $0x88] sm:$0xff] %v1702
      %1735 = vst [vmem:[#allocation3 + $0x90] sm:$0xff] %v1703
      %1736 = vst [vmem:[#allocation3 + $0x98] sm:$0xff] %v1704
      %1737 = vst [vmem:[#allocation3 + $0xa0] sm:$0xff] %v1705
      %1738 = vst [vmem:[#allocation3 + $0xa8] sm:$0xff] %v1706
      %1739 = vst [vmem:[#allocation3 + $0xb0] sm:$0xff] %v1707
      %1740 = vst [vmem:[#allocation3 + $0xb8] sm:$0xff] %v1708
      %1741 = vst [vmem:[#allocation3 + $0xc0] sm:$0xff] %v1709
      %1742 = vst [vmem:[#allocation3 + $0xc8] sm:$0xff] %v1710
      %1743 = vst [vmem:[#allocation3 + $0xd0] sm:$0xff] %v1711
      %1744 = vst [vmem:[#allocation3 + $0xd8] sm:$0xff] %v1712
      %1745 = vst [vmem:[#allocation3 + $0xe0] sm:$0xff] %v1713
      %1746 = vst [vmem:[#allocation3 + $0xe8] sm:$0xff] %v1714
      %1747 = vst [vmem:[#allocation3 + $0xf0] sm:$0xff] %v1715
      %1748 = vst [vmem:[#allocation3 + $0xf8] sm:$0xff] %v1716
      %s1749 = scalar_lea.vmem %s1, 384
      %v1750 = vld [vmem:[%s1749] sm:$0xf]
      %v1751 = vld [vmem:[%s1749 + $0x4] sm:$0xf]
      %v1752 = vld [vmem:[%s1749 + $0x8] sm:$0xf]
      %v1753 = vld [vmem:[%s1749 + $0xc] sm:$0xf]
      %v1754 = vld [vmem:[%s1749 + $0x10] sm:$0xf]
      %v1755 = vld [vmem:[%s1749 + $0x14] sm:$0xf]
      %v1756 = vld [vmem:[%s1749 + $0x18] sm:$0xf]
      %v1757 = vld [vmem:[%s1749 + $0x1c] sm:$0xf]
      %v1758 = vld [vmem:[%s1749 + $0x20] sm:$0xf]
      %v1759 = vld [vmem:[%s1749 + $0x24] sm:$0xf]
      %v1760 = vld [vmem:[%s1749 + $0x28] sm:$0xf]
      %v1761 = vld [vmem:[%s1749 + $0x2c] sm:$0xf]
      %v1762 = vld [vmem:[%s1749 + $0x30] sm:$0xf]
      %v1763 = vld [vmem:[%s1749 + $0x34] sm:$0xf]
      %v1764 = vld [vmem:[%s1749 + $0x38] sm:$0xf]
      %v1765 = vld [vmem:[%s1749 + $0x3c] sm:$0xf]
      %v1768 = vunpack.c.l.b16 %v1066
      %v1769 = vunpack.c.l.b16 %v1067
      %v1770 = vpack.c.b16 %v1769, %v1768
      %v1788 = vunpack.c.l.b16 %v1750
      %v1789 = vunpack.c.l.b16 %v1751
      %v1790 = vunpack.c.l.b16 %v1752
      %v1791 = vunpack.c.l.b16 %v1753
      %v1792 = vunpack.c.l.b16 %v1754
      %v1793 = vunpack.c.l.b16 %v1755
      %v1794 = vunpack.c.l.b16 %v1756
      %v1795 = vunpack.c.l.b16 %v1757
      %v1796 = vunpack.c.l.b16 %v1758
      %v1797 = vunpack.c.l.b16 %v1759
      %v1798 = vunpack.c.l.b16 %v1760
      %v1799 = vunpack.c.l.b16 %v1761
      %v1800 = vunpack.c.l.b16 %v1762
      %v1801 = vunpack.c.l.b16 %v1763
      %v1802 = vunpack.c.l.b16 %v1764
      %v1803 = vunpack.c.l.b16 %v1765
      %v1804 = vpack.c.b16 %v1789, %v1788
      %v1805 = vpack.c.b16 %v1791, %v1790
      %v1806 = vpack.c.b16 %v1793, %v1792
      %v1807 = vpack.c.b16 %v1795, %v1794
      %v1808 = vpack.c.b16 %v1797, %v1796
      %v1809 = vpack.c.b16 %v1799, %v1798
      %v1810 = vpack.c.b16 %v1801, %v1800
      %v1811 = vpack.c.b16 %v1803, %v1802
      %1820 = vmatprep.subr.bf16.mxu0 0
      %1821 = vmatpush1.bf16.msra.mxu0 %v1811
      %1822 = vmatprep.subr.bf16.mxu0 0
      %1823 = vmatpush1.bf16.msra.mxu0 %v1810
      %1824 = vmatprep.subr.bf16.mxu0 0
      %1825 = vmatpush1.bf16.msra.mxu0 %v1809
      %1826 = vmatprep.subr.bf16.mxu0 0
      %1827 = vmatpush1.bf16.msra.mxu0 %v1808
      %1828 = vmatprep.subr.bf16.mxu0 0
      %1829 = vmatpush1.bf16.msra.mxu0 %v1807
      %1830 = vmatprep.subr.bf16.mxu0 0
      %1831 = vmatpush1.bf16.msra.mxu0 %v1806
      %1832 = vmatprep.subr.bf16.mxu0 0
      %1833 = vmatpush1.bf16.msra.mxu0 %v1805
      %1834 = vmatprep.subr.bf16.mxu0 0
      %1835 = vmatpush1.bf16.msra.mxu0 %v1804
      %1836 = vmatprep.subr.bf16.mxu0 0
      %1837 = vmatpush2.bf16.msra.mxu0 0
      %1838 = vmatprep.subr.bf16.mxu0 0
      %1839 = vmatpush2.bf16.msra.mxu0 0
      %1840 = vmatprep.subr.bf16.mxu0 0
      %1841 = vmatpush2.bf16.msra.mxu0 0
      %1842 = vmatprep.subr.bf16.mxu0 0
      %1843 = vmatpush2.bf16.msra.mxu0 0
      %1844 = vmatprep.subr.bf16.mxu0 0
      %1845 = vmatpush2.bf16.msra.mxu0 0
      %1846 = vmatprep.subr.bf16.mxu0 0
      %1847 = vmatpush2.bf16.msra.mxu0 0
      %1848 = vmatprep.subr.bf16.mxu0 0
      %1849 = vmatpush2.bf16.msra.mxu0 0
      %1850 = vmatprep.subr.bf16.mxu0 0
      %1851 = vmatpush2.bf16.msra.mxu0 0
      %1852 = vmatprep.mubr.bf16.mxu0 0
      %1853 = vmatmul.mubr.bf16.gmra.mxu0 %v1150
      %v1854 = vpop.f32.mrf.mxu0
      %v1855 = vadd.f32 0.0, %v1854
      %v1856 = vpop.f32.mrf.mxu0
      %v1857 = vpop.f32.mrf.mxu0
      %v1858 = vadd.f32 0.0, %v1857
      %v1859 = vpop.f32.mrf.mxu0
      %1860 = vmatprep.mubr.bf16.mxu0 0
      %1861 = vmatmul.mubr.bf16.gmra.mxu0 %v1151
      %v1862 = vpop.f32.mrf.mxu0
      %v1863 = vadd.f32 0.0, %v1862
      %v1864 = vpop.f32.mrf.mxu0
      %v1865 = vpop.f32.mrf.mxu0
      %v1866 = vadd.f32 0.0, %v1865
      %v1867 = vpop.f32.mrf.mxu0
      %1868 = vmatprep.mubr.bf16.mxu0 0
      %1869 = vmatmul.mubr.bf16.gmra.mxu0 %v1152
      %v1870 = vpop.f32.mrf.mxu0
      %v1871 = vadd.f32 0.0, %v1870
      %v1872 = vpop.f32.mrf.mxu0
      %v1873 = vpop.f32.mrf.mxu0
      %v1874 = vadd.f32 0.0, %v1873
      %v1875 = vpop.f32.mrf.mxu0
      %1876 = vmatprep.mubr.bf16.mxu0 0
      %1877 = vmatmul.mubr.bf16.gmra.mxu0 %v1153
      %v1878 = vpop.f32.mrf.mxu0
      %v1879 = vadd.f32 0.0, %v1878
      %v1880 = vpop.f32.mrf.mxu0
      %v1881 = vpop.f32.mrf.mxu0
      %v1882 = vadd.f32 0.0, %v1881
      %v1883 = vpop.f32.mrf.mxu0
      %1884 = vmatprep.mubr.bf16.mxu0 0
      %1885 = vmatmul.mubr.bf16.gmra.mxu0 %v1154
      %v1886 = vpop.f32.mrf.mxu0
      %v1887 = vadd.f32 0.0, %v1886
      %v1888 = vpop.f32.mrf.mxu0
      %v1889 = vpop.f32.mrf.mxu0
      %v1890 = vadd.f32 0.0, %v1889
      %v1891 = vpop.f32.mrf.mxu0
      %1892 = vmatprep.mubr.bf16.mxu0 0
      %1893 = vmatmul.mubr.bf16.gmra.mxu0 %v1155
      %v1894 = vpop.f32.mrf.mxu0
      %v1895 = vadd.f32 0.0, %v1894
      %v1896 = vpop.f32.mrf.mxu0
      %v1897 = vpop.f32.mrf.mxu0
      %v1898 = vadd.f32 0.0, %v1897
      %v1899 = vpop.f32.mrf.mxu0
      %1900 = vmatprep.mubr.bf16.mxu0 0
      %1901 = vmatmul.mubr.bf16.gmra.mxu0 %v1156
      %v1902 = vpop.f32.mrf.mxu0
      %v1903 = vadd.f32 0.0, %v1902
      %v1904 = vpop.f32.mrf.mxu0
      %v1905 = vpop.f32.mrf.mxu0
      %v1906 = vadd.f32 0.0, %v1905
      %v1907 = vpop.f32.mrf.mxu0
      %1908 = vmatprep.mubr.bf16.mxu0 0
      %1909 = vmatmul.mubr.bf16.gmra.mxu0 %v1157
      %v1910 = vpop.f32.mrf.mxu0
      %v1911 = vadd.f32 0.0, %v1910
      %v1912 = vpop.f32.mrf.mxu0
      %v1913 = vpop.f32.mrf.mxu0
      %v1914 = vadd.f32 0.0, %v1913
      %v1915 = vpop.f32.mrf.mxu0
      %1916 = vmatprep.mubr.bf16.mxu0 0
      %1917 = vmatmul.mubr.bf16.gmra.mxu0 %v1158
      %v1918 = vpop.f32.mrf.mxu0
      %v1919 = vadd.f32 0.0, %v1918
      %v1920 = vpop.f32.mrf.mxu0
      %v1921 = vpop.f32.mrf.mxu0
      %v1922 = vadd.f32 0.0, %v1921
      %v1923 = vpop.f32.mrf.mxu0
      %1924 = vmatprep.mubr.bf16.mxu0 0
      %1925 = vmatmul.mubr.bf16.gmra.mxu0 %v1159
      %v1926 = vpop.f32.mrf.mxu0
      %v1927 = vadd.f32 0.0, %v1926
      %v1928 = vpop.f32.mrf.mxu0
      %v1929 = vpop.f32.mrf.mxu0
      %v1930 = vadd.f32 0.0, %v1929
      %v1931 = vpop.f32.mrf.mxu0
      %1932 = vmatprep.mubr.bf16.mxu0 0
      %1933 = vmatmul.mubr.bf16.gmra.mxu0 %v1160
      %v1934 = vpop.f32.mrf.mxu0
      %v1935 = vadd.f32 0.0, %v1934
      %v1936 = vpop.f32.mrf.mxu0
      %v1937 = vpop.f32.mrf.mxu0
      %v1938 = vadd.f32 0.0, %v1937
      %v1939 = vpop.f32.mrf.mxu0
      %1940 = vmatprep.mubr.bf16.mxu0 0
      %1941 = vmatmul.mubr.bf16.gmra.mxu0 %v1161
      %v1942 = vpop.f32.mrf.mxu0
      %v1943 = vadd.f32 0.0, %v1942
      %v1944 = vpop.f32.mrf.mxu0
      %v1945 = vpop.f32.mrf.mxu0
      %v1946 = vadd.f32 0.0, %v1945
      %v1947 = vpop.f32.mrf.mxu0
      %1948 = vmatprep.mubr.bf16.mxu0 0
      %1949 = vmatmul.mubr.bf16.gmra.mxu0 %v1162
      %v1950 = vpop.f32.mrf.mxu0
      %v1951 = vadd.f32 0.0, %v1950
      %v1952 = vpop.f32.mrf.mxu0
      %v1953 = vpop.f32.mrf.mxu0
      %v1954 = vadd.f32 0.0, %v1953
      %v1955 = vpop.f32.mrf.mxu0
      %1956 = vmatprep.mubr.bf16.mxu0 0
      %1957 = vmatmul.mubr.bf16.gmra.mxu0 %v1163
      %v1958 = vpop.f32.mrf.mxu0
      %v1959 = vadd.f32 0.0, %v1958
      %v1960 = vpop.f32.mrf.mxu0
      %v1961 = vpop.f32.mrf.mxu0
      %v1962 = vadd.f32 0.0, %v1961
      %v1963 = vpop.f32.mrf.mxu0
      %1964 = vmatprep.mubr.bf16.mxu0 0
      %1965 = vmatmul.mubr.bf16.gmra.mxu0 %v1442
      %v1966 = vpop.f32.mrf.mxu0
      %v1967 = vadd.f32 0.0, %v1966
      %v1968 = vpop.f32.mrf.mxu0
      %v1969 = vpop.f32.mrf.mxu0
      %v1970 = vadd.f32 0.0, %v1969
      %v1971 = vpop.f32.mrf.mxu0
      %1972 = vmatprep.mubr.bf16.mxu0 0
      %1973 = vmatmul.mubr.bf16.gmra.mxu0 %v1770
      %v1974 = vpop.f32.mrf.mxu0
      %v1975 = vadd.f32 0.0, %v1974
      %v1976 = vpop.f32.mrf.mxu0
      %v1977 = vpop.f32.mrf.mxu0
      %v1978 = vadd.f32 0.0, %v1977
      %v1979 = vpop.f32.mrf.mxu0
      %1980 = vdwg.mxu0
      %v1981 = vld [vmem:[#allocation3] sm:$0xff]
      %v1982 = vld [vmem:[#allocation3 + $0x8] sm:$0xff]
      %v1983 = vld [vmem:[#allocation3 + $0x10] sm:$0xff]
      %v1984 = vld [vmem:[#allocation3 + $0x18] sm:$0xff]
      %v1985 = vld [vmem:[#allocation3 + $0x20] sm:$0xff]
      %v1986 = vld [vmem:[#allocation3 + $0x28] sm:$0xff]
      %v1987 = vld [vmem:[#allocation3 + $0x30] sm:$0xff]
      %v1988 = vld [vmem:[#allocation3 + $0x38] sm:$0xff]
      %v1989 = vld [vmem:[#allocation3 + $0x40] sm:$0xff]
      %v1990 = vld [vmem:[#allocation3 + $0x48] sm:$0xff]
      %v1991 = vld [vmem:[#allocation3 + $0x50] sm:$0xff]
      %v1992 = vld [vmem:[#allocation3 + $0x58] sm:$0xff]
      %v1993 = vld [vmem:[#allocation3 + $0x60] sm:$0xff]
      %v1994 = vld [vmem:[#allocation3 + $0x68] sm:$0xff]
      %v1995 = vld [vmem:[#allocation3 + $0x70] sm:$0xff]
      %v1996 = vld [vmem:[#allocation3 + $0x78] sm:$0xff]
      %v1997 = vld [vmem:[#allocation3 + $0x80] sm:$0xff]
      %v1998 = vld [vmem:[#allocation3 + $0x88] sm:$0xff]
      %v1999 = vld [vmem:[#allocation3 + $0x90] sm:$0xff]
      %v2000 = vld [vmem:[#allocation3 + $0x98] sm:$0xff]
      %v2001 = vld [vmem:[#allocation3 + $0xa0] sm:$0xff]
      %v2002 = vld [vmem:[#allocation3 + $0xa8] sm:$0xff]
      %v2003 = vld [vmem:[#allocation3 + $0xb0] sm:$0xff]
      %v2004 = vld [vmem:[#allocation3 + $0xb8] sm:$0xff]
      %v2005 = vld [vmem:[#allocation3 + $0xc0] sm:$0xff]
      %v2006 = vld [vmem:[#allocation3 + $0xc8] sm:$0xff]
      %v2007 = vld [vmem:[#allocation3 + $0xd0] sm:$0xff]
      %v2008 = vld [vmem:[#allocation3 + $0xd8] sm:$0xff]
      %v2009 = vld [vmem:[#allocation3 + $0xe0] sm:$0xff]
      %v2010 = vld [vmem:[#allocation3 + $0xe8] sm:$0xff]
      %v2011 = vld [vmem:[#allocation3 + $0xf0] sm:$0xff]
      %v2012 = vld [vmem:[#allocation3 + $0xf8] sm:$0xff]
      %v2013 = vadd.f32 %v1981, %v1855
      %v2014 = vadd.f32 %v1982, %v1858
      %v2015 = vadd.f32 %v1983, %v1863
      %v2016 = vadd.f32 %v1984, %v1866
      %v2017 = vadd.f32 %v1985, %v1871
      %v2018 = vadd.f32 %v1986, %v1874
      %v2019 = vadd.f32 %v1987, %v1879
      %v2020 = vadd.f32 %v1988, %v1882
      %v2021 = vadd.f32 %v1989, %v1887
      %v2022 = vadd.f32 %v1990, %v1890
      %v2023 = vadd.f32 %v1991, %v1895
      %v2024 = vadd.f32 %v1992, %v1898
      %v2025 = vadd.f32 %v1993, %v1903
      %v2026 = vadd.f32 %v1994, %v1906
      %v2027 = vadd.f32 %v1995, %v1911
      %v2028 = vadd.f32 %v1996, %v1914
      %v2029 = vadd.f32 %v1997, %v1919
      %v2030 = vadd.f32 %v1998, %v1922
      %v2031 = vadd.f32 %v1999, %v1927
      %v2032 = vadd.f32 %v2000, %v1930
      %v2033 = vadd.f32 %v2001, %v1935
      %v2034 = vadd.f32 %v2002, %v1938
      %v2035 = vadd.f32 %v2003, %v1943
      %v2036 = vadd.f32 %v2004, %v1946
      %v2037 = vadd.f32 %v2005, %v1951
      %v2038 = vadd.f32 %v2006, %v1954
      %v2039 = vadd.f32 %v2007, %v1959
      %v2040 = vadd.f32 %v2008, %v1962
      %v2041 = vadd.f32 %v2009, %v1967
      %v2042 = vadd.f32 %v2010, %v1970
      %v2043 = vadd.f32 %v2011, %v1975
      %v2044 = vadd.f32 %v2012, %v1978
      %2045 = vst [vmem:[#allocation3] sm:$0xff] %v2013
      %2046 = vst [vmem:[#allocation3 + $0x8] sm:$0xff] %v2014
      %2047 = vst [vmem:[#allocation3 + $0x10] sm:$0xff] %v2015
      %2048 = vst [vmem:[#allocation3 + $0x18] sm:$0xff] %v2016
      %2049 = vst [vmem:[#allocation3 + $0x20] sm:$0xff] %v2017
      %2050 = vst [vmem:[#allocation3 + $0x28] sm:$0xff] %v2018
      %2051 = vst [vmem:[#allocation3 + $0x30] sm:$0xff] %v2019
      %2052 = vst [vmem:[#allocation3 + $0x38] sm:$0xff] %v2020
      %2053 = vst [vmem:[#allocation3 + $0x40] sm:$0xff] %v2021
      %2054 = vst [vmem:[#allocation3 + $0x48] sm:$0xff] %v2022
      %2055 = vst [vmem:[#allocation3 + $0x50] sm:$0xff] %v2023
      %2056 = vst [vmem:[#allocation3 + $0x58] sm:$0xff] %v2024
      %2057 = vst [vmem:[#allocation3 + $0x60] sm:$0xff] %v2025
      %2058 = vst [vmem:[#allocation3 + $0x68] sm:$0xff] %v2026
      %2059 = vst [vmem:[#allocation3 + $0x70] sm:$0xff] %v2027
      %2060 = vst [vmem:[#allocation3 + $0x78] sm:$0xff] %v2028
      %2061 = vst [vmem:[#allocation3 + $0x80] sm:$0xff] %v2029
      %2062 = vst [vmem:[#allocation3 + $0x88] sm:$0xff] %v2030
      %2063 = vst [vmem:[#allocation3 + $0x90] sm:$0xff] %v2031
      %2064 = vst [vmem:[#allocation3 + $0x98] sm:$0xff] %v2032
      %2065 = vst [vmem:[#allocation3 + $0xa0] sm:$0xff] %v2033
      %2066 = vst [vmem:[#allocation3 + $0xa8] sm:$0xff] %v2034
      %2067 = vst [vmem:[#allocation3 + $0xb0] sm:$0xff] %v2035
      %2068 = vst [vmem:[#allocation3 + $0xb8] sm:$0xff] %v2036
      %2069 = vst [vmem:[#allocation3 + $0xc0] sm:$0xff] %v2037
      %2070 = vst [vmem:[#allocation3 + $0xc8] sm:$0xff] %v2038
      %2071 = vst [vmem:[#allocation3 + $0xd0] sm:$0xff] %v2039
      %2072 = vst [vmem:[#allocation3 + $0xd8] sm:$0xff] %v2040
      %2073 = vst [vmem:[#allocation3 + $0xe0] sm:$0xff] %v2041
      %2074 = vst [vmem:[#allocation3 + $0xe8] sm:$0xff] %v2042
      %2075 = vst [vmem:[#allocation3 + $0xf0] sm:$0xff] %v2043
      %2076 = vst [vmem:[#allocation3 + $0xf8] sm:$0xff] %v2044
      %v2077 = vld [vmem:[#allocation2] sm:$0xf]
      %v2078 = vld [vmem:[#allocation2 + $0x4] sm:$0xf]
      %v2079 = vld [vmem:[#allocation2 + $0x8] sm:$0x1]
      %v2080 = vld [vmem:[#allocation2 + $0xc] sm:$0xf]
      %v2081 = vld [vmem:[#allocation2 + $0x10] sm:$0xf]
      %v2082 = vld [vmem:[#allocation2 + $0x14] sm:$0x1]
      %v2083 = vld [vmem:[#allocation2 + $0x18] sm:$0xf]
      %v2084 = vld [vmem:[#allocation2 + $0x1c] sm:$0xf]
      %v2085 = vld [vmem:[#allocation2 + $0x20] sm:$0x1]
      %v2086 = vld [vmem:[#allocation2 + $0x24] sm:$0xf]
      %v2087 = vld [vmem:[#allocation2 + $0x28] sm:$0xf]
      %v2088 = vld [vmem:[#allocation2 + $0x2c] sm:$0x1]
      %v2089 = vld [vmem:[#allocation2 + $0x30] sm:$0xf]
      %v2090 = vld [vmem:[#allocation2 + $0x34] sm:$0xf]
      %v2091 = vld [vmem:[#allocation2 + $0x38] sm:$0x1]
      %v2092 = vld [vmem:[#allocation2 + $0x3c] sm:$0xf]
      %v2093 = vld [vmem:[#allocation2 + $0x40] sm:$0xf]
      %v2094 = vld [vmem:[#allocation2 + $0x44] sm:$0x1]
      %v2095 = vld [vmem:[#allocation2 + $0x48] sm:$0xf]
      %v2096 = vld [vmem:[#allocation2 + $0x4c] sm:$0xf]
      %v2097 = vld [vmem:[#allocation2 + $0x50] sm:$0x1]
      %v2098 = vld [vmem:[#allocation2 + $0x54] sm:$0xf]
      %v2099 = vld [vmem:[#allocation2 + $0x58] sm:$0xf]
      %v2100 = vld [vmem:[#allocation2 + $0x5c] sm:$0x1]
      %v2101 = vld [vmem:[#allocation2 + $0x60] sm:$0xf]
      %v2102 = vld [vmem:[#allocation2 + $0x64] sm:$0xf]
      %v2103 = vld [vmem:[#allocation2 + $0x68] sm:$0x1]
      %v2104 = vld [vmem:[#allocation2 + $0x6c] sm:$0xf]
      %v2105 = vld [vmem:[#allocation2 + $0x70] sm:$0xf]
      %v2106 = vld [vmem:[#allocation2 + $0x74] sm:$0x1]
      %v2107 = vld [vmem:[#allocation2 + $0x78] sm:$0xf]
      %v2108 = vld [vmem:[#allocation2 + $0x7c] sm:$0xf]
      %v2109 = vld [vmem:[#allocation2 + $0x80] sm:$0x1]
      %v2110 = vld [vmem:[#allocation2 + $0x84] sm:$0xf]
      %v2111 = vld [vmem:[#allocation2 + $0x88] sm:$0xf]
      %v2112 = vld [vmem:[#allocation2 + $0x8c] sm:$0x1]
      %v2113 = vld [vmem:[#allocation2 + $0x90] sm:$0xf]
      %v2114 = vld [vmem:[#allocation2 + $0x94] sm:$0xf]
      %v2115 = vld [vmem:[#allocation2 + $0x98] sm:$0x1]
      %v2116 = vld [vmem:[#allocation2 + $0x9c] sm:$0xf]
      %v2117 = vld [vmem:[#allocation2 + $0xa0] sm:$0xf]
      %v2118 = vld [vmem:[#allocation2 + $0xa4] sm:$0x1]
      %v2119 = vld [vmem:[#allocation2 + $0xa8] sm:$0xf]
      %v2120 = vld [vmem:[#allocation2 + $0xac] sm:$0xf]
      %v2121 = vld [vmem:[#allocation2 + $0xb0] sm:$0x1]
      %v2122 = vld [vmem:[#allocation2 + $0xb4] sm:$0xf]
      %v2123 = vld [vmem:[#allocation2 + $0xb8] sm:$0xf]
      %v2124 = vld [vmem:[#allocation2 + $0xbc] sm:$0x1]
      %v2125 = vld [vmem:[#allocation2 + $0xc0] sm:$0xf]
      %v2126 = vld [vmem:[#allocation2 + $0xc4] sm:$0xf]
      %v2127 = vld [vmem:[#allocation2 + $0xc8] sm:$0x1]
      %v2128 = vld [vmem:[#allocation2 + $0xcc] sm:$0xf]
      %v2129 = vld [vmem:[#allocation2 + $0xd0] sm:$0xf]
      %v2130 = vld [vmem:[#allocation2 + $0xd4] sm:$0x1]
      %vm2131 = vsmask.f32 3328
      %vm2132 = vsmask.f32 7440
      %vm2133 = vmor %vm2131, %vm2132
      %v2135 = vshrl.u32 %v2077, 16
      %v2137 = vrot.slane %v2135, 4
      %v2138 = vshll.u32 %v2077, 16
      %v2140 = vrot.slane %v2138, 5
      %v2141 = vor.u32 %v2137, %v2140
      %v2142 = vrot.slane %v2141, 4
      %v2144 = vshll.u32 %v2078, 16
      %v2146 = vrot.slane %v2144, 5
      %v2147 = vsel %vm2133, %v2142, %v2146
      %v2148 = vshrl.u32 %v2078, 16
      %v2150 = vrot.slane %v2148, 4
      %v2151 = vor.u32 %v2150, %v2146
      %v2152 = vrot.slane %v2151, 4
      %v2154 = vshll.u32 %v2079, 16
      %v2156 = vrot.slane %v2154, 5
      %v2157 = vsel %vm2133, %v2152, %v2156
      %v2159 = vshrl.u32 %v2080, 16
      %v2161 = vrot.slane %v2159, 4
      %v2162 = vshll.u32 %v2080, 16
      %v2164 = vrot.slane %v2162, 5
      %v2165 = vor.u32 %v2161, %v2164
      %v2166 = vrot.slane %v2165, 4
      %v2168 = vshll.u32 %v2081, 16
      %v2170 = vrot.slane %v2168, 5
      %v2171 = vsel %vm2133, %v2166, %v2170
      %v2172 = vshrl.u32 %v2081, 16
      %v2174 = vrot.slane %v2172, 4
      %v2175 = vor.u32 %v2174, %v2170
      %v2176 = vrot.slane %v2175, 4
      %v2178 = vshll.u32 %v2082, 16
      %v2180 = vrot.slane %v2178, 5
      %v2181 = vsel %vm2133, %v2176, %v2180
      %v2183 = vshrl.u32 %v2083, 16
      %v2185 = vrot.slane %v2183, 4
      %v2186 = vshll.u32 %v2083, 16
      %v2188 = vrot.slane %v2186, 5
      %v2189 = vor.u32 %v2185, %v2188
      %v2190 = vrot.slane %v2189, 4
      %v2192 = vshll.u32 %v2084, 16
      %v2194 = vrot.slane %v2192, 5
      %v2195 = vsel %vm2133, %v2190, %v2194
      %v2196 = vshrl.u32 %v2084, 16
      %v2198 = vrot.slane %v2196, 4
      %v2199 = vor.u32 %v2198, %v2194
      %v2200 = vrot.slane %v2199, 4
      %v2202 = vshll.u32 %v2085, 16
      %v2204 = vrot.slane %v2202, 5
      %v2205 = vsel %vm2133, %v2200, %v2204
      %v2207 = vshrl.u32 %v2086, 16
      %v2209 = vrot.slane %v2207, 4
      %v2210 = vshll.u32 %v2086, 16
      %v2212 = vrot.slane %v2210, 5
      %v2213 = vor.u32 %v2209, %v2212
      %v2214 = vrot.slane %v2213, 4
      %v2216 = vshll.u32 %v2087, 16
      %v2218 = vrot.slane %v2216, 5
      %v2219 = vsel %vm2133, %v2214, %v2218
      %v2220 = vshrl.u32 %v2087, 16
      %v2222 = vrot.slane %v2220, 4
      %v2223 = vor.u32 %v2222, %v2218
      %v2224 = vrot.slane %v2223, 4
      %v2226 = vshll.u32 %v2088, 16
      %v2228 = vrot.slane %v2226, 5
      %v2229 = vsel %vm2133, %v2224, %v2228
      %v2231 = vshrl.u32 %v2089, 16
      %v2233 = vrot.slane %v2231, 4
      %v2234 = vshll.u32 %v2089, 16
      %v2236 = vrot.slane %v2234, 5
      %v2237 = vor.u32 %v2233, %v2236
      %v2238 = vrot.slane %v2237, 4
      %v2240 = vshll.u32 %v2090, 16
      %v2242 = vrot.slane %v2240, 5
      %v2243 = vsel %vm2133, %v2238, %v2242
      %v2244 = vshrl.u32 %v2090, 16
      %v2246 = vrot.slane %v2244, 4
      %v2247 = vor.u32 %v2246, %v2242
      %v2248 = vrot.slane %v2247, 4
      %v2250 = vshll.u32 %v2091, 16
      %v2252 = vrot.slane %v2250, 5
      %v2253 = vsel %vm2133, %v2248, %v2252
      %v2255 = vshrl.u32 %v2092, 16
      %v2257 = vrot.slane %v2255, 4
      %v2258 = vshll.u32 %v2092, 16
      %v2260 = vrot.slane %v2258, 5
      %v2261 = vor.u32 %v2257, %v2260
      %v2262 = vrot.slane %v2261, 4
      %v2264 = vshll.u32 %v2093, 16
      %v2266 = vrot.slane %v2264, 5
      %v2267 = vsel %vm2133, %v2262, %v2266
      %v2268 = vshrl.u32 %v2093, 16
      %v2270 = vrot.slane %v2268, 4
      %v2271 = vor.u32 %v2270, %v2266
      %v2272 = vrot.slane %v2271, 4
      %v2274 = vshll.u32 %v2094, 16
      %v2276 = vrot.slane %v2274, 5
      %v2277 = vsel %vm2133, %v2272, %v2276
      %v2279 = vshrl.u32 %v2095, 16
      %v2281 = vrot.slane %v2279, 4
      %v2282 = vshll.u32 %v2095, 16
      %v2284 = vrot.slane %v2282, 5
      %v2285 = vor.u32 %v2281, %v2284
      %v2286 = vrot.slane %v2285, 4
      %v2288 = vshll.u32 %v2096, 16
      %v2290 = vrot.slane %v2288, 5
      %v2291 = vsel %vm2133, %v2286, %v2290
      %v2292 = vshrl.u32 %v2096, 16
      %v2294 = vrot.slane %v2292, 4
      %v2295 = vor.u32 %v2294, %v2290
      %v2296 = vrot.slane %v2295, 4
      %v2298 = vshll.u32 %v2097, 16
      %v2300 = vrot.slane %v2298, 5
      %v2301 = vsel %vm2133, %v2296, %v2300
      %v2303 = vshrl.u32 %v2098, 16
      %v2305 = vrot.slane %v2303, 4
      %v2306 = vshll.u32 %v2098, 16
      %v2308 = vrot.slane %v2306, 5
      %v2309 = vor.u32 %v2305, %v2308
      %v2310 = vrot.slane %v2309, 4
      %v2312 = vshll.u32 %v2099, 16
      %v2314 = vrot.slane %v2312, 5
      %v2315 = vsel %vm2133, %v2310, %v2314
      %v2316 = vshrl.u32 %v2099, 16
      %v2318 = vrot.slane %v2316, 4
      %v2319 = vor.u32 %v2318, %v2314
      %v2320 = vrot.slane %v2319, 4
      %v2322 = vshll.u32 %v2100, 16
      %v2324 = vrot.slane %v2322, 5
      %v2325 = vsel %vm2133, %v2320, %v2324
      %v2327 = vshrl.u32 %v2101, 16
      %v2329 = vrot.slane %v2327, 4
      %v2330 = vshll.u32 %v2101, 16
      %v2332 = vrot.slane %v2330, 5
      %v2333 = vor.u32 %v2329, %v2332
      %v2334 = vrot.slane %v2333, 4
      %v2336 = vshll.u32 %v2102, 16
      %v2338 = vrot.slane %v2336, 5
      %v2339 = vsel %vm2133, %v2334, %v2338
      %v2340 = vshrl.u32 %v2102, 16
      %v2342 = vrot.slane %v2340, 4
      %v2343 = vor.u32 %v2342, %v2338
      %v2344 = vrot.slane %v2343, 4
      %v2346 = vshll.u32 %v2103, 16
      %v2348 = vrot.slane %v2346, 5
      %v2349 = vsel %vm2133, %v2344, %v2348
      %v2351 = vshrl.u32 %v2104, 16
      %v2353 = vrot.slane %v2351, 4
      %v2354 = vshll.u32 %v2104, 16
      %v2356 = vrot.slane %v2354, 5
      %v2357 = vor.u32 %v2353, %v2356
      %v2358 = vrot.slane %v2357, 4
      %v2360 = vshll.u32 %v2105, 16
      %v2362 = vrot.slane %v2360, 5
      %v2363 = vsel %vm2133, %v2358, %v2362
      %v2364 = vshrl.u32 %v2105, 16
      %v2366 = vrot.slane %v2364, 4
      %v2367 = vor.u32 %v2366, %v2362
      %v2368 = vrot.slane %v2367, 4
      %v2370 = vshll.u32 %v2106, 16
      %v2372 = vrot.slane %v2370, 5
      %v2373 = vsel %vm2133, %v2368, %v2372
      %v2375 = vshrl.u32 %v2107, 16
      %v2377 = vrot.slane %v2375, 4
      %v2378 = vshll.u32 %v2107, 16
      %v2380 = vrot.slane %v2378, 5
      %v2381 = vor.u32 %v2377, %v2380
      %v2382 = vrot.slane %v2381, 4
      %v2384 = vshll.u32 %v2108, 16
      %v2386 = vrot.slane %v2384, 5
      %v2387 = vsel %vm2133, %v2382, %v2386
      %v2388 = vshrl.u32 %v2108, 16
      %v2390 = vrot.slane %v2388, 4
      %v2391 = vor.u32 %v2390, %v2386
      %v2392 = vrot.slane %v2391, 4
      %v2394 = vshll.u32 %v2109, 16
      %v2396 = vrot.slane %v2394, 5
      %v2397 = vsel %vm2133, %v2392, %v2396
      %v2399 = vshrl.u32 %v2110, 16
      %v2401 = vrot.slane %v2399, 4
      %v2402 = vshll.u32 %v2110, 16
      %v2404 = vrot.slane %v2402, 5
      %v2405 = vor.u32 %v2401, %v2404
      %v2406 = vrot.slane %v2405, 4
      %v2408 = vshll.u32 %v2111, 16
      %v2410 = vrot.slane %v2408, 5
      %v2411 = vsel %vm2133, %v2406, %v2410
      %v2412 = vshrl.u32 %v2111, 16
      %v2414 = vrot.slane %v2412, 4
      %v2415 = vor.u32 %v2414, %v2410
      %v2416 = vrot.slane %v2415, 4
      %v2418 = vshll.u32 %v2112, 16
      %v2420 = vrot.slane %v2418, 5
      %v2421 = vsel %vm2133, %v2416, %v2420
      %v2423 = vshrl.u32 %v2113, 16
      %v2425 = vrot.slane %v2423, 4
      %v2426 = vshll.u32 %v2113, 16
      %v2428 = vrot.slane %v2426, 5
      %v2429 = vor.u32 %v2425, %v2428
      %v2430 = vrot.slane %v2429, 4
      %v2432 = vshll.u32 %v2114, 16
      %v2434 = vrot.slane %v2432, 5
      %v2435 = vsel %vm2133, %v2430, %v2434
      %v2436 = vshrl.u32 %v2114, 16
      %v2438 = vrot.slane %v2436, 4
      %v2439 = vor.u32 %v2438, %v2434
      %v2440 = vrot.slane %v2439, 4
      %v2442 = vshll.u32 %v2115, 16
      %v2444 = vrot.slane %v2442, 5
      %v2445 = vsel %vm2133, %v2440, %v2444
      %v2447 = vshrl.u32 %v2116, 16
      %v2449 = vrot.slane %v2447, 4
      %v2450 = vshll.u32 %v2116, 16
      %v2452 = vrot.slane %v2450, 5
      %v2453 = vor.u32 %v2449, %v2452
      %v2454 = vrot.slane %v2453, 4
      %v2456 = vshll.u32 %v2117, 16
      %v2458 = vrot.slane %v2456, 5
      %v2459 = vsel %vm2133, %v2454, %v2458
      %v2460 = vshrl.u32 %v2117, 16
      %v2462 = vrot.slane %v2460, 4
      %v2463 = vor.u32 %v2462, %v2458
      %v2464 = vrot.slane %v2463, 4
      %v2466 = vshll.u32 %v2118, 16
      %v2468 = vrot.slane %v2466, 5
      %v2469 = vsel %vm2133, %v2464, %v2468
      %v2471 = vshrl.u32 %v2119, 16
      %v2473 = vrot.slane %v2471, 4
      %v2474 = vshll.u32 %v2119, 16
      %v2476 = vrot.slane %v2474, 5
      %v2477 = vor.u32 %v2473, %v2476
      %v2478 = vrot.slane %v2477, 4
      %v2480 = vshll.u32 %v2120, 16
      %v2482 = vrot.slane %v2480, 5
      %v2483 = vsel %vm2133, %v2478, %v2482
      %v2484 = vshrl.u32 %v2120, 16
      %v2486 = vrot.slane %v2484, 4
      %v2487 = vor.u32 %v2486, %v2482
      %v2488 = vrot.slane %v2487, 4
      %v2490 = vshll.u32 %v2121, 16
      %v2492 = vrot.slane %v2490, 5
      %v2493 = vsel %vm2133, %v2488, %v2492
      %v2495 = vshrl.u32 %v2122, 16
      %v2497 = vrot.slane %v2495, 4
      %v2498 = vshll.u32 %v2122, 16
      %v2500 = vrot.slane %v2498, 5
      %v2501 = vor.u32 %v2497, %v2500
      %v2502 = vrot.slane %v2501, 4
      %v2504 = vshll.u32 %v2123, 16
      %v2506 = vrot.slane %v2504, 5
      %v2507 = vsel %vm2133, %v2502, %v2506
      %v2508 = vshrl.u32 %v2123, 16
      %v2510 = vrot.slane %v2508, 4
      %v2511 = vor.u32 %v2510, %v2506
      %v2512 = vrot.slane %v2511, 4
      %v2514 = vshll.u32 %v2124, 16
      %v2516 = vrot.slane %v2514, 5
      %v2517 = vsel %vm2133, %v2512, %v2516
      %s2518 = scalar_lea.vmem %s1, 64
      %v2519 = vld [vmem:[%s2518] sm:$0xf]
      %v2520 = vld [vmem:[%s2518 + $0x4] sm:$0xf]
      %v2521 = vld [vmem:[%s2518 + $0x8] sm:$0xf]
      %v2522 = vld [vmem:[%s2518 + $0xc] sm:$0xf]
      %v2523 = vld [vmem:[%s2518 + $0x10] sm:$0xf]
      %v2524 = vld [vmem:[%s2518 + $0x14] sm:$0xf]
      %v2525 = vld [vmem:[%s2518 + $0x18] sm:$0xf]
      %v2526 = vld [vmem:[%s2518 + $0x1c] sm:$0xf]
      %v2527 = vld [vmem:[%s2518 + $0x20] sm:$0xf]
      %v2528 = vld [vmem:[%s2518 + $0x24] sm:$0xf]
      %v2529 = vld [vmem:[%s2518 + $0x28] sm:$0xf]
      %v2530 = vld [vmem:[%s2518 + $0x2c] sm:$0xf]
      %v2531 = vld [vmem:[%s2518 + $0x30] sm:$0xf]
      %v2532 = vld [vmem:[%s2518 + $0x34] sm:$0xf]
      %v2533 = vld [vmem:[%s2518 + $0x38] sm:$0xf]
      %v2534 = vld [vmem:[%s2518 + $0x3c] sm:$0xf]
      %v2535 = vunpack.c.l.b16 %v2147
      %v2536 = vunpack.c.l.b16 %v2157
      %v2537 = vunpack.c.l.b16 %v2171
      %v2538 = vunpack.c.l.b16 %v2181
      %v2539 = vunpack.c.l.b16 %v2195
      %v2540 = vunpack.c.l.b16 %v2205
      %v2541 = vunpack.c.l.b16 %v2219
      %v2542 = vunpack.c.l.b16 %v2229
      %v2543 = vunpack.c.l.b16 %v2243
      %v2544 = vunpack.c.l.b16 %v2253
      %v2545 = vunpack.c.l.b16 %v2267
      %v2546 = vunpack.c.l.b16 %v2277
      %v2547 = vunpack.c.l.b16 %v2291
      %v2548 = vunpack.c.l.b16 %v2301
      %v2549 = vunpack.c.l.b16 %v2315
      %v2550 = vunpack.c.l.b16 %v2325
      %v2551 = vunpack.c.l.b16 %v2339
      %v2552 = vunpack.c.l.b16 %v2349
      %v2553 = vunpack.c.l.b16 %v2363
      %v2554 = vunpack.c.l.b16 %v2373
      %v2555 = vunpack.c.l.b16 %v2387
      %v2556 = vunpack.c.l.b16 %v2397
      %v2557 = vunpack.c.l.b16 %v2411
      %v2558 = vunpack.c.l.b16 %v2421
      %v2559 = vunpack.c.l.b16 %v2435
      %v2560 = vunpack.c.l.b16 %v2445
      %v2561 = vunpack.c.l.b16 %v2459
      %v2562 = vunpack.c.l.b16 %v2469
      %v2563 = vunpack.c.l.b16 %v2483
      %v2564 = vunpack.c.l.b16 %v2493
      %v2565 = vunpack.c.l.b16 %v2507
      %v2566 = vunpack.c.l.b16 %v2517
      %v2567 = vpack.c.b16 %v2536, %v2535
      %v2568 = vpack.c.b16 %v2538, %v2537
      %v2569 = vpack.c.b16 %v2540, %v2539
      %v2570 = vpack.c.b16 %v2542, %v2541
      %v2571 = vpack.c.b16 %v2544, %v2543
      %v2572 = vpack.c.b16 %v2546, %v2545
      %v2573 = vpack.c.b16 %v2548, %v2547
      %v2574 = vpack.c.b16 %v2550, %v2549
      %v2575 = vpack.c.b16 %v2552, %v2551
      %v2576 = vpack.c.b16 %v2554, %v2553
      %v2577 = vpack.c.b16 %v2556, %v2555
      %v2578 = vpack.c.b16 %v2558, %v2557
      %v2579 = vpack.c.b16 %v2560, %v2559
      %v2580 = vpack.c.b16 %v2562, %v2561
      %v2581 = vpack.c.b16 %v2564, %v2563
      %v2582 = vpack.c.b16 %v2566, %v2565
      %v2615 = vunpack.c.l.b16 %v2519
      %v2616 = vunpack.c.l.b16 %v2520
      %v2617 = vunpack.c.l.b16 %v2521
      %v2618 = vunpack.c.l.b16 %v2522
      %v2619 = vunpack.c.l.b16 %v2523
      %v2620 = vunpack.c.l.b16 %v2524
      %v2621 = vunpack.c.l.b16 %v2525
      %v2622 = vunpack.c.l.b16 %v2526
      %v2623 = vunpack.c.l.b16 %v2527
      %v2624 = vunpack.c.l.b16 %v2528
      %v2625 = vunpack.c.l.b16 %v2529
      %v2626 = vunpack.c.l.b16 %v2530
      %v2627 = vunpack.c.l.b16 %v2531
      %v2628 = vunpack.c.l.b16 %v2532
      %v2629 = vunpack.c.l.b16 %v2533
      %v2630 = vunpack.c.l.b16 %v2534
      %v2631 = vpack.c.b16 %v2616, %v2615
      %v2632 = vpack.c.b16 %v2618, %v2617
      %v2633 = vpack.c.b16 %v2620, %v2619
      %v2634 = vpack.c.b16 %v2622, %v2621
      %v2635 = vpack.c.b16 %v2624, %v2623
      %v2636 = vpack.c.b16 %v2626, %v2625
      %v2637 = vpack.c.b16 %v2628, %v2627
      %v2638 = vpack.c.b16 %v2630, %v2629
      %2647 = vmatprep.subr.bf16.mxu0 0
      %2648 = vmatpush1.bf16.msra.mxu0 %v2638
      %2649 = vmatprep.subr.bf16.mxu0 0
      %2650 = vmatpush1.bf16.msra.mxu0 %v2637
      %2651 = vmatprep.subr.bf16.mxu0 0
      %2652 = vmatpush1.bf16.msra.mxu0 %v2636
      %2653 = vmatprep.subr.bf16.mxu0 0
      %2654 = vmatpush1.bf16.msra.mxu0 %v2635
      %2655 = vmatprep.subr.bf16.mxu0 0
      %2656 = vmatpush1.bf16.msra.mxu0 %v2634
      %2657 = vmatprep.subr.bf16.mxu0 0
      %2658 = vmatpush1.bf16.msra.mxu0 %v2633
      %2659 = vmatprep.subr.bf16.mxu0 0
      %2660 = vmatpush1.bf16.msra.mxu0 %v2632
      %2661 = vmatprep.subr.bf16.mxu0 0
      %2662 = vmatpush1.bf16.msra.mxu0 %v2631
      %2663 = vmatprep.subr.bf16.mxu0 0
      %2664 = vmatpush2.bf16.msra.mxu0 0
      %2665 = vmatprep.subr.bf16.mxu0 0
      %2666 = vmatpush2.bf16.msra.mxu0 0
      %2667 = vmatprep.subr.bf16.mxu0 0
      %2668 = vmatpush2.bf16.msra.mxu0 0
      %2669 = vmatprep.subr.bf16.mxu0 0
      %2670 = vmatpush2.bf16.msra.mxu0 0
      %2671 = vmatprep.subr.bf16.mxu0 0
      %2672 = vmatpush2.bf16.msra.mxu0 0
      %2673 = vmatprep.subr.bf16.mxu0 0
      %2674 = vmatpush2.bf16.msra.mxu0 0
      %2675 = vmatprep.subr.bf16.mxu0 0
      %2676 = vmatpush2.bf16.msra.mxu0 0
      %2677 = vmatprep.subr.bf16.mxu0 0
      %2678 = vmatpush2.bf16.msra.mxu0 0
      %2679 = vmatprep.mubr.bf16.mxu0 0
      %2680 = vmatmul.mubr.bf16.gmra.mxu0 %v2567
      %v2681 = vpop.f32.mrf.mxu0
      %v2682 = vadd.f32 0.0, %v2681
      %v2683 = vpop.f32.mrf.mxu0
      %v2684 = vpop.f32.mrf.mxu0
      %v2685 = vadd.f32 0.0, %v2684
      %v2686 = vpop.f32.mrf.mxu0
      %2687 = vmatprep.mubr.bf16.mxu0 0
      %2688 = vmatmul.mubr.bf16.gmra.mxu0 %v2568
      %v2689 = vpop.f32.mrf.mxu0
      %v2690 = vadd.f32 0.0, %v2689
      %v2691 = vpop.f32.mrf.mxu0
      %v2692 = vpop.f32.mrf.mxu0
      %v2693 = vadd.f32 0.0, %v2692
      %v2694 = vpop.f32.mrf.mxu0
      %2695 = vmatprep.mubr.bf16.mxu0 0
      %2696 = vmatmul.mubr.bf16.gmra.mxu0 %v2569
      %v2697 = vpop.f32.mrf.mxu0
      %v2698 = vadd.f32 0.0, %v2697
      %v2699 = vpop.f32.mrf.mxu0
      %v2700 = vpop.f32.mrf.mxu0
      %v2701 = vadd.f32 0.0, %v2700
      %v2702 = vpop.f32.mrf.mxu0
      %2703 = vmatprep.mubr.bf16.mxu0 0
      %2704 = vmatmul.mubr.bf16.gmra.mxu0 %v2570
      %v2705 = vpop.f32.mrf.mxu0
      %v2706 = vadd.f32 0.0, %v2705
      %v2707 = vpop.f32.mrf.mxu0
      %v2708 = vpop.f32.mrf.mxu0
      %v2709 = vadd.f32 0.0, %v2708
      %v2710 = vpop.f32.mrf.mxu0
      %2711 = vmatprep.mubr.bf16.mxu0 0
      %2712 = vmatmul.mubr.bf16.gmra.mxu0 %v2571
      %v2713 = vpop.f32.mrf.mxu0
      %v2714 = vadd.f32 0.0, %v2713
      %v2715 = vpop.f32.mrf.mxu0
      %v2716 = vpop.f32.mrf.mxu0
      %v2717 = vadd.f32 0.0, %v2716
      %v2718 = vpop.f32.mrf.mxu0
      %2719 = vmatprep.mubr.bf16.mxu0 0
      %2720 = vmatmul.mubr.bf16.gmra.mxu0 %v2572
      %v2721 = vpop.f32.mrf.mxu0
      %v2722 = vadd.f32 0.0, %v2721
      %v2723 = vpop.f32.mrf.mxu0
      %v2724 = vpop.f32.mrf.mxu0
      %v2725 = vadd.f32 0.0, %v2724
      %v2726 = vpop.f32.mrf.mxu0
      %2727 = vmatprep.mubr.bf16.mxu0 0
      %2728 = vmatmul.mubr.bf16.gmra.mxu0 %v2573
      %v2729 = vpop.f32.mrf.mxu0
      %v2730 = vadd.f32 0.0, %v2729
      %v2731 = vpop.f32.mrf.mxu0
      %v2732 = vpop.f32.mrf.mxu0
      %v2733 = vadd.f32 0.0, %v2732
      %v2734 = vpop.f32.mrf.mxu0
      %2735 = vmatprep.mubr.bf16.mxu0 0
      %2736 = vmatmul.mubr.bf16.gmra.mxu0 %v2574
      %v2737 = vpop.f32.mrf.mxu0
      %v2738 = vadd.f32 0.0, %v2737
      %v2739 = vpop.f32.mrf.mxu0
      %v2740 = vpop.f32.mrf.mxu0
      %v2741 = vadd.f32 0.0, %v2740
      %v2742 = vpop.f32.mrf.mxu0
      %2743 = vmatprep.mubr.bf16.mxu0 0
      %2744 = vmatmul.mubr.bf16.gmra.mxu0 %v2575
      %v2745 = vpop.f32.mrf.mxu0
      %v2746 = vadd.f32 0.0, %v2745
      %v2747 = vpop.f32.mrf.mxu0
      %v2748 = vpop.f32.mrf.mxu0
      %v2749 = vadd.f32 0.0, %v2748
      %v2750 = vpop.f32.mrf.mxu0
      %2751 = vmatprep.mubr.bf16.mxu0 0
      %2752 = vmatmul.mubr.bf16.gmra.mxu0 %v2576
      %v2753 = vpop.f32.mrf.mxu0
      %v2754 = vadd.f32 0.0, %v2753
      %v2755 = vpop.f32.mrf.mxu0
      %v2756 = vpop.f32.mrf.mxu0
      %v2757 = vadd.f32 0.0, %v2756
      %v2758 = vpop.f32.mrf.mxu0
      %2759 = vmatprep.mubr.bf16.mxu0 0
      %2760 = vmatmul.mubr.bf16.gmra.mxu0 %v2577
      %v2761 = vpop.f32.mrf.mxu0
      %v2762 = vadd.f32 0.0, %v2761
      %v2763 = vpop.f32.mrf.mxu0
      %v2764 = vpop.f32.mrf.mxu0
      %v2765 = vadd.f32 0.0, %v2764
      %v2766 = vpop.f32.mrf.mxu0
      %2767 = vmatprep.mubr.bf16.mxu0 0
      %2768 = vmatmul.mubr.bf16.gmra.mxu0 %v2578
      %v2769 = vpop.f32.mrf.mxu0
      %v2770 = vadd.f32 0.0, %v2769
      %v2771 = vpop.f32.mrf.mxu0
      %v2772 = vpop.f32.mrf.mxu0
      %v2773 = vadd.f32 0.0, %v2772
      %v2774 = vpop.f32.mrf.mxu0
      %2775 = vmatprep.mubr.bf16.mxu0 0
      %2776 = vmatmul.mubr.bf16.gmra.mxu0 %v2579
      %v2777 = vpop.f32.mrf.mxu0
      %v2778 = vadd.f32 0.0, %v2777
      %v2779 = vpop.f32.mrf.mxu0
      %v2780 = vpop.f32.mrf.mxu0
      %v2781 = vadd.f32 0.0, %v2780
      %v2782 = vpop.f32.mrf.mxu0
      %2783 = vmatprep.mubr.bf16.mxu0 0
      %2784 = vmatmul.mubr.bf16.gmra.mxu0 %v2580
      %v2785 = vpop.f32.mrf.mxu0
      %v2786 = vadd.f32 0.0, %v2785
      %v2787 = vpop.f32.mrf.mxu0
      %v2788 = vpop.f32.mrf.mxu0
      %v2789 = vadd.f32 0.0, %v2788
      %v2790 = vpop.f32.mrf.mxu0
      %2791 = vmatprep.mubr.bf16.mxu0 0
      %2792 = vmatmul.mubr.bf16.gmra.mxu0 %v2581
      %v2793 = vpop.f32.mrf.mxu0
      %v2794 = vadd.f32 0.0, %v2793
      %v2795 = vpop.f32.mrf.mxu0
      %v2796 = vpop.f32.mrf.mxu0
      %v2797 = vadd.f32 0.0, %v2796
      %v2798 = vpop.f32.mrf.mxu0
      %2799 = vmatprep.mubr.bf16.mxu0 0
      %2800 = vmatmul.mubr.bf16.gmra.mxu0 %v2582
      %v2801 = vpop.f32.mrf.mxu0
      %v2802 = vadd.f32 0.0, %v2801
      %v2803 = vpop.f32.mrf.mxu0
      %v2804 = vpop.f32.mrf.mxu0
      %v2805 = vadd.f32 0.0, %v2804
      %v2806 = vpop.f32.mrf.mxu0
      %2807 = vdwg.mxu0
      %v2808 = vld [vmem:[#allocation3] sm:$0xff]
      %v2809 = vld [vmem:[#allocation3 + $0x8] sm:$0xff]
      %v2810 = vld [vmem:[#allocation3 + $0x10] sm:$0xff]
      %v2811 = vld [vmem:[#allocation3 + $0x18] sm:$0xff]
      %v2812 = vld [vmem:[#allocation3 + $0x20] sm:$0xff]
      %v2813 = vld [vmem:[#allocation3 + $0x28] sm:$0xff]
      %v2814 = vld [vmem:[#allocation3 + $0x30] sm:$0xff]
      %v2815 = vld [vmem:[#allocation3 + $0x38] sm:$0xff]
      %v2816 = vld [vmem:[#allocation3 + $0x40] sm:$0xff]
      %v2817 = vld [vmem:[#allocation3 + $0x48] sm:$0xff]
      %v2818 = vld [vmem:[#allocation3 + $0x50] sm:$0xff]
      %v2819 = vld [vmem:[#allocation3 + $0x58] sm:$0xff]
      %v2820 = vld [vmem:[#allocation3 + $0x60] sm:$0xff]
      %v2821 = vld [vmem:[#allocation3 + $0x68] sm:$0xff]
      %v2822 = vld [vmem:[#allocation3 + $0x70] sm:$0xff]
      %v2823 = vld [vmem:[#allocation3 + $0x78] sm:$0xff]
      %v2824 = vld [vmem:[#allocation3 + $0x80] sm:$0xff]
      %v2825 = vld [vmem:[#allocation3 + $0x88] sm:$0xff]
      %v2826 = vld [vmem:[#allocation3 + $0x90] sm:$0xff]
      %v2827 = vld [vmem:[#allocation3 + $0x98] sm:$0xff]
      %v2828 = vld [vmem:[#allocation3 + $0xa0] sm:$0xff]
      %v2829 = vld [vmem:[#allocation3 + $0xa8] sm:$0xff]
      %v2830 = vld [vmem:[#allocation3 + $0xb0] sm:$0xff]
      %v2831 = vld [vmem:[#allocation3 + $0xb8] sm:$0xff]
      %v2832 = vld [vmem:[#allocation3 + $0xc0] sm:$0xff]
      %v2833 = vld [vmem:[#allocation3 + $0xc8] sm:$0xff]
      %v2834 = vld [vmem:[#allocation3 + $0xd0] sm:$0xff]
      %v2835 = vld [vmem:[#allocation3 + $0xd8] sm:$0xff]
      %v2836 = vld [vmem:[#allocation3 + $0xe0] sm:$0xff]
      %v2837 = vld [vmem:[#allocation3 + $0xe8] sm:$0xff]
      %v2838 = vld [vmem:[#allocation3 + $0xf0] sm:$0xff]
      %v2839 = vld [vmem:[#allocation3 + $0xf8] sm:$0xff]
      %v2840 = vadd.f32 %v2808, %v2682
      %v2841 = vadd.f32 %v2809, %v2685
      %v2842 = vadd.f32 %v2810, %v2690
      %v2843 = vadd.f32 %v2811, %v2693
      %v2844 = vadd.f32 %v2812, %v2698
      %v2845 = vadd.f32 %v2813, %v2701
      %v2846 = vadd.f32 %v2814, %v2706
      %v2847 = vadd.f32 %v2815, %v2709
      %v2848 = vadd.f32 %v2816, %v2714
      %v2849 = vadd.f32 %v2817, %v2717
      %v2850 = vadd.f32 %v2818, %v2722
      %v2851 = vadd.f32 %v2819, %v2725
      %v2852 = vadd.f32 %v2820, %v2730
      %v2853 = vadd.f32 %v2821, %v2733
      %v2854 = vadd.f32 %v2822, %v2738
      %v2855 = vadd.f32 %v2823, %v2741
      %v2856 = vadd.f32 %v2824, %v2746
      %v2857 = vadd.f32 %v2825, %v2749
      %v2858 = vadd.f32 %v2826, %v2754
      %v2859 = vadd.f32 %v2827, %v2757
      %v2860 = vadd.f32 %v2828, %v2762
      %v2861 = vadd.f32 %v2829, %v2765
      %v2862 = vadd.f32 %v2830, %v2770
      %v2863 = vadd.f32 %v2831, %v2773
      %v2864 = vadd.f32 %v2832, %v2778
      %v2865 = vadd.f32 %v2833, %v2781
      %v2866 = vadd.f32 %v2834, %v2786
      %v2867 = vadd.f32 %v2835, %v2789
      %v2868 = vadd.f32 %v2836, %v2794
      %v2869 = vadd.f32 %v2837, %v2797
      %v2870 = vadd.f32 %v2838, %v2802
      %v2871 = vadd.f32 %v2839, %v2805
      %2872 = vst [vmem:[#allocation3] sm:$0xff] %v2840
      %2873 = vst [vmem:[#allocation3 + $0x8] sm:$0xff] %v2841
      %2874 = vst [vmem:[#allocation3 + $0x10] sm:$0xff] %v2842
      %2875 = vst [vmem:[#allocation3 + $0x18] sm:$0xff] %v2843
      %2876 = vst [vmem:[#allocation3 + $0x20] sm:$0xff] %v2844
      %2877 = vst [vmem:[#allocation3 + $0x28] sm:$0xff] %v2845
      %2878 = vst [vmem:[#allocation3 + $0x30] sm:$0xff] %v2846
      %2879 = vst [vmem:[#allocation3 + $0x38] sm:$0xff] %v2847
      %2880 = vst [vmem:[#allocation3 + $0x40] sm:$0xff] %v2848
      %2881 = vst [vmem:[#allocation3 + $0x48] sm:$0xff] %v2849
      %2882 = vst [vmem:[#allocation3 + $0x50] sm:$0xff] %v2850
      %2883 = vst [vmem:[#allocation3 + $0x58] sm:$0xff] %v2851
      %2884 = vst [vmem:[#allocation3 + $0x60] sm:$0xff] %v2852
      %2885 = vst [vmem:[#allocation3 + $0x68] sm:$0xff] %v2853
      %2886 = vst [vmem:[#allocation3 + $0x70] sm:$0xff] %v2854
      %2887 = vst [vmem:[#allocation3 + $0x78] sm:$0xff] %v2855
      %2888 = vst [vmem:[#allocation3 + $0x80] sm:$0xff] %v2856
      %2889 = vst [vmem:[#allocation3 + $0x88] sm:$0xff] %v2857
      %2890 = vst [vmem:[#allocation3 + $0x90] sm:$0xff] %v2858
      %2891 = vst [vmem:[#allocation3 + $0x98] sm:$0xff] %v2859
      %2892 = vst [vmem:[#allocation3 + $0xa0] sm:$0xff] %v2860
      %2893 = vst [vmem:[#allocation3 + $0xa8] sm:$0xff] %v2861
      %2894 = vst [vmem:[#allocation3 + $0xb0] sm:$0xff] %v2862
      %2895 = vst [vmem:[#allocation3 + $0xb8] sm:$0xff] %v2863
      %2896 = vst [vmem:[#allocation3 + $0xc0] sm:$0xff] %v2864
      %2897 = vst [vmem:[#allocation3 + $0xc8] sm:$0xff] %v2865
      %2898 = vst [vmem:[#allocation3 + $0xd0] sm:$0xff] %v2866
      %2899 = vst [vmem:[#allocation3 + $0xd8] sm:$0xff] %v2867
      %2900 = vst [vmem:[#allocation3 + $0xe0] sm:$0xff] %v2868
      %2901 = vst [vmem:[#allocation3 + $0xe8] sm:$0xff] %v2869
      %2902 = vst [vmem:[#allocation3 + $0xf0] sm:$0xff] %v2870
      %2903 = vst [vmem:[#allocation3 + $0xf8] sm:$0xff] %v2871
      %v2905 = vshrl.u32 %v2125, 16
      %v2907 = vrot.slane %v2905, 4
      %v2908 = vshll.u32 %v2125, 16
      %v2910 = vrot.slane %v2908, 5
      %v2911 = vor.u32 %v2907, %v2910
      %v2912 = vrot.slane %v2911, 4
      %v2914 = vshll.u32 %v2126, 16
      %v2916 = vrot.slane %v2914, 5
      %v2917 = vsel %vm2133, %v2912, %v2916
      %v2918 = vshrl.u32 %v2126, 16
      %v2920 = vrot.slane %v2918, 4
      %v2921 = vor.u32 %v2920, %v2916
      %v2922 = vrot.slane %v2921, 4
      %v2924 = vshll.u32 %v2127, 16
      %v2926 = vrot.slane %v2924, 5
      %v2927 = vsel %vm2133, %v2922, %v2926
      %s2928 = scalar_lea.vmem %s1, 256
      %v2929 = vld [vmem:[%s2928] sm:$0xf]
      %v2930 = vld [vmem:[%s2928 + $0x4] sm:$0xf]
      %v2931 = vld [vmem:[%s2928 + $0x8] sm:$0xf]
      %v2932 = vld [vmem:[%s2928 + $0xc] sm:$0xf]
      %v2933 = vld [vmem:[%s2928 + $0x10] sm:$0xf]
      %v2934 = vld [vmem:[%s2928 + $0x14] sm:$0xf]
      %v2935 = vld [vmem:[%s2928 + $0x18] sm:$0xf]
      %v2936 = vld [vmem:[%s2928 + $0x1c] sm:$0xf]
      %v2937 = vld [vmem:[%s2928 + $0x20] sm:$0xf]
      %v2938 = vld [vmem:[%s2928 + $0x24] sm:$0xf]
      %v2939 = vld [vmem:[%s2928 + $0x28] sm:$0xf]
      %v2940 = vld [vmem:[%s2928 + $0x2c] sm:$0xf]
      %v2941 = vld [vmem:[%s2928 + $0x30] sm:$0xf]
      %v2942 = vld [vmem:[%s2928 + $0x34] sm:$0xf]
      %v2943 = vld [vmem:[%s2928 + $0x38] sm:$0xf]
      %v2944 = vld [vmem:[%s2928 + $0x3c] sm:$0xf]
      %v2945 = vunpack.c.l.b16 %v2917
      %v2946 = vunpack.c.l.b16 %v2927
      %v2947 = vpack.c.b16 %v2946, %v2945
      %v2965 = vunpack.c.l.b16 %v2929
      %v2966 = vunpack.c.l.b16 %v2930
      %v2967 = vunpack.c.l.b16 %v2931
      %v2968 = vunpack.c.l.b16 %v2932
      %v2969 = vunpack.c.l.b16 %v2933
      %v2970 = vunpack.c.l.b16 %v2934
      %v2971 = vunpack.c.l.b16 %v2935
      %v2972 = vunpack.c.l.b16 %v2936
      %v2973 = vunpack.c.l.b16 %v2937
      %v2974 = vunpack.c.l.b16 %v2938
      %v2975 = vunpack.c.l.b16 %v2939
      %v2976 = vunpack.c.l.b16 %v2940
      %v2977 = vunpack.c.l.b16 %v2941
      %v2978 = vunpack.c.l.b16 %v2942
      %v2979 = vunpack.c.l.b16 %v2943
      %v2980 = vunpack.c.l.b16 %v2944
      %v2981 = vpack.c.b16 %v2966, %v2965
      %v2982 = vpack.c.b16 %v2968, %v2967
      %v2983 = vpack.c.b16 %v2970, %v2969
      %v2984 = vpack.c.b16 %v2972, %v2971
      %v2985 = vpack.c.b16 %v2974, %v2973
      %v2986 = vpack.c.b16 %v2976, %v2975
      %v2987 = vpack.c.b16 %v2978, %v2977
      %v2988 = vpack.c.b16 %v2980, %v2979
      %2997 = vmatprep.subr.bf16.mxu0 0
      %2998 = vmatpush1.bf16.msra.mxu0 %v2988
      %2999 = vmatprep.subr.bf16.mxu0 0
      %3000 = vmatpush1.bf16.msra.mxu0 %v2987
      %3001 = vmatprep.subr.bf16.mxu0 0
      %3002 = vmatpush1.bf16.msra.mxu0 %v2986
      %3003 = vmatprep.subr.bf16.mxu0 0
      %3004 = vmatpush1.bf16.msra.mxu0 %v2985
      %3005 = vmatprep.subr.bf16.mxu0 0
      %3006 = vmatpush1.bf16.msra.mxu0 %v2984
      %3007 = vmatprep.subr.bf16.mxu0 0
      %3008 = vmatpush1.bf16.msra.mxu0 %v2983
      %3009 = vmatprep.subr.bf16.mxu0 0
      %3010 = vmatpush1.bf16.msra.mxu0 %v2982
      %3011 = vmatprep.subr.bf16.mxu0 0
      %3012 = vmatpush1.bf16.msra.mxu0 %v2981
      %3013 = vmatprep.subr.bf16.mxu0 0
      %3014 = vmatpush2.bf16.msra.mxu0 0
      %3015 = vmatprep.subr.bf16.mxu0 0
      %3016 = vmatpush2.bf16.msra.mxu0 0
      %3017 = vmatprep.subr.bf16.mxu0 0
      %3018 = vmatpush2.bf16.msra.mxu0 0
      %3019 = vmatprep.subr.bf16.mxu0 0
      %3020 = vmatpush2.bf16.msra.mxu0 0
      %3021 = vmatprep.subr.bf16.mxu0 0
      %3022 = vmatpush2.bf16.msra.mxu0 0
      %3023 = vmatprep.subr.bf16.mxu0 0
      %3024 = vmatpush2.bf16.msra.mxu0 0
      %3025 = vmatprep.subr.bf16.mxu0 0
      %3026 = vmatpush2.bf16.msra.mxu0 0
      %3027 = vmatprep.subr.bf16.mxu0 0
      %3028 = vmatpush2.bf16.msra.mxu0 0
      %3029 = vmatprep.mubr.bf16.mxu0 0
      %3030 = vmatmul.mubr.bf16.gmra.mxu0 %v2568
      %v3031 = vpop.f32.mrf.mxu0
      %v3032 = vadd.f32 0.0, %v3031
      %v3033 = vpop.f32.mrf.mxu0
      %v3034 = vpop.f32.mrf.mxu0
      %v3035 = vadd.f32 0.0, %v3034
      %v3036 = vpop.f32.mrf.mxu0
      %3037 = vmatprep.mubr.bf16.mxu0 0
      %3038 = vmatmul.mubr.bf16.gmra.mxu0 %v2569
      %v3039 = vpop.f32.mrf.mxu0
      %v3040 = vadd.f32 0.0, %v3039
      %v3041 = vpop.f32.mrf.mxu0
      %v3042 = vpop.f32.mrf.mxu0
      %v3043 = vadd.f32 0.0, %v3042
      %v3044 = vpop.f32.mrf.mxu0
      %3045 = vmatprep.mubr.bf16.mxu0 0
      %3046 = vmatmul.mubr.bf16.gmra.mxu0 %v2570
      %v3047 = vpop.f32.mrf.mxu0
      %v3048 = vadd.f32 0.0, %v3047
      %v3049 = vpop.f32.mrf.mxu0
      %v3050 = vpop.f32.mrf.mxu0
      %v3051 = vadd.f32 0.0, %v3050
      %v3052 = vpop.f32.mrf.mxu0
      %3053 = vmatprep.mubr.bf16.mxu0 0
      %3054 = vmatmul.mubr.bf16.gmra.mxu0 %v2571
      %v3055 = vpop.f32.mrf.mxu0
      %v3056 = vadd.f32 0.0, %v3055
      %v3057 = vpop.f32.mrf.mxu0
      %v3058 = vpop.f32.mrf.mxu0
      %v3059 = vadd.f32 0.0, %v3058
      %v3060 = vpop.f32.mrf.mxu0
      %3061 = vmatprep.mubr.bf16.mxu0 0
      %3062 = vmatmul.mubr.bf16.gmra.mxu0 %v2572
      %v3063 = vpop.f32.mrf.mxu0
      %v3064 = vadd.f32 0.0, %v3063
      %v3065 = vpop.f32.mrf.mxu0
      %v3066 = vpop.f32.mrf.mxu0
      %v3067 = vadd.f32 0.0, %v3066
      %v3068 = vpop.f32.mrf.mxu0
      %3069 = vmatprep.mubr.bf16.mxu0 0
      %3070 = vmatmul.mubr.bf16.gmra.mxu0 %v2573
      %v3071 = vpop.f32.mrf.mxu0
      %v3072 = vadd.f32 0.0, %v3071
      %v3073 = vpop.f32.mrf.mxu0
      %v3074 = vpop.f32.mrf.mxu0
      %v3075 = vadd.f32 0.0, %v3074
      %v3076 = vpop.f32.mrf.mxu0
      %3077 = vmatprep.mubr.bf16.mxu0 0
      %3078 = vmatmul.mubr.bf16.gmra.mxu0 %v2574
      %v3079 = vpop.f32.mrf.mxu0
      %v3080 = vadd.f32 0.0, %v3079
      %v3081 = vpop.f32.mrf.mxu0
      %v3082 = vpop.f32.mrf.mxu0
      %v3083 = vadd.f32 0.0, %v3082
      %v3084 = vpop.f32.mrf.mxu0
      %3085 = vmatprep.mubr.bf16.mxu0 0
      %3086 = vmatmul.mubr.bf16.gmra.mxu0 %v2575
      %v3087 = vpop.f32.mrf.mxu0
      %v3088 = vadd.f32 0.0, %v3087
      %v3089 = vpop.f32.mrf.mxu0
      %v3090 = vpop.f32.mrf.mxu0
      %v3091 = vadd.f32 0.0, %v3090
      %v3092 = vpop.f32.mrf.mxu0
      %3093 = vmatprep.mubr.bf16.mxu0 0
      %3094 = vmatmul.mubr.bf16.gmra.mxu0 %v2576
      %v3095 = vpop.f32.mrf.mxu0
      %v3096 = vadd.f32 0.0, %v3095
      %v3097 = vpop.f32.mrf.mxu0
      %v3098 = vpop.f32.mrf.mxu0
      %v3099 = vadd.f32 0.0, %v3098
      %v3100 = vpop.f32.mrf.mxu0
      %3101 = vmatprep.mubr.bf16.mxu0 0
      %3102 = vmatmul.mubr.bf16.gmra.mxu0 %v2577
      %v3103 = vpop.f32.mrf.mxu0
      %v3104 = vadd.f32 0.0, %v3103
      %v3105 = vpop.f32.mrf.mxu0
      %v3106 = vpop.f32.mrf.mxu0
      %v3107 = vadd.f32 0.0, %v3106
      %v3108 = vpop.f32.mrf.mxu0
      %3109 = vmatprep.mubr.bf16.mxu0 0
      %3110 = vmatmul.mubr.bf16.gmra.mxu0 %v2578
      %v3111 = vpop.f32.mrf.mxu0
      %v3112 = vadd.f32 0.0, %v3111
      %v3113 = vpop.f32.mrf.mxu0
      %v3114 = vpop.f32.mrf.mxu0
      %v3115 = vadd.f32 0.0, %v3114
      %v3116 = vpop.f32.mrf.mxu0
      %3117 = vmatprep.mubr.bf16.mxu0 0
      %3118 = vmatmul.mubr.bf16.gmra.mxu0 %v2579
      %v3119 = vpop.f32.mrf.mxu0
      %v3120 = vadd.f32 0.0, %v3119
      %v3121 = vpop.f32.mrf.mxu0
      %v3122 = vpop.f32.mrf.mxu0
      %v3123 = vadd.f32 0.0, %v3122
      %v3124 = vpop.f32.mrf.mxu0
      %3125 = vmatprep.mubr.bf16.mxu0 0
      %3126 = vmatmul.mubr.bf16.gmra.mxu0 %v2580
      %v3127 = vpop.f32.mrf.mxu0
      %v3128 = vadd.f32 0.0, %v3127
      %v3129 = vpop.f32.mrf.mxu0
      %v3130 = vpop.f32.mrf.mxu0
      %v3131 = vadd.f32 0.0, %v3130
      %v3132 = vpop.f32.mrf.mxu0
      %3133 = vmatprep.mubr.bf16.mxu0 0
      %3134 = vmatmul.mubr.bf16.gmra.mxu0 %v2581
      %v3135 = vpop.f32.mrf.mxu0
      %v3136 = vadd.f32 0.0, %v3135
      %v3137 = vpop.f32.mrf.mxu0
      %v3138 = vpop.f32.mrf.mxu0
      %v3139 = vadd.f32 0.0, %v3138
      %v3140 = vpop.f32.mrf.mxu0
      %3141 = vmatprep.mubr.bf16.mxu0 0
      %3142 = vmatmul.mubr.bf16.gmra.mxu0 %v2582
      %v3143 = vpop.f32.mrf.mxu0
      %v3144 = vadd.f32 0.0, %v3143
      %v3145 = vpop.f32.mrf.mxu0
      %v3146 = vpop.f32.mrf.mxu0
      %v3147 = vadd.f32 0.0, %v3146
      %v3148 = vpop.f32.mrf.mxu0
      %3149 = vmatprep.mubr.bf16.mxu0 0
      %3150 = vmatmul.mubr.bf16.gmra.mxu0 %v2947
      %v3151 = vpop.f32.mrf.mxu0
      %v3152 = vadd.f32 0.0, %v3151
      %v3153 = vpop.f32.mrf.mxu0
      %v3154 = vpop.f32.mrf.mxu0
      %v3155 = vadd.f32 0.0, %v3154
      %v3156 = vpop.f32.mrf.mxu0
      %3157 = vdwg.mxu0
      %v3158 = vld [vmem:[#allocation3] sm:$0xff]
      %v3159 = vld [vmem:[#allocation3 + $0x8] sm:$0xff]
      %v3160 = vld [vmem:[#allocation3 + $0x10] sm:$0xff]
      %v3161 = vld [vmem:[#allocation3 + $0x18] sm:$0xff]
      %v3162 = vld [vmem:[#allocation3 + $0x20] sm:$0xff]
      %v3163 = vld [vmem:[#allocation3 + $0x28] sm:$0xff]
      %v3164 = vld [vmem:[#allocation3 + $0x30] sm:$0xff]
      %v3165 = vld [vmem:[#allocation3 + $0x38] sm:$0xff]
      %v3166 = vld [vmem:[#allocation3 + $0x40] sm:$0xff]
      %v3167 = vld [vmem:[#allocation3 + $0x48] sm:$0xff]
      %v3168 = vld [vmem:[#allocation3 + $0x50] sm:$0xff]
      %v3169 = vld [vmem:[#allocation3 + $0x58] sm:$0xff]
      %v3170 = vld [vmem:[#allocation3 + $0x60] sm:$0xff]
      %v3171 = vld [vmem:[#allocation3 + $0x68] sm:$0xff]
      %v3172 = vld [vmem:[#allocation3 + $0x70] sm:$0xff]
      %v3173 = vld [vmem:[#allocation3 + $0x78] sm:$0xff]
      %v3174 = vld [vmem:[#allocation3 + $0x80] sm:$0xff]
      %v3175 = vld [vmem:[#allocation3 + $0x88] sm:$0xff]
      %v3176 = vld [vmem:[#allocation3 + $0x90] sm:$0xff]
      %v3177 = vld [vmem:[#allocation3 + $0x98] sm:$0xff]
      %v3178 = vld [vmem:[#allocation3 + $0xa0] sm:$0xff]
      %v3179 = vld [vmem:[#allocation3 + $0xa8] sm:$0xff]
      %v3180 = vld [vmem:[#allocation3 + $0xb0] sm:$0xff]
      %v3181 = vld [vmem:[#allocation3 + $0xb8] sm:$0xff]
      %v3182 = vld [vmem:[#allocation3 + $0xc0] sm:$0xff]
      %v3183 = vld [vmem:[#allocation3 + $0xc8] sm:$0xff]
      %v3184 = vld [vmem:[#allocation3 + $0xd0] sm:$0xff]
      %v3185 = vld [vmem:[#allocation3 + $0xd8] sm:$0xff]
      %v3186 = vld [vmem:[#allocation3 + $0xe0] sm:$0xff]
      %v3187 = vld [vmem:[#allocation3 + $0xe8] sm:$0xff]
      %v3188 = vld [vmem:[#allocation3 + $0xf0] sm:$0xff]
      %v3189 = vld [vmem:[#allocation3 + $0xf8] sm:$0xff]
      %v3190 = vadd.f32 %v3158, %v3032
      %v3191 = vadd.f32 %v3159, %v3035
      %v3192 = vadd.f32 %v3160, %v3040
      %v3193 = vadd.f32 %v3161, %v3043
      %v3194 = vadd.f32 %v3162, %v3048
      %v3195 = vadd.f32 %v3163, %v3051
      %v3196 = vadd.f32 %v3164, %v3056
      %v3197 = vadd.f32 %v3165, %v3059
      %v3198 = vadd.f32 %v3166, %v3064
      %v3199 = vadd.f32 %v3167, %v3067
      %v3200 = vadd.f32 %v3168, %v3072
      %v3201 = vadd.f32 %v3169, %v3075
      %v3202 = vadd.f32 %v3170, %v3080
      %v3203 = vadd.f32 %v3171, %v3083
      %v3204 = vadd.f32 %v3172, %v3088
      %v3205 = vadd.f32 %v3173, %v3091
      %v3206 = vadd.f32 %v3174, %v3096
      %v3207 = vadd.f32 %v3175, %v3099
      %v3208 = vadd.f32 %v3176, %v3104
      %v3209 = vadd.f32 %v3177, %v3107
      %v3210 = vadd.f32 %v3178, %v3112
      %v3211 = vadd.f32 %v3179, %v3115
      %v3212 = vadd.f32 %v3180, %v3120
      %v3213 = vadd.f32 %v3181, %v3123
      %v3214 = vadd.f32 %v3182, %v3128
      %v3215 = vadd.f32 %v3183, %v3131
      %v3216 = vadd.f32 %v3184, %v3136
      %v3217 = vadd.f32 %v3185, %v3139
      %v3218 = vadd.f32 %v3186, %v3144
      %v3219 = vadd.f32 %v3187, %v3147
      %v3220 = vadd.f32 %v3188, %v3152
      %v3221 = vadd.f32 %v3189, %v3155
      %3222 = vst [vmem:[#allocation3] sm:$0xff] %v3190
      %3223 = vst [vmem:[#allocation3 + $0x8] sm:$0xff] %v3191
      %3224 = vst [vmem:[#allocation3 + $0x10] sm:$0xff] %v3192
      %3225 = vst [vmem:[#allocation3 + $0x18] sm:$0xff] %v3193
      %3226 = vst [vmem:[#allocation3 + $0x20] sm:$0xff] %v3194
      %3227 = vst [vmem:[#allocation3 + $0x28] sm:$0xff] %v3195
      %3228 = vst [vmem:[#allocation3 + $0x30] sm:$0xff] %v3196
      %3229 = vst [vmem:[#allocation3 + $0x38] sm:$0xff] %v3197
      %3230 = vst [vmem:[#allocation3 + $0x40] sm:$0xff] %v3198
      %3231 = vst [vmem:[#allocation3 + $0x48] sm:$0xff] %v3199
      %3232 = vst [vmem:[#allocation3 + $0x50] sm:$0xff] %v3200
      %3233 = vst [vmem:[#allocation3 + $0x58] sm:$0xff] %v3201
      %3234 = vst [vmem:[#allocation3 + $0x60] sm:$0xff] %v3202
      %3235 = vst [vmem:[#allocation3 + $0x68] sm:$0xff] %v3203
      %3236 = vst [vmem:[#allocation3 + $0x70] sm:$0xff] %v3204
      %3237 = vst [vmem:[#allocation3 + $0x78] sm:$0xff] %v3205
      %3238 = vst [vmem:[#allocation3 + $0x80] sm:$0xff] %v3206
      %3239 = vst [vmem:[#allocation3 + $0x88] sm:$0xff] %v3207
      %3240 = vst [vmem:[#allocation3 + $0x90] sm:$0xff] %v3208
      %3241 = vst [vmem:[#allocation3 + $0x98] sm:$0xff] %v3209
      %3242 = vst [vmem:[#allocation3 + $0xa0] sm:$0xff] %v3210
      %3243 = vst [vmem:[#allocation3 + $0xa8] sm:$0xff] %v3211
      %3244 = vst [vmem:[#allocation3 + $0xb0] sm:$0xff] %v3212
      %3245 = vst [vmem:[#allocation3 + $0xb8] sm:$0xff] %v3213
      %3246 = vst [vmem:[#allocation3 + $0xc0] sm:$0xff] %v3214
      %3247 = vst [vmem:[#allocation3 + $0xc8] sm:$0xff] %v3215
      %3248 = vst [vmem:[#allocation3 + $0xd0] sm:$0xff] %v3216
      %3249 = vst [vmem:[#allocation3 + $0xd8] sm:$0xff] %v3217
      %3250 = vst [vmem:[#allocation3 + $0xe0] sm:$0xff] %v3218
      %3251 = vst [vmem:[#allocation3 + $0xe8] sm:$0xff] %v3219
      %3252 = vst [vmem:[#allocation3 + $0xf0] sm:$0xff] %v3220
      %3253 = vst [vmem:[#allocation3 + $0xf8] sm:$0xff] %v3221
      %v3255 = vshrl.u32 %v2128, 16
      %v3257 = vrot.slane %v3255, 4
      %v3258 = vshll.u32 %v2128, 16
      %v3260 = vrot.slane %v3258, 5
      %v3261 = vor.u32 %v3257, %v3260
      %v3262 = vrot.slane %v3261, 4
      %v3264 = vshll.u32 %v2129, 16
      %v3266 = vrot.slane %v3264, 5
      %v3267 = vsel %vm2133, %v3262, %v3266
      %v3268 = vshrl.u32 %v2129, 16
      %v3270 = vrot.slane %v3268, 4
      %v3271 = vor.u32 %v3270, %v3266
      %v3272 = vrot.slane %v3271, 4
      %v3274 = vshll.u32 %v2130, 16
      %v3276 = vrot.slane %v3274, 5
      %v3277 = vsel %vm2133, %v3272, %v3276
      %s3278 = scalar_lea.vmem %s1, 448
      %v3279 = vld [vmem:[%s3278] sm:$0xf]
      %v3280 = vld [vmem:[%s3278 + $0x4] sm:$0xf]
      %v3281 = vld [vmem:[%s3278 + $0x8] sm:$0xf]
      %v3282 = vld [vmem:[%s3278 + $0xc] sm:$0xf]
      %v3283 = vld [vmem:[%s3278 + $0x10] sm:$0xf]
      %v3284 = vld [vmem:[%s3278 + $0x14] sm:$0xf]
      %v3285 = vld [vmem:[%s3278 + $0x18] sm:$0xf]
      %v3286 = vld [vmem:[%s3278 + $0x1c] sm:$0xf]
      %v3287 = vld [vmem:[%s3278 + $0x20] sm:$0xf]
      %v3288 = vld [vmem:[%s3278 + $0x24] sm:$0xf]
      %v3289 = vld [vmem:[%s3278 + $0x28] sm:$0xf]
      %v3290 = vld [vmem:[%s3278 + $0x2c] sm:$0xf]
      %v3291 = vld [vmem:[%s3278 + $0x30] sm:$0xf]
      %v3292 = vld [vmem:[%s3278 + $0x34] sm:$0xf]
      %v3293 = vld [vmem:[%s3278 + $0x38] sm:$0xf]
      %v3294 = vld [vmem:[%s3278 + $0x3c] sm:$0xf]
      %v3295 = vunpack.c.l.b16 %v3267
      %v3296 = vunpack.c.l.b16 %v3277
      %v3297 = vpack.c.b16 %v3296, %v3295
      %v3315 = vunpack.c.l.b16 %v3279
      %v3316 = vunpack.c.l.b16 %v3280
      %v3317 = vunpack.c.l.b16 %v3281
      %v3318 = vunpack.c.l.b16 %v3282
      %v3319 = vunpack.c.l.b16 %v3283
      %v3320 = vunpack.c.l.b16 %v3284
      %v3321 = vunpack.c.l.b16 %v3285
      %v3322 = vunpack.c.l.b16 %v3286
      %v3323 = vunpack.c.l.b16 %v3287
      %v3324 = vunpack.c.l.b16 %v3288
      %v3325 = vunpack.c.l.b16 %v3289
      %v3326 = vunpack.c.l.b16 %v3290
      %v3327 = vunpack.c.l.b16 %v3291
      %v3328 = vunpack.c.l.b16 %v3292
      %v3329 = vunpack.c.l.b16 %v3293
      %v3330 = vunpack.c.l.b16 %v3294
      %v3331 = vpack.c.b16 %v3316, %v3315
      %v3332 = vpack.c.b16 %v3318, %v3317
      %v3333 = vpack.c.b16 %v3320, %v3319
      %v3334 = vpack.c.b16 %v3322, %v3321
      %v3335 = vpack.c.b16 %v3324, %v3323
      %v3336 = vpack.c.b16 %v3326, %v3325
      %v3337 = vpack.c.b16 %v3328, %v3327
      %v3338 = vpack.c.b16 %v3330, %v3329
      %3347 = vmatprep.subr.bf16.mxu0 0
      %3348 = vmatpush1.bf16.msra.mxu0 %v3338
      %3349 = vmatprep.subr.bf16.mxu0 0
      %3350 = vmatpush1.bf16.msra.mxu0 %v3337
      %3351 = vmatprep.subr.bf16.mxu0 0
      %3352 = vmatpush1.bf16.msra.mxu0 %v3336
      %3353 = vmatprep.subr.bf16.mxu0 0
      %3354 = vmatpush1.bf16.msra.mxu0 %v3335
      %3355 = vmatprep.subr.bf16.mxu0 0
      %3356 = vmatpush1.bf16.msra.mxu0 %v3334
      %3357 = vmatprep.subr.bf16.mxu0 0
      %3358 = vmatpush1.bf16.msra.mxu0 %v3333
      %3359 = vmatprep.subr.bf16.mxu0 0
      %3360 = vmatpush1.bf16.msra.mxu0 %v3332
      %3361 = vmatprep.subr.bf16.mxu0 0
      %3362 = vmatpush1.bf16.msra.mxu0 %v3331
      %3363 = vmatprep.subr.bf16.mxu0 0
      %3364 = vmatpush2.bf16.msra.mxu0 0
      %3365 = vmatprep.subr.bf16.mxu0 0
      %3366 = vmatpush2.bf16.msra.mxu0 0
      %3367 = vmatprep.subr.bf16.mxu0 0
      %3368 = vmatpush2.bf16.msra.mxu0 0
      %3369 = vmatprep.subr.bf16.mxu0 0
      %3370 = vmatpush2.bf16.msra.mxu0 0
      %3371 = vmatprep.subr.bf16.mxu0 0
      %3372 = vmatpush2.bf16.msra.mxu0 0
      %3373 = vmatprep.subr.bf16.mxu0 0
      %3374 = vmatpush2.bf16.msra.mxu0 0
      %3375 = vmatprep.subr.bf16.mxu0 0
      %3376 = vmatpush2.bf16.msra.mxu0 0
      %3377 = vmatprep.subr.bf16.mxu0 0
      %3378 = vmatpush2.bf16.msra.mxu0 0
      %3379 = vmatprep.mubr.bf16.mxu0 0
      %3380 = vmatmul.mubr.bf16.gmra.mxu0 %v2569
      %v3381 = vpop.f32.mrf.mxu0
      %v3382 = vadd.f32 0.0, %v3381
      %v3383 = vpop.f32.mrf.mxu0
      %v3384 = vpop.f32.mrf.mxu0
      %v3385 = vadd.f32 0.0, %v3384
      %v3386 = vpop.f32.mrf.mxu0
      %3387 = vmatprep.mubr.bf16.mxu0 0
      %3388 = vmatmul.mubr.bf16.gmra.mxu0 %v2570
      %v3389 = vpop.f32.mrf.mxu0
      %v3390 = vadd.f32 0.0, %v3389
      %v3391 = vpop.f32.mrf.mxu0
      %v3392 = vpop.f32.mrf.mxu0
      %v3393 = vadd.f32 0.0, %v3392
      %v3394 = vpop.f32.mrf.mxu0
      %3395 = vmatprep.mubr.bf16.mxu0 0
      %3396 = vmatmul.mubr.bf16.gmra.mxu0 %v2571
      %v3397 = vpop.f32.mrf.mxu0
      %v3398 = vadd.f32 0.0, %v3397
      %v3399 = vpop.f32.mrf.mxu0
      %v3400 = vpop.f32.mrf.mxu0
      %v3401 = vadd.f32 0.0, %v3400
      %v3402 = vpop.f32.mrf.mxu0
      %3403 = vmatprep.mubr.bf16.mxu0 0
      %3404 = vmatmul.mubr.bf16.gmra.mxu0 %v2572
      %v3405 = vpop.f32.mrf.mxu0
      %v3406 = vadd.f32 0.0, %v3405
      %v3407 = vpop.f32.mrf.mxu0
      %v3408 = vpop.f32.mrf.mxu0
      %v3409 = vadd.f32 0.0, %v3408
      %v3410 = vpop.f32.mrf.mxu0
      %3411 = vmatprep.mubr.bf16.mxu0 0
      %3412 = vmatmul.mubr.bf16.gmra.mxu0 %v2573
      %v3413 = vpop.f32.mrf.mxu0
      %v3414 = vadd.f32 0.0, %v3413
      %v3415 = vpop.f32.mrf.mxu0
      %v3416 = vpop.f32.mrf.mxu0
      %v3417 = vadd.f32 0.0, %v3416
      %v3418 = vpop.f32.mrf.mxu0
      %3419 = vmatprep.mubr.bf16.mxu0 0
      %3420 = vmatmul.mubr.bf16.gmra.mxu0 %v2574
      %v3421 = vpop.f32.mrf.mxu0
      %v3422 = vadd.f32 0.0, %v3421
      %v3423 = vpop.f32.mrf.mxu0
      %v3424 = vpop.f32.mrf.mxu0
      %v3425 = vadd.f32 0.0, %v3424
      %v3426 = vpop.f32.mrf.mxu0
      %3427 = vmatprep.mubr.bf16.mxu0 0
      %3428 = vmatmul.mubr.bf16.gmra.mxu0 %v2575
      %v3429 = vpop.f32.mrf.mxu0
      %v3430 = vadd.f32 0.0, %v3429
      %v3431 = vpop.f32.mrf.mxu0
      %v3432 = vpop.f32.mrf.mxu0
      %v3433 = vadd.f32 0.0, %v3432
      %v3434 = vpop.f32.mrf.mxu0
      %3435 = vmatprep.mubr.bf16.mxu0 0
      %3436 = vmatmul.mubr.bf16.gmra.mxu0 %v2576
      %v3437 = vpop.f32.mrf.mxu0
      %v3438 = vadd.f32 0.0, %v3437
      %v3439 = vpop.f32.mrf.mxu0
      %v3440 = vpop.f32.mrf.mxu0
      %v3441 = vadd.f32 0.0, %v3440
      %v3442 = vpop.f32.mrf.mxu0
      %3443 = vmatprep.mubr.bf16.mxu0 0
      %3444 = vmatmul.mubr.bf16.gmra.mxu0 %v2577
      %v3445 = vpop.f32.mrf.mxu0
      %v3446 = vadd.f32 0.0, %v3445
      %v3447 = vpop.f32.mrf.mxu0
      %v3448 = vpop.f32.mrf.mxu0
      %v3449 = vadd.f32 0.0, %v3448
      %v3450 = vpop.f32.mrf.mxu0
      %3451 = vmatprep.mubr.bf16.mxu0 0
      %3452 = vmatmul.mubr.bf16.gmra.mxu0 %v2578
      %v3453 = vpop.f32.mrf.mxu0
      %v3454 = vadd.f32 0.0, %v3453
      %v3455 = vpop.f32.mrf.mxu0
      %v3456 = vpop.f32.mrf.mxu0
      %v3457 = vadd.f32 0.0, %v3456
      %v3458 = vpop.f32.mrf.mxu0
      %3459 = vmatprep.mubr.bf16.mxu0 0
      %3460 = vmatmul.mubr.bf16.gmra.mxu0 %v2579
      %v3461 = vpop.f32.mrf.mxu0
      %v3462 = vadd.f32 0.0, %v3461
      %v3463 = vpop.f32.mrf.mxu0
      %v3464 = vpop.f32.mrf.mxu0
      %v3465 = vadd.f32 0.0, %v3464
      %v3466 = vpop.f32.mrf.mxu0
      %3467 = vmatprep.mubr.bf16.mxu0 0
      %3468 = vmatmul.mubr.bf16.gmra.mxu0 %v2580
      %v3469 = vpop.f32.mrf.mxu0
      %v3470 = vadd.f32 0.0, %v3469
      %v3471 = vpop.f32.mrf.mxu0
      %v3472 = vpop.f32.mrf.mxu0
      %v3473 = vadd.f32 0.0, %v3472
      %v3474 = vpop.f32.mrf.mxu0
      %3475 = vmatprep.mubr.bf16.mxu0 0
      %3476 = vmatmul.mubr.bf16.gmra.mxu0 %v2581
      %v3477 = vpop.f32.mrf.mxu0
      %v3478 = vadd.f32 0.0, %v3477
      %v3479 = vpop.f32.mrf.mxu0
      %v3480 = vpop.f32.mrf.mxu0
      %v3481 = vadd.f32 0.0, %v3480
      %v3482 = vpop.f32.mrf.mxu0
      %3483 = vmatprep.mubr.bf16.mxu0 0
      %3484 = vmatmul.mubr.bf16.gmra.mxu0 %v2582
      %v3485 = vpop.f32.mrf.mxu0
      %v3486 = vadd.f32 0.0, %v3485
      %v3487 = vpop.f32.mrf.mxu0
      %v3488 = vpop.f32.mrf.mxu0
      %v3489 = vadd.f32 0.0, %v3488
      %v3490 = vpop.f32.mrf.mxu0
      %3491 = vmatprep.mubr.bf16.mxu0 0
      %3492 = vmatmul.mubr.bf16.gmra.mxu0 %v2947
      %v3493 = vpop.f32.mrf.mxu0
      %v3494 = vadd.f32 0.0, %v3493
      %v3495 = vpop.f32.mrf.mxu0
      %v3496 = vpop.f32.mrf.mxu0
      %v3497 = vadd.f32 0.0, %v3496
      %v3498 = vpop.f32.mrf.mxu0
      %3499 = vmatprep.mubr.bf16.mxu0 0
      %3500 = vmatmul.mubr.bf16.gmra.mxu0 %v3297
      %v3501 = vpop.f32.mrf.mxu0
      %v3502 = vadd.f32 0.0, %v3501
      %v3503 = vpop.f32.mrf.mxu0
      %v3504 = vpop.f32.mrf.mxu0
      %v3505 = vadd.f32 0.0, %v3504
      %v3506 = vpop.f32.mrf.mxu0
      %3507 = vdwg.mxu0
      %v3508 = vld [vmem:[#allocation3] sm:$0xff]
      %v3509 = vld [vmem:[#allocation3 + $0x8] sm:$0xff]
      %v3510 = vld [vmem:[#allocation3 + $0x10] sm:$0xff]
      %v3511 = vld [vmem:[#allocation3 + $0x18] sm:$0xff]
      %v3512 = vld [vmem:[#allocation3 + $0x20] sm:$0xff]
      %v3513 = vld [vmem:[#allocation3 + $0x28] sm:$0xff]
      %v3514 = vld [vmem:[#allocation3 + $0x30] sm:$0xff]
      %v3515 = vld [vmem:[#allocation3 + $0x38] sm:$0xff]
      %v3516 = vld [vmem:[#allocation3 + $0x40] sm:$0xff]
      %v3517 = vld [vmem:[#allocation3 + $0x48] sm:$0xff]
      %v3518 = vld [vmem:[#allocation3 + $0x50] sm:$0xff]
      %v3519 = vld [vmem:[#allocation3 + $0x58] sm:$0xff]
      %v3520 = vld [vmem:[#allocation3 + $0x60] sm:$0xff]
      %v3521 = vld [vmem:[#allocation3 + $0x68] sm:$0xff]
      %v3522 = vld [vmem:[#allocation3 + $0x70] sm:$0xff]
      %v3523 = vld [vmem:[#allocation3 + $0x78] sm:$0xff]
      %v3524 = vld [vmem:[#allocation3 + $0x80] sm:$0xff]
      %v3525 = vld [vmem:[#allocation3 + $0x88] sm:$0xff]
      %v3526 = vld [vmem:[#allocation3 + $0x90] sm:$0xff]
      %v3527 = vld [vmem:[#allocation3 + $0x98] sm:$0xff]
      %v3528 = vld [vmem:[#allocation3 + $0xa0] sm:$0xff]
      %v3529 = vld [vmem:[#allocation3 + $0xa8] sm:$0xff]
      %v3530 = vld [vmem:[#allocation3 + $0xb0] sm:$0xff]
      %v3531 = vld [vmem:[#allocation3 + $0xb8] sm:$0xff]
      %v3532 = vld [vmem:[#allocation3 + $0xc0] sm:$0xff]
      %v3533 = vld [vmem:[#allocation3 + $0xc8] sm:$0xff]
      %v3534 = vld [vmem:[#allocation3 + $0xd0] sm:$0xff]
      %v3535 = vld [vmem:[#allocation3 + $0xd8] sm:$0xff]
      %v3536 = vld [vmem:[#allocation3 + $0xe0] sm:$0xff]
      %v3537 = vld [vmem:[#allocation3 + $0xe8] sm:$0xff]
      %v3538 = vld [vmem:[#allocation3 + $0xf0] sm:$0xff]
      %v3539 = vld [vmem:[#allocation3 + $0xf8] sm:$0xff]
      %v3540 = vadd.f32 %v3508, %v3382
      %v3541 = vadd.f32 %v3509, %v3385
      %v3542 = vadd.f32 %v3510, %v3390
      %v3543 = vadd.f32 %v3511, %v3393
      %v3544 = vadd.f32 %v3512, %v3398
      %v3545 = vadd.f32 %v3513, %v3401
      %v3546 = vadd.f32 %v3514, %v3406
      %v3547 = vadd.f32 %v3515, %v3409
      %v3548 = vadd.f32 %v3516, %v3414
      %v3549 = vadd.f32 %v3517, %v3417
      %v3550 = vadd.f32 %v3518, %v3422
      %v3551 = vadd.f32 %v3519, %v3425
      %v3552 = vadd.f32 %v3520, %v3430
      %v3553 = vadd.f32 %v3521, %v3433
      %v3554 = vadd.f32 %v3522, %v3438
      %v3555 = vadd.f32 %v3523, %v3441
      %v3556 = vadd.f32 %v3524, %v3446
      %v3557 = vadd.f32 %v3525, %v3449
      %v3558 = vadd.f32 %v3526, %v3454
      %v3559 = vadd.f32 %v3527, %v3457
      %v3560 = vadd.f32 %v3528, %v3462
      %v3561 = vadd.f32 %v3529, %v3465
      %v3562 = vadd.f32 %v3530, %v3470
      %v3563 = vadd.f32 %v3531, %v3473
      %v3564 = vadd.f32 %v3532, %v3478
      %v3565 = vadd.f32 %v3533, %v3481
      %v3566 = vadd.f32 %v3534, %v3486
      %v3567 = vadd.f32 %v3535, %v3489
      %v3568 = vadd.f32 %v3536, %v3494
      %v3569 = vadd.f32 %v3537, %v3497
      %v3570 = vadd.f32 %v3538, %v3502
      %v3571 = vadd.f32 %v3539, %v3505
      %3572 = vst [vmem:[#allocation3] sm:$0xff] %v3540
      %3573 = vst [vmem:[#allocation3 + $0x8] sm:$0xff] %v3541
      %3574 = vst [vmem:[#allocation3 + $0x10] sm:$0xff] %v3542
      %3575 = vst [vmem:[#allocation3 + $0x18] sm:$0xff] %v3543
      %3576 = vst [vmem:[#allocation3 + $0x20] sm:$0xff] %v3544
      %3577 = vst [vmem:[#allocation3 + $0x28] sm:$0xff] %v3545
      %3578 = vst [vmem:[#allocation3 + $0x30] sm:$0xff] %v3546
      %3579 = vst [vmem:[#allocation3 + $0x38] sm:$0xff] %v3547
      %3580 = vst [vmem:[#allocation3 + $0x40] sm:$0xff] %v3548
      %3581 = vst [vmem:[#allocation3 + $0x48] sm:$0xff] %v3549
      %3582 = vst [vmem:[#allocation3 + $0x50] sm:$0xff] %v3550
      %3583 = vst [vmem:[#allocation3 + $0x58] sm:$0xff] %v3551
      %3584 = vst [vmem:[#allocation3 + $0x60] sm:$0xff] %v3552
      %3585 = vst [vmem:[#allocation3 + $0x68] sm:$0xff] %v3553
      %3586 = vst [vmem:[#allocation3 + $0x70] sm:$0xff] %v3554
      %3587 = vst [vmem:[#allocation3 + $0x78] sm:$0xff] %v3555
      %3588 = vst [vmem:[#allocation3 + $0x80] sm:$0xff] %v3556
      %3589 = vst [vmem:[#allocation3 + $0x88] sm:$0xff] %v3557
      %3590 = vst [vmem:[#allocation3 + $0x90] sm:$0xff] %v3558
      %3591 = vst [vmem:[#allocation3 + $0x98] sm:$0xff] %v3559
      %3592 = vst [vmem:[#allocation3 + $0xa0] sm:$0xff] %v3560
      %3593 = vst [vmem:[#allocation3 + $0xa8] sm:$0xff] %v3561
      %3594 = vst [vmem:[#allocation3 + $0xb0] sm:$0xff] %v3562
      %3595 = vst [vmem:[#allocation3 + $0xb8] sm:$0xff] %v3563
      %3596 = vst [vmem:[#allocation3 + $0xc0] sm:$0xff] %v3564
      %3597 = vst [vmem:[#allocation3 + $0xc8] sm:$0xff] %v3565
      %3598 = vst [vmem:[#allocation3 + $0xd0] sm:$0xff] %v3566
      %3599 = vst [vmem:[#allocation3 + $0xd8] sm:$0xff] %v3567
      %3600 = vst [vmem:[#allocation3 + $0xe0] sm:$0xff] %v3568
      %3601 = vst [vmem:[#allocation3 + $0xe8] sm:$0xff] %v3569
      %3602 = vst [vmem:[#allocation3 + $0xf0] sm:$0xff] %v3570
      %3603 = vst [vmem:[#allocation3 + $0xf8] sm:$0xff] %v3571
      %v3604 = vld [vmem:[#allocation2] sm:$0xe]
      %v3605 = vld [vmem:[#allocation2 + $0x4] sm:$0xf]
      %v3606 = vld [vmem:[#allocation2 + $0x8] sm:$0x1]
      %v3607 = vld [vmem:[#allocation2 + $0xc] sm:$0xe]
      %v3608 = vld [vmem:[#allocation2 + $0x10] sm:$0xf]
      %v3609 = vld [vmem:[#allocation2 + $0x14] sm:$0x1]
      %v3610 = vld [vmem:[#allocation2 + $0x18] sm:$0xe]
      %v3611 = vld [vmem:[#allocation2 + $0x1c] sm:$0xf]
      %v3612 = vld [vmem:[#allocation2 + $0x20] sm:$0x1]
      %v3613 = vld [vmem:[#allocation2 + $0x24] sm:$0xe]
      %v3614 = vld [vmem:[#allocation2 + $0x28] sm:$0xf]
      %v3615 = vld [vmem:[#allocation2 + $0x2c] sm:$0x1]
      %v3616 = vld [vmem:[#allocation2 + $0x30] sm:$0xe]
      %v3617 = vld [vmem:[#allocation2 + $0x34] sm:$0xf]
      %v3618 = vld [vmem:[#allocation2 + $0x38] sm:$0x1]
      %v3619 = vld [vmem:[#allocation2 + $0x3c] sm:$0xe]
      %v3620 = vld [vmem:[#allocation2 + $0x40] sm:$0xf]
      %v3621 = vld [vmem:[#allocation2 + $0x44] sm:$0x1]
      %v3622 = vld [vmem:[#allocation2 + $0x48] sm:$0xe]
      %v3623 = vld [vmem:[#allocation2 + $0x4c] sm:$0xf]
      %v3624 = vld [vmem:[#allocation2 + $0x50] sm:$0x1]
      %v3625 = vld [vmem:[#allocation2 + $0x54] sm:$0xe]
      %v3626 = vld [vmem:[#allocation2 + $0x58] sm:$0xf]
      %v3627 = vld [vmem:[#allocation2 + $0x5c] sm:$0x1]
      %v3628 = vld [vmem:[#allocation2 + $0x60] sm:$0xe]
      %v3629 = vld [vmem:[#allocation2 + $0x64] sm:$0xf]
      %v3630 = vld [vmem:[#allocation2 + $0x68] sm:$0x1]
      %v3631 = vld [vmem:[#allocation2 + $0x6c] sm:$0xe]
      %v3632 = vld [vmem:[#allocation2 + $0x70] sm:$0xf]
      %v3633 = vld [vmem:[#allocation2 + $0x74] sm:$0x1]
      %v3634 = vld [vmem:[#allocation2 + $0x78] sm:$0xe]
      %v3635 = vld [vmem:[#allocation2 + $0x7c] sm:$0xf]
      %v3636 = vld [vmem:[#allocation2 + $0x80] sm:$0x1]
      %v3637 = vld [vmem:[#allocation2 + $0x84] sm:$0xe]
      %v3638 = vld [vmem:[#allocation2 + $0x88] sm:$0xf]
      %v3639 = vld [vmem:[#allocation2 + $0x8c] sm:$0x1]
      %v3640 = vld [vmem:[#allocation2 + $0x90] sm:$0xe]
      %v3641 = vld [vmem:[#allocation2 + $0x94] sm:$0xf]
      %v3642 = vld [vmem:[#allocation2 + $0x98] sm:$0x1]
      %v3643 = vld [vmem:[#allocation2 + $0x9c] sm:$0xe]
      %v3644 = vld [vmem:[#allocation2 + $0xa0] sm:$0xf]
      %v3645 = vld [vmem:[#allocation2 + $0xa4] sm:$0x1]
      %v3646 = vld [vmem:[#allocation2 + $0xa8] sm:$0xe]
      %v3647 = vld [vmem:[#allocation2 + $0xac] sm:$0xf]
      %v3648 = vld [vmem:[#allocation2 + $0xb0] sm:$0x1]
      %v3649 = vld [vmem:[#allocation2 + $0xb4] sm:$0xe]
      %v3650 = vld [vmem:[#allocation2 + $0xb8] sm:$0xf]
      %v3651 = vld [vmem:[#allocation2 + $0xbc] sm:$0x1]
      %v3652 = vld [vmem:[#allocation2 + $0xc0] sm:$0xe]
      %v3653 = vld [vmem:[#allocation2 + $0xc4] sm:$0xf]
      %v3654 = vld [vmem:[#allocation2 + $0xc8] sm:$0x1]
      %v3655 = vld [vmem:[#allocation2 + $0xcc] sm:$0xe]
      %v3656 = vld [vmem:[#allocation2 + $0xd0] sm:$0xf]
      %v3657 = vld [vmem:[#allocation2 + $0xd4] sm:$0x1]
      %vm3706 = vcmask 1042432
      %vm3707 = vcmask 1046532
      %vm3708 = vmor %vm3706, %vm3707
      %v3709 = vrot.slane %v3604, 5
      %v3710 = vrot.slane %v3709, 4
      %v3711 = vrot.slane %v3605, 5
      %v3712 = vsel %vm3708, %v3710, %v3711
      %v3713 = vrot.slane %v3711, 4
      %v3714 = vrot.slane %v3606, 5
      %v3715 = vsel %vm3708, %v3713, %v3714
      %v3716 = vrot.slane %v3607, 5
      %v3717 = vrot.slane %v3716, 4
      %v3718 = vrot.slane %v3608, 5
      %v3719 = vsel %vm3708, %v3717, %v3718
      %v3720 = vrot.slane %v3718, 4
      %v3721 = vrot.slane %v3609, 5
      %v3722 = vsel %vm3708, %v3720, %v3721
      %v3723 = vrot.slane %v3610, 5
      %v3724 = vrot.slane %v3723, 4
      %v3725 = vrot.slane %v3611, 5
      %v3726 = vsel %vm3708, %v3724, %v3725
      %v3727 = vrot.slane %v3725, 4
      %v3728 = vrot.slane %v3612, 5
      %v3729 = vsel %vm3708, %v3727, %v3728
      %v3730 = vrot.slane %v3613, 5
      %v3731 = vrot.slane %v3730, 4
      %v3732 = vrot.slane %v3614, 5
      %v3733 = vsel %vm3708, %v3731, %v3732
      %v3734 = vrot.slane %v3732, 4
      %v3735 = vrot.slane %v3615, 5
      %v3736 = vsel %vm3708, %v3734, %v3735
      %v3737 = vrot.slane %v3616, 5
      %v3738 = vrot.slane %v3737, 4
      %v3739 = vrot.slane %v3617, 5
      %v3740 = vsel %vm3708, %v3738, %v3739
      %v3741 = vrot.slane %v3739, 4
      %v3742 = vrot.slane %v3618, 5
      %v3743 = vsel %vm3708, %v3741, %v3742
      %v3744 = vrot.slane %v3619, 5
      %v3745 = vrot.slane %v3744, 4
      %v3746 = vrot.slane %v3620, 5
      %v3747 = vsel %vm3708, %v3745, %v3746
      %v3748 = vrot.slane %v3746, 4
      %v3749 = vrot.slane %v3621, 5
      %v3750 = vsel %vm3708, %v3748, %v3749
      %v3751 = vrot.slane %v3622, 5
      %v3752 = vrot.slane %v3751, 4
      %v3753 = vrot.slane %v3623, 5
      %v3754 = vsel %vm3708, %v3752, %v3753
      %v3755 = vrot.slane %v3753, 4
      %v3756 = vrot.slane %v3624, 5
      %v3757 = vsel %vm3708, %v3755, %v3756
      %v3758 = vrot.slane %v3625, 5
      %v3759 = vrot.slane %v3758, 4
      %v3760 = vrot.slane %v3626, 5
      %v3761 = vsel %vm3708, %v3759, %v3760
      %v3762 = vrot.slane %v3760, 4
      %v3763 = vrot.slane %v3627, 5
      %v3764 = vsel %vm3708, %v3762, %v3763
      %v3765 = vrot.slane %v3628, 5
      %v3766 = vrot.slane %v3765, 4
      %v3767 = vrot.slane %v3629, 5
      %v3768 = vsel %vm3708, %v3766, %v3767
      %v3769 = vrot.slane %v3767, 4
      %v3770 = vrot.slane %v3630, 5
      %v3771 = vsel %vm3708, %v3769, %v3770
      %v3772 = vrot.slane %v3631, 5
      %v3773 = vrot.slane %v3772, 4
      %v3774 = vrot.slane %v3632, 5
      %v3775 = vsel %vm3708, %v3773, %v3774
      %v3776 = vrot.slane %v3774, 4
      %v3777 = vrot.slane %v3633, 5
      %v3778 = vsel %vm3708, %v3776, %v3777
      %v3779 = vrot.slane %v3634, 5
      %v3780 = vrot.slane %v3779, 4
      %v3781 = vrot.slane %v3635, 5
      %v3782 = vsel %vm3708, %v3780, %v3781
      %v3783 = vrot.slane %v3781, 4
      %v3784 = vrot.slane %v3636, 5
      %v3785 = vsel %vm3708, %v3783, %v3784
      %v3786 = vrot.slane %v3637, 5
      %v3787 = vrot.slane %v3786, 4
      %v3788 = vrot.slane %v3638, 5
      %v3789 = vsel %vm3708, %v3787, %v3788
      %v3790 = vrot.slane %v3788, 4
      %v3791 = vrot.slane %v3639, 5
      %v3792 = vsel %vm3708, %v3790, %v3791
      %v3793 = vrot.slane %v3640, 5
      %v3794 = vrot.slane %v3793, 4
      %v3795 = vrot.slane %v3641, 5
      %v3796 = vsel %vm3708, %v3794, %v3795
      %v3797 = vrot.slane %v3795, 4
      %v3798 = vrot.slane %v3642, 5
      %v3799 = vsel %vm3708, %v3797, %v3798
      %v3800 = vrot.slane %v3643, 5
      %v3801 = vrot.slane %v3800, 4
      %v3802 = vrot.slane %v3644, 5
      %v3803 = vsel %vm3708, %v3801, %v3802
      %v3804 = vrot.slane %v3802, 4
      %v3805 = vrot.slane %v3645, 5
      %v3806 = vsel %vm3708, %v3804, %v3805
      %v3807 = vrot.slane %v3646, 5
      %v3808 = vrot.slane %v3807, 4
      %v3809 = vrot.slane %v3647, 5
      %v3810 = vsel %vm3708, %v3808, %v3809
      %v3811 = vrot.slane %v3809, 4
      %v3812 = vrot.slane %v3648, 5
      %v3813 = vsel %vm3708, %v3811, %v3812
      %v3814 = vrot.slane %v3649, 5
      %v3815 = vrot.slane %v3814, 4
      %v3816 = vrot.slane %v3650, 5
      %v3817 = vsel %vm3708, %v3815, %v3816
      %v3818 = vrot.slane %v3816, 4
      %v3819 = vrot.slane %v3651, 5
      %v3820 = vsel %vm3708, %v3818, %v3819
      %s3821 = scalar_lea.vmem %s1, 128
      %v3822 = vld [vmem:[%s3821] sm:$0xf]
      %v3823 = vld [vmem:[%s3821 + $0x4] sm:$0xf]
      %v3824 = vld [vmem:[%s3821 + $0x8] sm:$0xf]
      %v3825 = vld [vmem:[%s3821 + $0xc] sm:$0xf]
      %v3826 = vld [vmem:[%s3821 + $0x10] sm:$0xf]
      %v3827 = vld [vmem:[%s3821 + $0x14] sm:$0xf]
      %v3828 = vld [vmem:[%s3821 + $0x18] sm:$0xf]
      %v3829 = vld [vmem:[%s3821 + $0x1c] sm:$0xf]
      %v3830 = vld [vmem:[%s3821 + $0x20] sm:$0xf]
      %v3831 = vld [vmem:[%s3821 + $0x24] sm:$0xf]
      %v3832 = vld [vmem:[%s3821 + $0x28] sm:$0xf]
      %v3833 = vld [vmem:[%s3821 + $0x2c] sm:$0xf]
      %v3834 = vld [vmem:[%s3821 + $0x30] sm:$0xf]
      %v3835 = vld [vmem:[%s3821 + $0x34] sm:$0xf]
      %v3836 = vld [vmem:[%s3821 + $0x38] sm:$0xf]
      %v3837 = vld [vmem:[%s3821 + $0x3c] sm:$0xf]
      %v3838 = vunpack.c.l.b16 %v3712
      %v3839 = vunpack.c.l.b16 %v3715
      %v3840 = vunpack.c.l.b16 %v3719
      %v3841 = vunpack.c.l.b16 %v3722
      %v3842 = vunpack.c.l.b16 %v3726
      %v3843 = vunpack.c.l.b16 %v3729
      %v3844 = vunpack.c.l.b16 %v3733
      %v3845 = vunpack.c.l.b16 %v3736
      %v3846 = vunpack.c.l.b16 %v3740
      %v3847 = vunpack.c.l.b16 %v3743
      %v3848 = vunpack.c.l.b16 %v3747
      %v3849 = vunpack.c.l.b16 %v3750
      %v3850 = vunpack.c.l.b16 %v3754
      %v3851 = vunpack.c.l.b16 %v3757
      %v3852 = vunpack.c.l.b16 %v3761
      %v3853 = vunpack.c.l.b16 %v3764
      %v3854 = vunpack.c.l.b16 %v3768
      %v3855 = vunpack.c.l.b16 %v3771
      %v3856 = vunpack.c.l.b16 %v3775
      %v3857 = vunpack.c.l.b16 %v3778
      %v3858 = vunpack.c.l.b16 %v3782
      %v3859 = vunpack.c.l.b16 %v3785
      %v3860 = vunpack.c.l.b16 %v3789
      %v3861 = vunpack.c.l.b16 %v3792
      %v3862 = vunpack.c.l.b16 %v3796
      %v3863 = vunpack.c.l.b16 %v3799
      %v3864 = vunpack.c.l.b16 %v3803
      %v3865 = vunpack.c.l.b16 %v3806
      %v3866 = vunpack.c.l.b16 %v3810
      %v3867 = vunpack.c.l.b16 %v3813
      %v3868 = vunpack.c.l.b16 %v3817
      %v3869 = vunpack.c.l.b16 %v3820
      %v3870 = vpack.c.b16 %v3839, %v3838
      %v3871 = vpack.c.b16 %v3841, %v3840
      %v3872 = vpack.c.b16 %v3843, %v3842
      %v3873 = vpack.c.b16 %v3845, %v3844
      %v3874 = vpack.c.b16 %v3847, %v3846
      %v3875 = vpack.c.b16 %v3849, %v3848
      %v3876 = vpack.c.b16 %v3851, %v3850
      %v3877 = vpack.c.b16 %v3853, %v3852
      %v3878 = vpack.c.b16 %v3855, %v3854
      %v3879 = vpack.c.b16 %v3857, %v3856
      %v3880 = vpack.c.b16 %v3859, %v3858
      %v3881 = vpack.c.b16 %v3861, %v3860
      %v3882 = vpack.c.b16 %v3863, %v3862
      %v3883 = vpack.c.b16 %v3865, %v3864
      %v3884 = vpack.c.b16 %v3867, %v3866
      %v3885 = vpack.c.b16 %v3869, %v3868
      %v3918 = vunpack.c.l.b16 %v3822
      %v3919 = vunpack.c.l.b16 %v3823
      %v3920 = vunpack.c.l.b16 %v3824
      %v3921 = vunpack.c.l.b16 %v3825
      %v3922 = vunpack.c.l.b16 %v3826
      %v3923 = vunpack.c.l.b16 %v3827
      %v3924 = vunpack.c.l.b16 %v3828
      %v3925 = vunpack.c.l.b16 %v3829
      %v3926 = vunpack.c.l.b16 %v3830
      %v3927 = vunpack.c.l.b16 %v3831
      %v3928 = vunpack.c.l.b16 %v3832
      %v3929 = vunpack.c.l.b16 %v3833
      %v3930 = vunpack.c.l.b16 %v3834
      %v3931 = vunpack.c.l.b16 %v3835
      %v3932 = vunpack.c.l.b16 %v3836
      %v3933 = vunpack.c.l.b16 %v3837
      %v3934 = vpack.c.b16 %v3919, %v3918
      %v3935 = vpack.c.b16 %v3921, %v3920
      %v3936 = vpack.c.b16 %v3923, %v3922
      %v3937 = vpack.c.b16 %v3925, %v3924
      %v3938 = vpack.c.b16 %v3927, %v3926
      %v3939 = vpack.c.b16 %v3929, %v3928
      %v3940 = vpack.c.b16 %v3931, %v3930
      %v3941 = vpack.c.b16 %v3933, %v3932
      %3950 = vmatprep.subr.bf16.mxu0 0
      %3951 = vmatpush1.bf16.msra.mxu0 %v3941
      %3952 = vmatprep.subr.bf16.mxu0 0
      %3953 = vmatpush1.bf16.msra.mxu0 %v3940
      %3954 = vmatprep.subr.bf16.mxu0 0
      %3955 = vmatpush1.bf16.msra.mxu0 %v3939
      %3956 = vmatprep.subr.bf16.mxu0 0
      %3957 = vmatpush1.bf16.msra.mxu0 %v3938
      %3958 = vmatprep.subr.bf16.mxu0 0
      %3959 = vmatpush1.bf16.msra.mxu0 %v3937
      %3960 = vmatprep.subr.bf16.mxu0 0
      %3961 = vmatpush1.bf16.msra.mxu0 %v3936
      %3962 = vmatprep.subr.bf16.mxu0 0
      %3963 = vmatpush1.bf16.msra.mxu0 %v3935
      %3964 = vmatprep.subr.bf16.mxu0 0
      %3965 = vmatpush1.bf16.msra.mxu0 %v3934
      %3966 = vmatprep.subr.bf16.mxu0 0
      %3967 = vmatpush2.bf16.msra.mxu0 0
      %3968 = vmatprep.subr.bf16.mxu0 0
      %3969 = vmatpush2.bf16.msra.mxu0 0
      %3970 = vmatprep.subr.bf16.mxu0 0
      %3971 = vmatpush2.bf16.msra.mxu0 0
      %3972 = vmatprep.subr.bf16.mxu0 0
      %3973 = vmatpush2.bf16.msra.mxu0 0
      %3974 = vmatprep.subr.bf16.mxu0 0
      %3975 = vmatpush2.bf16.msra.mxu0 0
      %3976 = vmatprep.subr.bf16.mxu0 0
      %3977 = vmatpush2.bf16.msra.mxu0 0
      %3978 = vmatprep.subr.bf16.mxu0 0
      %3979 = vmatpush2.bf16.msra.mxu0 0
      %3980 = vmatprep.subr.bf16.mxu0 0
      %3981 = vmatpush2.bf16.msra.mxu0 0
      %3982 = vmatprep.mubr.bf16.mxu0 0
      %3983 = vmatmul.mubr.bf16.gmra.mxu0 %v3870
      %v3984 = vpop.f32.mrf.mxu0
      %v3985 = vadd.f32 0.0, %v3984
      %v3986 = vpop.f32.mrf.mxu0
      %v3987 = vpop.f32.mrf.mxu0
      %v3988 = vadd.f32 0.0, %v3987
      %v3989 = vpop.f32.mrf.mxu0
      %3990 = vmatprep.mubr.bf16.mxu0 0
      %3991 = vmatmul.mubr.bf16.gmra.mxu0 %v3871
      %v3992 = vpop.f32.mrf.mxu0
      %v3993 = vadd.f32 0.0, %v3992
      %v3994 = vpop.f32.mrf.mxu0
      %v3995 = vpop.f32.mrf.mxu0
      %v3996 = vadd.f32 0.0, %v3995
      %v3997 = vpop.f32.mrf.mxu0
      %3998 = vmatprep.mubr.bf16.mxu0 0
      %3999 = vmatmul.mubr.bf16.gmra.mxu0 %v3872
      %v4000 = vpop.f32.mrf.mxu0
      %v4001 = vadd.f32 0.0, %v4000
      %v4002 = vpop.f32.mrf.mxu0
      %v4003 = vpop.f32.mrf.mxu0
      %v4004 = vadd.f32 0.0, %v4003
      %v4005 = vpop.f32.mrf.mxu0
      %4006 = vmatprep.mubr.bf16.mxu0 0
      %4007 = vmatmul.mubr.bf16.gmra.mxu0 %v3873
      %v4008 = vpop.f32.mrf.mxu0
      %v4009 = vadd.f32 0.0, %v4008
      %v4010 = vpop.f32.mrf.mxu0
      %v4011 = vpop.f32.mrf.mxu0
      %v4012 = vadd.f32 0.0, %v4011
      %v4013 = vpop.f32.mrf.mxu0
      %4014 = vmatprep.mubr.bf16.mxu0 0
      %4015 = vmatmul.mubr.bf16.gmra.mxu0 %v3874
      %v4016 = vpop.f32.mrf.mxu0
      %v4017 = vadd.f32 0.0, %v4016
      %v4018 = vpop.f32.mrf.mxu0
      %v4019 = vpop.f32.mrf.mxu0
      %v4020 = vadd.f32 0.0, %v4019
      %v4021 = vpop.f32.mrf.mxu0
      %4022 = vmatprep.mubr.bf16.mxu0 0
      %4023 = vmatmul.mubr.bf16.gmra.mxu0 %v3875
      %v4024 = vpop.f32.mrf.mxu0
      %v4025 = vadd.f32 0.0, %v4024
      %v4026 = vpop.f32.mrf.mxu0
      %v4027 = vpop.f32.mrf.mxu0
      %v4028 = vadd.f32 0.0, %v4027
      %v4029 = vpop.f32.mrf.mxu0
      %4030 = vmatprep.mubr.bf16.mxu0 0
      %4031 = vmatmul.mubr.bf16.gmra.mxu0 %v3876
      %v4032 = vpop.f32.mrf.mxu0
      %v4033 = vadd.f32 0.0, %v4032
      %v4034 = vpop.f32.mrf.mxu0
      %v4035 = vpop.f32.mrf.mxu0
      %v4036 = vadd.f32 0.0, %v4035
      %v4037 = vpop.f32.mrf.mxu0
      %4038 = vmatprep.mubr.bf16.mxu0 0
      %4039 = vmatmul.mubr.bf16.gmra.mxu0 %v3877
      %v4040 = vpop.f32.mrf.mxu0
      %v4041 = vadd.f32 0.0, %v4040
      %v4042 = vpop.f32.mrf.mxu0
      %v4043 = vpop.f32.mrf.mxu0
      %v4044 = vadd.f32 0.0, %v4043
      %v4045 = vpop.f32.mrf.mxu0
      %4046 = vmatprep.mubr.bf16.mxu0 0
      %4047 = vmatmul.mubr.bf16.gmra.mxu0 %v3878
      %v4048 = vpop.f32.mrf.mxu0
      %v4049 = vadd.f32 0.0, %v4048
      %v4050 = vpop.f32.mrf.mxu0
      %v4051 = vpop.f32.mrf.mxu0
      %v4052 = vadd.f32 0.0, %v4051
      %v4053 = vpop.f32.mrf.mxu0
      %4054 = vmatprep.mubr.bf16.mxu0 0
      %4055 = vmatmul.mubr.bf16.gmra.mxu0 %v3879
      %v4056 = vpop.f32.mrf.mxu0
      %v4057 = vadd.f32 0.0, %v4056
      %v4058 = vpop.f32.mrf.mxu0
      %v4059 = vpop.f32.mrf.mxu0
      %v4060 = vadd.f32 0.0, %v4059
      %v4061 = vpop.f32.mrf.mxu0
      %4062 = vmatprep.mubr.bf16.mxu0 0
      %4063 = vmatmul.mubr.bf16.gmra.mxu0 %v3880
      %v4064 = vpop.f32.mrf.mxu0
      %v4065 = vadd.f32 0.0, %v4064
      %v4066 = vpop.f32.mrf.mxu0
      %v4067 = vpop.f32.mrf.mxu0
      %v4068 = vadd.f32 0.0, %v4067
      %v4069 = vpop.f32.mrf.mxu0
      %4070 = vmatprep.mubr.bf16.mxu0 0
      %4071 = vmatmul.mubr.bf16.gmra.mxu0 %v3881
      %v4072 = vpop.f32.mrf.mxu0
      %v4073 = vadd.f32 0.0, %v4072
      %v4074 = vpop.f32.mrf.mxu0
      %v4075 = vpop.f32.mrf.mxu0
      %v4076 = vadd.f32 0.0, %v4075
      %v4077 = vpop.f32.mrf.mxu0
      %4078 = vmatprep.mubr.bf16.mxu0 0
      %4079 = vmatmul.mubr.bf16.gmra.mxu0 %v3882
      %v4080 = vpop.f32.mrf.mxu0
      %v4081 = vadd.f32 0.0, %v4080
      %v4082 = vpop.f32.mrf.mxu0
      %v4083 = vpop.f32.mrf.mxu0
      %v4084 = vadd.f32 0.0, %v4083
      %v4085 = vpop.f32.mrf.mxu0
      %4086 = vmatprep.mubr.bf16.mxu0 0
      %4087 = vmatmul.mubr.bf16.gmra.mxu0 %v3883
      %v4088 = vpop.f32.mrf.mxu0
      %v4089 = vadd.f32 0.0, %v4088
      %v4090 = vpop.f32.mrf.mxu0
      %v4091 = vpop.f32.mrf.mxu0
      %v4092 = vadd.f32 0.0, %v4091
      %v4093 = vpop.f32.mrf.mxu0
      %4094 = vmatprep.mubr.bf16.mxu0 0
      %4095 = vmatmul.mubr.bf16.gmra.mxu0 %v3884
      %v4096 = vpop.f32.mrf.mxu0
      %v4097 = vadd.f32 0.0, %v4096
      %v4098 = vpop.f32.mrf.mxu0
      %v4099 = vpop.f32.mrf.mxu0
      %v4100 = vadd.f32 0.0, %v4099
      %v4101 = vpop.f32.mrf.mxu0
      %4102 = vmatprep.mubr.bf16.mxu0 0
      %4103 = vmatmul.mubr.bf16.gmra.mxu0 %v3885
      %v4104 = vpop.f32.mrf.mxu0
      %v4105 = vadd.f32 0.0, %v4104
      %v4106 = vpop.f32.mrf.mxu0
      %v4107 = vpop.f32.mrf.mxu0
      %v4108 = vadd.f32 0.0, %v4107
      %v4109 = vpop.f32.mrf.mxu0
      %4110 = vdwg.mxu0
      %v4111 = vld [vmem:[#allocation3] sm:$0xff]
      %v4112 = vld [vmem:[#allocation3 + $0x8] sm:$0xff]
      %v4113 = vld [vmem:[#allocation3 + $0x10] sm:$0xff]
      %v4114 = vld [vmem:[#allocation3 + $0x18] sm:$0xff]
      %v4115 = vld [vmem:[#allocation3 + $0x20] sm:$0xff]
      %v4116 = vld [vmem:[#allocation3 + $0x28] sm:$0xff]
      %v4117 = vld [vmem:[#allocation3 + $0x30] sm:$0xff]
      %v4118 = vld [vmem:[#allocation3 + $0x38] sm:$0xff]
      %v4119 = vld [vmem:[#allocation3 + $0x40] sm:$0xff]
      %v4120 = vld [vmem:[#allocation3 + $0x48] sm:$0xff]
      %v4121 = vld [vmem:[#allocation3 + $0x50] sm:$0xff]
      %v4122 = vld [vmem:[#allocation3 + $0x58] sm:$0xff]
      %v4123 = vld [vmem:[#allocation3 + $0x60] sm:$0xff]
      %v4124 = vld [vmem:[#allocation3 + $0x68] sm:$0xff]
      %v4125 = vld [vmem:[#allocation3 + $0x70] sm:$0xff]
      %v4126 = vld [vmem:[#allocation3 + $0x78] sm:$0xff]
      %v4127 = vld [vmem:[#allocation3 + $0x80] sm:$0xff]
      %v4128 = vld [vmem:[#allocation3 + $0x88] sm:$0xff]
      %v4129 = vld [vmem:[#allocation3 + $0x90] sm:$0xff]
      %v4130 = vld [vmem:[#allocation3 + $0x98] sm:$0xff]
      %v4131 = vld [vmem:[#allocation3 + $0xa0] sm:$0xff]
      %v4132 = vld [vmem:[#allocation3 + $0xa8] sm:$0xff]
      %v4133 = vld [vmem:[#allocation3 + $0xb0] sm:$0xff]
      %v4134 = vld [vmem:[#allocation3 + $0xb8] sm:$0xff]
      %v4135 = vld [vmem:[#allocation3 + $0xc0] sm:$0xff]
      %v4136 = vld [vmem:[#allocation3 + $0xc8] sm:$0xff]
      %v4137 = vld [vmem:[#allocation3 + $0xd0] sm:$0xff]
      %v4138 = vld [vmem:[#allocation3 + $0xd8] sm:$0xff]
      %v4139 = vld [vmem:[#allocation3 + $0xe0] sm:$0xff]
      %v4140 = vld [vmem:[#allocation3 + $0xe8] sm:$0xff]
      %v4141 = vld [vmem:[#allocation3 + $0xf0] sm:$0xff]
      %v4142 = vld [vmem:[#allocation3 + $0xf8] sm:$0xff]
      %v4143 = vadd.f32 %v4111, %v3985
      %v4144 = vadd.f32 %v4112, %v3988
      %v4145 = vadd.f32 %v4113, %v3993
      %v4146 = vadd.f32 %v4114, %v3996
      %v4147 = vadd.f32 %v4115, %v4001
      %v4148 = vadd.f32 %v4116, %v4004
      %v4149 = vadd.f32 %v4117, %v4009
      %v4150 = vadd.f32 %v4118, %v4012
      %v4151 = vadd.f32 %v4119, %v4017
      %v4152 = vadd.f32 %v4120, %v4020
      %v4153 = vadd.f32 %v4121, %v4025
      %v4154 = vadd.f32 %v4122, %v4028
      %v4155 = vadd.f32 %v4123, %v4033
      %v4156 = vadd.f32 %v4124, %v4036
      %v4157 = vadd.f32 %v4125, %v4041
      %v4158 = vadd.f32 %v4126, %v4044
      %v4159 = vadd.f32 %v4127, %v4049
      %v4160 = vadd.f32 %v4128, %v4052
      %v4161 = vadd.f32 %v4129, %v4057
      %v4162 = vadd.f32 %v4130, %v4060
      %v4163 = vadd.f32 %v4131, %v4065
      %v4164 = vadd.f32 %v4132, %v4068
      %v4165 = vadd.f32 %v4133, %v4073
      %v4166 = vadd.f32 %v4134, %v4076
      %v4167 = vadd.f32 %v4135, %v4081
      %v4168 = vadd.f32 %v4136, %v4084
      %v4169 = vadd.f32 %v4137, %v4089
      %v4170 = vadd.f32 %v4138, %v4092
      %v4171 = vadd.f32 %v4139, %v4097
      %v4172 = vadd.f32 %v4140, %v4100
      %v4173 = vadd.f32 %v4141, %v4105
      %v4174 = vadd.f32 %v4142, %v4108
      %4175 = vst [vmem:[#allocation3] sm:$0xff] %v4143
      %4176 = vst [vmem:[#allocation3 + $0x8] sm:$0xff] %v4144
      %4177 = vst [vmem:[#allocation3 + $0x10] sm:$0xff] %v4145
      %4178 = vst [vmem:[#allocation3 + $0x18] sm:$0xff] %v4146
      %4179 = vst [vmem:[#allocation3 + $0x20] sm:$0xff] %v4147
      %4180 = vst [vmem:[#allocation3 + $0x28] sm:$0xff] %v4148
      %4181 = vst [vmem:[#allocation3 + $0x30] sm:$0xff] %v4149
      %4182 = vst [vmem:[#allocation3 + $0x38] sm:$0xff] %v4150
      %4183 = vst [vmem:[#allocation3 + $0x40] sm:$0xff] %v4151
      %4184 = vst [vmem:[#allocation3 + $0x48] sm:$0xff] %v4152
      %4185 = vst [vmem:[#allocation3 + $0x50] sm:$0xff] %v4153
      %4186 = vst [vmem:[#allocation3 + $0x58] sm:$0xff] %v4154
      %4187 = vst [vmem:[#allocation3 + $0x60] sm:$0xff] %v4155
      %4188 = vst [vmem:[#allocation3 + $0x68] sm:$0xff] %v4156
      %4189 = vst [vmem:[#allocation3 + $0x70] sm:$0xff] %v4157
      %4190 = vst [vmem:[#allocation3 + $0x78] sm:$0xff] %v4158
      %4191 = vst [vmem:[#allocation3 + $0x80] sm:$0xff] %v4159
      %4192 = vst [vmem:[#allocation3 + $0x88] sm:$0xff] %v4160
      %4193 = vst [vmem:[#allocation3 + $0x90] sm:$0xff] %v4161
      %4194 = vst [vmem:[#allocation3 + $0x98] sm:$0xff] %v4162
      %4195 = vst [vmem:[#allocation3 + $0xa0] sm:$0xff] %v4163
      %4196 = vst [vmem:[#allocation3 + $0xa8] sm:$0xff] %v4164
      %4197 = vst [vmem:[#allocation3 + $0xb0] sm:$0xff] %v4165
      %4198 = vst [vmem:[#allocation3 + $0xb8] sm:$0xff] %v4166
      %4199 = vst [vmem:[#allocation3 + $0xc0] sm:$0xff] %v4167
      %4200 = vst [vmem:[#allocation3 + $0xc8] sm:$0xff] %v4168
      %4201 = vst [vmem:[#allocation3 + $0xd0] sm:$0xff] %v4169
      %4202 = vst [vmem:[#allocation3 + $0xd8] sm:$0xff] %v4170
      %4203 = vst [vmem:[#allocation3 + $0xe0] sm:$0xff] %v4171
      %4204 = vst [vmem:[#allocation3 + $0xe8] sm:$0xff] %v4172
      %4205 = vst [vmem:[#allocation3 + $0xf0] sm:$0xff] %v4173
      %4206 = vst [vmem:[#allocation3 + $0xf8] sm:$0xff] %v4174
      %v4210 = vrot.slane %v3652, 5
      %v4211 = vrot.slane %v4210, 4
      %v4212 = vrot.slane %v3653, 5
      %v4213 = vsel %vm3708, %v4211, %v4212
      %v4214 = vrot.slane %v4212, 4
      %v4215 = vrot.slane %v3654, 5
      %v4216 = vsel %vm3708, %v4214, %v4215
      %s4217 = scalar_lea.vmem %s1, 320
      %v4218 = vld [vmem:[%s4217] sm:$0xf]
      %v4219 = vld [vmem:[%s4217 + $0x4] sm:$0xf]
      %v4220 = vld [vmem:[%s4217 + $0x8] sm:$0xf]
      %v4221 = vld [vmem:[%s4217 + $0xc] sm:$0xf]
      %v4222 = vld [vmem:[%s4217 + $0x10] sm:$0xf]
      %v4223 = vld [vmem:[%s4217 + $0x14] sm:$0xf]
      %v4224 = vld [vmem:[%s4217 + $0x18] sm:$0xf]
      %v4225 = vld [vmem:[%s4217 + $0x1c] sm:$0xf]
      %v4226 = vld [vmem:[%s4217 + $0x20] sm:$0xf]
      %v4227 = vld [vmem:[%s4217 + $0x24] sm:$0xf]
      %v4228 = vld [vmem:[%s4217 + $0x28] sm:$0xf]
      %v4229 = vld [vmem:[%s4217 + $0x2c] sm:$0xf]
      %v4230 = vld [vmem:[%s4217 + $0x30] sm:$0xf]
      %v4231 = vld [vmem:[%s4217 + $0x34] sm:$0xf]
      %v4232 = vld [vmem:[%s4217 + $0x38] sm:$0xf]
      %v4233 = vld [vmem:[%s4217 + $0x3c] sm:$0xf]
      %v4234 = vunpack.c.l.b16 %v4213
      %v4235 = vunpack.c.l.b16 %v4216
      %v4236 = vpack.c.b16 %v4235, %v4234
      %v4254 = vunpack.c.l.b16 %v4218
      %v4255 = vunpack.c.l.b16 %v4219
      %v4256 = vunpack.c.l.b16 %v4220
      %v4257 = vunpack.c.l.b16 %v4221
      %v4258 = vunpack.c.l.b16 %v4222
      %v4259 = vunpack.c.l.b16 %v4223
      %v4260 = vunpack.c.l.b16 %v4224
      %v4261 = vunpack.c.l.b16 %v4225
      %v4262 = vunpack.c.l.b16 %v4226
      %v4263 = vunpack.c.l.b16 %v4227
      %v4264 = vunpack.c.l.b16 %v4228
      %v4265 = vunpack.c.l.b16 %v4229
      %v4266 = vunpack.c.l.b16 %v4230
      %v4267 = vunpack.c.l.b16 %v4231
      %v4268 = vunpack.c.l.b16 %v4232
      %v4269 = vunpack.c.l.b16 %v4233
      %v4270 = vpack.c.b16 %v4255, %v4254
      %v4271 = vpack.c.b16 %v4257, %v4256
      %v4272 = vpack.c.b16 %v4259, %v4258
      %v4273 = vpack.c.b16 %v4261, %v4260
      %v4274 = vpack.c.b16 %v4263, %v4262
      %v4275 = vpack.c.b16 %v4265, %v4264
      %v4276 = vpack.c.b16 %v4267, %v4266
      %v4277 = vpack.c.b16 %v4269, %v4268
      %4286 = vmatprep.subr.bf16.mxu0 0
      %4287 = vmatpush1.bf16.msra.mxu0 %v4277
      %4288 = vmatprep.subr.bf16.mxu0 0
      %4289 = vmatpush1.bf16.msra.mxu0 %v4276
      %4290 = vmatprep.subr.bf16.mxu0 0
      %4291 = vmatpush1.bf16.msra.mxu0 %v4275
      %4292 = vmatprep.subr.bf16.mxu0 0
      %4293 = vmatpush1.bf16.msra.mxu0 %v4274
      %4294 = vmatprep.subr.bf16.mxu0 0
      %4295 = vmatpush1.bf16.msra.mxu0 %v4273
      %4296 = vmatprep.subr.bf16.mxu0 0
      %4297 = vmatpush1.bf16.msra.mxu0 %v4272
      %4298 = vmatprep.subr.bf16.mxu0 0
      %4299 = vmatpush1.bf16.msra.mxu0 %v4271
      %4300 = vmatprep.subr.bf16.mxu0 0
      %4301 = vmatpush1.bf16.msra.mxu0 %v4270
      %4302 = vmatprep.subr.bf16.mxu0 0
      %4303 = vmatpush2.bf16.msra.mxu0 0
      %4304 = vmatprep.subr.bf16.mxu0 0
      %4305 = vmatpush2.bf16.msra.mxu0 0
      %4306 = vmatprep.subr.bf16.mxu0 0
      %4307 = vmatpush2.bf16.msra.mxu0 0
      %4308 = vmatprep.subr.bf16.mxu0 0
      %4309 = vmatpush2.bf16.msra.mxu0 0
      %4310 = vmatprep.subr.bf16.mxu0 0
      %4311 = vmatpush2.bf16.msra.mxu0 0
      %4312 = vmatprep.subr.bf16.mxu0 0
      %4313 = vmatpush2.bf16.msra.mxu0 0
      %4314 = vmatprep.subr.bf16.mxu0 0
      %4315 = vmatpush2.bf16.msra.mxu0 0
      %4316 = vmatprep.subr.bf16.mxu0 0
      %4317 = vmatpush2.bf16.msra.mxu0 0
      %4318 = vmatprep.mubr.bf16.mxu0 0
      %4319 = vmatmul.mubr.bf16.gmra.mxu0 %v3871
      %v4320 = vpop.f32.mrf.mxu0
      %v4321 = vadd.f32 0.0, %v4320
      %v4322 = vpop.f32.mrf.mxu0
      %v4323 = vpop.f32.mrf.mxu0
      %v4324 = vadd.f32 0.0, %v4323
      %v4325 = vpop.f32.mrf.mxu0
      %4326 = vmatprep.mubr.bf16.mxu0 0
      %4327 = vmatmul.mubr.bf16.gmra.mxu0 %v3872
      %v4328 = vpop.f32.mrf.mxu0
      %v4329 = vadd.f32 0.0, %v4328
      %v4330 = vpop.f32.mrf.mxu0
      %v4331 = vpop.f32.mrf.mxu0
      %v4332 = vadd.f32 0.0, %v4331
      %v4333 = vpop.f32.mrf.mxu0
      %4334 = vmatprep.mubr.bf16.mxu0 0
      %4335 = vmatmul.mubr.bf16.gmra.mxu0 %v3873
      %v4336 = vpop.f32.mrf.mxu0
      %v4337 = vadd.f32 0.0, %v4336
      %v4338 = vpop.f32.mrf.mxu0
      %v4339 = vpop.f32.mrf.mxu0
      %v4340 = vadd.f32 0.0, %v4339
      %v4341 = vpop.f32.mrf.mxu0
      %4342 = vmatprep.mubr.bf16.mxu0 0
      %4343 = vmatmul.mubr.bf16.gmra.mxu0 %v3874
      %v4344 = vpop.f32.mrf.mxu0
      %v4345 = vadd.f32 0.0, %v4344
      %v4346 = vpop.f32.mrf.mxu0
      %v4347 = vpop.f32.mrf.mxu0
      %v4348 = vadd.f32 0.0, %v4347
      %v4349 = vpop.f32.mrf.mxu0
      %4350 = vmatprep.mubr.bf16.mxu0 0
      %4351 = vmatmul.mubr.bf16.gmra.mxu0 %v3875
      %v4352 = vpop.f32.mrf.mxu0
      %v4353 = vadd.f32 0.0, %v4352
      %v4354 = vpop.f32.mrf.mxu0
      %v4355 = vpop.f32.mrf.mxu0
      %v4356 = vadd.f32 0.0, %v4355
      %v4357 = vpop.f32.mrf.mxu0
      %4358 = vmatprep.mubr.bf16.mxu0 0
      %4359 = vmatmul.mubr.bf16.gmra.mxu0 %v3876
      %v4360 = vpop.f32.mrf.mxu0
      %v4361 = vadd.f32 0.0, %v4360
      %v4362 = vpop.f32.mrf.mxu0
      %v4363 = vpop.f32.mrf.mxu0
      %v4364 = vadd.f32 0.0, %v4363
      %v4365 = vpop.f32.mrf.mxu0
      %4366 = vmatprep.mubr.bf16.mxu0 0
      %4367 = vmatmul.mubr.bf16.gmra.mxu0 %v3877
      %v4368 = vpop.f32.mrf.mxu0
      %v4369 = vadd.f32 0.0, %v4368
      %v4370 = vpop.f32.mrf.mxu0
      %v4371 = vpop.f32.mrf.mxu0
      %v4372 = vadd.f32 0.0, %v4371
      %v4373 = vpop.f32.mrf.mxu0
      %4374 = vmatprep.mubr.bf16.mxu0 0
      %4375 = vmatmul.mubr.bf16.gmra.mxu0 %v3878
      %v4376 = vpop.f32.mrf.mxu0
      %v4377 = vadd.f32 0.0, %v4376
      %v4378 = vpop.f32.mrf.mxu0
      %v4379 = vpop.f32.mrf.mxu0
      %v4380 = vadd.f32 0.0, %v4379
      %v4381 = vpop.f32.mrf.mxu0
      %4382 = vmatprep.mubr.bf16.mxu0 0
      %4383 = vmatmul.mubr.bf16.gmra.mxu0 %v3879
      %v4384 = vpop.f32.mrf.mxu0
      %v4385 = vadd.f32 0.0, %v4384
      %v4386 = vpop.f32.mrf.mxu0
      %v4387 = vpop.f32.mrf.mxu0
      %v4388 = vadd.f32 0.0, %v4387
      %v4389 = vpop.f32.mrf.mxu0
      %4390 = vmatprep.mubr.bf16.mxu0 0
      %4391 = vmatmul.mubr.bf16.gmra.mxu0 %v3880
      %v4392 = vpop.f32.mrf.mxu0
      %v4393 = vadd.f32 0.0, %v4392
      %v4394 = vpop.f32.mrf.mxu0
      %v4395 = vpop.f32.mrf.mxu0
      %v4396 = vadd.f32 0.0, %v4395
      %v4397 = vpop.f32.mrf.mxu0
      %4398 = vmatprep.mubr.bf16.mxu0 0
      %4399 = vmatmul.mubr.bf16.gmra.mxu0 %v3881
      %v4400 = vpop.f32.mrf.mxu0
      %v4401 = vadd.f32 0.0, %v4400
      %v4402 = vpop.f32.mrf.mxu0
      %v4403 = vpop.f32.mrf.mxu0
      %v4404 = vadd.f32 0.0, %v4403
      %v4405 = vpop.f32.mrf.mxu0
      %4406 = vmatprep.mubr.bf16.mxu0 0
      %4407 = vmatmul.mubr.bf16.gmra.mxu0 %v3882
      %v4408 = vpop.f32.mrf.mxu0
      %v4409 = vadd.f32 0.0, %v4408
      %v4410 = vpop.f32.mrf.mxu0
      %v4411 = vpop.f32.mrf.mxu0
      %v4412 = vadd.f32 0.0, %v4411
      %v4413 = vpop.f32.mrf.mxu0
      %4414 = vmatprep.mubr.bf16.mxu0 0
      %4415 = vmatmul.mubr.bf16.gmra.mxu0 %v3883
      %v4416 = vpop.f32.mrf.mxu0
      %v4417 = vadd.f32 0.0, %v4416
      %v4418 = vpop.f32.mrf.mxu0
      %v4419 = vpop.f32.mrf.mxu0
      %v4420 = vadd.f32 0.0, %v4419
      %v4421 = vpop.f32.mrf.mxu0
      %4422 = vmatprep.mubr.bf16.mxu0 0
      %4423 = vmatmul.mubr.bf16.gmra.mxu0 %v3884
      %v4424 = vpop.f32.mrf.mxu0
      %v4425 = vadd.f32 0.0, %v4424
      %v4426 = vpop.f32.mrf.mxu0
      %v4427 = vpop.f32.mrf.mxu0
      %v4428 = vadd.f32 0.0, %v4427
      %v4429 = vpop.f32.mrf.mxu0
      %4430 = vmatprep.mubr.bf16.mxu0 0
      %4431 = vmatmul.mubr.bf16.gmra.mxu0 %v3885
      %v4432 = vpop.f32.mrf.mxu0
      %v4433 = vadd.f32 0.0, %v4432
      %v4434 = vpop.f32.mrf.mxu0
      %v4435 = vpop.f32.mrf.mxu0
      %v4436 = vadd.f32 0.0, %v4435
      %v4437 = vpop.f32.mrf.mxu0
      %4438 = vmatprep.mubr.bf16.mxu0 0
      %4439 = vmatmul.mubr.bf16.gmra.mxu0 %v4236
      %v4440 = vpop.f32.mrf.mxu0
      %v4441 = vadd.f32 0.0, %v4440
      %v4442 = vpop.f32.mrf.mxu0
      %v4443 = vpop.f32.mrf.mxu0
      %v4444 = vadd.f32 0.0, %v4443
      %v4445 = vpop.f32.mrf.mxu0
      %4446 = vdwg.mxu0
      %v4447 = vld [vmem:[#allocation3] sm:$0xff]
      %v4448 = vld [vmem:[#allocation3 + $0x8] sm:$0xff]
      %v4449 = vld [vmem:[#allocation3 + $0x10] sm:$0xff]
      %v4450 = vld [vmem:[#allocation3 + $0x18] sm:$0xff]
      %v4451 = vld [vmem:[#allocation3 + $0x20] sm:$0xff]
      %v4452 = vld [vmem:[#allocation3 + $0x28] sm:$0xff]
      %v4453 = vld [vmem:[#allocation3 + $0x30] sm:$0xff]
      %v4454 = vld [vmem:[#allocation3 + $0x38] sm:$0xff]
      %v4455 = vld [vmem:[#allocation3 + $0x40] sm:$0xff]
      %v4456 = vld [vmem:[#allocation3 + $0x48] sm:$0xff]
      %v4457 = vld [vmem:[#allocation3 + $0x50] sm:$0xff]
      %v4458 = vld [vmem:[#allocation3 + $0x58] sm:$0xff]
      %v4459 = vld [vmem:[#allocation3 + $0x60] sm:$0xff]
      %v4460 = vld [vmem:[#allocation3 + $0x68] sm:$0xff]
      %v4461 = vld [vmem:[#allocation3 + $0x70] sm:$0xff]
      %v4462 = vld [vmem:[#allocation3 + $0x78] sm:$0xff]
      %v4463 = vld [vmem:[#allocation3 + $0x80] sm:$0xff]
      %v4464 = vld [vmem:[#allocation3 + $0x88] sm:$0xff]
      %v4465 = vld [vmem:[#allocation3 + $0x90] sm:$0xff]
      %v4466 = vld [vmem:[#allocation3 + $0x98] sm:$0xff]
      %v4467 = vld [vmem:[#allocation3 + $0xa0] sm:$0xff]
      %v4468 = vld [vmem:[#allocation3 + $0xa8] sm:$0xff]
      %v4469 = vld [vmem:[#allocation3 + $0xb0] sm:$0xff]
      %v4470 = vld [vmem:[#allocation3 + $0xb8] sm:$0xff]
      %v4471 = vld [vmem:[#allocation3 + $0xc0] sm:$0xff]
      %v4472 = vld [vmem:[#allocation3 + $0xc8] sm:$0xff]
      %v4473 = vld [vmem:[#allocation3 + $0xd0] sm:$0xff]
      %v4474 = vld [vmem:[#allocation3 + $0xd8] sm:$0xff]
      %v4475 = vld [vmem:[#allocation3 + $0xe0] sm:$0xff]
      %v4476 = vld [vmem:[#allocation3 + $0xe8] sm:$0xff]
      %v4477 = vld [vmem:[#allocation3 + $0xf0] sm:$0xff]
      %v4478 = vld [vmem:[#allocation3 + $0xf8] sm:$0xff]
      %v4479 = vadd.f32 %v4447, %v4321
      %v4480 = vadd.f32 %v4448, %v4324
      %v4481 = vadd.f32 %v4449, %v4329
      %v4482 = vadd.f32 %v4450, %v4332
      %v4483 = vadd.f32 %v4451, %v4337
      %v4484 = vadd.f32 %v4452, %v4340
      %v4485 = vadd.f32 %v4453, %v4345
      %v4486 = vadd.f32 %v4454, %v4348
      %v4487 = vadd.f32 %v4455, %v4353
      %v4488 = vadd.f32 %v4456, %v4356
      %v4489 = vadd.f32 %v4457, %v4361
      %v4490 = vadd.f32 %v4458, %v4364
      %v4491 = vadd.f32 %v4459, %v4369
      %v4492 = vadd.f32 %v4460, %v4372
      %v4493 = vadd.f32 %v4461, %v4377
      %v4494 = vadd.f32 %v4462, %v4380
      %v4495 = vadd.f32 %v4463, %v4385
      %v4496 = vadd.f32 %v4464, %v4388
      %v4497 = vadd.f32 %v4465, %v4393
      %v4498 = vadd.f32 %v4466, %v4396
      %v4499 = vadd.f32 %v4467, %v4401
      %v4500 = vadd.f32 %v4468, %v4404
      %v4501 = vadd.f32 %v4469, %v4409
      %v4502 = vadd.f32 %v4470, %v4412
      %v4503 = vadd.f32 %v4471, %v4417
      %v4504 = vadd.f32 %v4472, %v4420
      %v4505 = vadd.f32 %v4473, %v4425
      %v4506 = vadd.f32 %v4474, %v4428
      %v4507 = vadd.f32 %v4475, %v4433
      %v4508 = vadd.f32 %v4476, %v4436
      %v4509 = vadd.f32 %v4477, %v4441
      %v4510 = vadd.f32 %v4478, %v4444
      %4511 = vst [vmem:[#allocation3] sm:$0xff] %v4479
      %4512 = vst [vmem:[#allocation3 + $0x8] sm:$0xff] %v4480
      %4513 = vst [vmem:[#allocation3 + $0x10] sm:$0xff] %v4481
      %4514 = vst [vmem:[#allocation3 + $0x18] sm:$0xff] %v4482
      %4515 = vst [vmem:[#allocation3 + $0x20] sm:$0xff] %v4483
      %4516 = vst [vmem:[#allocation3 + $0x28] sm:$0xff] %v4484
      %4517 = vst [vmem:[#allocation3 + $0x30] sm:$0xff] %v4485
      %4518 = vst [vmem:[#allocation3 + $0x38] sm:$0xff] %v4486
      %4519 = vst [vmem:[#allocation3 + $0x40] sm:$0xff] %v4487
      %4520 = vst [vmem:[#allocation3 + $0x48] sm:$0xff] %v4488
      %4521 = vst [vmem:[#allocation3 + $0x50] sm:$0xff] %v4489
      %4522 = vst [vmem:[#allocation3 + $0x58] sm:$0xff] %v4490
      %4523 = vst [vmem:[#allocation3 + $0x60] sm:$0xff] %v4491
      %4524 = vst [vmem:[#allocation3 + $0x68] sm:$0xff] %v4492
      %4525 = vst [vmem:[#allocation3 + $0x70] sm:$0xff] %v4493
      %4526 = vst [vmem:[#allocation3 + $0x78] sm:$0xff] %v4494
      %4527 = vst [vmem:[#allocation3 + $0x80] sm:$0xff] %v4495
      %4528 = vst [vmem:[#allocation3 + $0x88] sm:$0xff] %v4496
      %4529 = vst [vmem:[#allocation3 + $0x90] sm:$0xff] %v4497
      %4530 = vst [vmem:[#allocation3 + $0x98] sm:$0xff] %v4498
      %4531 = vst [vmem:[#allocation3 + $0xa0] sm:$0xff] %v4499
      %4532 = vst [vmem:[#allocation3 + $0xa8] sm:$0xff] %v4500
      %4533 = vst [vmem:[#allocation3 + $0xb0] sm:$0xff] %v4501
      %4534 = vst [vmem:[#allocation3 + $0xb8] sm:$0xff] %v4502
      %4535 = vst [vmem:[#allocation3 + $0xc0] sm:$0xff] %v4503
      %4536 = vst [vmem:[#allocation3 + $0xc8] sm:$0xff] %v4504
      %4537 = vst [vmem:[#allocation3 + $0xd0] sm:$0xff] %v4505
      %4538 = vst [vmem:[#allocation3 + $0xd8] sm:$0xff] %v4506
      %4539 = vst [vmem:[#allocation3 + $0xe0] sm:$0xff] %v4507
      %4540 = vst [vmem:[#allocation3 + $0xe8] sm:$0xff] %v4508
      %4541 = vst [vmem:[#allocation3 + $0xf0] sm:$0xff] %v4509
      %4542 = vst [vmem:[#allocation3 + $0xf8] sm:$0xff] %v4510
      %v4546 = vrot.slane %v3655, 5
      %v4547 = vrot.slane %v4546, 4
      %v4548 = vrot.slane %v3656, 5
      %v4549 = vsel %vm3708, %v4547, %v4548
      %v4550 = vrot.slane %v4548, 4
      %v4551 = vrot.slane %v3657, 5
      %v4552 = vsel %vm3708, %v4550, %v4551
      %s4553 = scalar_lea.vmem %s1, 512
      %v4554 = vld [vmem:[%s4553] sm:$0xf]
      %v4555 = vld [vmem:[%s4553 + $0x4] sm:$0xf]
      %v4556 = vld [vmem:[%s4553 + $0x8] sm:$0xf]
      %v4557 = vld [vmem:[%s4553 + $0xc] sm:$0xf]
      %v4558 = vld [vmem:[%s4553 + $0x10] sm:$0xf]
      %v4559 = vld [vmem:[%s4553 + $0x14] sm:$0xf]
      %v4560 = vld [vmem:[%s4553 + $0x18] sm:$0xf]
      %v4561 = vld [vmem:[%s4553 + $0x1c] sm:$0xf]
      %v4562 = vld [vmem:[%s4553 + $0x20] sm:$0xf]
      %v4563 = vld [vmem:[%s4553 + $0x24] sm:$0xf]
      %v4564 = vld [vmem:[%s4553 + $0x28] sm:$0xf]
      %v4565 = vld [vmem:[%s4553 + $0x2c] sm:$0xf]
      %v4566 = vld [vmem:[%s4553 + $0x30] sm:$0xf]
      %v4567 = vld [vmem:[%s4553 + $0x34] sm:$0xf]
      %v4568 = vld [vmem:[%s4553 + $0x38] sm:$0xf]
      %v4569 = vld [vmem:[%s4553 + $0x3c] sm:$0xf]
      %v4570 = vunpack.c.l.b16 %v4549
      %v4571 = vunpack.c.l.b16 %v4552
      %v4572 = vpack.c.b16 %v4571, %v4570
      %v4590 = vunpack.c.l.b16 %v4554
      %v4591 = vunpack.c.l.b16 %v4555
      %v4592 = vunpack.c.l.b16 %v4556
      %v4593 = vunpack.c.l.b16 %v4557
      %v4594 = vunpack.c.l.b16 %v4558
      %v4595 = vunpack.c.l.b16 %v4559
      %v4596 = vunpack.c.l.b16 %v4560
      %v4597 = vunpack.c.l.b16 %v4561
      %v4598 = vunpack.c.l.b16 %v4562
      %v4599 = vunpack.c.l.b16 %v4563
      %v4600 = vunpack.c.l.b16 %v4564
      %v4601 = vunpack.c.l.b16 %v4565
      %v4602 = vunpack.c.l.b16 %v4566
      %v4603 = vunpack.c.l.b16 %v4567
      %v4604 = vunpack.c.l.b16 %v4568
      %v4605 = vunpack.c.l.b16 %v4569
      %v4606 = vpack.c.b16 %v4591, %v4590
      %v4607 = vpack.c.b16 %v4593, %v4592
      %v4608 = vpack.c.b16 %v4595, %v4594
      %v4609 = vpack.c.b16 %v4597, %v4596
      %v4610 = vpack.c.b16 %v4599, %v4598
      %v4611 = vpack.c.b16 %v4601, %v4600
      %v4612 = vpack.c.b16 %v4603, %v4602
      %v4613 = vpack.c.b16 %v4605, %v4604
      %4622 = vmatprep.subr.bf16.mxu0 0
      %4623 = vmatpush1.bf16.msra.mxu0 %v4613
      %4624 = vmatprep.subr.bf16.mxu0 0
      %4625 = vmatpush1.bf16.msra.mxu0 %v4612
      %4626 = vmatprep.subr.bf16.mxu0 0
      %4627 = vmatpush1.bf16.msra.mxu0 %v4611
      %4628 = vmatprep.subr.bf16.mxu0 0
      %4629 = vmatpush1.bf16.msra.mxu0 %v4610
      %4630 = vmatprep.subr.bf16.mxu0 0
      %4631 = vmatpush1.bf16.msra.mxu0 %v4609
      %4632 = vmatprep.subr.bf16.mxu0 0
      %4633 = vmatpush1.bf16.msra.mxu0 %v4608
      %4634 = vmatprep.subr.bf16.mxu0 0
      %4635 = vmatpush1.bf16.msra.mxu0 %v4607
      %4636 = vmatprep.subr.bf16.mxu0 0
      %4637 = vmatpush1.bf16.msra.mxu0 %v4606
      %4638 = vmatprep.subr.bf16.mxu0 0
      %4639 = vmatpush2.bf16.msra.mxu0 0
      %4640 = vmatprep.subr.bf16.mxu0 0
      %4641 = vmatpush2.bf16.msra.mxu0 0
      %4642 = vmatprep.subr.bf16.mxu0 0
      %4643 = vmatpush2.bf16.msra.mxu0 0
      %4644 = vmatprep.subr.bf16.mxu0 0
      %4645 = vmatpush2.bf16.msra.mxu0 0
      %4646 = vmatprep.subr.bf16.mxu0 0
      %4647 = vmatpush2.bf16.msra.mxu0 0
      %4648 = vmatprep.subr.bf16.mxu0 0
      %4649 = vmatpush2.bf16.msra.mxu0 0
      %4650 = vmatprep.subr.bf16.mxu0 0
      %4651 = vmatpush2.bf16.msra.mxu0 0
      %4652 = vmatprep.subr.bf16.mxu0 0
      %4653 = vmatpush2.bf16.msra.mxu0 0
      %4654 = vmatprep.mubr.bf16.mxu0 0
      %4655 = vmatmul.mubr.bf16.gmra.mxu0 %v3872
      %v4656 = vpop.f32.mrf.mxu0
      %v4657 = vadd.f32 0.0, %v4656
      %v4658 = vpop.f32.mrf.mxu0
      %v4659 = vpop.f32.mrf.mxu0
      %v4660 = vadd.f32 0.0, %v4659
      %v4661 = vpop.f32.mrf.mxu0
      %4662 = vmatprep.mubr.bf16.mxu0 0
      %4663 = vmatmul.mubr.bf16.gmra.mxu0 %v3873
      %v4664 = vpop.f32.mrf.mxu0
      %v4665 = vadd.f32 0.0, %v4664
      %v4666 = vpop.f32.mrf.mxu0
      %v4667 = vpop.f32.mrf.mxu0
      %v4668 = vadd.f32 0.0, %v4667
      %v4669 = vpop.f32.mrf.mxu0
      %4670 = vmatprep.mubr.bf16.mxu0 0
      %4671 = vmatmul.mubr.bf16.gmra.mxu0 %v3874
      %v4672 = vpop.f32.mrf.mxu0
      %v4673 = vadd.f32 0.0, %v4672
      %v4674 = vpop.f32.mrf.mxu0
      %v4675 = vpop.f32.mrf.mxu0
      %v4676 = vadd.f32 0.0, %v4675
      %v4677 = vpop.f32.mrf.mxu0
      %4678 = vmatprep.mubr.bf16.mxu0 0
      %4679 = vmatmul.mubr.bf16.gmra.mxu0 %v3875
      %v4680 = vpop.f32.mrf.mxu0
      %v4681 = vadd.f32 0.0, %v4680
      %v4682 = vpop.f32.mrf.mxu0
      %v4683 = vpop.f32.mrf.mxu0
      %v4684 = vadd.f32 0.0, %v4683
      %v4685 = vpop.f32.mrf.mxu0
      %4686 = vmatprep.mubr.bf16.mxu0 0
      %4687 = vmatmul.mubr.bf16.gmra.mxu0 %v3876
      %v4688 = vpop.f32.mrf.mxu0
      %v4689 = vadd.f32 0.0, %v4688
      %v4690 = vpop.f32.mrf.mxu0
      %v4691 = vpop.f32.mrf.mxu0
      %v4692 = vadd.f32 0.0, %v4691
      %v4693 = vpop.f32.mrf.mxu0
      %4694 = vmatprep.mubr.bf16.mxu0 0
      %4695 = vmatmul.mubr.bf16.gmra.mxu0 %v3877
      %v4696 = vpop.f32.mrf.mxu0
      %v4697 = vadd.f32 0.0, %v4696
      %v4698 = vpop.f32.mrf.mxu0
      %v4699 = vpop.f32.mrf.mxu0
      %v4700 = vadd.f32 0.0, %v4699
      %v4701 = vpop.f32.mrf.mxu0
      %4702 = vmatprep.mubr.bf16.mxu0 0
      %4703 = vmatmul.mubr.bf16.gmra.mxu0 %v3878
      %v4704 = vpop.f32.mrf.mxu0
      %v4705 = vadd.f32 0.0, %v4704
      %v4706 = vpop.f32.mrf.mxu0
      %v4707 = vpop.f32.mrf.mxu0
      %v4708 = vadd.f32 0.0, %v4707
      %v4709 = vpop.f32.mrf.mxu0
      %4710 = vmatprep.mubr.bf16.mxu0 0
      %4711 = vmatmul.mubr.bf16.gmra.mxu0 %v3879
      %v4712 = vpop.f32.mrf.mxu0
      %v4713 = vadd.f32 0.0, %v4712
      %v4714 = vpop.f32.mrf.mxu0
      %v4715 = vpop.f32.mrf.mxu0
      %v4716 = vadd.f32 0.0, %v4715
      %v4717 = vpop.f32.mrf.mxu0
      %4718 = vmatprep.mubr.bf16.mxu0 0
      %4719 = vmatmul.mubr.bf16.gmra.mxu0 %v3880
      %v4720 = vpop.f32.mrf.mxu0
      %v4721 = vadd.f32 0.0, %v4720
      %v4722 = vpop.f32.mrf.mxu0
      %v4723 = vpop.f32.mrf.mxu0
      %v4724 = vadd.f32 0.0, %v4723
      %v4725 = vpop.f32.mrf.mxu0
      %4726 = vmatprep.mubr.bf16.mxu0 0
      %4727 = vmatmul.mubr.bf16.gmra.mxu0 %v3881
      %v4728 = vpop.f32.mrf.mxu0
      %v4729 = vadd.f32 0.0, %v4728
      %v4730 = vpop.f32.mrf.mxu0
      %v4731 = vpop.f32.mrf.mxu0
      %v4732 = vadd.f32 0.0, %v4731
      %v4733 = vpop.f32.mrf.mxu0
      %4734 = vmatprep.mubr.bf16.mxu0 0
      %4735 = vmatmul.mubr.bf16.gmra.mxu0 %v3882
      %v4736 = vpop.f32.mrf.mxu0
      %v4737 = vadd.f32 0.0, %v4736
      %v4738 = vpop.f32.mrf.mxu0
      %v4739 = vpop.f32.mrf.mxu0
      %v4740 = vadd.f32 0.0, %v4739
      %v4741 = vpop.f32.mrf.mxu0
      %4742 = vmatprep.mubr.bf16.mxu0 0
      %4743 = vmatmul.mubr.bf16.gmra.mxu0 %v3883
      %v4744 = vpop.f32.mrf.mxu0
      %v4745 = vadd.f32 0.0, %v4744
      %v4746 = vpop.f32.mrf.mxu0
      %v4747 = vpop.f32.mrf.mxu0
      %v4748 = vadd.f32 0.0, %v4747
      %v4749 = vpop.f32.mrf.mxu0
      %4750 = vmatprep.mubr.bf16.mxu0 0
      %4751 = vmatmul.mubr.bf16.gmra.mxu0 %v3884
      %v4752 = vpop.f32.mrf.mxu0
      %v4753 = vadd.f32 0.0, %v4752
      %v4754 = vpop.f32.mrf.mxu0
      %v4755 = vpop.f32.mrf.mxu0
      %v4756 = vadd.f32 0.0, %v4755
      %v4757 = vpop.f32.mrf.mxu0
      %4758 = vmatprep.mubr.bf16.mxu0 0
      %4759 = vmatmul.mubr.bf16.gmra.mxu0 %v3885
      %v4760 = vpop.f32.mrf.mxu0
      %v4761 = vadd.f32 0.0, %v4760
      %v4762 = vpop.f32.mrf.mxu0
      %v4763 = vpop.f32.mrf.mxu0
      %v4764 = vadd.f32 0.0, %v4763
      %v4765 = vpop.f32.mrf.mxu0
      %4766 = vmatprep.mubr.bf16.mxu0 0
      %4767 = vmatmul.mubr.bf16.gmra.mxu0 %v4236
      %v4768 = vpop.f32.mrf.mxu0
      %v4769 = vadd.f32 0.0, %v4768
      %v4770 = vpop.f32.mrf.mxu0
      %v4771 = vpop.f32.mrf.mxu0
      %v4772 = vadd.f32 0.0, %v4771
      %v4773 = vpop.f32.mrf.mxu0
      %4774 = vmatprep.mubr.bf16.mxu0 0
      %4775 = vmatmul.mubr.bf16.gmra.mxu0 %v4572
      %v4776 = vpop.f32.mrf.mxu0
      %v4777 = vadd.f32 0.0, %v4776
      %v4778 = vpop.f32.mrf.mxu0
      %v4779 = vpop.f32.mrf.mxu0
      %v4780 = vadd.f32 0.0, %v4779
      %v4781 = vpop.f32.mrf.mxu0
      %4782 = vdwg.mxu0
      %v4783 = vld [vmem:[#allocation3] sm:$0xff]
      %v4784 = vld [vmem:[#allocation3 + $0x8] sm:$0xff]
      %v4785 = vld [vmem:[#allocation3 + $0x10] sm:$0xff]
      %v4786 = vld [vmem:[#allocation3 + $0x18] sm:$0xff]
      %v4787 = vld [vmem:[#allocation3 + $0x20] sm:$0xff]
      %v4788 = vld [vmem:[#allocation3 + $0x28] sm:$0xff]
      %v4789 = vld [vmem:[#allocation3 + $0x30] sm:$0xff]
      %v4790 = vld [vmem:[#allocation3 + $0x38] sm:$0xff]
      %v4791 = vld [vmem:[#allocation3 + $0x40] sm:$0xff]
      %v4792 = vld [vmem:[#allocation3 + $0x48] sm:$0xff]
      %v4793 = vld [vmem:[#allocation3 + $0x50] sm:$0xff]
      %v4794 = vld [vmem:[#allocation3 + $0x58] sm:$0xff]
      %v4795 = vld [vmem:[#allocation3 + $0x60] sm:$0xff]
      %v4796 = vld [vmem:[#allocation3 + $0x68] sm:$0xff]
      %v4797 = vld [vmem:[#allocation3 + $0x70] sm:$0xff]
      %v4798 = vld [vmem:[#allocation3 + $0x78] sm:$0xff]
      %v4799 = vld [vmem:[#allocation3 + $0x80] sm:$0xff]
      %v4800 = vld [vmem:[#allocation3 + $0x88] sm:$0xff]
      %v4801 = vld [vmem:[#allocation3 + $0x90] sm:$0xff]
      %v4802 = vld [vmem:[#allocation3 + $0x98] sm:$0xff]
      %v4803 = vld [vmem:[#allocation3 + $0xa0] sm:$0xff]
      %v4804 = vld [vmem:[#allocation3 + $0xa8] sm:$0xff]
      %v4805 = vld [vmem:[#allocation3 + $0xb0] sm:$0xff]
      %v4806 = vld [vmem:[#allocation3 + $0xb8] sm:$0xff]
      %v4807 = vld [vmem:[#allocation3 + $0xc0] sm:$0xff]
      %v4808 = vld [vmem:[#allocation3 + $0xc8] sm:$0xff]
      %v4809 = vld [vmem:[#allocation3 + $0xd0] sm:$0xff]
      %v4810 = vld [vmem:[#allocation3 + $0xd8] sm:$0xff]
      %v4811 = vld [vmem:[#allocation3 + $0xe0] sm:$0xff]
      %v4812 = vld [vmem:[#allocation3 + $0xe8] sm:$0xff]
      %v4813 = vld [vmem:[#allocation3 + $0xf0] sm:$0xff]
      %v4814 = vld [vmem:[#allocation3 + $0xf8] sm:$0xff]
      %v4815 = vadd.f32 %v4783, %v4657
      %v4816 = vadd.f32 %v4784, %v4660
      %v4817 = vadd.f32 %v4785, %v4665
      %v4818 = vadd.f32 %v4786, %v4668
      %v4819 = vadd.f32 %v4787, %v4673
      %v4820 = vadd.f32 %v4788, %v4676
      %v4821 = vadd.f32 %v4789, %v4681
      %v4822 = vadd.f32 %v4790, %v4684
      %v4823 = vadd.f32 %v4791, %v4689
      %v4824 = vadd.f32 %v4792, %v4692
      %v4825 = vadd.f32 %v4793, %v4697
      %v4826 = vadd.f32 %v4794, %v4700
      %v4827 = vadd.f32 %v4795, %v4705
      %v4828 = vadd.f32 %v4796, %v4708
      %v4829 = vadd.f32 %v4797, %v4713
      %v4830 = vadd.f32 %v4798, %v4716
      %v4831 = vadd.f32 %v4799, %v4721
      %v4832 = vadd.f32 %v4800, %v4724
      %v4833 = vadd.f32 %v4801, %v4729
      %v4834 = vadd.f32 %v4802, %v4732
      %v4835 = vadd.f32 %v4803, %v4737
      %v4836 = vadd.f32 %v4804, %v4740
      %v4837 = vadd.f32 %v4805, %v4745
      %v4838 = vadd.f32 %v4806, %v4748
      %v4839 = vadd.f32 %v4807, %v4753
      %v4840 = vadd.f32 %v4808, %v4756
      %v4841 = vadd.f32 %v4809, %v4761
      %v4842 = vadd.f32 %v4810, %v4764
      %v4843 = vadd.f32 %v4811, %v4769
      %v4844 = vadd.f32 %v4812, %v4772
      %v4845 = vadd.f32 %v4813, %v4777
      %v4846 = vadd.f32 %v4814, %v4780
      %4847 = vst [vmem:[#allocation3] sm:$0xff] %v4815
      %4848 = vst [vmem:[#allocation3 + $0x8] sm:$0xff] %v4816
      %4849 = vst [vmem:[#allocation3 + $0x10] sm:$0xff] %v4817
      %4850 = vst [vmem:[#allocation3 + $0x18] sm:$0xff] %v4818
      %4851 = vst [vmem:[#allocation3 + $0x20] sm:$0xff] %v4819
      %4852 = vst [vmem:[#allocation3 + $0x28] sm:$0xff] %v4820
      %4853 = vst [vmem:[#allocation3 + $0x30] sm:$0xff] %v4821
      %4854 = vst [vmem:[#allocation3 + $0x38] sm:$0xff] %v4822
      %4855 = vst [vmem:[#allocation3 + $0x40] sm:$0xff] %v4823
      %4856 = vst [vmem:[#allocation3 + $0x48] sm:$0xff] %v4824
      %4857 = vst [vmem:[#allocation3 + $0x50] sm:$0xff] %v4825
      %4858 = vst [vmem:[#allocation3 + $0x58] sm:$0xff] %v4826
      %4859 = vst [vmem:[#allocation3 + $0x60] sm:$0xff] %v4827
      %4860 = vst [vmem:[#allocation3 + $0x68] sm:$0xff] %v4828
      %4861 = vst [vmem:[#allocation3 + $0x70] sm:$0xff] %v4829
      %4862 = vst [vmem:[#allocation3 + $0x78] sm:$0xff] %v4830
      %4863 = vst [vmem:[#allocation3 + $0x80] sm:$0xff] %v4831
      %4864 = vst [vmem:[#allocation3 + $0x88] sm:$0xff] %v4832
      %4865 = vst [vmem:[#allocation3 + $0x90] sm:$0xff] %v4833
      %4866 = vst [vmem:[#allocation3 + $0x98] sm:$0xff] %v4834
      %4867 = vst [vmem:[#allocation3 + $0xa0] sm:$0xff] %v4835
      %4868 = vst [vmem:[#allocation3 + $0xa8] sm:$0xff] %v4836
      %4869 = vst [vmem:[#allocation3 + $0xb0] sm:$0xff] %v4837
      %4870 = vst [vmem:[#allocation3 + $0xb8] sm:$0xff] %v4838
      %4871 = vst [vmem:[#allocation3 + $0xc0] sm:$0xff] %v4839
      %4872 = vst [vmem:[#allocation3 + $0xc8] sm:$0xff] %v4840
      %4873 = vst [vmem:[#allocation3 + $0xd0] sm:$0xff] %v4841
      %4874 = vst [vmem:[#allocation3 + $0xd8] sm:$0xff] %v4842
      %4875 = vst [vmem:[#allocation3 + $0xe0] sm:$0xff] %v4843
      %4876 = vst [vmem:[#allocation3 + $0xe8] sm:$0xff] %v4844
      %4877 = vst [vmem:[#allocation3 + $0xf0] sm:$0xff] %v4845
      %4878 = vst [vmem:[#allocation3 + $0xf8] sm:$0xff] %v4846
      %v4879 = vld [vmem:[#allocation3] sm:$0xff]
      %v4880 = vld [vmem:[#allocation3 + $0x8] sm:$0xff]
      %v4881 = vld [vmem:[#allocation3 + $0x10] sm:$0xff]
      %v4882 = vld [vmem:[#allocation3 + $0x18] sm:$0xff]
      %v4883 = vld [vmem:[#allocation3 + $0x20] sm:$0xff]
      %v4884 = vld [vmem:[#allocation3 + $0x28] sm:$0xff]
      %v4885 = vld [vmem:[#allocation3 + $0x30] sm:$0xff]
      %v4886 = vld [vmem:[#allocation3 + $0x38] sm:$0xff]
      %v4887 = vld [vmem:[#allocation3 + $0x40] sm:$0xff]
      %v4888 = vld [vmem:[#allocation3 + $0x48] sm:$0xff]
      %v4889 = vld [vmem:[#allocation3 + $0x50] sm:$0xff]
      %v4890 = vld [vmem:[#allocation3 + $0x58] sm:$0xff]
      %v4891 = vld [vmem:[#allocation3 + $0x60] sm:$0xff]
      %v4892 = vld [vmem:[#allocation3 + $0x68] sm:$0xff]
      %v4893 = vld [vmem:[#allocation3 + $0x70] sm:$0xff]
      %v4894 = vld [vmem:[#allocation3 + $0x78] sm:$0xff]
      %v4895 = vld [vmem:[#allocation3 + $0x80] sm:$0xff]
      %v4896 = vld [vmem:[#allocation3 + $0x88] sm:$0xff]
      %v4897 = vld [vmem:[#allocation3 + $0x90] sm:$0xff]
      %v4898 = vld [vmem:[#allocation3 + $0x98] sm:$0xff]
      %v4899 = vld [vmem:[#allocation3 + $0xa0] sm:$0xff]
      %v4900 = vld [vmem:[#allocation3 + $0xa8] sm:$0xff]
      %v4901 = vld [vmem:[#allocation3 + $0xb0] sm:$0xff]
      %v4902 = vld [vmem:[#allocation3 + $0xb8] sm:$0xff]
      %v4903 = vld [vmem:[#allocation3 + $0xc0] sm:$0xff]
      %v4904 = vld [vmem:[#allocation3 + $0xc8] sm:$0xff]
      %v4905 = vld [vmem:[#allocation3 + $0xd0] sm:$0xff]
      %v4906 = vld [vmem:[#allocation3 + $0xd8] sm:$0xff]
      %v4907 = vld [vmem:[#allocation3 + $0xe0] sm:$0xff]
      %v4908 = vld [vmem:[#allocation3 + $0xe8] sm:$0xff]
      %v4909 = vld [vmem:[#allocation3 + $0xf0] sm:$0xff]
      %v4910 = vld [vmem:[#allocation3 + $0xf8] sm:$0xff]
      %v4911 = vpack.c.bf16 %v4880, %v4879
      %v4912 = vpack.c.bf16 %v4882, %v4881
      %v4913 = vpack.c.bf16 %v4884, %v4883
      %v4914 = vpack.c.bf16 %v4886, %v4885
      %v4915 = vpack.c.bf16 %v4888, %v4887
      %v4916 = vpack.c.bf16 %v4890, %v4889
      %v4917 = vpack.c.bf16 %v4892, %v4891
      %v4918 = vpack.c.bf16 %v4894, %v4893
      %v4919 = vpack.c.bf16 %v4896, %v4895
      %v4920 = vpack.c.bf16 %v4898, %v4897
      %v4921 = vpack.c.bf16 %v4900, %v4899
      %v4922 = vpack.c.bf16 %v4902, %v4901
      %v4923 = vpack.c.bf16 %v4904, %v4903
      %v4924 = vpack.c.bf16 %v4906, %v4905
      %v4925 = vpack.c.bf16 %v4908, %v4907
      %v4926 = vpack.c.bf16 %v4910, %v4909
      %v4943 = vunpack.c.l.b16 %v4911
      %v4944 = vunpack.c.h.b16 %v4911
      %v4945 = vunpack.c.l.b16 %v4912
      %v4946 = vunpack.c.h.b16 %v4912
      %v4947 = vunpack.c.l.b16 %v4913
      %v4948 = vunpack.c.h.b16 %v4913
      %v4949 = vunpack.c.l.b16 %v4914
      %v4950 = vunpack.c.h.b16 %v4914
      %v4951 = vunpack.c.l.b16 %v4915
      %v4952 = vunpack.c.h.b16 %v4915
      %v4953 = vunpack.c.l.b16 %v4916
      %v4954 = vunpack.c.h.b16 %v4916
      %v4955 = vunpack.c.l.b16 %v4917
      %v4956 = vunpack.c.h.b16 %v4917
      %v4957 = vunpack.c.l.b16 %v4918
      %v4958 = vunpack.c.h.b16 %v4918
      %v4959 = vunpack.c.l.b16 %v4919
      %v4960 = vunpack.c.h.b16 %v4919
      %v4961 = vunpack.c.l.b16 %v4920
      %v4962 = vunpack.c.h.b16 %v4920
      %v4963 = vunpack.c.l.b16 %v4921
      %v4964 = vunpack.c.h.b16 %v4921
      %v4965 = vunpack.c.l.b16 %v4922
      %v4966 = vunpack.c.h.b16 %v4922
      %v4967 = vunpack.c.l.b16 %v4923
      %v4968 = vunpack.c.h.b16 %v4923
      %v4969 = vunpack.c.l.b16 %v4924
      %v4970 = vunpack.c.h.b16 %v4924
      %v4971 = vunpack.c.l.b16 %v4925
      %v4972 = vunpack.c.h.b16 %v4925
      %v4973 = vunpack.c.l.b16 %v4926
      %v4974 = vunpack.c.h.b16 %v4926
      %v4975 = vpack.c.b16 %v4943, %v4943
      %v4976 = vpack.c.b16 %v4944, %v4944
      %v4977 = vpack.c.b16 %v4945, %v4945
      %v4978 = vpack.c.b16 %v4946, %v4946
      %v4979 = vpack.c.b16 %v4947, %v4947
      %v4980 = vpack.c.b16 %v4948, %v4948
      %v4981 = vpack.c.b16 %v4949, %v4949
      %v4982 = vpack.c.b16 %v4950, %v4950
      %v4983 = vpack.c.b16 %v4951, %v4951
      %v4984 = vpack.c.b16 %v4952, %v4952
      %v4985 = vpack.c.b16 %v4953, %v4953
      %v4986 = vpack.c.b16 %v4954, %v4954
      %v4987 = vpack.c.b16 %v4955, %v4955
      %v4988 = vpack.c.b16 %v4956, %v4956
      %v4989 = vpack.c.b16 %v4957, %v4957
      %v4990 = vpack.c.b16 %v4958, %v4958
      %v4991 = vpack.c.b16 %v4959, %v4959
      %v4992 = vpack.c.b16 %v4960, %v4960
      %v4993 = vpack.c.b16 %v4961, %v4961
      %v4994 = vpack.c.b16 %v4962, %v4962
      %v4995 = vpack.c.b16 %v4963, %v4963
      %v4996 = vpack.c.b16 %v4964, %v4964
      %v4997 = vpack.c.b16 %v4965, %v4965
      %v4998 = vpack.c.b16 %v4966, %v4966
      %v4999 = vpack.c.b16 %v4967, %v4967
      %v5000 = vpack.c.b16 %v4968, %v4968
      %v5001 = vpack.c.b16 %v4969, %v4969
      %v5002 = vpack.c.b16 %v4970, %v4970
      %v5003 = vpack.c.b16 %v4971, %v4971
      %v5004 = vpack.c.b16 %v4972, %v4972
      %v5005 = vpack.c.b16 %v4973, %v4973
      %v5006 = vpack.c.b16 %v4974, %v4974
      %5039 = vst [vmem:[%s231] sm:$0xf] %v4975
      %5040 = vst [vmem:[%s231 + $0x4] sm:$0xf] %v4976
      %5041 = vst [vmem:[%s231 + $0x8] sm:$0xf] %v4977
      %5042 = vst [vmem:[%s231 + $0xc] sm:$0xf] %v4978
      %5043 = vst [vmem:[%s231 + $0x10] sm:$0xf] %v4979
      %5044 = vst [vmem:[%s231 + $0x14] sm:$0xf] %v4980
      %5045 = vst [vmem:[%s231 + $0x18] sm:$0xf] %v4981
      %5046 = vst [vmem:[%s231 + $0x1c] sm:$0xf] %v4982
      %5047 = vst [vmem:[%s231 + $0x20] sm:$0xf] %v4983
      %5048 = vst [vmem:[%s231 + $0x24] sm:$0xf] %v4984
      %5049 = vst [vmem:[%s231 + $0x28] sm:$0xf] %v4985
      %5050 = vst [vmem:[%s231 + $0x2c] sm:$0xf] %v4986
      %5051 = vst [vmem:[%s231 + $0x30] sm:$0xf] %v4987
      %5052 = vst [vmem:[%s231 + $0x34] sm:$0xf] %v4988
      %5053 = vst [vmem:[%s231 + $0x38] sm:$0xf] %v4989
      %5054 = vst [vmem:[%s231 + $0x3c] sm:$0xf] %v4990
      %5055 = vst [vmem:[%s231 + $0x40] sm:$0xf] %v4991
      %5056 = vst [vmem:[%s231 + $0x44] sm:$0xf] %v4992
      %5057 = vst [vmem:[%s231 + $0x48] sm:$0xf] %v4993
      %5058 = vst [vmem:[%s231 + $0x4c] sm:$0xf] %v4994
      %5059 = vst [vmem:[%s231 + $0x50] sm:$0xf] %v4995
      %5060 = vst [vmem:[%s231 + $0x54] sm:$0xf] %v4996
      %5061 = vst [vmem:[%s231 + $0x58] sm:$0xf] %v4997
      %5062 = vst [vmem:[%s231 + $0x5c] sm:$0xf] %v4998
      %5063 = vst [vmem:[%s231 + $0x60] sm:$0xf] %v4999
      %5064 = vst [vmem:[%s231 + $0x64] sm:$0xf] %v5000
      %5065 = vst [vmem:[%s231 + $0x68] sm:$0xf] %v5001
      %5066 = vst [vmem:[%s231 + $0x6c] sm:$0xf] %v5002
      %5067 = vst [vmem:[%s231 + $0x70] sm:$0xf] %v5003
      %5068 = vst [vmem:[%s231 + $0x74] sm:$0xf] %v5004
      %5069 = vst [vmem:[%s231 + $0x78] sm:$0xf] %v5005
      %5070 = vst [vmem:[%s231 + $0x7c] sm:$0xf] %v5006
      %v5071 = vadd.f32 %v4879, %v4880
      %v5072 = vadd.f32 %v5071, %v4881
      %v5073 = vadd.f32 %v5072, %v4882
      %v5074 = vadd.f32 %v5073, %v4883
      %v5075 = vadd.f32 %v5074, %v4884
      %v5076 = vadd.f32 %v5075, %v4885
      %v5077 = vadd.f32 %v5076, %v4886
      %v5078 = vadd.f32 %v5077, %v4887
      %v5079 = vadd.f32 %v5078, %v4888
      %v5080 = vadd.f32 %v5079, %v4889
      %v5081 = vadd.f32 %v5080, %v4890
      %v5082 = vadd.f32 %v5081, %v4891
      %v5083 = vadd.f32 %v5082, %v4892
      %v5084 = vadd.f32 %v5083, %v4893
      %v5085 = vadd.f32 %v5084, %v4894
      %v5086 = vadd.f32 %v5085, %v4895
      %v5087 = vadd.f32 %v5086, %v4896
      %v5088 = vadd.f32 %v5087, %v4897
      %v5089 = vadd.f32 %v5088, %v4898
      %v5090 = vadd.f32 %v5089, %v4899
      %v5091 = vadd.f32 %v5090, %v4900
      %v5092 = vadd.f32 %v5091, %v4901
      %v5093 = vadd.f32 %v5092, %v4902
      %v5094 = vadd.f32 %v5093, %v4903
      %v5095 = vadd.f32 %v5094, %v4904
      %v5096 = vadd.f32 %v5095, %v4905
      %v5097 = vadd.f32 %v5096, %v4906
      %v5098 = vadd.f32 %v5097, %v4907
      %v5099 = vadd.f32 %v5098, %v4908
      %v5100 = vadd.f32 %v5099, %v4909
      %v5101 = vadd.f32 %v5100, %v4910
      %v5102 = vrot.slane %v5101, 4
      %v5103 = vadd.f32 %v5101, %v5102
      %v5104 = vrot.slane %v5103, 2
      %v5105 = vadd.f32 %v5103, %v5104
      %v5106 = vrot.slane %v5105, 1
      %v5107 = vadd.f32 %v5105, %v5106
      %5108 = vst [vmem:[%s235] sm:$0x1] %v5107
      %v5109 = vmul.f32 %v4879, %v4879
      %v5110 = vmul.f32 %v4880, %v4880
      %v5111 = vmul.f32 %v4881, %v4881
      %v5112 = vmul.f32 %v4882, %v4882
      %v5113 = vmul.f32 %v4883, %v4883
      %v5114 = vmul.f32 %v4884, %v4884
      %v5115 = vmul.f32 %v4885, %v4885
      %v5116 = vmul.f32 %v4886, %v4886
      %v5117 = vmul.f32 %v4887, %v4887
      %v5118 = vmul.f32 %v4888, %v4888
      %v5119 = vmul.f32 %v4889, %v4889
      %v5120 = vmul.f32 %v4890, %v4890
      %v5121 = vmul.f32 %v4891, %v4891
      %v5122 = vmul.f32 %v4892, %v4892
      %v5123 = vmul.f32 %v4893, %v4893
      %v5124 = vmul.f32 %v4894, %v4894
      %v5125 = vmul.f32 %v4895, %v4895
      %v5126 = vmul.f32 %v4896, %v4896
      %v5127 = vmul.f32 %v4897, %v4897
      %v5128 = vmul.f32 %v4898, %v4898
      %v5129 = vmul.f32 %v4899, %v4899
      %v5130 = vmul.f32 %v4900, %v4900
      %v5131 = vmul.f32 %v4901, %v4901
      %v5132 = vmul.f32 %v4902, %v4902
      %v5133 = vmul.f32 %v4903, %v4903
      %v5134 = vmul.f32 %v4904, %v4904
      %v5135 = vmul.f32 %v4905, %v4905
      %v5136 = vmul.f32 %v4906, %v4906
      %v5137 = vmul.f32 %v4907, %v4907
      %v5138 = vmul.f32 %v4908, %v4908
      %v5139 = vmul.f32 %v4909, %v4909
      %v5140 = vmul.f32 %v4910, %v4910
      %v5141 = vadd.f32 %v5109, %v5110
      %v5142 = vadd.f32 %v5141, %v5111
      %v5143 = vadd.f32 %v5142, %v5112
      %v5144 = vadd.f32 %v5143, %v5113
      %v5145 = vadd.f32 %v5144, %v5114
      %v5146 = vadd.f32 %v5145, %v5115
      %v5147 = vadd.f32 %v5146, %v5116
      %v5148 = vadd.f32 %v5147, %v5117
      %v5149 = vadd.f32 %v5148, %v5118
      %v5150 = vadd.f32 %v5149, %v5119
      %v5151 = vadd.f32 %v5150, %v5120
      %v5152 = vadd.f32 %v5151, %v5121
      %v5153 = vadd.f32 %v5152, %v5122
      %v5154 = vadd.f32 %v5153, %v5123
      %v5155 = vadd.f32 %v5154, %v5124
      %v5156 = vadd.f32 %v5155, %v5125
      %v5157 = vadd.f32 %v5156, %v5126
      %v5158 = vadd.f32 %v5157, %v5127
      %v5159 = vadd.f32 %v5158, %v5128
      %v5160 = vadd.f32 %v5159, %v5129
      %v5161 = vadd.f32 %v5160, %v5130
      %v5162 = vadd.f32 %v5161, %v5131
      %v5163 = vadd.f32 %v5162, %v5132
      %v5164 = vadd.f32 %v5163, %v5133
      %v5165 = vadd.f32 %v5164, %v5134
      %v5166 = vadd.f32 %v5165, %v5135
      %v5167 = vadd.f32 %v5166, %v5136
      %v5168 = vadd.f32 %v5167, %v5137
      %v5169 = vadd.f32 %v5168, %v5138
      %v5170 = vadd.f32 %v5169, %v5139
      %v5171 = vadd.f32 %v5170, %v5140
      %v5172 = vrot.slane %v5171, 4
      %v5173 = vadd.f32 %v5171, %v5172
      %v5174 = vrot.slane %v5173, 2
      %v5175 = vadd.f32 %v5173, %v5174
      %v5176 = vrot.slane %v5175, 1
      %v5177 = vadd.f32 %v5175, %v5176
      %5178 = vst [vmem:[%s235 + $0x1] sm:$0x1] %v5177
      %p5179 = scmp.lt.s32.totalorder %s17, 1
      %s5180 = scalar_select %p5179, %s17, 1
      %s5181 = smul.addr %s5180, 32
      %s5182 = smul.addr %s5181, 4
      %s5183 = scalar_lea.vmem %s4, %s5182
      %p5184 = scmp.lt.s32.totalorder %s17, 1
      %s5185 = scalar_select %p5184, %s17, 1
      %s5186 = smul.addr %s5185, 2
      %s5187 = scalar_lea.vmem %s5, %s5186
      // Predicated region
      $region37: #{unet_block_a.3} parent=35 // pred_check
        %p5188 = pneg %p124
      $region38: #{unet_block_a.3} parent=35 // pred_check_branch
        %5190 = sbr.rel (%p5188) target = $region40
      $region39: #{unet_block_a.3} parent=35 // pred_region
        _
      $region40: #{unet_block_a.3} parent=35 // pred_fallthru
        _
      // Predicated region
      $region41: #{unet_block_a.3} parent=35 // pred_check
        %p5191 = pneg %p150
      $region42: #{unet_block_a.3} parent=35 // pred_check_branch
        %5193 = sbr.rel (%p5191) target = $region44
      $region43: #{unet_block_a.3} parent=35 // pred_region
        _
      $region44: #{unet_block_a.3} parent=35 // pred_fallthru
        _
    $region36: #{unet_block_a.3} parent=5 // pred_fallthru
      _
    %p5194 = scmp.le.s32.totalorder 2, %s12
    // Predicated region
    $region45: #{unet_block_a.3} parent=5 // pred_check
      %p5195 = pneg %p5194
    $region46: #{unet_block_a.3} parent=5 // pred_check_branch
      %5197 = sbr.rel (%p5195) target = $region48
    $region47: #{unet_block_a.3} parent=5 // pred_region
      %s5198 = ssub.s32 %s12, 2
      // Predicated region
      $region49: #{unet_block_a.3} parent=47 // pred_check
        %p5199 = pneg %p130
      $region50: #{unet_block_a.3} parent=47 // pred_check_branch
        %5201 = sbr.rel (%p5199) target = $region52
      $region51: #{unet_block_a.3} parent=47 // pred_region
        %p5202 = scmp.lt.s32.totalorder %s18, 1
        %s5203 = scalar_select %p5202, %s18, 1
        %s5204 = smul.addr %s5203, 32
        %s5205 = smul.addr %s5204, 4
        %s5206 = scalar_lea.vmem %s4, %s5205
      $region52: #{unet_block_a.3} parent=47 // pred_fallthru
        _
      // Predicated region
      $region53: #{unet_block_a.3} parent=47 // pred_check
        %p5207 = pneg %p156
      $region54: #{unet_block_a.3} parent=47 // pred_check_branch
        %5209 = sbr.rel (%p5207) target = $region56
      $region55: #{unet_block_a.3} parent=47 // pred_region
        %p5210 = scmp.lt.s32.totalorder %s18, 1
        %s5211 = scalar_select %p5210, %s18, 1
        %s5212 = smul.addr %s5211, 2
        %s5213 = scalar_lea.vmem %s5, %s5212
      $region56: #{unet_block_a.3} parent=47 // pred_fallthru
        _
    $region48: #{unet_block_a.3} parent=5 // pred_fallthru
      _
  $region6: #{unet_block_a.3} parent=0 // loop_footer
    %s16 = sadd.s32 1, %s12
  $region7: #{unet_block_a.3} parent=0 // loop_footer_branch
    %11 = sbr.rel target = $region3
  $region8: #{unet_block_a.3} parent=0 // loop_exit
    _

// kernel: unet_block_a.4
$region0: #{unet_block_a.4}
  #allocation0 [shape = 'u32[]', space=smem, size = 0x4, offset = 0x4, fixed_abs, tag = 'smem constant byte address 0x4 - core index']
  #allocation1 [shape = 'u32[144,128]{1,0:T(1,128)}', space=vmem, size = 0x12000, scoped, tag = 'internal scratch']
  #allocation2 [shape = 'bf16[18,18,128]{2,1,0:T(8,128)(2,1)}', space=vmem, size = 0x1b000, scoped, tag = 'scratch operand']
  #allocation3 [shape = 'f32[256,128]{1,0:T(8,128)}', space=vmem, size = 0x20000, scoped, tag = 'scratch operand']
  %s0 = inlined_call_operand.vmem [shape: bf16[2,16,16,128], index: 0, kind: input, shape index: {}]
  %s1 = inlined_call_operand.vmem [shape: bf16[3,3,128,128], index: 1, kind: input, shape index: {}]
  %s2 = inlined_call_operand.vmem [shape: f32[1,128], index: 2, kind: input, shape index: {}]
  %s3 = inlined_call_operand.vmem [shape: f32[1,128], index: 3, kind: input, shape index: {}]
  %s4 = inlined_call_operand.vmem [shape: bf16[2,16,16,128], index: 4, kind: output, shape index: {0}]
  %s5 = inlined_call_operand.vmem [shape: f32[2,2,128], index: 5, kind: output, shape index: {1}]
  %6 = xla_tuple %s4, %s5
  %s7 = sld [smem:[#allocation0]]
  $region57: #{unet_block_a.4} parent=0
    _
  %s9 = ssub.s32 1, %s7
  %s10 = scalar_select 0, %s9, %s7
  loop: start=0, step=1, limit=4
  $region2: #{unet_block_a.4} parent=0 // loop_pre_header
    _
  $region3: #{unet_block_a.4} parent=0 // loop_header
    %s12 = sphi 0, %s16
    %p13 = scmp.ge.s32.totalorder %s12, 4
    %s22 = sphi 0, %s24
    %s25 = sphi 0, %s22
    %s26 = sphi 0, %s25
    %s42 = sphi 0, %s26
    %s46 = sphi 0, %s46
    %s48 = sphi 0, %s46
    %s49 = sphi 0, %s48
    %s63 = sphi 0, %s49
    %s67 = sphi 0, %s67
    %s69 = sphi 0, %s67
    %s70 = sphi 0, %s69
    %s84 = sphi 0, %s70
    %s88 = sphi 0, %s88
    %s90 = sphi 0, %s88
    %s91 = sphi 0, %s90
    %s105 = sphi 0, %s91
    %s111 = sphi 0, %s113
    %s114 = sphi 0, %s111
    %s115 = sphi 0, %s114
    %s131 = sphi 0, %s115
    %s137 = sphi 0, %s139
    %s140 = sphi 0, %s137
    %s141 = sphi 0, %s140
    %s157 = sphi 0, %s141
  $region4: #{unet_block_a.4} parent=0 // loop_header_branch
    %15 = sbr.rel (%p13) target = $region8
  $region5: #{unet_block_a.4} parent=0 // loop_body
    %s17 = ssub.s32 %s12, 1
    %s18 = ssub.s32 %s12, 2
    %s19 = sadd.s32 %s12, 1
    %s20 = ssub.s32 %s12, %s19
    %p21 = scmp.eq.s32.totalorder %s20, 0
    %s23 = sadd.s32 %s22, 1
    %s24 = scalar_select %p21, %s22, %s23
    %p27 = pneg %p21
    %p28 = scmp.eq.s32.totalorder %s12, 1
    %p29 = por %p27, %p28
    %p30 = scmp.ne.s32.totalorder %s22, %s25
    %p31 = scmp.eq.s32.totalorder %s12, 0
    %p32 = por %p30, %p31
    %p33 = scmp.ne.s32.totalorder %s22, %s25
    %p34 = scmp.eq.s32.totalorder %s17, 1
    %p35 = por %p33, %p34
    %p36 = scmp.ne.s32.totalorder %s25, %s26
    %p37 = scmp.eq.s32.totalorder %s17, 0
    %p38 = por %p36, %p37
    %p39 = scmp.ne.s32.totalorder %s25, %s26
    %p40 = scmp.eq.s32.totalorder %s18, 1
    %p41 = por %p39, %p40
    %p43 = scmp.ne.s32.totalorder %s26, %s42
    %p44 = scmp.eq.s32.totalorder %s18, 0
    %p45 = por %p43, %p44
    %s47 = sadd.s32 %s46, 1
    %p50 = scmp.eq.s32.totalorder %s12, 1
    %p51 = scmp.ne.s32.totalorder %s46, %s48
    %p52 = scmp.eq.s32.totalorder %s12, 0
    %p53 = por %p51, %p52
    %p54 = scmp.ne.s32.totalorder %s46, %s48
    %p55 = scmp.eq.s32.totalorder %s17, 1
    %p56 = por %p54, %p55
    %p57 = scmp.ne.s32.totalorder %s48, %s49
    %p58 = scmp.eq.s32.totalorder %s17, 0
    %p59 = por %p57, %p58
    %p60 = scmp.ne.s32.totalorder %s48, %s49
    %p61 = scmp.eq.s32.totalorder %s18, 1
    %p62 = por %p60, %p61
    %p64 = scmp.ne.s32.totalorder %s49, %s63
    %p65 = scmp.eq.s32.totalorder %s18, 0
    %p66 = por %p64, %p65
    %s68 = sadd.s32 %s67, 1
    %p71 = scmp.eq.s32.totalorder %s12, 1
    %p72 = scmp.ne.s32.totalorder %s67, %s69
    %p73 = scmp.eq.s32.totalorder %s12, 0
    %p74 = por %p72, %p73
    %p75 = scmp.ne.s32.totalorder %s67, %s69
    %p76 = scmp.eq.s32.totalorder %s17, 1
    %p77 = por %p75, %p76
    %p78 = scmp.ne.s32.totalorder %s69, %s70
    %p79 = scmp.eq.s32.totalorder %s17, 0
    %p80 = por %p78, %p79
    %p81 = scmp.ne.s32.totalorder %s69, %s70
    %p82 = scmp.eq.s32.totalorder %s18, 1
    %p83 = por %p81, %p82
    %p85 = scmp.ne.s32.totalorder %s70, %s84
    %p86 = scmp.eq.s32.totalorder %s18, 0
    %p87 = por %p85, %p86
    %s89 = sadd.s32 %s88, 1
    %p92 = scmp.eq.s32.totalorder %s12, 1
    %p93 = scmp.ne.s32.totalorder %s88, %s90
    %p94 = scmp.eq.s32.totalorder %s12, 0
    %p95 = por %p93, %p94
    %p96 = scmp.ne.s32.totalorder %s88, %s90
    %p97 = scmp.eq.s32.totalorder %s17, 1
    %p98 = por %p96, %p97
    %p99 = scmp.ne.s32.totalorder %s90, %s91
    %p100 = scmp.eq.s32.totalorder %s17, 0
    %p101 = por %p99, %p100
    %p102 = scmp.ne.s32.totalorder %s90, %s91
    %p103 = scmp.eq.s32.totalorder %s18, 1
    %p104 = por %p102, %p103
    %p106 = scmp.ne.s32.totalorder %s91, %s105
    %p107 = scmp.eq.s32.totalorder %s18, 0
    %p108 = por %p106, %p107
    %s109 = ssub.s32 %s12, %s19
    %p110 = scmp.eq.s32.totalorder %s109, 0
    %s112 = sadd.s32 %s111, 1
    %s113 = scalar_select %p110, %s111, %s112
    %p116 = pneg %p110
    %p117 = scmp.eq.s32.totalorder %s12, 1
    %p118 = por %p116, %p117
    %p119 = scmp.ne.s32.totalorder %s111, %s114
    %p120 = scmp.eq.s32.totalorder %s12, 0
    %p121 = por %p119, %p120
    %p122 = scmp.ne.s32.totalorder %s111, %s114
    %p123 = scmp.eq.s32.totalorder %s17, 1
    %p124 = por %p122, %p123
    %p125 = scmp.ne.s32.totalorder %s114, %s115
    %p126 = scmp.eq.s32.totalorder %s17, 0
    %p127 = por %p125, %p126
    %p128 = scmp.ne.s32.totalorder %s114, %s115
    %p129 = scmp.eq.s32.totalorder %s18, 1
    %p130 = por %p128, %p129
    %p132 = scmp.ne.s32.totalorder %s115, %s131
    %p133 = scmp.eq.s32.totalorder %s18, 0
    %p134 = por %p132, %p133
    %s135 = ssub.s32 %s12, %s19
    %p136 = scmp.eq.s32.totalorder %s135, 0
    %s138 = sadd.s32 %s137, 1
    %s139 = scalar_select %p136, %s137, %s138
    %p142 = pneg %p136
    %p143 = scmp.eq.s32.totalorder %s12, 1
    %p144 = por %p142, %p143
    %p145 = scmp.ne.s32.totalorder %s137, %s140
    %p146 = scmp.eq.s32.totalorder %s12, 0
    %p147 = por %p145, %p146
    %p148 = scmp.ne.s32.totalorder %s137, %s140
    %p149 = scmp.eq.s32.totalorder %s17, 1
    %p150 = por %p148, %p149
    %p151 = scmp.ne.s32.totalorder %s140, %s141
    %p152 = scmp.eq.s32.totalorder %s17, 0
    %p153 = por %p151, %p152
    %p154 = scmp.ne.s32.totalorder %s140, %s141
    %p155 = scmp.eq.s32.totalorder %s18, 1
    %p156 = por %p154, %p155
    %p158 = scmp.ne.s32.totalorder %s141, %s157
    %p159 = scmp.eq.s32.totalorder %s18, 0
    %p160 = por %p158, %p159
    %p161 = scmp.le.s32.totalorder 1, %s12
    %p162 = scmp.lt.s32.totalorder %s12, 3
    %p163 = pnand %p161, %p162
    %p164 = pneg %p163
    // Predicated region
    $region9: #{unet_block_a.4} parent=5 // pred_check
      _
    $region10: #{unet_block_a.4} parent=5 // pred_check_branch
      %166 = sbr.rel (%p163) target = $region12
    $region11: #{unet_block_a.4} parent=5 // pred_region
      %s167 = ssub.s32 %s12, 1
      // Predicated region
      $region13: #{unet_block_a.4} parent=11 // pred_check
        %p168 = pneg %p59
      $region14: #{unet_block_a.4} parent=11 // pred_check_branch
        %170 = sbr.rel (%p168) target = $region16
      $region15: #{unet_block_a.4} parent=11 // pred_region
        _
      $region16: #{unet_block_a.4} parent=11 // pred_fallthru
        _
      // Predicated region
      $region17: #{unet_block_a.4} parent=11 // pred_check
        %p171 = pneg %p80
      $region18: #{unet_block_a.4} parent=11 // pred_check_branch
        %173 = sbr.rel (%p171) target = $region20
      $region19: #{unet_block_a.4} parent=11 // pred_region
        _
      $region20: #{unet_block_a.4} parent=11 // pred_fallthru
        _
      // Predicated region
      $region21: #{unet_block_a.4} parent=11 // pred_check
        %p174 = pneg %p101
      $region22: #{unet_block_a.4} parent=11 // pred_check_branch
        %176 = sbr.rel (%p174) target = $region24
      $region23: #{unet_block_a.4} parent=11 // pred_region
        _
      $region24: #{unet_block_a.4} parent=11 // pred_fallthru
        _
    $region12: #{unet_block_a.4} parent=5 // pred_fallthru
      _
    %p177 = scmp.lt.s32.totalorder %s12, 2
    // Predicated region
    $region25: #{unet_block_a.4} parent=5 // pred_check
      %p178 = pneg %p177
    $region26: #{unet_block_a.4} parent=5 // pred_check_branch
      %180 = sbr.rel (%p178) target = $region28
    $region27: #{unet_block_a.4} parent=5 // pred_region
      // Predicated region
      $region29: #{unet_block_a.4} parent=27 // pred_check
        %p181 = pneg %p32
      $region30: #{unet_block_a.4} parent=27 // pred_check_branch
        %183 = sbr.rel (%p181) target = $region32
      $region31: #{unet_block_a.4} parent=27 // pred_region
        %p184 = scmp.lt.s32.totalorder %s12, 1
        %s185 = scalar_select %p184, %s12, 1
        %s186 = smul.addr %s185, 32
        %s187 = smul.addr %s186, 4
        %s188 = scalar_lea.vmem %s0, %s187
      $region32: #{unet_block_a.4} parent=27 // pred_fallthru
        _
    $region28: #{unet_block_a.4} parent=5 // pred_fallthru
      _
    %p189 = scmp.le.s32.totalorder 1, %s12
    %p190 = scmp.lt.s32.totalorder %s12, 3
    %p191 = pnand %p189, %p190
    %p192 = pneg %p191
    // Predicated region
    $region33: #{unet_block_a.4} parent=5 // pred_check
      _
    $region34: #{unet_block_a.4} parent=5 // pred_check_branch
      %194 = sbr.rel (%p191) target = $region36
    $region35: #{unet_block_a.4} parent=5 // pred_region
      %s195 = ssub.s32 %s12, 1
      %p196 = scmp.lt.s32.totalorder %s17, 1
      %s197 = scalar_select %p196, %s17, 1
      %s198 = smul.addr %s197, 32
      %s199 = smul.addr %s198, 4
      %s200 = scalar_lea.vmem %s0, %s199
      %p201 = pneg %p38
      %p202 = pneg %p35
      %p203 = pneg %p59
      %p204 = pneg %p56
      %p205 = pneg %p80
      %p206 = pneg %p77
      %p207 = pneg %p101
      %p208 = pneg %p98
      %p209 = pneg %p127
      %p210 = pneg %p124
      %p211 = scmp.lt.s32.totalorder %s17, 1
      %s212 = scalar_select %p211, %s17, 1
      %s213 = smul.addr %s212, 32
      %s214 = smul.addr %s213, 4
      %s215 = scalar_lea.vmem %s4, %s214
      %p216 = pneg %p153
      %p217 = pneg %p150
      %p218 = scmp.lt.s32.totalorder %s17, 1
      %s219 = scalar_select %p218, %s17, 1
      %s220 = smul.addr %s219, 2
      %s221 = scalar_lea.vmem %s5, %s220
      %p222 = scmp.lt.s32.totalorder %s17, 1
      %s223 = scalar_select %p222, %s17, 1
      %s224 = smul.addr %s223, 32
      %s225 = smul.addr %s224, 4
      %s226 = scalar_lea.vmem %s0, %s225
      %p227 = scmp.lt.s32.totalorder %s17, 1
      %s228 = scalar_select %p227, %s17, 1
      %s229 = smul.addr %s228, 32
      %s230 = smul.addr %s229, 4
      %s231 = scalar_lea.vmem %s4, %s230
      %p232 = scmp.lt.s32.totalorder %s17, 1
      %s233 = scalar_select %p232, %s17, 1
      %s234 = smul.addr %s233, 2
      %s235 = scalar_lea.vmem %s5, %s234
      %v237 = vld [vmem:[%s226] sm:$0xf]
      %v238 = vld [vmem:[%s226 + $0x4] sm:$0xf]
      %v239 = vld [vmem:[%s226 + $0x8] sm:$0xf]
      %v240 = vld [vmem:[%s226 + $0xc] sm:$0xf]
      %v241 = vld [vmem:[%s226 + $0x10] sm:$0xf]
      %v242 = vld [vmem:[%s226 + $0x14] sm:$0xf]
      %v243 = vld [vmem:[%s226 + $0x18] sm:$0xf]
      %v244 = vld [vmem:[%s226 + $0x1c] sm:$0xf]
      %v245 = vld [vmem:[%s226 + $0x20] sm:$0xf]
      %v246 = vld [vmem:[%s226 + $0x24] sm:$0xf]
      %v247 = vld [vmem:[%s226 + $0x28] sm:$0xf]
      %v248 = vld [vmem:[%s226 + $0x2c] sm:$0xf]
      %v249 = vld [vmem:[%s226 + $0x30] sm:$0xf]
      %v250 = vld [vmem:[%s226 + $0x34] sm:$0xf]
      %v251 = vld [vmem:[%s226 + $0x38] sm:$0xf]
      %v252 = vld [vmem:[%s226 + $0x3c] sm:$0xf]
      %v253 = vld [vmem:[%s226 + $0x40] sm:$0xf]
      %v254 = vld [vmem:[%s226 + $0x44] sm:$0xf]
      %v255 = vld [vmem:[%s226 + $0x48] sm:$0xf]
      %v256 = vld [vmem:[%s226 + $0x4c] sm:$0xf]
      %v257 = vld [vmem:[%s226 + $0x50] sm:$0xf]
      %v258 = vld [vmem:[%s226 + $0x54] sm:$0xf]
      %v259 = vld [vmem:[%s226 + $0x58] sm:$0xf]
      %v260 = vld [vmem:[%s226 + $0x5c] sm:$0xf]
      %v261 = vld [vmem:[%s226 + $0x60] sm:$0xf]
      %v262 = vld [vmem:[%s226 + $0x64] sm:$0xf]
      %v263 = vld [vmem:[%s226 + $0x68] sm:$0xf]
      %v264 = vld [vmem:[%s226 + $0x6c] sm:$0xf]
      %v265 = vld [vmem:[%s226 + $0x70] sm:$0xf]
      %v266 = vld [vmem:[%s226 + $0x74] sm:$0xf]
      %v267 = vld [vmem:[%s226 + $0x78] sm:$0xf]
      %v268 = vld [vmem:[%s226 + $0x7c] sm:$0xf]
      %v269 = vunpack.c.l.bf16 %v237
      %v270 = vunpack.c.l.bf16 %v238
      %v271 = vunpack.c.l.bf16 %v239
      %v272 = vunpack.c.l.bf16 %v240
      %v273 = vunpack.c.l.bf16 %v241
      %v274 = vunpack.c.l.bf16 %v242
      %v275 = vunpack.c.l.bf16 %v243
      %v276 = vunpack.c.l.bf16 %v244
      %v277 = vunpack.c.l.bf16 %v245
      %v278 = vunpack.c.l.bf16 %v246
      %v279 = vunpack.c.l.bf16 %v247
      %v280 = vunpack.c.l.bf16 %v248
      %v281 = vunpack.c.l.bf16 %v249
      %v282 = vunpack.c.l.bf16 %v250
      %v283 = vunpack.c.l.bf16 %v251
      %v284 = vunpack.c.l.bf16 %v252
      %v285 = vunpack.c.l.bf16 %v253
      %v286 = vunpack.c.l.bf16 %v254
      %v287 = vunpack.c.l.bf16 %v255
      %v288 = vunpack.c.l.bf16 %v256
      %v289 = vunpack.c.l.bf16 %v257
      %v290 = vunpack.c.l.bf16 %v258
      %v291 = vunpack.c.l.bf16 %v259
      %v292 = vunpack.c.l.bf16 %v260
      %v293 = vunpack.c.l.bf16 %v261
      %v294 = vunpack.c.l.bf16 %v262
      %v295 = vunpack.c.l.bf16 %v263
      %v296 = vunpack.c.l.bf16 %v264
      %v297 = vunpack.c.l.bf16 %v265
      %v298 = vunpack.c.l.bf16 %v266
      %v299 = vunpack.c.l.bf16 %v267
      %v300 = vunpack.c.l.bf16 %v268
      %v301 = vld [vmem:[%s2] sm:$0x1]
      %v303 = vlaneseq
      %v304 = vshrl.u32 %v303, 7
      %v305 = vsub.s32 0, %v304
      %v306 = vrot.slane %v301, %v305
      %v308 = vmul.f32 %v269, %v306
      %v309 = vmul.f32 %v270, %v306
      %v310 = vmul.f32 %v271, %v306
      %v311 = vmul.f32 %v272, %v306
      %v312 = vmul.f32 %v273, %v306
      %v313 = vmul.f32 %v274, %v306
      %v314 = vmul.f32 %v275, %v306
      %v315 = vmul.f32 %v276, %v306
      %v316 = vmul.f32 %v277, %v306
      %v317 = vmul.f32 %v278, %v306
      %v318 = vmul.f32 %v279, %v306
      %v319 = vmul.f32 %v280, %v306
      %v320 = vmul.f32 %v281, %v306
      %v321 = vmul.f32 %v282, %v306
      %v322 = vmul.f32 %v283, %v306
      %v323 = vmul.f32 %v284, %v306
      %v324 = vmul.f32 %v285, %v306
      %v325 = vmul.f32 %v286, %v306
      %v326 = vmul.f32 %v287, %v306
      %v327 = vmul.f32 %v288, %v306
      %v328 = vmul.f32 %v289, %v306
      %v329 = vmul.f32 %v290, %v306
      %v330 = vmul.f32 %v291, %v306
      %v331 = vmul.f32 %v292, %v306
      %v332 = vmul.f32 %v293, %v306
      %v333 = vmul.f32 %v294, %v306
      %v334 = vmul.f32 %v295, %v306
      %v335 = vmul.f32 %v296, %v306
      %v336 = vmul.f32 %v297, %v306
      %v337 = vmul.f32 %v298, %v306
      %v338 = vmul.f32 %v299, %v306
      %v339 = vmul.f32 %v300, %v306
      %v340 = vld [vmem:[%s3] sm:$0x1]
      %v342 = vlaneseq
      %v343 = vshrl.u32 %v342, 7
      %v344 = vsub.s32 0, %v343
      %v345 = vrot.slane %v340, %v344
      %v347 = vadd.f32 %v308, %v345
      %v348 = vadd.f32 %v309, %v345
      %v349 = vadd.f32 %v310, %v345
      %v350 = vadd.f32 %v311, %v345
      %v351 = vadd.f32 %v312, %v345
      %v352 = vadd.f32 %v313, %v345
      %v353 = vadd.f32 %v314, %v345
      %v354 = vadd.f32 %v315, %v345
      %v355 = vadd.f32 %v316, %v345
      %v356 = vadd.f32 %v317, %v345
      %v357 = vadd.f32 %v318, %v345
      %v358 = vadd.f32 %v319, %v345
      %v359 = vadd.f32 %v320, %v345
      %v360 = vadd.f32 %v321, %v345
      %v361 = vadd.f32 %v322, %v345
      %v362 = vadd.f32 %v323, %v345
      %v363 = vadd.f32 %v324, %v345
      %v364 = vadd.f32 %v325, %v345
      %v365 = vadd.f32 %v326, %v345
      %v366 = vadd.f32 %v327, %v345
      %v367 = vadd.f32 %v328, %v345
      %v368 = vadd.f32 %v329, %v345
      %v369 = vadd.f32 %v330, %v345
      %v370 = vadd.f32 %v331, %v345
      %v371 = vadd.f32 %v332, %v345
      %v372 = vadd.f32 %v333, %v345
      %v373 = vadd.f32 %v334, %v345
      %v374 = vadd.f32 %v335, %v345
      %v375 = vadd.f32 %v336, %v345
      %v376 = vadd.f32 %v337, %v345
      %v377 = vadd.f32 %v338, %v345
      %v378 = vadd.f32 %v339, %v345
      %v379 = vmax.f32 %v347, 0.0
      %v380 = vmax.f32 %v348, 0.0
      %v381 = vmax.f32 %v349, 0.0
      %v382 = vmax.f32 %v350, 0.0
      %v383 = vmax.f32 %v351, 0.0
      %v384 = vmax.f32 %v352, 0.0
      %v385 = vmax.f32 %v353, 0.0
      %v386 = vmax.f32 %v354, 0.0
      %v387 = vmax.f32 %v355, 0.0
      %v388 = vmax.f32 %v356, 0.0
      %v389 = vmax.f32 %v357, 0.0
      %v390 = vmax.f32 %v358, 0.0
      %v391 = vmax.f32 %v359, 0.0
      %v392 = vmax.f32 %v360, 0.0
      %v393 = vmax.f32 %v361, 0.0
      %v394 = vmax.f32 %v362, 0.0
      %v395 = vmax.f32 %v363, 0.0
      %v396 = vmax.f32 %v364, 0.0
      %v397 = vmax.f32 %v365, 0.0
      %v398 = vmax.f32 %v366, 0.0
      %v399 = vmax.f32 %v367, 0.0
      %v400 = vmax.f32 %v368, 0.0
      %v401 = vmax.f32 %v369, 0.0
      %v402 = vmax.f32 %v370, 0.0
      %v403 = vmax.f32 %v371, 0.0
      %v404 = vmax.f32 %v372, 0.0
      %v405 = vmax.f32 %v373, 0.0
      %v406 = vmax.f32 %v374, 0.0
      %v407 = vmax.f32 %v375, 0.0
      %v408 = vmax.f32 %v376, 0.0
      %v409 = vmax.f32 %v377, 0.0
      %v410 = vmax.f32 %v378, 0.0
      %411 = vst [vmem:[#allocation2] sm:$0xf] 0
      %412 = vst [vmem:[#allocation2 + $0x4] sm:$0xf] 0
      %413 = vst [vmem:[#allocation2 + $0x8] sm:$0x1] 0
      %s414 = scalar_lea.vmem [#allocation2], 204
      %415 = vst [vmem:[%s414] sm:$0xf] 0
      %416 = vst [vmem:[%s414 + $0x4] sm:$0xf] 0
      %417 = vst [vmem:[%s414 + $0x8] sm:$0x1] 0
      %vm418 = vcmask 1040384
      %vm419 = vsmask.f32 256
      %vm420 = vmand %vm418, %vm419
      %v421 = vld [vmem:[#allocation2] sm:$0x1]
      %v422 = vsel %vm420, 0, %v421
      %423 = vst [vmem:[#allocation2] sm:$0x1] %v422
      %v424 = vld [vmem:[#allocation2 + $0xc] sm:$0x1]
      %v425 = vsel %vm420, 0, %v424
      %426 = vst [vmem:[#allocation2 + $0xc] sm:$0x1] %v425
      %v427 = vld [vmem:[#allocation2 + $0x18] sm:$0x1]
      %v428 = vsel %vm420, 0, %v427
      %429 = vst [vmem:[#allocation2 + $0x18] sm:$0x1] %v428
      %v430 = vld [vmem:[#allocation2 + $0x24] sm:$0x1]
      %v431 = vsel %vm420, 0, %v430
      %432 = vst [vmem:[#allocation2 + $0x24] sm:$0x1] %v431
      %v433 = vld [vmem:[#allocation2 + $0x30] sm:$0x1]
      %v434 = vsel %vm420, 0, %v433
      %435 = vst [vmem:[#allocation2 + $0x30] sm:$0x1] %v434
      %v436 = vld [vmem:[#allocation2 + $0x3c] sm:$0x1]
      %v437 = vsel %vm420, 0, %v436
      %438 = vst [vmem:[#allocation2 + $0x3c] sm:$0x1] %v437
      %v439 = vld [vmem:[#allocation2 + $0x48] sm:$0x1]
      %v440 = vsel %vm420, 0, %v439
      %441 = vst [vmem:[#allocation2 + $0x48] sm:$0x1] %v440
      %v442 = vld [vmem:[#allocation2 + $0x54] sm:$0x1]
      %v443 = vsel %vm420, 0, %v442
      %444 = vst [vmem:[#allocation2 + $0x54] sm:$0x1] %v443
      %v445 = vld [vmem:[#allocation2 + $0x60] sm:$0x1]
      %v446 = vsel %vm420, 0, %v445
      %447 = vst [vmem:[#allocation2 + $0x60] sm:$0x1] %v446
      %v448 = vld [vmem:[#allocation2 + $0x6c] sm:$0x1]
      %v449 = vsel %vm420, 0, %v448
      %450 = vst [vmem:[#allocation2 + $0x6c] sm:$0x1] %v449
      %v451 = vld [vmem:[#allocation2 + $0x78] sm:$0x1]
      %v452 = vsel %vm420, 0, %v451
      %453 = vst [vmem:[#allocation2 + $0x78] sm:$0x1] %v452
      %v454 = vld [vmem:[#allocation2 + $0x84] sm:$0x1]
      %v455 = vsel %vm420, 0, %v454
      %456 = vst [vmem:[#allocation2 + $0x84] sm:$0x1] %v455
      %v457 = vld [vmem:[#allocation2 + $0x90] sm:$0x1]
      %v458 = vsel %vm420, 0, %v457
      %459 = vst [vmem:[#allocation2 + $0x90] sm:$0x1] %v458
      %v460 = vld [vmem:[#allocation2 + $0x9c] sm:$0x1]
      %v461 = vsel %vm420, 0, %v460
      %462 = vst [vmem:[#allocation2 + $0x9c] sm:$0x1] %v461
      %v463 = vld [vmem:[#allocation2 + $0xa8] sm:$0x1]
      %v464 = vsel %vm420, 0, %v463
      %465 = vst [vmem:[#allocation2 + $0xa8] sm:$0x1] %v464
      %v466 = vld [vmem:[#allocation2 + $0xb4] sm:$0x1]
      %v467 = vsel %vm420, 0, %v466
      %468 = vst [vmem:[#allocation2 + $0xb4] sm:$0x1] %v467
      %v469 = vld [vmem:[#allocation2 + $0xc0] sm:$0x1]
      %v470 = vsel %vm420, 0, %v469
      %471 = vst [vmem:[#allocation2 + $0xc0] sm:$0x1] %v470
      %v472 = vld [vmem:[#allocation2 + $0xcc] sm:$0x1]
      %v473 = vsel %vm420, 0, %v472
      %474 = vst [vmem:[#allocation2 + $0xcc] sm:$0x1] %v473
      %vm475 = vsmask.f32 7938
      %vm476 = vmand %vm418, %vm475
      %v477 = vld [vmem:[#allocation2 + $0x8] sm:$0x1]
      %v478 = vsel %vm476, 0, %v477
      %479 = vst [vmem:[#allocation2 + $0x8] sm:$0x1] %v478
      %v480 = vld [vmem:[#allocation2 + $0x14] sm:$0x1]
      %v481 = vsel %vm476, 0, %v480
      %482 = vst [vmem:[#allocation2 + $0x14] sm:$0x1] %v481
      %v483 = vld [vmem:[#allocation2 + $0x20] sm:$0x1]
      %v484 = vsel %vm476, 0, %v483
      %485 = vst [vmem:[#allocation2 + $0x20] sm:$0x1] %v484
      %v486 = vld [vmem:[#allocation2 + $0x2c] sm:$0x1]
      %v487 = vsel %vm476, 0, %v486
      %488 = vst [vmem:[#allocation2 + $0x2c] sm:$0x1] %v487
      %v489 = vld [vmem:[#allocation2 + $0x38] sm:$0x1]
      %v490 = vsel %vm476, 0, %v489
      %491 = vst [vmem:[#allocation2 + $0x38] sm:$0x1] %v490
      %v492 = vld [vmem:[#allocation2 + $0x44] sm:$0x1]
      %v493 = vsel %vm476, 0, %v492
      %494 = vst [vmem:[#allocation2 + $0x44] sm:$0x1] %v493
      %v495 = vld [vmem:[#allocation2 + $0x50] sm:$0x1]
      %v496 = vsel %vm476, 0, %v495
      %497 = vst [vmem:[#allocation2 + $0x50] sm:$0x1] %v496
      %v498 = vld [vmem:[#allocation2 + $0x5c] sm:$0x1]
      %v499 = vsel %vm476, 0, %v498
      %500 = vst [vmem:[#allocation2 + $0x5c] sm:$0x1] %v499
      %v501 = vld [vmem:[#allocation2 + $0x68] sm:$0x1]
      %v502 = vsel %vm476, 0, %v501
      %503 = vst [vmem:[#allocation2 + $0x68] sm:$0x1] %v502
      %v504 = vld [vmem:[#allocation2 + $0x74] sm:$0x1]
      %v505 = vsel %vm476, 0, %v504
      %506 = vst [vmem:[#allocation2 + $0x74] sm:$0x1] %v505
      %v507 = vld [vmem:[#allocation2 + $0x80] sm:$0x1]
      %v508 = vsel %vm476, 0, %v507
      %509 = vst [vmem:[#allocation2 + $0x80] sm:$0x1] %v508
      %v510 = vld [vmem:[#allocation2 + $0x8c] sm:$0x1]
      %v511 = vsel %vm476, 0, %v510
      %512 = vst [vmem:[#allocation2 + $0x8c] sm:$0x1] %v511
      %v513 = vld [vmem:[#allocation2 + $0x98] sm:$0x1]
      %v514 = vsel %vm476, 0, %v513
      %515 = vst [vmem:[#allocation2 + $0x98] sm:$0x1] %v514
      %v516 = vld [vmem:[#allocation2 + $0xa4] sm:$0x1]
      %v517 = vsel %vm476, 0, %v516
      %518 = vst [vmem:[#allocation2 + $0xa4] sm:$0x1] %v517
      %v519 = vld [vmem:[#allocation2 + $0xb0] sm:$0x1]
      %v520 = vsel %vm476, 0, %v519
      %521 = vst [vmem:[#allocation2 + $0xb0] sm:$0x1] %v520
      %v522 = vld [vmem:[#allocation2 + $0xbc] sm:$0x1]
      %v523 = vsel %vm476, 0, %v522
      %524 = vst [vmem:[#allocation2 + $0xbc] sm:$0x1] %v523
      %v525 = vld [vmem:[#allocation2 + $0xc8] sm:$0x1]
      %v526 = vsel %vm476, 0, %v525
      %527 = vst [vmem:[#allocation2 + $0xc8] sm:$0x1] %v526
      %v528 = vld [vmem:[#allocation2 + $0xd4] sm:$0x1]
      %v529 = vsel %vm476, 0, %v528
      %530 = vst [vmem:[#allocation2 + $0xd4] sm:$0x1] %v529
      %v531 = vpack.c.bf16 %v380, %v379
      %v532 = vpack.c.bf16 %v382, %v381
      %v533 = vpack.c.bf16 %v384, %v383
      %v534 = vpack.c.bf16 %v386, %v385
      %v535 = vpack.c.bf16 %v388, %v387
      %v536 = vpack.c.bf16 %v390, %v389
      %v537 = vpack.c.bf16 %v392, %v391
      %v538 = vpack.c.bf16 %v394, %v393
      %v539 = vpack.c.bf16 %v396, %v395
      %v540 = vpack.c.bf16 %v398, %v397
      %v541 = vpack.c.bf16 %v400, %v399
      %v542 = vpack.c.bf16 %v402, %v401
      %v543 = vpack.c.bf16 %v404, %v403
      %v544 = vpack.c.bf16 %v406, %v405
      %v545 = vpack.c.bf16 %v408, %v407
      %v546 = vpack.c.bf16 %v410, %v409
      %v563 = vunpack.c.l.b16 %v531
      %v564 = vunpack.c.h.b16 %v531
      %v565 = vunpack.c.l.b16 %v532
      %v566 = vunpack.c.h.b16 %v532
      %v567 = vunpack.c.l.b16 %v533
      %v568 = vunpack.c.h.b16 %v533
      %v569 = vunpack.c.l.b16 %v534
      %v570 = vunpack.c.h.b16 %v534
      %v571 = vunpack.c.l.b16 %v535
      %v572 = vunpack.c.h.b16 %v535
      %v573 = vunpack.c.l.b16 %v536
      %v574 = vunpack.c.h.b16 %v536
      %v575 = vunpack.c.l.b16 %v537
      %v576 = vunpack.c.h.b16 %v537
      %v577 = vunpack.c.l.b16 %v538
      %v578 = vunpack.c.h.b16 %v538
      %v579 = vunpack.c.l.b16 %v539
      %v580 = vunpack.c.h.b16 %v539
      %v581 = vunpack.c.l.b16 %v540
      %v582 = vunpack.c.h.b16 %v540
      %v583 = vunpack.c.l.b16 %v541
      %v584 = vunpack.c.h.b16 %v541
      %v585 = vunpack.c.l.b16 %v542
      %v586 = vunpack.c.h.b16 %v542
      %v587 = vunpack.c.l.b16 %v543
      %v588 = vunpack.c.h.b16 %v543
      %v589 = vunpack.c.l.b16 %v544
      %v590 = vunpack.c.h.b16 %v544
      %v591 = vunpack.c.l.b16 %v545
      %v592 = vunpack.c.h.b16 %v545
      %v593 = vunpack.c.l.b16 %v546
      %v594 = vunpack.c.h.b16 %v546
      %v595 = vpack.c.b16 %v563, %v563
      %v596 = vpack.c.b16 %v564, %v564
      %v597 = vpack.c.b16 %v565, %v565
      %v598 = vpack.c.b16 %v566, %v566
      %v599 = vpack.c.b16 %v567, %v567
      %v600 = vpack.c.b16 %v568, %v568
      %v601 = vpack.c.b16 %v569, %v569
      %v602 = vpack.c.b16 %v570, %v570
      %v603 = vpack.c.b16 %v571, %v571
      %v604 = vpack.c.b16 %v572, %v572
      %v605 = vpack.c.b16 %v573, %v573
      %v606 = vpack.c.b16 %v574, %v574
      %v607 = vpack.c.b16 %v575, %v575
      %v608 = vpack.c.b16 %v576, %v576
      %v609 = vpack.c.b16 %v577, %v577
      %v610 = vpack.c.b16 %v578, %v578
      %v611 = vpack.c.b16 %v579, %v579
      %v612 = vpack.c.b16 %v580, %v580
      %v613 = vpack.c.b16 %v581, %v581
      %v614 = vpack.c.b16 %v582, %v582
      %v615 = vpack.c.b16 %v583, %v583
      %v616 = vpack.c.b16 %v584, %v584
      %v617 = vpack.c.b16 %v585, %v585
      %v618 = vpack.c.b16 %v586, %v586
      %v619 = vpack.c.b16 %v587, %v587
      %v620 = vpack.c.b16 %v588, %v588
      %v621 = vpack.c.b16 %v589, %v589
      %v622 = vpack.c.b16 %v590, %v590
      %v623 = vpack.c.b16 %v591, %v591
      %v624 = vpack.c.b16 %v592, %v592
      %v625 = vpack.c.b16 %v593, %v593
      %v626 = vpack.c.b16 %v594, %v594
      %vm627 = vsmask.f32 4368
      %vm628 = vmor %vm419, %vm627
      %v630 = vshrl.u32 %v595, 16
      %v632 = vrot.slane %v630, 7
      %v633 = vshll.u32 %v595, 16
      %v635 = vor.u32 %v632, %v633
      %v636 = vrot.slane %v632, 4
      %v638 = vshrl.u32 %v596, 16
      %v640 = vrot.slane %v638, 7
      %v641 = vshll.u32 %v596, 16
      %v643 = vor.u32 %v640, %v641
      %v644 = vsel %vm628, %v636, %v643
      %v645 = vrot.slane %v640, 4
      %v647 = vshrl.u32 %v597, 16
      %v649 = vrot.slane %v647, 7
      %v650 = vshll.u32 %v597, 16
      %v652 = vor.u32 %v649, %v650
      %v653 = vrot.slane %v649, 4
      %v655 = vshrl.u32 %v598, 16
      %v657 = vrot.slane %v655, 7
      %v658 = vshll.u32 %v598, 16
      %v660 = vor.u32 %v657, %v658
      %v661 = vsel %vm628, %v653, %v660
      %v662 = vrot.slane %v657, 4
      %v664 = vshrl.u32 %v599, 16
      %v666 = vrot.slane %v664, 7
      %v667 = vshll.u32 %v599, 16
      %v669 = vor.u32 %v666, %v667
      %v670 = vrot.slane %v666, 4
      %v672 = vshrl.u32 %v600, 16
      %v674 = vrot.slane %v672, 7
      %v675 = vshll.u32 %v600, 16
      %v677 = vor.u32 %v674, %v675
      %v678 = vsel %vm628, %v670, %v677
      %v679 = vrot.slane %v674, 4
      %v681 = vshrl.u32 %v601, 16
      %v683 = vrot.slane %v681, 7
      %v684 = vshll.u32 %v601, 16
      %v686 = vor.u32 %v683, %v684
      %v687 = vrot.slane %v683, 4
      %v689 = vshrl.u32 %v602, 16
      %v691 = vrot.slane %v689, 7
      %v692 = vshll.u32 %v602, 16
      %v694 = vor.u32 %v691, %v692
      %v695 = vsel %vm628, %v687, %v694
      %v696 = vrot.slane %v691, 4
      %v698 = vshrl.u32 %v603, 16
      %v700 = vrot.slane %v698, 7
      %v701 = vshll.u32 %v603, 16
      %v703 = vor.u32 %v700, %v701
      %v704 = vrot.slane %v700, 4
      %v706 = vshrl.u32 %v604, 16
      %v708 = vrot.slane %v706, 7
      %v709 = vshll.u32 %v604, 16
      %v711 = vor.u32 %v708, %v709
      %v712 = vsel %vm628, %v704, %v711
      %v713 = vrot.slane %v708, 4
      %v715 = vshrl.u32 %v605, 16
      %v717 = vrot.slane %v715, 7
      %v718 = vshll.u32 %v605, 16
      %v720 = vor.u32 %v717, %v718
      %v721 = vrot.slane %v717, 4
      %v723 = vshrl.u32 %v606, 16
      %v725 = vrot.slane %v723, 7
      %v726 = vshll.u32 %v606, 16
      %v728 = vor.u32 %v725, %v726
      %v729 = vsel %vm628, %v721, %v728
      %v730 = vrot.slane %v725, 4
      %v732 = vshrl.u32 %v607, 16
      %v734 = vrot.slane %v732, 7
      %v735 = vshll.u32 %v607, 16
      %v737 = vor.u32 %v734, %v735
      %v738 = vrot.slane %v734, 4
      %v740 = vshrl.u32 %v608, 16
      %v742 = vrot.slane %v740, 7
      %v743 = vshll.u32 %v608, 16
      %v745 = vor.u32 %v742, %v743
      %v746 = vsel %vm628, %v738, %v745
      %v747 = vrot.slane %v742, 4
      %v749 = vshrl.u32 %v609, 16
      %v751 = vrot.slane %v749, 7
      %v752 = vshll.u32 %v609, 16
      %v754 = vor.u32 %v751, %v752
      %v755 = vrot.slane %v751, 4
      %v757 = vshrl.u32 %v610, 16
      %v759 = vrot.slane %v757, 7
      %v760 = vshll.u32 %v610, 16
      %v762 = vor.u32 %v759, %v760
      %v763 = vsel %vm628, %v755, %v762
      %v764 = vrot.slane %v759, 4
      %v766 = vshrl.u32 %v611, 16
      %v768 = vrot.slane %v766, 7
      %v769 = vshll.u32 %v611, 16
      %v771 = vor.u32 %v768, %v769
      %v772 = vrot.slane %v768, 4
      %v774 = vshrl.u32 %v612, 16
      %v776 = vrot.slane %v774, 7
      %v777 = vshll.u32 %v612, 16
      %v779 = vor.u32 %v776, %v777
      %v780 = vsel %vm628, %v772, %v779
      %v781 = vrot.slane %v776, 4
      %v783 = vshrl.u32 %v613, 16
      %v785 = vrot.slane %v783, 7
      %v786 = vshll.u32 %v613, 16
      %v788 = vor.u32 %v785, %v786
      %v789 = vrot.slane %v785, 4
      %v791 = vshrl.u32 %v614, 16
      %v793 = vrot.slane %v791, 7
      %v794 = vshll.u32 %v614, 16
      %v796 = vor.u32 %v793, %v794
      %v797 = vsel %vm628, %v789, %v796
      %v798 = vrot.slane %v793, 4
      %v800 = vshrl.u32 %v615, 16
      %v802 = vrot.slane %v800, 7
      %v803 = vshll.u32 %v615, 16
      %v805 = vor.u32 %v802, %v803
      %v806 = vrot.slane %v802, 4
      %v808 = vshrl.u32 %v616, 16
      %v810 = vrot.slane %v808, 7
      %v811 = vshll.u32 %v616, 16
      %v813 = vor.u32 %v810, %v811
      %v814 = vsel %vm628, %v806, %v813
      %v815 = vrot.slane %v810, 4
      %v817 = vshrl.u32 %v617, 16
      %v819 = vrot.slane %v817, 7
      %v820 = vshll.u32 %v617, 16
      %v822 = vor.u32 %v819, %v820
      %v823 = vrot.slane %v819, 4
      %v825 = vshrl.u32 %v618, 16
      %v827 = vrot.slane %v825, 7
      %v828 = vshll.u32 %v618, 16
      %v830 = vor.u32 %v827, %v828
      %v831 = vsel %vm628, %v823, %v830
      %v832 = vrot.slane %v827, 4
      %v834 = vshrl.u32 %v619, 16
      %v836 = vrot.slane %v834, 7
      %v837 = vshll.u32 %v619, 16
      %v839 = vor.u32 %v836, %v837
      %v840 = vrot.slane %v836, 4
      %v842 = vshrl.u32 %v620, 16
      %v844 = vrot.slane %v842, 7
      %v845 = vshll.u32 %v620, 16
      %v847 = vor.u32 %v844, %v845
      %v848 = vsel %vm628, %v840, %v847
      %v849 = vrot.slane %v844, 4
      %v851 = vshrl.u32 %v621, 16
      %v853 = vrot.slane %v851, 7
      %v854 = vshll.u32 %v621, 16
      %v856 = vor.u32 %v853, %v854
      %v857 = vrot.slane %v853, 4
      %v859 = vshrl.u32 %v622, 16
      %v861 = vrot.slane %v859, 7
      %v862 = vshll.u32 %v622, 16
      %v864 = vor.u32 %v861, %v862
      %v865 = vsel %vm628, %v857, %v864
      %v866 = vrot.slane %v861, 4
      %v868 = vshrl.u32 %v623, 16
      %v870 = vrot.slane %v868, 7
      %v871 = vshll.u32 %v623, 16
      %v873 = vor.u32 %v870, %v871
      %v874 = vrot.slane %v870, 4
      %v876 = vshrl.u32 %v624, 16
      %v878 = vrot.slane %v876, 7
      %v879 = vshll.u32 %v624, 16
      %v881 = vor.u32 %v878, %v879
      %v882 = vsel %vm628, %v874, %v881
      %v883 = vrot.slane %v878, 4
      %v885 = vshrl.u32 %v625, 16
      %v887 = vrot.slane %v885, 7
      %v888 = vshll.u32 %v625, 16
      %v890 = vor.u32 %v887, %v888
      %v891 = vrot.slane %v887, 4
      %v893 = vshrl.u32 %v626, 16
      %v895 = vrot.slane %v893, 7
      %v896 = vshll.u32 %v626, 16
      %v898 = vor.u32 %v895, %v896
      %v899 = vsel %vm628, %v891, %v898
      %v900 = vrot.slane %v895, 4
      %s949 = scalar_lea.vmem [#allocation2], 12
      %vm950 = vcmask 1043456
      %vm951 = vmand %vm950, %vm475
      %v952 = vld [vmem:[%s949] sm:$0xf]
      %v953 = vsel %vm951, %v635, %v952
      %954 = vst [vmem:[%s949] sm:$0xf] %v953
      %955 = vst [vmem:[%s949 + $0x4] sm:$0xf] %v644
      %v956 = vld [vmem:[%s949 + $0x8] sm:$0x1]
      %v957 = vsel %vm420, %v645, %v956
      %958 = vst [vmem:[%s949 + $0x8] sm:$0x1] %v957
      %v959 = vld [vmem:[%s949 + $0xc] sm:$0xf]
      %v960 = vsel %vm951, %v652, %v959
      %961 = vst [vmem:[%s949 + $0xc] sm:$0xf] %v960
      %962 = vst [vmem:[%s949 + $0x10] sm:$0xf] %v661
      %v963 = vld [vmem:[%s949 + $0x14] sm:$0x1]
      %v964 = vsel %vm420, %v662, %v963
      %965 = vst [vmem:[%s949 + $0x14] sm:$0x1] %v964
      %v966 = vld [vmem:[%s949 + $0x18] sm:$0xf]
      %v967 = vsel %vm951, %v669, %v966
      %968 = vst [vmem:[%s949 + $0x18] sm:$0xf] %v967
      %969 = vst [vmem:[%s949 + $0x1c] sm:$0xf] %v678
      %v970 = vld [vmem:[%s949 + $0x20] sm:$0x1]
      %v971 = vsel %vm420, %v679, %v970
      %972 = vst [vmem:[%s949 + $0x20] sm:$0x1] %v971
      %v973 = vld [vmem:[%s949 + $0x24] sm:$0xf]
      %v974 = vsel %vm951, %v686, %v973
      %975 = vst [vmem:[%s949 + $0x24] sm:$0xf] %v974
      %976 = vst [vmem:[%s949 + $0x28] sm:$0xf] %v695
      %v977 = vld [vmem:[%s949 + $0x2c] sm:$0x1]
      %v978 = vsel %vm420, %v696, %v977
      %979 = vst [vmem:[%s949 + $0x2c] sm:$0x1] %v978
      %v980 = vld [vmem:[%s949 + $0x30] sm:$0xf]
      %v981 = vsel %vm951, %v703, %v980
      %982 = vst [vmem:[%s949 + $0x30] sm:$0xf] %v981
      %983 = vst [vmem:[%s949 + $0x34] sm:$0xf] %v712
      %v984 = vld [vmem:[%s949 + $0x38] sm:$0x1]
      %v985 = vsel %vm420, %v713, %v984
      %986 = vst [vmem:[%s949 + $0x38] sm:$0x1] %v985
      %v987 = vld [vmem:[%s949 + $0x3c] sm:$0xf]
      %v988 = vsel %vm951, %v720, %v987
      %989 = vst [vmem:[%s949 + $0x3c] sm:$0xf] %v988
      %990 = vst [vmem:[%s949 + $0x40] sm:$0xf] %v729
      %v991 = vld [vmem:[%s949 + $0x44] sm:$0x1]
      %v992 = vsel %vm420, %v730, %v991
      %993 = vst [vmem:[%s949 + $0x44] sm:$0x1] %v992
      %v994 = vld [vmem:[%s949 + $0x48] sm:$0xf]
      %v995 = vsel %vm951, %v737, %v994
      %996 = vst [vmem:[%s949 + $0x48] sm:$0xf] %v995
      %997 = vst [vmem:[%s949 + $0x4c] sm:$0xf] %v746
      %v998 = vld [vmem:[%s949 + $0x50] sm:$0x1]
      %v999 = vsel %vm420, %v747, %v998
      %1000 = vst [vmem:[%s949 + $0x50] sm:$0x1] %v999
      %v1001 = vld [vmem:[%s949 + $0x54] sm:$0xf]
      %v1002 = vsel %vm951, %v754, %v1001
      %1003 = vst [vmem:[%s949 + $0x54] sm:$0xf] %v1002
      %1004 = vst [vmem:[%s949 + $0x58] sm:$0xf] %v763
      %v1005 = vld [vmem:[%s949 + $0x5c] sm:$0x1]
      %v1006 = vsel %vm420, %v764, %v1005
      %1007 = vst [vmem:[%s949 + $0x5c] sm:$0x1] %v1006
      %v1008 = vld [vmem:[%s949 + $0x60] sm:$0xf]
      %v1009 = vsel %vm951, %v771, %v1008
      %1010 = vst [vmem:[%s949 + $0x60] sm:$0xf] %v1009
      %1011 = vst [vmem:[%s949 + $0x64] sm:$0xf] %v780
      %v1012 = vld [vmem:[%s949 + $0x68] sm:$0x1]
      %v1013 = vsel %vm420, %v781, %v1012
      %1014 = vst [vmem:[%s949 + $0x68] sm:$0x1] %v1013
      %v1015 = vld [vmem:[%s949 + $0x6c] sm:$0xf]
      %v1016 = vsel %vm951, %v788, %v1015
      %1017 = vst [vmem:[%s949 + $0x6c] sm:$0xf] %v1016
      %1018 = vst [vmem:[%s949 + $0x70] sm:$0xf] %v797
      %v1019 = vld [vmem:[%s949 + $0x74] sm:$0x1]
      %v1020 = vsel %vm420, %v798, %v1019
      %1021 = vst [vmem:[%s949 + $0x74] sm:$0x1] %v1020
      %v1022 = vld [vmem:[%s949 + $0x78] sm:$0xf]
      %v1023 = vsel %vm951, %v805, %v1022
      %1024 = vst [vmem:[%s949 + $0x78] sm:$0xf] %v1023
      %1025 = vst [vmem:[%s949 + $0x7c] sm:$0xf] %v814
      %v1026 = vld [vmem:[%s949 + $0x80] sm:$0x1]
      %v1027 = vsel %vm420, %v815, %v1026
      %1028 = vst [vmem:[%s949 + $0x80] sm:$0x1] %v1027
      %v1029 = vld [vmem:[%s949 + $0x84] sm:$0xf]
      %v1030 = vsel %vm951, %v822, %v1029
      %1031 = vst [vmem:[%s949 + $0x84] sm:$0xf] %v1030
      %1032 = vst [vmem:[%s949 + $0x88] sm:$0xf] %v831
      %v1033 = vld [vmem:[%s949 + $0x8c] sm:$0x1]
      %v1034 = vsel %vm420, %v832, %v1033
      %1035 = vst [vmem:[%s949 + $0x8c] sm:$0x1] %v1034
      %v1036 = vld [vmem:[%s949 + $0x90] sm:$0xf]
      %v1037 = vsel %vm951, %v839, %v1036
      %1038 = vst [vmem:[%s949 + $0x90] sm:$0xf] %v1037
      %1039 = vst [vmem:[%s949 + $0x94] sm:$0xf] %v848
      %v1040 = vld [vmem:[%s949 + $0x98] sm:$0x1]
      %v1041 = vsel %vm420, %v849, %v1040
      %1042 = vst [vmem:[%s949 + $0x98] sm:$0x1] %v1041
      %v1043 = vld [vmem:[%s949 + $0x9c] sm:$0xf]
      %v1044 = vsel %vm951, %v856, %v1043
      %1045 = vst [vmem:[%s949 + $0x9c] sm:$0xf] %v1044
      %1046 = vst [vmem:[%s949 + $0xa0] sm:$0xf] %v865
      %v1047 = vld [vmem:[%s949 + $0xa4] sm:$0x1]
      %v1048 = vsel %vm420, %v866, %v1047
      %1049 = vst [vmem:[%s949 + $0xa4] sm:$0x1] %v1048
      %v1050 = vld [vmem:[%s949 + $0xa8] sm:$0xf]
      %v1051 = vsel %vm951, %v873, %v1050
      %1052 = vst [vmem:[%s949 + $0xa8] sm:$0xf] %v1051
      %1053 = vst [vmem:[%s949 + $0xac] sm:$0xf] %v882
      %v1054 = vld [vmem:[%s949 + $0xb0] sm:$0x1]
      %v1055 = vsel %vm420, %v883, %v1054
      %1056 = vst [vmem:[%s949 + $0xb0] sm:$0x1] %v1055
      %v1057 = vld [vmem:[%s949 + $0xb4] sm:$0xf]
      %v1058 = vsel %vm951, %v890, %v1057
      %1059 = vst [vmem:[%s949 + $0xb4] sm:$0xf] %v1058
      %1060 = vst [vmem:[%s949 + $0xb8] sm:$0xf] %v899
      %v1061 = vld [vmem:[%s949 + $0xbc] sm:$0x1]
      %v1062 = vsel %vm420, %v900, %v1061
      %1063 = vst [vmem:[%s949 + $0xbc] sm:$0x1] %v1062
      %v1064 = vld [vmem:[#allocation2] sm:$0xf]
      %v1065 = vld [vmem:[#allocation2 + $0x4] sm:$0xf]
      %v1066 = vld [vmem:[#allocation2 + $0xc] sm:$0xf]
      %v1067 = vld [vmem:[#allocation2 + $0x10] sm:$0xf]
      %v1068 = vld [vmem:[#allocation2 + $0x18] sm:$0xf]
      %v1069 = vld [vmem:[#allocation2 + $0x1c] sm:$0xf]
      %v1070 = vld [vmem:[#allocation2 + $0x24] sm:$0xf]
      %v1071 = vld [vmem:[#allocation2 + $0x28] sm:$0xf]
      %v1072 = vld [vmem:[#allocation2 + $0x30] sm:$0xf]
      %v1073 = vld [vmem:[#allocation2 + $0x34] sm:$0xf]
      %v1074 = vld [vmem:[#allocation2 + $0x3c] sm:$0xf]
      %v1075 = vld [vmem:[#allocation2 + $0x40] sm:$0xf]
      %v1076 = vld [vmem:[#allocation2 + $0x48] sm:$0xf]
      %v1077 = vld [vmem:[#allocation2 + $0x4c] sm:$0xf]
      %v1078 = vld [vmem:[#allocation2 + $0x54] sm:$0xf]
      %v1079 = vld [vmem:[#allocation2 + $0x58] sm:$0xf]
      %v1080 = vld [vmem:[#allocation2 + $0x60] sm:$0xf]
      %v1081 = vld [vmem:[#allocation2 + $0x64] sm:$0xf]
      %v1082 = vld [vmem:[#allocation2 + $0x6c] sm:$0xf]
      %v1083 = vld [vmem:[#allocation2 + $0x70] sm:$0xf]
      %v1084 = vld [vmem:[#allocation2 + $0x78] sm:$0xf]
      %v1085 = vld [vmem:[#allocation2 + $0x7c] sm:$0xf]
      %v1086 = vld [vmem:[#allocation2 + $0x84] sm:$0xf]
      %v1087 = vld [vmem:[#allocation2 + $0x88] sm:$0xf]
      %v1088 = vld [vmem:[#allocation2 + $0x90] sm:$0xf]
      %v1089 = vld [vmem:[#allocation2 + $0x94] sm:$0xf]
      %v1090 = vld [vmem:[#allocation2 + $0x9c] sm:$0xf]
      %v1091 = vld [vmem:[#allocation2 + $0xa0] sm:$0xf]
      %v1092 = vld [vmem:[#allocation2 + $0xa8] sm:$0xf]
      %v1093 = vld [vmem:[#allocation2 + $0xac] sm:$0xf]
      %v1094 = vld [vmem:[#allocation2 + $0xb4] sm:$0xf]
      %v1095 = vld [vmem:[#allocation2 + $0xb8] sm:$0xf]
      %v1096 = vld [vmem:[#allocation2 + $0xc0] sm:$0xf]
      %v1097 = vld [vmem:[#allocation2 + $0xc4] sm:$0xf]
      %v1098 = vld [vmem:[#allocation2 + $0xcc] sm:$0xf]
      %v1099 = vld [vmem:[#allocation2 + $0xd0] sm:$0xf]
      %v1100 = vld [vmem:[%s1] sm:$0xf]
      %v1101 = vld [vmem:[%s1 + $0x4] sm:$0xf]
      %v1102 = vld [vmem:[%s1 + $0x8] sm:$0xf]
      %v1103 = vld [vmem:[%s1 + $0xc] sm:$0xf]
      %v1104 = vld [vmem:[%s1 + $0x10] sm:$0xf]
      %v1105 = vld [vmem:[%s1 + $0x14] sm:$0xf]
      %v1106 = vld [vmem:[%s1 + $0x18] sm:$0xf]
      %v1107 = vld [vmem:[%s1 + $0x1c] sm:$0xf]
      %v1108 = vld [vmem:[%s1 + $0x20] sm:$0xf]
      %v1109 = vld [vmem:[%s1 + $0x24] sm:$0xf]
      %v1110 = vld [vmem:[%s1 + $0x28] sm:$0xf]
      %v1111 = vld [vmem:[%s1 + $0x2c] sm:$0xf]
      %v1112 = vld [vmem:[%s1 + $0x30] sm:$0xf]
      %v1113 = vld [vmem:[%s1 + $0x34] sm:$0xf]
      %v1114 = vld [vmem:[%s1 + $0x38] sm:$0xf]
      %v1115 = vld [vmem:[%s1 + $0x3c] sm:$0xf]
      %v1148 = vunpack.c.l.b16 %v1064
      %v1149 = vunpack.c.l.b16 %v1065
      %v1150 = vunpack.c.l.b16 %v1066
      %v1151 = vunpack.c.l.b16 %v1067
      %v1152 = vunpack.c.l.b16 %v1068
      %v1153 = vunpack.c.l.b16 %v1069
      %v1154 = vunpack.c.l.b16 %v1070
      %v1155 = vunpack.c.l.b16 %v1071
      %v1156 = vunpack.c.l.b16 %v1072
      %v1157 = vunpack.c.l.b16 %v1073
      %v1158 = vunpack.c.l.b16 %v1074
      %v1159 = vunpack.c.l.b16 %v1075
      %v1160 = vunpack.c.l.b16 %v1076
      %v1161 = vunpack.c.l.b16 %v1077
      %v1162 = vunpack.c.l.b16 %v1078
      %v1163 = vunpack.c.l.b16 %v1079
      %v1164 = vunpack.c.l.b16 %v1080
      %v1165 = vunpack.c.l.b16 %v1081
      %v1166 = vunpack.c.l.b16 %v1082
      %v1167 = vunpack.c.l.b16 %v1083
      %v1168 = vunpack.c.l.b16 %v1084
      %v1169 = vunpack.c.l.b16 %v1085
      %v1170 = vunpack.c.l.b16 %v1086
      %v1171 = vunpack.c.l.b16 %v1087
      %v1172 = vunpack.c.l.b16 %v1088
      %v1173 = vunpack.c.l.b16 %v1089
      %v1174 = vunpack.c.l.b16 %v1090
      %v1175 = vunpack.c.l.b16 %v1091
      %v1176 = vunpack.c.l.b16 %v1092
      %v1177 = vunpack.c.l.b16 %v1093
      %v1178 = vunpack.c.l.b16 %v1094
      %v1179 = vunpack.c.l.b16 %v1095
      %v1180 = vpack.c.b16 %v1149, %v1148
      %v1181 = vpack.c.b16 %v1151, %v1150
      %v1182 = vpack.c.b16 %v1153, %v1152
      %v1183 = vpack.c.b16 %v1155, %v1154
      %v1184 = vpack.c.b16 %v1157, %v1156
      %v1185 = vpack.c.b16 %v1159, %v1158
      %v1186 = vpack.c.b16 %v1161, %v1160
      %v1187 = vpack.c.b16 %v1163, %v1162
      %v1188 = vpack.c.b16 %v1165, %v1164
      %v1189 = vpack.c.b16 %v1167, %v1166
      %v1190 = vpack.c.b16 %v1169, %v1168
      %v1191 = vpack.c.b16 %v1171, %v1170
      %v1192 = vpack.c.b16 %v1173, %v1172
      %v1193 = vpack.c.b16 %v1175, %v1174
      %v1194 = vpack.c.b16 %v1177, %v1176
      %v1195 = vpack.c.b16 %v1179, %v1178
      %v1228 = vunpack.c.l.b16 %v1100
      %v1229 = vunpack.c.l.b16 %v1101
      %v1230 = vunpack.c.l.b16 %v1102
      %v1231 = vunpack.c.l.b16 %v1103
      %v1232 = vunpack.c.l.b16 %v1104
      %v1233 = vunpack.c.l.b16 %v1105
      %v1234 = vunpack.c.l.b16 %v1106
      %v1235 = vunpack.c.l.b16 %v1107
      %v1236 = vunpack.c.l.b16 %v1108
      %v1237 = vunpack.c.l.b16 %v1109
      %v1238 = vunpack.c.l.b16 %v1110
      %v1239 = vunpack.c.l.b16 %v1111
      %v1240 = vunpack.c.l.b16 %v1112
      %v1241 = vunpack.c.l.b16 %v1113
      %v1242 = vunpack.c.l.b16 %v1114
      %v1243 = vunpack.c.l.b16 %v1115
      %v1244 = vpack.c.b16 %v1229, %v1228
      %v1245 = vpack.c.b16 %v1231, %v1230
      %v1246 = vpack.c.b16 %v1233, %v1232
      %v1247 = vpack.c.b16 %v1235, %v1234
      %v1248 = vpack.c.b16 %v1237, %v1236
      %v1249 = vpack.c.b16 %v1239, %v1238
      %v1250 = vpack.c.b16 %v1241, %v1240
      %v1251 = vpack.c.b16 %v1243, %v1242
      %1260 = vmatprep.subr.bf16.mxu0 0
      %1261 = vmatpush1.bf16.msra.mxu0 %v1251
      %1262 = vmatprep.subr.bf16.mxu0 0
      %1263 = vmatpush1.bf16.msra.mxu0 %v1250
      %1264 = vmatprep.subr.bf16.mxu0 0
      %1265 = vmatpush1.bf16.msra.mxu0 %v1249
      %1266 = vmatprep.subr.bf16.mxu0 0
      %1267 = vmatpush1.bf16.msra.mxu0 %v1248
      %1268 = vmatprep.subr.bf16.mxu0 0
      %1269 = vmatpush1.bf16.msra.mxu0 %v1247
      %1270 = vmatprep.subr.bf16.mxu0 0
      %1271 = vmatpush1.bf16.msra.mxu0 %v1246
      %1272 = vmatprep.subr.bf16.mxu0 0
      %1273 = vmatpush1.bf16.msra.mxu0 %v1245
      %1274 = vmatprep.subr.bf16.mxu0 0
      %1275 = vmatpush1.bf16.msra.mxu0 %v1244
      %1276 = vmatprep.subr.bf16.mxu0 0
      %1277 = vmatpush2.bf16.msra.mxu0 0
      %1278 = vmatprep.subr.bf16.mxu0 0
      %1279 = vmatpush2.bf16.msra.mxu0 0
      %1280 = vmatprep.subr.bf16.mxu0 0
      %1281 = vmatpush2.bf16.msra.mxu0 0
      %1282 = vmatprep.subr.bf16.mxu0 0
      %1283 = vmatpush2.bf16.msra.mxu0 0
      %1284 = vmatprep.subr.bf16.mxu0 0
      %1285 = vmatpush2.bf16.msra.mxu0 0
      %1286 = vmatprep.subr.bf16.mxu0 0
      %1287 = vmatpush2.bf16.msra.mxu0 0
      %1288 = vmatprep.subr.bf16.mxu0 0
      %1289 = vmatpush2.bf16.msra.mxu0 0
      %1290 = vmatprep.subr.bf16.mxu0 0
      %1291 = vmatpush2.bf16.msra.mxu0 0
      %1292 = vmatprep.mubr.bf16.mxu0 0
      %1293 = vmatmul.mubr.bf16.gmra.mxu0 %v1180
      %v1294 = vpop.f32.mrf.mxu0
      %v1295 = vadd.f32 0.0, %v1294
      %v1296 = vpop.f32.mrf.mxu0
      %v1297 = vpop.f32.mrf.mxu0
      %v1298 = vadd.f32 0.0, %v1297
      %v1299 = vpop.f32.mrf.mxu0
      %1300 = vmatprep.mubr.bf16.mxu0 0
      %1301 = vmatmul.mubr.bf16.gmra.mxu0 %v1181
      %v1302 = vpop.f32.mrf.mxu0
      %v1303 = vadd.f32 0.0, %v1302
      %v1304 = vpop.f32.mrf.mxu0
      %v1305 = vpop.f32.mrf.mxu0
      %v1306 = vadd.f32 0.0, %v1305
      %v1307 = vpop.f32.mrf.mxu0
      %1308 = vmatprep.mubr.bf16.mxu0 0
      %1309 = vmatmul.mubr.bf16.gmra.mxu0 %v1182
      %v1310 = vpop.f32.mrf.mxu0
      %v1311 = vadd.f32 0.0, %v1310
      %v1312 = vpop.f32.mrf.mxu0
      %v1313 = vpop.f32.mrf.mxu0
      %v1314 = vadd.f32 0.0, %v1313
      %v1315 = vpop.f32.mrf.mxu0
      %1316 = vmatprep.mubr.bf16.mxu0 0
      %1317 = vmatmul.mubr.bf16.gmra.mxu0 %v1183
      %v1318 = vpop.f32.mrf.mxu0
      %v1319 = vadd.f32 0.0, %v1318
      %v1320 = vpop.f32.mrf.mxu0
      %v1321 = vpop.f32.mrf.mxu0
      %v1322 = vadd.f32 0.0, %v1321
      %v1323 = vpop.f32.mrf.mxu0
      %1324 = vmatprep.mubr.bf16.mxu0 0
      %1325 = vmatmul.mubr.bf16.gmra.mxu0 %v1184
      %v1326 = vpop.f32.mrf.mxu0
      %v1327 = vadd.f32 0.0, %v1326
      %v1328 = vpop.f32.mrf.mxu0
      %v1329 = vpop.f32.mrf.mxu0
      %v1330 = vadd.f32 0.0, %v1329
      %v1331 = vpop.f32.mrf.mxu0
      %1332 = vmatprep.mubr.bf16.mxu0 0
      %1333 = vmatmul.mubr.bf16.gmra.mxu0 %v1185
      %v1334 = vpop.f32.mrf.mxu0
      %v1335 = vadd.f32 0.0, %v1334
      %v1336 = vpop.f32.mrf.mxu0
      %v1337 = vpop.f32.mrf.mxu0
      %v1338 = vadd.f32 0.0, %v1337
      %v1339 = vpop.f32.mrf.mxu0
      %1340 = vmatprep.mubr.bf16.mxu0 0
      %1341 = vmatmul.mubr.bf16.gmra.mxu0 %v1186
      %v1342 = vpop.f32.mrf.mxu0
      %v1343 = vadd.f32 0.0, %v1342
      %v1344 = vpop.f32.mrf.mxu0
      %v1345 = vpop.f32.mrf.mxu0
      %v1346 = vadd.f32 0.0, %v1345
      %v1347 = vpop.f32.mrf.mxu0
      %1348 = vmatprep.mubr.bf16.mxu0 0
      %1349 = vmatmul.mubr.bf16.gmra.mxu0 %v1187
      %v1350 = vpop.f32.mrf.mxu0
      %v1351 = vadd.f32 0.0, %v1350
      %v1352 = vpop.f32.mrf.mxu0
      %v1353 = vpop.f32.mrf.mxu0
      %v1354 = vadd.f32 0.0, %v1353
      %v1355 = vpop.f32.mrf.mxu0
      %1356 = vmatprep.mubr.bf16.mxu0 0
      %1357 = vmatmul.mubr.bf16.gmra.mxu0 %v1188
      %v1358 = vpop.f32.mrf.mxu0
      %v1359 = vadd.f32 0.0, %v1358
      %v1360 = vpop.f32.mrf.mxu0
      %v1361 = vpop.f32.mrf.mxu0
      %v1362 = vadd.f32 0.0, %v1361
      %v1363 = vpop.f32.mrf.mxu0
      %1364 = vmatprep.mubr.bf16.mxu0 0
      %1365 = vmatmul.mubr.bf16.gmra.mxu0 %v1189
      %v1366 = vpop.f32.mrf.mxu0
      %v1367 = vadd.f32 0.0, %v1366
      %v1368 = vpop.f32.mrf.mxu0
      %v1369 = vpop.f32.mrf.mxu0
      %v1370 = vadd.f32 0.0, %v1369
      %v1371 = vpop.f32.mrf.mxu0
      %1372 = vmatprep.mubr.bf16.mxu0 0
      %1373 = vmatmul.mubr.bf16.gmra.mxu0 %v1190
      %v1374 = vpop.f32.mrf.mxu0
      %v1375 = vadd.f32 0.0, %v1374
      %v1376 = vpop.f32.mrf.mxu0
      %v1377 = vpop.f32.mrf.mxu0
      %v1378 = vadd.f32 0.0, %v1377
      %v1379 = vpop.f32.mrf.mxu0
      %1380 = vmatprep.mubr.bf16.mxu0 0
      %1381 = vmatmul.mubr.bf16.gmra.mxu0 %v1191
      %v1382 = vpop.f32.mrf.mxu0
      %v1383 = vadd.f32 0.0, %v1382
      %v1384 = vpop.f32.mrf.mxu0
      %v1385 = vpop.f32.mrf.mxu0
      %v1386 = vadd.f32 0.0, %v1385
      %v1387 = vpop.f32.mrf.mxu0
      %1388 = vmatprep.mubr.bf16.mxu0 0
      %1389 = vmatmul.mubr.bf16.gmra.mxu0 %v1192
      %v1390 = vpop.f32.mrf.mxu0
      %v1391 = vadd.f32 0.0, %v1390
      %v1392 = vpop.f32.mrf.mxu0
      %v1393 = vpop.f32.mrf.mxu0
      %v1394 = vadd.f32 0.0, %v1393
      %v1395 = vpop.f32.mrf.mxu0
      %1396 = vmatprep.mubr.bf16.mxu0 0
      %1397 = vmatmul.mubr.bf16.gmra.mxu0 %v1193
      %v1398 = vpop.f32.mrf.mxu0
      %v1399 = vadd.f32 0.0, %v1398
      %v1400 = vpop.f32.mrf.mxu0
      %v1401 = vpop.f32.mrf.mxu0
      %v1402 = vadd.f32 0.0, %v1401
      %v1403 = vpop.f32.mrf.mxu0
      %1404 = vmatprep.mubr.bf16.mxu0 0
      %1405 = vmatmul.mubr.bf16.gmra.mxu0 %v1194
      %v1406 = vpop.f32.mrf.mxu0
      %v1407 = vadd.f32 0.0, %v1406
      %v1408 = vpop.f32.mrf.mxu0
      %v1409 = vpop.f32.mrf.mxu0
      %v1410 = vadd.f32 0.0, %v1409
      %v1411 = vpop.f32.mrf.mxu0
      %1412 = vmatprep.mubr.bf16.mxu0 0
      %1413 = vmatmul.mubr.bf16.gmra.mxu0 %v1195
      %v1414 = vpop.f32.mrf.mxu0
      %v1415 = vadd.f32 0.0, %v1414
      %v1416 = vpop.f32.mrf.mxu0
      %v1417 = vpop.f32.mrf.mxu0
      %v1418 = vadd.f32 0.0, %v1417
      %v1419 = vpop.f32.mrf.mxu0
      %1420 = vdwg.mxu0
      %1421 = vst [vmem:[#allocation3] sm:$0xff] %v1295
      %1422 = vst [vmem:[#allocation3 + $0x8] sm:$0xff] %v1298
      %1423 = vst [vmem:[#allocation3 + $0x10] sm:$0xff] %v1303
      %1424 = vst [vmem:[#allocation3 + $0x18] sm:$0xff] %v1306
      %1425 = vst [vmem:[#allocation3 + $0x20] sm:$0xff] %v1311
      %1426 = vst [vmem:[#allocation3 + $0x28] sm:$0xff] %v1314
      %1427 = vst [vmem:[#allocation3 + $0x30] sm:$0xff] %v1319
      %1428 = vst [vmem:[#allocation3 + $0x38] sm:$0xff] %v1322
      %1429 = vst [vmem:[#allocation3 + $0x40] sm:$0xff] %v1327
      %1430 = vst [vmem:[#allocation3 + $0x48] sm:$0xff] %v1330
      %1431 = vst [vmem:[#allocation3 + $0x50] sm:$0xff] %v1335
      %1432 = vst [vmem:[#allocation3 + $0x58] sm:$0xff] %v1338
      %1433 = vst [vmem:[#allocation3 + $0x60] sm:$0xff] %v1343
      %1434 = vst [vmem:[#allocation3 + $0x68] sm:$0xff] %v1346
      %1435 = vst [vmem:[#allocation3 + $0x70] sm:$0xff] %v1351
      %1436 = vst [vmem:[#allocation3 + $0x78] sm:$0xff] %v1354
      %1437 = vst [vmem:[#allocation3 + $0x80] sm:$0xff] %v1359
      %1438 = vst [vmem:[#allocation3 + $0x88] sm:$0xff] %v1362
      %1439 = vst [vmem:[#allocation3 + $0x90] sm:$0xff] %v1367
      %1440 = vst [vmem:[#allocation3 + $0x98] sm:$0xff] %v1370
      %1441 = vst [vmem:[#allocation3 + $0xa0] sm:$0xff] %v1375
      %1442 = vst [vmem:[#allocation3 + $0xa8] sm:$0xff] %v1378
      %1443 = vst [vmem:[#allocation3 + $0xb0] sm:$0xff] %v1383
      %1444 = vst [vmem:[#allocation3 + $0xb8] sm:$0xff] %v1386
      %1445 = vst [vmem:[#allocation3 + $0xc0] sm:$0xff] %v1391
      %1446 = vst [vmem:[#allocation3 + $0xc8] sm:$0xff] %v1394
      %1447 = vst [vmem:[#allocation3 + $0xd0] sm:$0xff] %v1399
      %1448 = vst [vmem:[#allocation3 + $0xd8] sm:$0xff] %v1402
      %1449 = vst [vmem:[#allocation3 + $0xe0] sm:$0xff] %v1407
      %1450 = vst [vmem:[#allocation3 + $0xe8] sm:$0xff] %v1410
      %1451 = vst [vmem:[#allocation3 + $0xf0] sm:$0xff] %v1415
      %1452 = vst [vmem:[#allocation3 + $0xf8] sm:$0xff] %v1418
      %s1453 = scalar_lea.vmem %s1, 192
      %v1454 = vld [vmem:[%s1453] sm:$0xf]
      %v1455 = vld [vmem:[%s1453 + $0x4] sm:$0xf]
      %v1456 = vld [vmem:[%s1453 + $0x8] sm:$0xf]
      %v1457 = vld [vmem:[%s1453 + $0xc] sm:$0xf]
      %v1458 = vld [vmem:[%s1453 + $0x10] sm:$0xf]
      %v1459 = vld [vmem:[%s1453 + $0x14] sm:$0xf]
      %v1460 = vld [vmem:[%s1453 + $0x18] sm:$0xf]
      %v1461 = vld [vmem:[%s1453 + $0x1c] sm:$0xf]
      %v1462 = vld [vmem:[%s1453 + $0x20] sm:$0xf]
      %v1463 = vld [vmem:[%s1453 + $0x24] sm:$0xf]
      %v1464 = vld [vmem:[%s1453 + $0x28] sm:$0xf]
      %v1465 = vld [vmem:[%s1453 + $0x2c] sm:$0xf]
      %v1466 = vld [vmem:[%s1453 + $0x30] sm:$0xf]
      %v1467 = vld [vmem:[%s1453 + $0x34] sm:$0xf]
      %v1468 = vld [vmem:[%s1453 + $0x38] sm:$0xf]
      %v1469 = vld [vmem:[%s1453 + $0x3c] sm:$0xf]
      %v1472 = vunpack.c.l.b16 %v1096
      %v1473 = vunpack.c.l.b16 %v1097
      %v1474 = vpack.c.b16 %v1473, %v1472
      %v1492 = vunpack.c.l.b16 %v1454
      %v1493 = vunpack.c.l.b16 %v1455
      %v1494 = vunpack.c.l.b16 %v1456
      %v1495 = vunpack.c.l.b16 %v1457
      %v1496 = vunpack.c.l.b16 %v1458
      %v1497 = vunpack.c.l.b16 %v1459
      %v1498 = vunpack.c.l.b16 %v1460
      %v1499 = vunpack.c.l.b16 %v1461
      %v1500 = vunpack.c.l.b16 %v1462
      %v1501 = vunpack.c.l.b16 %v1463
      %v1502 = vunpack.c.l.b16 %v1464
      %v1503 = vunpack.c.l.b16 %v1465
      %v1504 = vunpack.c.l.b16 %v1466
      %v1505 = vunpack.c.l.b16 %v1467
      %v1506 = vunpack.c.l.b16 %v1468
      %v1507 = vunpack.c.l.b16 %v1469
      %v1508 = vpack.c.b16 %v1493, %v1492
      %v1509 = vpack.c.b16 %v1495, %v1494
      %v1510 = vpack.c.b16 %v1497, %v1496
      %v1511 = vpack.c.b16 %v1499, %v1498
      %v1512 = vpack.c.b16 %v1501, %v1500
      %v1513 = vpack.c.b16 %v1503, %v1502
      %v1514 = vpack.c.b16 %v1505, %v1504
      %v1515 = vpack.c.b16 %v1507, %v1506
      %1524 = vmatprep.subr.bf16.mxu0 0
      %1525 = vmatpush1.bf16.msra.mxu0 %v1515
      %1526 = vmatprep.subr.bf16.mxu0 0
      %1527 = vmatpush1.bf16.msra.mxu0 %v1514
      %1528 = vmatprep.subr.bf16.mxu0 0
      %1529 = vmatpush1.bf16.msra.mxu0 %v1513
      %1530 = vmatprep.subr.bf16.mxu0 0
      %1531 = vmatpush1.bf16.msra.mxu0 %v1512
      %1532 = vmatprep.subr.bf16.mxu0 0
      %1533 = vmatpush1.bf16.msra.mxu0 %v1511
      %1534 = vmatprep.subr.bf16.mxu0 0
      %1535 = vmatpush1.bf16.msra.mxu0 %v1510
      %1536 = vmatprep.subr.bf16.mxu0 0
      %1537 = vmatpush1.bf16.msra.mxu0 %v1509
      %1538 = vmatprep.subr.bf16.mxu0 0
      %1539 = vmatpush1.bf16.msra.mxu0 %v1508
      %1540 = vmatprep.subr.bf16.mxu0 0
      %1541 = vmatpush2.bf16.msra.mxu0 0
      %1542 = vmatprep.subr.bf16.mxu0 0
      %1543 = vmatpush2.bf16.msra.mxu0 0
      %1544 = vmatprep.subr.bf16.mxu0 0
      %1545 = vmatpush2.bf16.msra.mxu0 0
      %1546 = vmatprep.subr.bf16.mxu0 0
      %1547 = vmatpush2.bf16.msra.mxu0 0
      %1548 = vmatprep.subr.bf16.mxu0 0
      %1549 = vmatpush2.bf16.msra.mxu0 0
      %1550 = vmatprep.subr.bf16.mxu0 0
      %1551 = vmatpush2.bf16.msra.mxu0 0
      %1552 = vmatprep.subr.bf16.mxu0 0
      %1553 = vmatpush2.bf16.msra.mxu0 0
      %1554 = vmatprep.subr.bf16.mxu0 0
      %1555 = vmatpush2.bf16.msra.mxu0 0
      %1556 = vmatprep.mubr.bf16.mxu0 0
      %1557 = vmatmul.mubr.bf16.gmra.mxu0 %v1181
      %v1558 = vpop.f32.mrf.mxu0
      %v1559 = vadd.f32 0.0, %v1558
      %v1560 = vpop.f32.mrf.mxu0
      %v1561 = vpop.f32.mrf.mxu0
      %v1562 = vadd.f32 0.0, %v1561
      %v1563 = vpop.f32.mrf.mxu0
      %1564 = vmatprep.mubr.bf16.mxu0 0
      %1565 = vmatmul.mubr.bf16.gmra.mxu0 %v1182
      %v1566 = vpop.f32.mrf.mxu0
      %v1567 = vadd.f32 0.0, %v1566
      %v1568 = vpop.f32.mrf.mxu0
      %v1569 = vpop.f32.mrf.mxu0
      %v1570 = vadd.f32 0.0, %v1569
      %v1571 = vpop.f32.mrf.mxu0
      %1572 = vmatprep.mubr.bf16.mxu0 0
      %1573 = vmatmul.mubr.bf16.gmra.mxu0 %v1183
      %v1574 = vpop.f32.mrf.mxu0
      %v1575 = vadd.f32 0.0, %v1574
      %v1576 = vpop.f32.mrf.mxu0
      %v1577 = vpop.f32.mrf.mxu0
      %v1578 = vadd.f32 0.0, %v1577
      %v1579 = vpop.f32.mrf.mxu0
      %1580 = vmatprep.mubr.bf16.mxu0 0
      %1581 = vmatmul.mubr.bf16.gmra.mxu0 %v1184
      %v1582 = vpop.f32.mrf.mxu0
      %v1583 = vadd.f32 0.0, %v1582
      %v1584 = vpop.f32.mrf.mxu0
      %v1585 = vpop.f32.mrf.mxu0
      %v1586 = vadd.f32 0.0, %v1585
      %v1587 = vpop.f32.mrf.mxu0
      %1588 = vmatprep.mubr.bf16.mxu0 0
      %1589 = vmatmul.mubr.bf16.gmra.mxu0 %v1185
      %v1590 = vpop.f32.mrf.mxu0
      %v1591 = vadd.f32 0.0, %v1590
      %v1592 = vpop.f32.mrf.mxu0
      %v1593 = vpop.f32.mrf.mxu0
      %v1594 = vadd.f32 0.0, %v1593
      %v1595 = vpop.f32.mrf.mxu0
      %1596 = vmatprep.mubr.bf16.mxu0 0
      %1597 = vmatmul.mubr.bf16.gmra.mxu0 %v1186
      %v1598 = vpop.f32.mrf.mxu0
      %v1599 = vadd.f32 0.0, %v1598
      %v1600 = vpop.f32.mrf.mxu0
      %v1601 = vpop.f32.mrf.mxu0
      %v1602 = vadd.f32 0.0, %v1601
      %v1603 = vpop.f32.mrf.mxu0
      %1604 = vmatprep.mubr.bf16.mxu0 0
      %1605 = vmatmul.mubr.bf16.gmra.mxu0 %v1187
      %v1606 = vpop.f32.mrf.mxu0
      %v1607 = vadd.f32 0.0, %v1606
      %v1608 = vpop.f32.mrf.mxu0
      %v1609 = vpop.f32.mrf.mxu0
      %v1610 = vadd.f32 0.0, %v1609
      %v1611 = vpop.f32.mrf.mxu0
      %1612 = vmatprep.mubr.bf16.mxu0 0
      %1613 = vmatmul.mubr.bf16.gmra.mxu0 %v1188
      %v1614 = vpop.f32.mrf.mxu0
      %v1615 = vadd.f32 0.0, %v1614
      %v1616 = vpop.f32.mrf.mxu0
      %v1617 = vpop.f32.mrf.mxu0
      %v1618 = vadd.f32 0.0, %v1617
      %v1619 = vpop.f32.mrf.mxu0
      %1620 = vmatprep.mubr.bf16.mxu0 0
      %1621 = vmatmul.mubr.bf16.gmra.mxu0 %v1189
      %v1622 = vpop.f32.mrf.mxu0
      %v1623 = vadd.f32 0.0, %v1622
      %v1624 = vpop.f32.mrf.mxu0
      %v1625 = vpop.f32.mrf.mxu0
      %v1626 = vadd.f32 0.0, %v1625
      %v1627 = vpop.f32.mrf.mxu0
      %1628 = vmatprep.mubr.bf16.mxu0 0
      %1629 = vmatmul.mubr.bf16.gmra.mxu0 %v1190
      %v1630 = vpop.f32.mrf.mxu0
      %v1631 = vadd.f32 0.0, %v1630
      %v1632 = vpop.f32.mrf.mxu0
      %v1633 = vpop.f32.mrf.mxu0
      %v1634 = vadd.f32 0.0, %v1633
      %v1635 = vpop.f32.mrf.mxu0
      %1636 = vmatprep.mubr.bf16.mxu0 0
      %1637 = vmatmul.mubr.bf16.gmra.mxu0 %v1191
      %v1638 = vpop.f32.mrf.mxu0
      %v1639 = vadd.f32 0.0, %v1638
      %v1640 = vpop.f32.mrf.mxu0
      %v1641 = vpop.f32.mrf.mxu0
      %v1642 = vadd.f32 0.0, %v1641
      %v1643 = vpop.f32.mrf.mxu0
      %1644 = vmatprep.mubr.bf16.mxu0 0
      %1645 = vmatmul.mubr.bf16.gmra.mxu0 %v1192
      %v1646 = vpop.f32.mrf.mxu0
      %v1647 = vadd.f32 0.0, %v1646
      %v1648 = vpop.f32.mrf.mxu0
      %v1649 = vpop.f32.mrf.mxu0
      %v1650 = vadd.f32 0.0, %v1649
      %v1651 = vpop.f32.mrf.mxu0
      %1652 = vmatprep.mubr.bf16.mxu0 0
      %1653 = vmatmul.mubr.bf16.gmra.mxu0 %v1193
      %v1654 = vpop.f32.mrf.mxu0
      %v1655 = vadd.f32 0.0, %v1654
      %v1656 = vpop.f32.mrf.mxu0
      %v1657 = vpop.f32.mrf.mxu0
      %v1658 = vadd.f32 0.0, %v1657
      %v1659 = vpop.f32.mrf.mxu0
      %1660 = vmatprep.mubr.bf16.mxu0 0
      %1661 = vmatmul.mubr.bf16.gmra.mxu0 %v1194
      %v1662 = vpop.f32.mrf.mxu0
      %v1663 = vadd.f32 0.0, %v1662
      %v1664 = vpop.f32.mrf.mxu0
      %v1665 = vpop.f32.mrf.mxu0
      %v1666 = vadd.f32 0.0, %v1665
      %v1667 = vpop.f32.mrf.mxu0
      %1668 = vmatprep.mubr.bf16.mxu0 0
      %1669 = vmatmul.mubr.bf16.gmra.mxu0 %v1195
      %v1670 = vpop.f32.mrf.mxu0
      %v1671 = vadd.f32 0.0, %v1670
      %v1672 = vpop.f32.mrf.mxu0
      %v1673 = vpop.f32.mrf.mxu0
      %v1674 = vadd.f32 0.0, %v1673
      %v1675 = vpop.f32.mrf.mxu0
      %1676 = vmatprep.mubr.bf16.mxu0 0
      %1677 = vmatmul.mubr.bf16.gmra.mxu0 %v1474
      %v1678 = vpop.f32.mrf.mxu0
      %v1679 = vadd.f32 0.0, %v1678
      %v1680 = vpop.f32.mrf.mxu0
      %v1681 = vpop.f32.mrf.mxu0
      %v1682 = vadd.f32 0.0, %v1681
      %v1683 = vpop.f32.mrf.mxu0
      %1684 = vdwg.mxu0
      %v1685 = vld [vmem:[#allocation3] sm:$0xff]
      %v1686 = vld [vmem:[#allocation3 + $0x8] sm:$0xff]
      %v1687 = vld [vmem:[#allocation3 + $0x10] sm:$0xff]
      %v1688 = vld [vmem:[#allocation3 + $0x18] sm:$0xff]
      %v1689 = vld [vmem:[#allocation3 + $0x20] sm:$0xff]
      %v1690 = vld [vmem:[#allocation3 + $0x28] sm:$0xff]
      %v1691 = vld [vmem:[#allocation3 + $0x30] sm:$0xff]
      %v1692 = vld [vmem:[#allocation3 + $0x38] sm:$0xff]
      %v1693 = vld [vmem:[#allocation3 + $0x40] sm:$0xff]
      %v1694 = vld [vmem:[#allocation3 + $0x48] sm:$0xff]
      %v1695 = vld [vmem:[#allocation3 + $0x50] sm:$0xff]
      %v1696 = vld [vmem:[#allocation3 + $0x58] sm:$0xff]
      %v1697 = vld [vmem:[#allocation3 + $0x60] sm:$0xff]
      %v1698 = vld [vmem:[#allocation3 + $0x68] sm:$0xff]
      %v1699 = vld [vmem:[#allocation3 + $0x70] sm:$0xff]
      %v1700 = vld [vmem:[#allocation3 + $0x78] sm:$0xff]
      %v1701 = vld [vmem:[#allocation3 + $0x80] sm:$0xff]
      %v1702 = vld [vmem:[#allocation3 + $0x88] sm:$0xff]
      %v1703 = vld [vmem:[#allocation3 + $0x90] sm:$0xff]
      %v1704 = vld [vmem:[#allocation3 + $0x98] sm:$0xff]
      %v1705 = vld [vmem:[#allocation3 + $0xa0] sm:$0xff]
      %v1706 = vld [vmem:[#allocation3 + $0xa8] sm:$0xff]
      %v1707 = vld [vmem:[#allocation3 + $0xb0] sm:$0xff]
      %v1708 = vld [vmem:[#allocation3 + $0xb8] sm:$0xff]
      %v1709 = vld [vmem:[#allocation3 + $0xc0] sm:$0xff]
      %v1710 = vld [vmem:[#allocation3 + $0xc8] sm:$0xff]
      %v1711 = vld [vmem:[#allocation3 + $0xd0] sm:$0xff]
      %v1712 = vld [vmem:[#allocation3 + $0xd8] sm:$0xff]
      %v1713 = vld [vmem:[#allocation3 + $0xe0] sm:$0xff]
      %v1714 = vld [vmem:[#allocation3 + $0xe8] sm:$0xff]
      %v1715 = vld [vmem:[#allocation3 + $0xf0] sm:$0xff]
      %v1716 = vld [vmem:[#allocation3 + $0xf8] sm:$0xff]
      %v1717 = vadd.f32 %v1685, %v1559
      %v1718 = vadd.f32 %v1686, %v1562
      %v1719 = vadd.f32 %v1687, %v1567
      %v1720 = vadd.f32 %v1688, %v1570
      %v1721 = vadd.f32 %v1689, %v1575
      %v1722 = vadd.f32 %v1690, %v1578
      %v1723 = vadd.f32 %v1691, %v1583
      %v1724 = vadd.f32 %v1692, %v1586
      %v1725 = vadd.f32 %v1693, %v1591
      %v1726 = vadd.f32 %v1694, %v1594
      %v1727 = vadd.f32 %v1695, %v1599
      %v1728 = vadd.f32 %v1696, %v1602
      %v1729 = vadd.f32 %v1697, %v1607
      %v1730 = vadd.f32 %v1698, %v1610
      %v1731 = vadd.f32 %v1699, %v1615
      %v1732 = vadd.f32 %v1700, %v1618
      %v1733 = vadd.f32 %v1701, %v1623
      %v1734 = vadd.f32 %v1702, %v1626
      %v1735 = vadd.f32 %v1703, %v1631
      %v1736 = vadd.f32 %v1704, %v1634
      %v1737 = vadd.f32 %v1705, %v1639
      %v1738 = vadd.f32 %v1706, %v1642
      %v1739 = vadd.f32 %v1707, %v1647
      %v1740 = vadd.f32 %v1708, %v1650
      %v1741 = vadd.f32 %v1709, %v1655
      %v1742 = vadd.f32 %v1710, %v1658
      %v1743 = vadd.f32 %v1711, %v1663
      %v1744 = vadd.f32 %v1712, %v1666
      %v1745 = vadd.f32 %v1713, %v1671
      %v1746 = vadd.f32 %v1714, %v1674
      %v1747 = vadd.f32 %v1715, %v1679
      %v1748 = vadd.f32 %v1716, %v1682
      %1749 = vst [vmem:[#allocation3] sm:$0xff] %v1717
      %1750 = vst [vmem:[#allocation3 + $0x8] sm:$0xff] %v1718
      %1751 = vst [vmem:[#allocation3 + $0x10] sm:$0xff] %v1719
      %1752 = vst [vmem:[#allocation3 + $0x18] sm:$0xff] %v1720
      %1753 = vst [vmem:[#allocation3 + $0x20] sm:$0xff] %v1721
      %1754 = vst [vmem:[#allocation3 + $0x28] sm:$0xff] %v1722
      %1755 = vst [vmem:[#allocation3 + $0x30] sm:$0xff] %v1723
      %1756 = vst [vmem:[#allocation3 + $0x38] sm:$0xff] %v1724
      %1757 = vst [vmem:[#allocation3 + $0x40] sm:$0xff] %v1725
      %1758 = vst [vmem:[#allocation3 + $0x48] sm:$0xff] %v1726
      %1759 = vst [vmem:[#allocation3 + $0x50] sm:$0xff] %v1727
      %1760 = vst [vmem:[#allocation3 + $0x58] sm:$0xff] %v1728
      %1761 = vst [vmem:[#allocation3 + $0x60] sm:$0xff] %v1729
      %1762 = vst [vmem:[#allocation3 + $0x68] sm:$0xff] %v1730
      %1763 = vst [vmem:[#allocation3 + $0x70] sm:$0xff] %v1731
      %1764 = vst [vmem:[#allocation3 + $0x78] sm:$0xff] %v1732
      %1765 = vst [vmem:[#allocation3 + $0x80] sm:$0xff] %v1733
      %1766 = vst [vmem:[#allocation3 + $0x88] sm:$0xff] %v1734
      %1767 = vst [vmem:[#allocation3 + $0x90] sm:$0xff] %v1735
      %1768 = vst [vmem:[#allocation3 + $0x98] sm:$0xff] %v1736
      %1769 = vst [vmem:[#allocation3 + $0xa0] sm:$0xff] %v1737
      %1770 = vst [vmem:[#allocation3 + $0xa8] sm:$0xff] %v1738
      %1771 = vst [vmem:[#allocation3 + $0xb0] sm:$0xff] %v1739
      %1772 = vst [vmem:[#allocation3 + $0xb8] sm:$0xff] %v1740
      %1773 = vst [vmem:[#allocation3 + $0xc0] sm:$0xff] %v1741
      %1774 = vst [vmem:[#allocation3 + $0xc8] sm:$0xff] %v1742
      %1775 = vst [vmem:[#allocation3 + $0xd0] sm:$0xff] %v1743
      %1776 = vst [vmem:[#allocation3 + $0xd8] sm:$0xff] %v1744
      %1777 = vst [vmem:[#allocation3 + $0xe0] sm:$0xff] %v1745
      %1778 = vst [vmem:[#allocation3 + $0xe8] sm:$0xff] %v1746
      %1779 = vst [vmem:[#allocation3 + $0xf0] sm:$0xff] %v1747
      %1780 = vst [vmem:[#allocation3 + $0xf8] sm:$0xff] %v1748
      %s1781 = scalar_lea.vmem %s1, 384
      %v1782 = vld [vmem:[%s1781] sm:$0xf]
      %v1783 = vld [vmem:[%s1781 + $0x4] sm:$0xf]
      %v1784 = vld [vmem:[%s1781 + $0x8] sm:$0xf]
      %v1785 = vld [vmem:[%s1781 + $0xc] sm:$0xf]
      %v1786 = vld [vmem:[%s1781 + $0x10] sm:$0xf]
      %v1787 = vld [vmem:[%s1781 + $0x14] sm:$0xf]
      %v1788 = vld [vmem:[%s1781 + $0x18] sm:$0xf]
      %v1789 = vld [vmem:[%s1781 + $0x1c] sm:$0xf]
      %v1790 = vld [vmem:[%s1781 + $0x20] sm:$0xf]
      %v1791 = vld [vmem:[%s1781 + $0x24] sm:$0xf]
      %v1792 = vld [vmem:[%s1781 + $0x28] sm:$0xf]
      %v1793 = vld [vmem:[%s1781 + $0x2c] sm:$0xf]
      %v1794 = vld [vmem:[%s1781 + $0x30] sm:$0xf]
      %v1795 = vld [vmem:[%s1781 + $0x34] sm:$0xf]
      %v1796 = vld [vmem:[%s1781 + $0x38] sm:$0xf]
      %v1797 = vld [vmem:[%s1781 + $0x3c] sm:$0xf]
      %v1800 = vunpack.c.l.b16 %v1098
      %v1801 = vunpack.c.l.b16 %v1099
      %v1802 = vpack.c.b16 %v1801, %v1800
      %v1820 = vunpack.c.l.b16 %v1782
      %v1821 = vunpack.c.l.b16 %v1783
      %v1822 = vunpack.c.l.b16 %v1784
      %v1823 = vunpack.c.l.b16 %v1785
      %v1824 = vunpack.c.l.b16 %v1786
      %v1825 = vunpack.c.l.b16 %v1787
      %v1826 = vunpack.c.l.b16 %v1788
      %v1827 = vunpack.c.l.b16 %v1789
      %v1828 = vunpack.c.l.b16 %v1790
      %v1829 = vunpack.c.l.b16 %v1791
      %v1830 = vunpack.c.l.b16 %v1792
      %v1831 = vunpack.c.l.b16 %v1793
      %v1832 = vunpack.c.l.b16 %v1794
      %v1833 = vunpack.c.l.b16 %v1795
      %v1834 = vunpack.c.l.b16 %v1796
      %v1835 = vunpack.c.l.b16 %v1797
      %v1836 = vpack.c.b16 %v1821, %v1820
      %v1837 = vpack.c.b16 %v1823, %v1822
      %v1838 = vpack.c.b16 %v1825, %v1824
      %v1839 = vpack.c.b16 %v1827, %v1826
      %v1840 = vpack.c.b16 %v1829, %v1828
      %v1841 = vpack.c.b16 %v1831, %v1830
      %v1842 = vpack.c.b16 %v1833, %v1832
      %v1843 = vpack.c.b16 %v1835, %v1834
      %1852 = vmatprep.subr.bf16.mxu0 0
      %1853 = vmatpush1.bf16.msra.mxu0 %v1843
      %1854 = vmatprep.subr.bf16.mxu0 0
      %1855 = vmatpush1.bf16.msra.mxu0 %v1842
      %1856 = vmatprep.subr.bf16.mxu0 0
      %1857 = vmatpush1.bf16.msra.mxu0 %v1841
      %1858 = vmatprep.subr.bf16.mxu0 0
      %1859 = vmatpush1.bf16.msra.mxu0 %v1840
      %1860 = vmatprep.subr.bf16.mxu0 0
      %1861 = vmatpush1.bf16.msra.mxu0 %v1839
      %1862 = vmatprep.subr.bf16.mxu0 0
      %1863 = vmatpush1.bf16.msra.mxu0 %v1838
      %1864 = vmatprep.subr.bf16.mxu0 0
      %1865 = vmatpush1.bf16.msra.mxu0 %v1837
      %1866 = vmatprep.subr.bf16.mxu0 0
      %1867 = vmatpush1.bf16.msra.mxu0 %v1836
      %1868 = vmatprep.subr.bf16.mxu0 0
      %1869 = vmatpush2.bf16.msra.mxu0 0
      %1870 = vmatprep.subr.bf16.mxu0 0
      %1871 = vmatpush2.bf16.msra.mxu0 0
      %1872 = vmatprep.subr.bf16.mxu0 0
      %1873 = vmatpush2.bf16.msra.mxu0 0
      %1874 = vmatprep.subr.bf16.mxu0 0
      %1875 = vmatpush2.bf16.msra.mxu0 0
      %1876 = vmatprep.subr.bf16.mxu0 0
      %1877 = vmatpush2.bf16.msra.mxu0 0
      %1878 = vmatprep.subr.bf16.mxu0 0
      %1879 = vmatpush2.bf16.msra.mxu0 0
      %1880 = vmatprep.subr.bf16.mxu0 0
      %1881 = vmatpush2.bf16.msra.mxu0 0
      %1882 = vmatprep.subr.bf16.mxu0 0
      %1883 = vmatpush2.bf16.msra.mxu0 0
      %1884 = vmatprep.mubr.bf16.mxu0 0
      %1885 = vmatmul.mubr.bf16.gmra.mxu0 %v1182
      %v1886 = vpop.f32.mrf.mxu0
      %v1887 = vadd.f32 0.0, %v1886
      %v1888 = vpop.f32.mrf.mxu0
      %v1889 = vpop.f32.mrf.mxu0
      %v1890 = vadd.f32 0.0, %v1889
      %v1891 = vpop.f32.mrf.mxu0
      %1892 = vmatprep.mubr.bf16.mxu0 0
      %1893 = vmatmul.mubr.bf16.gmra.mxu0 %v1183
      %v1894 = vpop.f32.mrf.mxu0
      %v1895 = vadd.f32 0.0, %v1894
      %v1896 = vpop.f32.mrf.mxu0
      %v1897 = vpop.f32.mrf.mxu0
      %v1898 = vadd.f32 0.0, %v1897
      %v1899 = vpop.f32.mrf.mxu0
      %1900 = vmatprep.mubr.bf16.mxu0 0
      %1901 = vmatmul.mubr.bf16.gmra.mxu0 %v1184
      %v1902 = vpop.f32.mrf.mxu0
      %v1903 = vadd.f32 0.0, %v1902
      %v1904 = vpop.f32.mrf.mxu0
      %v1905 = vpop.f32.mrf.mxu0
      %v1906 = vadd.f32 0.0, %v1905
      %v1907 = vpop.f32.mrf.mxu0
      %1908 = vmatprep.mubr.bf16.mxu0 0
      %1909 = vmatmul.mubr.bf16.gmra.mxu0 %v1185
      %v1910 = vpop.f32.mrf.mxu0
      %v1911 = vadd.f32 0.0, %v1910
      %v1912 = vpop.f32.mrf.mxu0
      %v1913 = vpop.f32.mrf.mxu0
      %v1914 = vadd.f32 0.0, %v1913
      %v1915 = vpop.f32.mrf.mxu0
      %1916 = vmatprep.mubr.bf16.mxu0 0
      %1917 = vmatmul.mubr.bf16.gmra.mxu0 %v1186
      %v1918 = vpop.f32.mrf.mxu0
      %v1919 = vadd.f32 0.0, %v1918
      %v1920 = vpop.f32.mrf.mxu0
      %v1921 = vpop.f32.mrf.mxu0
      %v1922 = vadd.f32 0.0, %v1921
      %v1923 = vpop.f32.mrf.mxu0
      %1924 = vmatprep.mubr.bf16.mxu0 0
      %1925 = vmatmul.mubr.bf16.gmra.mxu0 %v1187
      %v1926 = vpop.f32.mrf.mxu0
      %v1927 = vadd.f32 0.0, %v1926
      %v1928 = vpop.f32.mrf.mxu0
      %v1929 = vpop.f32.mrf.mxu0
      %v1930 = vadd.f32 0.0, %v1929
      %v1931 = vpop.f32.mrf.mxu0
      %1932 = vmatprep.mubr.bf16.mxu0 0
      %1933 = vmatmul.mubr.bf16.gmra.mxu0 %v1188
      %v1934 = vpop.f32.mrf.mxu0
      %v1935 = vadd.f32 0.0, %v1934
      %v1936 = vpop.f32.mrf.mxu0
      %v1937 = vpop.f32.mrf.mxu0
      %v1938 = vadd.f32 0.0, %v1937
      %v1939 = vpop.f32.mrf.mxu0
      %1940 = vmatprep.mubr.bf16.mxu0 0
      %1941 = vmatmul.mubr.bf16.gmra.mxu0 %v1189
      %v1942 = vpop.f32.mrf.mxu0
      %v1943 = vadd.f32 0.0, %v1942
      %v1944 = vpop.f32.mrf.mxu0
      %v1945 = vpop.f32.mrf.mxu0
      %v1946 = vadd.f32 0.0, %v1945
      %v1947 = vpop.f32.mrf.mxu0
      %1948 = vmatprep.mubr.bf16.mxu0 0
      %1949 = vmatmul.mubr.bf16.gmra.mxu0 %v1190
      %v1950 = vpop.f32.mrf.mxu0
      %v1951 = vadd.f32 0.0, %v1950
      %v1952 = vpop.f32.mrf.mxu0
      %v1953 = vpop.f32.mrf.mxu0
      %v1954 = vadd.f32 0.0, %v1953
      %v1955 = vpop.f32.mrf.mxu0
      %1956 = vmatprep.mubr.bf16.mxu0 0
      %1957 = vmatmul.mubr.bf16.gmra.mxu0 %v1191
      %v1958 = vpop.f32.mrf.mxu0
      %v1959 = vadd.f32 0.0, %v1958
      %v1960 = vpop.f32.mrf.mxu0
      %v1961 = vpop.f32.mrf.mxu0
      %v1962 = vadd.f32 0.0, %v1961
      %v1963 = vpop.f32.mrf.mxu0
      %1964 = vmatprep.mubr.bf16.mxu0 0
      %1965 = vmatmul.mubr.bf16.gmra.mxu0 %v1192
      %v1966 = vpop.f32.mrf.mxu0
      %v1967 = vadd.f32 0.0, %v1966
      %v1968 = vpop.f32.mrf.mxu0
      %v1969 = vpop.f32.mrf.mxu0
      %v1970 = vadd.f32 0.0, %v1969
      %v1971 = vpop.f32.mrf.mxu0
      %1972 = vmatprep.mubr.bf16.mxu0 0
      %1973 = vmatmul.mubr.bf16.gmra.mxu0 %v1193
      %v1974 = vpop.f32.mrf.mxu0
      %v1975 = vadd.f32 0.0, %v1974
      %v1976 = vpop.f32.mrf.mxu0
      %v1977 = vpop.f32.mrf.mxu0
      %v1978 = vadd.f32 0.0, %v1977
      %v1979 = vpop.f32.mrf.mxu0
      %1980 = vmatprep.mubr.bf16.mxu0 0
      %1981 = vmatmul.mubr.bf16.gmra.mxu0 %v1194
      %v1982 = vpop.f32.mrf.mxu0
      %v1983 = vadd.f32 0.0, %v1982
      %v1984 = vpop.f32.mrf.mxu0
      %v1985 = vpop.f32.mrf.mxu0
      %v1986 = vadd.f32 0.0, %v1985
      %v1987 = vpop.f32.mrf.mxu0
      %1988 = vmatprep.mubr.bf16.mxu0 0
      %1989 = vmatmul.mubr.bf16.gmra.mxu0 %v1195
      %v1990 = vpop.f32.mrf.mxu0
      %v1991 = vadd.f32 0.0, %v1990
      %v1992 = vpop.f32.mrf.mxu0
      %v1993 = vpop.f32.mrf.mxu0
      %v1994 = vadd.f32 0.0, %v1993
      %v1995 = vpop.f32.mrf.mxu0
      %1996 = vmatprep.mubr.bf16.mxu0 0
      %1997 = vmatmul.mubr.bf16.gmra.mxu0 %v1474
      %v1998 = vpop.f32.mrf.mxu0
      %v1999 = vadd.f32 0.0, %v1998
      %v2000 = vpop.f32.mrf.mxu0
      %v2001 = vpop.f32.mrf.mxu0
      %v2002 = vadd.f32 0.0, %v2001
      %v2003 = vpop.f32.mrf.mxu0
      %2004 = vmatprep.mubr.bf16.mxu0 0
      %2005 = vmatmul.mubr.bf16.gmra.mxu0 %v1802
      %v2006 = vpop.f32.mrf.mxu0
      %v2007 = vadd.f32 0.0, %v2006
      %v2008 = vpop.f32.mrf.mxu0
      %v2009 = vpop.f32.mrf.mxu0
      %v2010 = vadd.f32 0.0, %v2009
      %v2011 = vpop.f32.mrf.mxu0
      %2012 = vdwg.mxu0
      %v2013 = vld [vmem:[#allocation3] sm:$0xff]
      %v2014 = vld [vmem:[#allocation3 + $0x8] sm:$0xff]
      %v2015 = vld [vmem:[#allocation3 + $0x10] sm:$0xff]
      %v2016 = vld [vmem:[#allocation3 + $0x18] sm:$0xff]
      %v2017 = vld [vmem:[#allocation3 + $0x20] sm:$0xff]
      %v2018 = vld [vmem:[#allocation3 + $0x28] sm:$0xff]
      %v2019 = vld [vmem:[#allocation3 + $0x30] sm:$0xff]
      %v2020 = vld [vmem:[#allocation3 + $0x38] sm:$0xff]
      %v2021 = vld [vmem:[#allocation3 + $0x40] sm:$0xff]
      %v2022 = vld [vmem:[#allocation3 + $0x48] sm:$0xff]
      %v2023 = vld [vmem:[#allocation3 + $0x50] sm:$0xff]
      %v2024 = vld [vmem:[#allocation3 + $0x58] sm:$0xff]
      %v2025 = vld [vmem:[#allocation3 + $0x60] sm:$0xff]
      %v2026 = vld [vmem:[#allocation3 + $0x68] sm:$0xff]
      %v2027 = vld [vmem:[#allocation3 + $0x70] sm:$0xff]
      %v2028 = vld [vmem:[#allocation3 + $0x78] sm:$0xff]
      %v2029 = vld [vmem:[#allocation3 + $0x80] sm:$0xff]
      %v2030 = vld [vmem:[#allocation3 + $0x88] sm:$0xff]
      %v2031 = vld [vmem:[#allocation3 + $0x90] sm:$0xff]
      %v2032 = vld [vmem:[#allocation3 + $0x98] sm:$0xff]
      %v2033 = vld [vmem:[#allocation3 + $0xa0] sm:$0xff]
      %v2034 = vld [vmem:[#allocation3 + $0xa8] sm:$0xff]
      %v2035 = vld [vmem:[#allocation3 + $0xb0] sm:$0xff]
      %v2036 = vld [vmem:[#allocation3 + $0xb8] sm:$0xff]
      %v2037 = vld [vmem:[#allocation3 + $0xc0] sm:$0xff]
      %v2038 = vld [vmem:[#allocation3 + $0xc8] sm:$0xff]
      %v2039 = vld [vmem:[#allocation3 + $0xd0] sm:$0xff]
      %v2040 = vld [vmem:[#allocation3 + $0xd8] sm:$0xff]
      %v2041 = vld [vmem:[#allocation3 + $0xe0] sm:$0xff]
      %v2042 = vld [vmem:[#allocation3 + $0xe8] sm:$0xff]
      %v2043 = vld [vmem:[#allocation3 + $0xf0] sm:$0xff]
      %v2044 = vld [vmem:[#allocation3 + $0xf8] sm:$0xff]
      %v2045 = vadd.f32 %v2013, %v1887
      %v2046 = vadd.f32 %v2014, %v1890
      %v2047 = vadd.f32 %v2015, %v1895
      %v2048 = vadd.f32 %v2016, %v1898
      %v2049 = vadd.f32 %v2017, %v1903
      %v2050 = vadd.f32 %v2018, %v1906
      %v2051 = vadd.f32 %v2019, %v1911
      %v2052 = vadd.f32 %v2020, %v1914
      %v2053 = vadd.f32 %v2021, %v1919
      %v2054 = vadd.f32 %v2022, %v1922
      %v2055 = vadd.f32 %v2023, %v1927
      %v2056 = vadd.f32 %v2024, %v1930
      %v2057 = vadd.f32 %v2025, %v1935
      %v2058 = vadd.f32 %v2026, %v1938
      %v2059 = vadd.f32 %v2027, %v1943
      %v2060 = vadd.f32 %v2028, %v1946
      %v2061 = vadd.f32 %v2029, %v1951
      %v2062 = vadd.f32 %v2030, %v1954
      %v2063 = vadd.f32 %v2031, %v1959
      %v2064 = vadd.f32 %v2032, %v1962
      %v2065 = vadd.f32 %v2033, %v1967
      %v2066 = vadd.f32 %v2034, %v1970
      %v2067 = vadd.f32 %v2035, %v1975
      %v2068 = vadd.f32 %v2036, %v1978
      %v2069 = vadd.f32 %v2037, %v1983
      %v2070 = vadd.f32 %v2038, %v1986
      %v2071 = vadd.f32 %v2039, %v1991
      %v2072 = vadd.f32 %v2040, %v1994
      %v2073 = vadd.f32 %v2041, %v1999
      %v2074 = vadd.f32 %v2042, %v2002
      %v2075 = vadd.f32 %v2043, %v2007
      %v2076 = vadd.f32 %v2044, %v2010
      %2077 = vst [vmem:[#allocation3] sm:$0xff] %v2045
      %2078 = vst [vmem:[#allocation3 + $0x8] sm:$0xff] %v2046
      %2079 = vst [vmem:[#allocation3 + $0x10] sm:$0xff] %v2047
      %2080 = vst [vmem:[#allocation3 + $0x18] sm:$0xff] %v2048
      %2081 = vst [vmem:[#allocation3 + $0x20] sm:$0xff] %v2049
      %2082 = vst [vmem:[#allocation3 + $0x28] sm:$0xff] %v2050
      %2083 = vst [vmem:[#allocation3 + $0x30] sm:$0xff] %v2051
      %2084 = vst [vmem:[#allocation3 + $0x38] sm:$0xff] %v2052
      %2085 = vst [vmem:[#allocation3 + $0x40] sm:$0xff] %v2053
      %2086 = vst [vmem:[#allocation3 + $0x48] sm:$0xff] %v2054
      %2087 = vst [vmem:[#allocation3 + $0x50] sm:$0xff] %v2055
      %2088 = vst [vmem:[#allocation3 + $0x58] sm:$0xff] %v2056
      %2089 = vst [vmem:[#allocation3 + $0x60] sm:$0xff] %v2057
      %2090 = vst [vmem:[#allocation3 + $0x68] sm:$0xff] %v2058
      %2091 = vst [vmem:[#allocation3 + $0x70] sm:$0xff] %v2059
      %2092 = vst [vmem:[#allocation3 + $0x78] sm:$0xff] %v2060
      %2093 = vst [vmem:[#allocation3 + $0x80] sm:$0xff] %v2061
      %2094 = vst [vmem:[#allocation3 + $0x88] sm:$0xff] %v2062
      %2095 = vst [vmem:[#allocation3 + $0x90] sm:$0xff] %v2063
      %2096 = vst [vmem:[#allocation3 + $0x98] sm:$0xff] %v2064
      %2097 = vst [vmem:[#allocation3 + $0xa0] sm:$0xff] %v2065
      %2098 = vst [vmem:[#allocation3 + $0xa8] sm:$0xff] %v2066
      %2099 = vst [vmem:[#allocation3 + $0xb0] sm:$0xff] %v2067
      %2100 = vst [vmem:[#allocation3 + $0xb8] sm:$0xff] %v2068
      %2101 = vst [vmem:[#allocation3 + $0xc0] sm:$0xff] %v2069
      %2102 = vst [vmem:[#allocation3 + $0xc8] sm:$0xff] %v2070
      %2103 = vst [vmem:[#allocation3 + $0xd0] sm:$0xff] %v2071
      %2104 = vst [vmem:[#allocation3 + $0xd8] sm:$0xff] %v2072
      %2105 = vst [vmem:[#allocation3 + $0xe0] sm:$0xff] %v2073
      %2106 = vst [vmem:[#allocation3 + $0xe8] sm:$0xff] %v2074
      %2107 = vst [vmem:[#allocation3 + $0xf0] sm:$0xff] %v2075
      %2108 = vst [vmem:[#allocation3 + $0xf8] sm:$0xff] %v2076
      %v2109 = vld [vmem:[#allocation2] sm:$0xf]
      %v2110 = vld [vmem:[#allocation2 + $0x4] sm:$0xf]
      %v2111 = vld [vmem:[#allocation2 + $0x8] sm:$0x1]
      %v2112 = vld [vmem:[#allocation2 + $0xc] sm:$0xf]
      %v2113 = vld [vmem:[#allocation2 + $0x10] sm:$0xf]
      %v2114 = vld [vmem:[#allocation2 + $0x14] sm:$0x1]
      %v2115 = vld [vmem:[#allocation2 + $0x18] sm:$0xf]
      %v2116 = vld [vmem:[#allocation2 + $0x1c] sm:$0xf]
      %v2117 = vld [vmem:[#allocation2 + $0x20] sm:$0x1]
      %v2118 = vld [vmem:[#allocation2 + $0x24] sm:$0xf]
      %v2119 = vld [vmem:[#allocation2 + $0x28] sm:$0xf]
      %v2120 = vld [vmem:[#allocation2 + $0x2c] sm:$0x1]
      %v2121 = vld [vmem:[#allocation2 + $0x30] sm:$0xf]
      %v2122 = vld [vmem:[#allocation2 + $0x34] sm:$0xf]
      %v2123 = vld [vmem:[#allocation2 + $0x38] sm:$0x1]
      %v2124 = vld [vmem:[#allocation2 + $0x3c] sm:$0xf]
      %v2125 = vld [vmem:[#allocation2 + $0x40] sm:$0xf]
      %v2126 = vld [vmem:[#allocation2 + $0x44] sm:$0x1]
      %v2127 = vld [vmem:[#allocation2 + $0x48] sm:$0xf]
      %v2128 = vld [vmem:[#allocation2 + $0x4c] sm:$0xf]
      %v2129 = vld [vmem:[#allocation2 + $0x50] sm:$0x1]
      %v2130 = vld [vmem:[#allocation2 + $0x54] sm:$0xf]
      %v2131 = vld [vmem:[#allocation2 + $0x58] sm:$0xf]
      %v2132 = vld [vmem:[#allocation2 + $0x5c] sm:$0x1]
      %v2133 = vld [vmem:[#allocation2 + $0x60] sm:$0xf]
      %v2134 = vld [vmem:[#allocation2 + $0x64] sm:$0xf]
      %v2135 = vld [vmem:[#allocation2 + $0x68] sm:$0x1]
      %v2136 = vld [vmem:[#allocation2 + $0x6c] sm:$0xf]
      %v2137 = vld [vmem:[#allocation2 + $0x70] sm:$0xf]
      %v2138 = vld [vmem:[#allocation2 + $0x74] sm:$0x1]
      %v2139 = vld [vmem:[#allocation2 + $0x78] sm:$0xf]
      %v2140 = vld [vmem:[#allocation2 + $0x7c] sm:$0xf]
      %v2141 = vld [vmem:[#allocation2 + $0x80] sm:$0x1]
      %v2142 = vld [vmem:[#allocation2 + $0x84] sm:$0xf]
      %v2143 = vld [vmem:[#allocation2 + $0x88] sm:$0xf]
      %v2144 = vld [vmem:[#allocation2 + $0x8c] sm:$0x1]
      %v2145 = vld [vmem:[#allocation2 + $0x90] sm:$0xf]
      %v2146 = vld [vmem:[#allocation2 + $0x94] sm:$0xf]
      %v2147 = vld [vmem:[#allocation2 + $0x98] sm:$0x1]
      %v2148 = vld [vmem:[#allocation2 + $0x9c] sm:$0xf]
      %v2149 = vld [vmem:[#allocation2 + $0xa0] sm:$0xf]
      %v2150 = vld [vmem:[#allocation2 + $0xa4] sm:$0x1]
      %v2151 = vld [vmem:[#allocation2 + $0xa8] sm:$0xf]
      %v2152 = vld [vmem:[#allocation2 + $0xac] sm:$0xf]
      %v2153 = vld [vmem:[#allocation2 + $0xb0] sm:$0x1]
      %v2154 = vld [vmem:[#allocation2 + $0xb4] sm:$0xf]
      %v2155 = vld [vmem:[#allocation2 + $0xb8] sm:$0xf]
      %v2156 = vld [vmem:[#allocation2 + $0xbc] sm:$0x1]
      %v2157 = vld [vmem:[#allocation2 + $0xc0] sm:$0xf]
      %v2158 = vld [vmem:[#allocation2 + $0xc4] sm:$0xf]
      %v2159 = vld [vmem:[#allocation2 + $0xc8] sm:$0x1]
      %v2160 = vld [vmem:[#allocation2 + $0xcc] sm:$0xf]
      %v2161 = vld [vmem:[#allocation2 + $0xd0] sm:$0xf]
      %v2162 = vld [vmem:[#allocation2 + $0xd4] sm:$0x1]
      %vm2163 = vsmask.f32 3328
      %vm2164 = vsmask.f32 7440
      %vm2165 = vmor %vm2163, %vm2164
      %v2167 = vshrl.u32 %v2109, 16
      %v2169 = vrot.slane %v2167, 4
      %v2170 = vshll.u32 %v2109, 16
      %v2172 = vrot.slane %v2170, 5
      %v2173 = vor.u32 %v2169, %v2172
      %v2174 = vrot.slane %v2173, 4
      %v2176 = vshll.u32 %v2110, 16
      %v2178 = vrot.slane %v2176, 5
      %v2179 = vsel %vm2165, %v2174, %v2178
      %v2180 = vshrl.u32 %v2110, 16
      %v2182 = vrot.slane %v2180, 4
      %v2183 = vor.u32 %v2182, %v2178
      %v2184 = vrot.slane %v2183, 4
      %v2186 = vshll.u32 %v2111, 16
      %v2188 = vrot.slane %v2186, 5
      %v2189 = vsel %vm2165, %v2184, %v2188
      %v2191 = vshrl.u32 %v2112, 16
      %v2193 = vrot.slane %v2191, 4
      %v2194 = vshll.u32 %v2112, 16
      %v2196 = vrot.slane %v2194, 5
      %v2197 = vor.u32 %v2193, %v2196
      %v2198 = vrot.slane %v2197, 4
      %v2200 = vshll.u32 %v2113, 16
      %v2202 = vrot.slane %v2200, 5
      %v2203 = vsel %vm2165, %v2198, %v2202
      %v2204 = vshrl.u32 %v2113, 16
      %v2206 = vrot.slane %v2204, 4
      %v2207 = vor.u32 %v2206, %v2202
      %v2208 = vrot.slane %v2207, 4
      %v2210 = vshll.u32 %v2114, 16
      %v2212 = vrot.slane %v2210, 5
      %v2213 = vsel %vm2165, %v2208, %v2212
      %v2215 = vshrl.u32 %v2115, 16
      %v2217 = vrot.slane %v2215, 4
      %v2218 = vshll.u32 %v2115, 16
      %v2220 = vrot.slane %v2218, 5
      %v2221 = vor.u32 %v2217, %v2220
      %v2222 = vrot.slane %v2221, 4
      %v2224 = vshll.u32 %v2116, 16
      %v2226 = vrot.slane %v2224, 5
      %v2227 = vsel %vm2165, %v2222, %v2226
      %v2228 = vshrl.u32 %v2116, 16
      %v2230 = vrot.slane %v2228, 4
      %v2231 = vor.u32 %v2230, %v2226
      %v2232 = vrot.slane %v2231, 4
      %v2234 = vshll.u32 %v2117, 16
      %v2236 = vrot.slane %v2234, 5
      %v2237 = vsel %vm2165, %v2232, %v2236
      %v2239 = vshrl.u32 %v2118, 16
      %v2241 = vrot.slane %v2239, 4
      %v2242 = vshll.u32 %v2118, 16
      %v2244 = vrot.slane %v2242, 5
      %v2245 = vor.u32 %v2241, %v2244
      %v2246 = vrot.slane %v2245, 4
      %v2248 = vshll.u32 %v2119, 16
      %v2250 = vrot.slane %v2248, 5
      %v2251 = vsel %vm2165, %v2246, %v2250
      %v2252 = vshrl.u32 %v2119, 16
      %v2254 = vrot.slane %v2252, 4
      %v2255 = vor.u32 %v2254, %v2250
      %v2256 = vrot.slane %v2255, 4
      %v2258 = vshll.u32 %v2120, 16
      %v2260 = vrot.slane %v2258, 5
      %v2261 = vsel %vm2165, %v2256, %v2260
      %v2263 = vshrl.u32 %v2121, 16
      %v2265 = vrot.slane %v2263, 4
      %v2266 = vshll.u32 %v2121, 16
      %v2268 = vrot.slane %v2266, 5
      %v2269 = vor.u32 %v2265, %v2268
      %v2270 = vrot.slane %v2269, 4
      %v2272 = vshll.u32 %v2122, 16
      %v2274 = vrot.slane %v2272, 5
      %v2275 = vsel %vm2165, %v2270, %v2274
      %v2276 = vshrl.u32 %v2122, 16
      %v2278 = vrot.slane %v2276, 4
      %v2279 = vor.u32 %v2278, %v2274
      %v2280 = vrot.slane %v2279, 4
      %v2282 = vshll.u32 %v2123, 16
      %v2284 = vrot.slane %v2282, 5
      %v2285 = vsel %vm2165, %v2280, %v2284
      %v2287 = vshrl.u32 %v2124, 16
      %v2289 = vrot.slane %v2287, 4
      %v2290 = vshll.u32 %v2124, 16
      %v2292 = vrot.slane %v2290, 5
      %v2293 = vor.u32 %v2289, %v2292
      %v2294 = vrot.slane %v2293, 4
      %v2296 = vshll.u32 %v2125, 16
      %v2298 = vrot.slane %v2296, 5
      %v2299 = vsel %vm2165, %v2294, %v2298
      %v2300 = vshrl.u32 %v2125, 16
      %v2302 = vrot.slane %v2300, 4
      %v2303 = vor.u32 %v2302, %v2298
      %v2304 = vrot.slane %v2303, 4
      %v2306 = vshll.u32 %v2126, 16
      %v2308 = vrot.slane %v2306, 5
      %v2309 = vsel %vm2165, %v2304, %v2308
      %v2311 = vshrl.u32 %v2127, 16
      %v2313 = vrot.slane %v2311, 4
      %v2314 = vshll.u32 %v2127, 16
      %v2316 = vrot.slane %v2314, 5
      %v2317 = vor.u32 %v2313, %v2316
      %v2318 = vrot.slane %v2317, 4
      %v2320 = vshll.u32 %v2128, 16
      %v2322 = vrot.slane %v2320, 5
      %v2323 = vsel %vm2165, %v2318, %v2322
      %v2324 = vshrl.u32 %v2128, 16
      %v2326 = vrot.slane %v2324, 4
      %v2327 = vor.u32 %v2326, %v2322
      %v2328 = vrot.slane %v2327, 4
      %v2330 = vshll.u32 %v2129, 16
      %v2332 = vrot.slane %v2330, 5
      %v2333 = vsel %vm2165, %v2328, %v2332
      %v2335 = vshrl.u32 %v2130, 16
      %v2337 = vrot.slane %v2335, 4
      %v2338 = vshll.u32 %v2130, 16
      %v2340 = vrot.slane %v2338, 5
      %v2341 = vor.u32 %v2337, %v2340
      %v2342 = vrot.slane %v2341, 4
      %v2344 = vshll.u32 %v2131, 16
      %v2346 = vrot.slane %v2344, 5
      %v2347 = vsel %vm2165, %v2342, %v2346
      %v2348 = vshrl.u32 %v2131, 16
      %v2350 = vrot.slane %v2348, 4
      %v2351 = vor.u32 %v2350, %v2346
      %v2352 = vrot.slane %v2351, 4
      %v2354 = vshll.u32 %v2132, 16
      %v2356 = vrot.slane %v2354, 5
      %v2357 = vsel %vm2165, %v2352, %v2356
      %v2359 = vshrl.u32 %v2133, 16
      %v2361 = vrot.slane %v2359, 4
      %v2362 = vshll.u32 %v2133, 16
      %v2364 = vrot.slane %v2362, 5
      %v2365 = vor.u32 %v2361, %v2364
      %v2366 = vrot.slane %v2365, 4
      %v2368 = vshll.u32 %v2134, 16
      %v2370 = vrot.slane %v2368, 5
      %v2371 = vsel %vm2165, %v2366, %v2370
      %v2372 = vshrl.u32 %v2134, 16
      %v2374 = vrot.slane %v2372, 4
      %v2375 = vor.u32 %v2374, %v2370
      %v2376 = vrot.slane %v2375, 4
      %v2378 = vshll.u32 %v2135, 16
      %v2380 = vrot.slane %v2378, 5
      %v2381 = vsel %vm2165, %v2376, %v2380
      %v2383 = vshrl.u32 %v2136, 16
      %v2385 = vrot.slane %v2383, 4
      %v2386 = vshll.u32 %v2136, 16
      %v2388 = vrot.slane %v2386, 5
      %v2389 = vor.u32 %v2385, %v2388
      %v2390 = vrot.slane %v2389, 4
      %v2392 = vshll.u32 %v2137, 16
      %v2394 = vrot.slane %v2392, 5
      %v2395 = vsel %vm2165, %v2390, %v2394
      %v2396 = vshrl.u32 %v2137, 16
      %v2398 = vrot.slane %v2396, 4
      %v2399 = vor.u32 %v2398, %v2394
      %v2400 = vrot.slane %v2399, 4
      %v2402 = vshll.u32 %v2138, 16
      %v2404 = vrot.slane %v2402, 5
      %v2405 = vsel %vm2165, %v2400, %v2404
      %v2407 = vshrl.u32 %v2139, 16
      %v2409 = vrot.slane %v2407, 4
      %v2410 = vshll.u32 %v2139, 16
      %v2412 = vrot.slane %v2410, 5
      %v2413 = vor.u32 %v2409, %v2412
      %v2414 = vrot.slane %v2413, 4
      %v2416 = vshll.u32 %v2140, 16
      %v2418 = vrot.slane %v2416, 5
      %v2419 = vsel %vm2165, %v2414, %v2418
      %v2420 = vshrl.u32 %v2140, 16
      %v2422 = vrot.slane %v2420, 4
      %v2423 = vor.u32 %v2422, %v2418
      %v2424 = vrot.slane %v2423, 4
      %v2426 = vshll.u32 %v2141, 16
      %v2428 = vrot.slane %v2426, 5
      %v2429 = vsel %vm2165, %v2424, %v2428
      %v2431 = vshrl.u32 %v2142, 16
      %v2433 = vrot.slane %v2431, 4
      %v2434 = vshll.u32 %v2142, 16
      %v2436 = vrot.slane %v2434, 5
      %v2437 = vor.u32 %v2433, %v2436
      %v2438 = vrot.slane %v2437, 4
      %v2440 = vshll.u32 %v2143, 16
      %v2442 = vrot.slane %v2440, 5
      %v2443 = vsel %vm2165, %v2438, %v2442
      %v2444 = vshrl.u32 %v2143, 16
      %v2446 = vrot.slane %v2444, 4
      %v2447 = vor.u32 %v2446, %v2442
      %v2448 = vrot.slane %v2447, 4
      %v2450 = vshll.u32 %v2144, 16
      %v2452 = vrot.slane %v2450, 5
      %v2453 = vsel %vm2165, %v2448, %v2452
      %v2455 = vshrl.u32 %v2145, 16
      %v2457 = vrot.slane %v2455, 4
      %v2458 = vshll.u32 %v2145, 16
      %v2460 = vrot.slane %v2458, 5
      %v2461 = vor.u32 %v2457, %v2460
      %v2462 = vrot.slane %v2461, 4
      %v2464 = vshll.u32 %v2146, 16
      %v2466 = vrot.slane %v2464, 5
      %v2467 = vsel %vm2165, %v2462, %v2466
      %v2468 = vshrl.u32 %v2146, 16
      %v2470 = vrot.slane %v2468, 4
      %v2471 = vor.u32 %v2470, %v2466
      %v2472 = vrot.slane %v2471, 4
      %v2474 = vshll.u32 %v2147, 16
      %v2476 = vrot.slane %v2474, 5
      %v2477 = vsel %vm2165, %v2472, %v2476
      %v2479 = vshrl.u32 %v2148, 16
      %v2481 = vrot.slane %v2479, 4
      %v2482 = vshll.u32 %v2148, 16
      %v2484 = vrot.slane %v2482, 5
      %v2485 = vor.u32 %v2481, %v2484
      %v2486 = vrot.slane %v2485, 4
      %v2488 = vshll.u32 %v2149, 16
      %v2490 = vrot.slane %v2488, 5
      %v2491 = vsel %vm2165, %v2486, %v2490
      %v2492 = vshrl.u32 %v2149, 16
      %v2494 = vrot.slane %v2492, 4
      %v2495 = vor.u32 %v2494, %v2490
      %v2496 = vrot.slane %v2495, 4
      %v2498 = vshll.u32 %v2150, 16
      %v2500 = vrot.slane %v2498, 5
      %v2501 = vsel %vm2165, %v2496, %v2500
      %v2503 = vshrl.u32 %v2151, 16
      %v2505 = vrot.slane %v2503, 4
      %v2506 = vshll.u32 %v2151, 16
      %v2508 = vrot.slane %v2506, 5
      %v2509 = vor.u32 %v2505, %v2508
      %v2510 = vrot.slane %v2509, 4
      %v2512 = vshll.u32 %v2152, 16
      %v2514 = vrot.slane %v2512, 5
      %v2515 = vsel %vm2165, %v2510, %v2514
      %v2516 = vshrl.u32 %v2152, 16
      %v2518 = vrot.slane %v2516, 4
      %v2519 = vor.u32 %v2518, %v2514
      %v2520 = vrot.slane %v2519, 4
      %v2522 = vshll.u32 %v2153, 16
      %v2524 = vrot.slane %v2522, 5
      %v2525 = vsel %vm2165, %v2520, %v2524
      %v2527 = vshrl.u32 %v2154, 16
      %v2529 = vrot.slane %v2527, 4
      %v2530 = vshll.u32 %v2154, 16
      %v2532 = vrot.slane %v2530, 5
      %v2533 = vor.u32 %v2529, %v2532
      %v2534 = vrot.slane %v2533, 4
      %v2536 = vshll.u32 %v2155, 16
      %v2538 = vrot.slane %v2536, 5
      %v2539 = vsel %vm2165, %v2534, %v2538
      %v2540 = vshrl.u32 %v2155, 16
      %v2542 = vrot.slane %v2540, 4
      %v2543 = vor.u32 %v2542, %v2538
      %v2544 = vrot.slane %v2543, 4
      %v2546 = vshll.u32 %v2156, 16
      %v2548 = vrot.slane %v2546, 5
      %v2549 = vsel %vm2165, %v2544, %v2548
      %s2550 = scalar_lea.vmem %s1, 64
      %v2551 = vld [vmem:[%s2550] sm:$0xf]
      %v2552 = vld [vmem:[%s2550 + $0x4] sm:$0xf]
      %v2553 = vld [vmem:[%s2550 + $0x8] sm:$0xf]
      %v2554 = vld [vmem:[%s2550 + $0xc] sm:$0xf]
      %v2555 = vld [vmem:[%s2550 + $0x10] sm:$0xf]
      %v2556 = vld [vmem:[%s2550 + $0x14] sm:$0xf]
      %v2557 = vld [vmem:[%s2550 + $0x18] sm:$0xf]
      %v2558 = vld [vmem:[%s2550 + $0x1c] sm:$0xf]
      %v2559 = vld [vmem:[%s2550 + $0x20] sm:$0xf]
      %v2560 = vld [vmem:[%s2550 + $0x24] sm:$0xf]
      %v2561 = vld [vmem:[%s2550 + $0x28] sm:$0xf]
      %v2562 = vld [vmem:[%s2550 + $0x2c] sm:$0xf]
      %v2563 = vld [vmem:[%s2550 + $0x30] sm:$0xf]
      %v2564 = vld [vmem:[%s2550 + $0x34] sm:$0xf]
      %v2565 = vld [vmem:[%s2550 + $0x38] sm:$0xf]
      %v2566 = vld [vmem:[%s2550 + $0x3c] sm:$0xf]
      %v2567 = vunpack.c.l.b16 %v2179
      %v2568 = vunpack.c.l.b16 %v2189
      %v2569 = vunpack.c.l.b16 %v2203
      %v2570 = vunpack.c.l.b16 %v2213
      %v2571 = vunpack.c.l.b16 %v2227
      %v2572 = vunpack.c.l.b16 %v2237
      %v2573 = vunpack.c.l.b16 %v2251
      %v2574 = vunpack.c.l.b16 %v2261
      %v2575 = vunpack.c.l.b16 %v2275
      %v2576 = vunpack.c.l.b16 %v2285
      %v2577 = vunpack.c.l.b16 %v2299
      %v2578 = vunpack.c.l.b16 %v2309
      %v2579 = vunpack.c.l.b16 %v2323
      %v2580 = vunpack.c.l.b16 %v2333
      %v2581 = vunpack.c.l.b16 %v2347
      %v2582 = vunpack.c.l.b16 %v2357
      %v2583 = vunpack.c.l.b16 %v2371
      %v2584 = vunpack.c.l.b16 %v2381
      %v2585 = vunpack.c.l.b16 %v2395
      %v2586 = vunpack.c.l.b16 %v2405
      %v2587 = vunpack.c.l.b16 %v2419
      %v2588 = vunpack.c.l.b16 %v2429
      %v2589 = vunpack.c.l.b16 %v2443
      %v2590 = vunpack.c.l.b16 %v2453
      %v2591 = vunpack.c.l.b16 %v2467
      %v2592 = vunpack.c.l.b16 %v2477
      %v2593 = vunpack.c.l.b16 %v2491
      %v2594 = vunpack.c.l.b16 %v2501
      %v2595 = vunpack.c.l.b16 %v2515
      %v2596 = vunpack.c.l.b16 %v2525
      %v2597 = vunpack.c.l.b16 %v2539
      %v2598 = vunpack.c.l.b16 %v2549
      %v2599 = vpack.c.b16 %v2568, %v2567
      %v2600 = vpack.c.b16 %v2570, %v2569
      %v2601 = vpack.c.b16 %v2572, %v2571
      %v2602 = vpack.c.b16 %v2574, %v2573
      %v2603 = vpack.c.b16 %v2576, %v2575
      %v2604 = vpack.c.b16 %v2578, %v2577
      %v2605 = vpack.c.b16 %v2580, %v2579
      %v2606 = vpack.c.b16 %v2582, %v2581
      %v2607 = vpack.c.b16 %v2584, %v2583
      %v2608 = vpack.c.b16 %v2586, %v2585
      %v2609 = vpack.c.b16 %v2588, %v2587
      %v2610 = vpack.c.b16 %v2590, %v2589
      %v2611 = vpack.c.b16 %v2592, %v2591
      %v2612 = vpack.c.b16 %v2594, %v2593
      %v2613 = vpack.c.b16 %v2596, %v2595
      %v2614 = vpack.c.b16 %v2598, %v2597
      %v2647 = vunpack.c.l.b16 %v2551
      %v2648 = vunpack.c.l.b16 %v2552
      %v2649 = vunpack.c.l.b16 %v2553
      %v2650 = vunpack.c.l.b16 %v2554
      %v2651 = vunpack.c.l.b16 %v2555
      %v2652 = vunpack.c.l.b16 %v2556
      %v2653 = vunpack.c.l.b16 %v2557
      %v2654 = vunpack.c.l.b16 %v2558
      %v2655 = vunpack.c.l.b16 %v2559
      %v2656 = vunpack.c.l.b16 %v2560
      %v2657 = vunpack.c.l.b16 %v2561
      %v2658 = vunpack.c.l.b16 %v2562
      %v2659 = vunpack.c.l.b16 %v2563
      %v2660 = vunpack.c.l.b16 %v2564
      %v2661 = vunpack.c.l.b16 %v2565
      %v2662 = vunpack.c.l.b16 %v2566
      %v2663 = vpack.c.b16 %v2648, %v2647
      %v2664 = vpack.c.b16 %v2650, %v2649
      %v2665 = vpack.c.b16 %v2652, %v2651
      %v2666 = vpack.c.b16 %v2654, %v2653
      %v2667 = vpack.c.b16 %v2656, %v2655
      %v2668 = vpack.c.b16 %v2658, %v2657
      %v2669 = vpack.c.b16 %v2660, %v2659
      %v2670 = vpack.c.b16 %v2662, %v2661
      %2679 = vmatprep.subr.bf16.mxu0 0
      %2680 = vmatpush1.bf16.msra.mxu0 %v2670
      %2681 = vmatprep.subr.bf16.mxu0 0
      %2682 = vmatpush1.bf16.msra.mxu0 %v2669
      %2683 = vmatprep.subr.bf16.mxu0 0
      %2684 = vmatpush1.bf16.msra.mxu0 %v2668
      %2685 = vmatprep.subr.bf16.mxu0 0
      %2686 = vmatpush1.bf16.msra.mxu0 %v2667
      %2687 = vmatprep.subr.bf16.mxu0 0
      %2688 = vmatpush1.bf16.msra.mxu0 %v2666
      %2689 = vmatprep.subr.bf16.mxu0 0
      %2690 = vmatpush1.bf16.msra.mxu0 %v2665
      %2691 = vmatprep.subr.bf16.mxu0 0
      %2692 = vmatpush1.bf16.msra.mxu0 %v2664
      %2693 = vmatprep.subr.bf16.mxu0 0
      %2694 = vmatpush1.bf16.msra.mxu0 %v2663
      %2695 = vmatprep.subr.bf16.mxu0 0
      %2696 = vmatpush2.bf16.msra.mxu0 0
      %2697 = vmatprep.subr.bf16.mxu0 0
      %2698 = vmatpush2.bf16.msra.mxu0 0
      %2699 = vmatprep.subr.bf16.mxu0 0
      %2700 = vmatpush2.bf16.msra.mxu0 0
      %2701 = vmatprep.subr.bf16.mxu0 0
      %2702 = vmatpush2.bf16.msra.mxu0 0
      %2703 = vmatprep.subr.bf16.mxu0 0
      %2704 = vmatpush2.bf16.msra.mxu0 0
      %2705 = vmatprep.subr.bf16.mxu0 0
      %2706 = vmatpush2.bf16.msra.mxu0 0
      %2707 = vmatprep.subr.bf16.mxu0 0
      %2708 = vmatpush2.bf16.msra.mxu0 0
      %2709 = vmatprep.subr.bf16.mxu0 0
      %2710 = vmatpush2.bf16.msra.mxu0 0
      %2711 = vmatprep.mubr.bf16.mxu0 0
      %2712 = vmatmul.mubr.bf16.gmra.mxu0 %v2599
      %v2713 = vpop.f32.mrf.mxu0
      %v2714 = vadd.f32 0.0, %v2713
      %v2715 = vpop.f32.mrf.mxu0
      %v2716 = vpop.f32.mrf.mxu0
      %v2717 = vadd.f32 0.0, %v2716
      %v2718 = vpop.f32.mrf.mxu0
      %2719 = vmatprep.mubr.bf16.mxu0 0
      %2720 = vmatmul.mubr.bf16.gmra.mxu0 %v2600
      %v2721 = vpop.f32.mrf.mxu0
      %v2722 = vadd.f32 0.0, %v2721
      %v2723 = vpop.f32.mrf.mxu0
      %v2724 = vpop.f32.mrf.mxu0
      %v2725 = vadd.f32 0.0, %v2724
      %v2726 = vpop.f32.mrf.mxu0
      %2727 = vmatprep.mubr.bf16.mxu0 0
      %2728 = vmatmul.mubr.bf16.gmra.mxu0 %v2601
      %v2729 = vpop.f32.mrf.mxu0
      %v2730 = vadd.f32 0.0, %v2729
      %v2731 = vpop.f32.mrf.mxu0
      %v2732 = vpop.f32.mrf.mxu0
      %v2733 = vadd.f32 0.0, %v2732
      %v2734 = vpop.f32.mrf.mxu0
      %2735 = vmatprep.mubr.bf16.mxu0 0
      %2736 = vmatmul.mubr.bf16.gmra.mxu0 %v2602
      %v2737 = vpop.f32.mrf.mxu0
      %v2738 = vadd.f32 0.0, %v2737
      %v2739 = vpop.f32.mrf.mxu0
      %v2740 = vpop.f32.mrf.mxu0
      %v2741 = vadd.f32 0.0, %v2740
      %v2742 = vpop.f32.mrf.mxu0
      %2743 = vmatprep.mubr.bf16.mxu0 0
      %2744 = vmatmul.mubr.bf16.gmra.mxu0 %v2603
      %v2745 = vpop.f32.mrf.mxu0
      %v2746 = vadd.f32 0.0, %v2745
      %v2747 = vpop.f32.mrf.mxu0
      %v2748 = vpop.f32.mrf.mxu0
      %v2749 = vadd.f32 0.0, %v2748
      %v2750 = vpop.f32.mrf.mxu0
      %2751 = vmatprep.mubr.bf16.mxu0 0
      %2752 = vmatmul.mubr.bf16.gmra.mxu0 %v2604
      %v2753 = vpop.f32.mrf.mxu0
      %v2754 = vadd.f32 0.0, %v2753
      %v2755 = vpop.f32.mrf.mxu0
      %v2756 = vpop.f32.mrf.mxu0
      %v2757 = vadd.f32 0.0, %v2756
      %v2758 = vpop.f32.mrf.mxu0
      %2759 = vmatprep.mubr.bf16.mxu0 0
      %2760 = vmatmul.mubr.bf16.gmra.mxu0 %v2605
      %v2761 = vpop.f32.mrf.mxu0
      %v2762 = vadd.f32 0.0, %v2761
      %v2763 = vpop.f32.mrf.mxu0
      %v2764 = vpop.f32.mrf.mxu0
      %v2765 = vadd.f32 0.0, %v2764
      %v2766 = vpop.f32.mrf.mxu0
      %2767 = vmatprep.mubr.bf16.mxu0 0
      %2768 = vmatmul.mubr.bf16.gmra.mxu0 %v2606
      %v2769 = vpop.f32.mrf.mxu0
      %v2770 = vadd.f32 0.0, %v2769
      %v2771 = vpop.f32.mrf.mxu0
      %v2772 = vpop.f32.mrf.mxu0
      %v2773 = vadd.f32 0.0, %v2772
      %v2774 = vpop.f32.mrf.mxu0
      %2775 = vmatprep.mubr.bf16.mxu0 0
      %2776 = vmatmul.mubr.bf16.gmra.mxu0 %v2607
      %v2777 = vpop.f32.mrf.mxu0
      %v2778 = vadd.f32 0.0, %v2777
      %v2779 = vpop.f32.mrf.mxu0
      %v2780 = vpop.f32.mrf.mxu0
      %v2781 = vadd.f32 0.0, %v2780
      %v2782 = vpop.f32.mrf.mxu0
      %2783 = vmatprep.mubr.bf16.mxu0 0
      %2784 = vmatmul.mubr.bf16.gmra.mxu0 %v2608
      %v2785 = vpop.f32.mrf.mxu0
      %v2786 = vadd.f32 0.0, %v2785
      %v2787 = vpop.f32.mrf.mxu0
      %v2788 = vpop.f32.mrf.mxu0
      %v2789 = vadd.f32 0.0, %v2788
      %v2790 = vpop.f32.mrf.mxu0
      %2791 = vmatprep.mubr.bf16.mxu0 0
      %2792 = vmatmul.mubr.bf16.gmra.mxu0 %v2609
      %v2793 = vpop.f32.mrf.mxu0
      %v2794 = vadd.f32 0.0, %v2793
      %v2795 = vpop.f32.mrf.mxu0
      %v2796 = vpop.f32.mrf.mxu0
      %v2797 = vadd.f32 0.0, %v2796
      %v2798 = vpop.f32.mrf.mxu0
      %2799 = vmatprep.mubr.bf16.mxu0 0
      %2800 = vmatmul.mubr.bf16.gmra.mxu0 %v2610
      %v2801 = vpop.f32.mrf.mxu0
      %v2802 = vadd.f32 0.0, %v2801
      %v2803 = vpop.f32.mrf.mxu0
      %v2804 = vpop.f32.mrf.mxu0
      %v2805 = vadd.f32 0.0, %v2804
      %v2806 = vpop.f32.mrf.mxu0
      %2807 = vmatprep.mubr.bf16.mxu0 0
      %2808 = vmatmul.mubr.bf16.gmra.mxu0 %v2611
      %v2809 = vpop.f32.mrf.mxu0
      %v2810 = vadd.f32 0.0, %v2809
      %v2811 = vpop.f32.mrf.mxu0
      %v2812 = vpop.f32.mrf.mxu0
      %v2813 = vadd.f32 0.0, %v2812
      %v2814 = vpop.f32.mrf.mxu0
      %2815 = vmatprep.mubr.bf16.mxu0 0
      %2816 = vmatmul.mubr.bf16.gmra.mxu0 %v2612
      %v2817 = vpop.f32.mrf.mxu0
      %v2818 = vadd.f32 0.0, %v2817
      %v2819 = vpop.f32.mrf.mxu0
      %v2820 = vpop.f32.mrf.mxu0
      %v2821 = vadd.f32 0.0, %v2820
      %v2822 = vpop.f32.mrf.mxu0
      %2823 = vmatprep.mubr.bf16.mxu0 0
      %2824 = vmatmul.mubr.bf16.gmra.mxu0 %v2613
      %v2825 = vpop.f32.mrf.mxu0
      %v2826 = vadd.f32 0.0, %v2825
      %v2827 = vpop.f32.mrf.mxu0
      %v2828 = vpop.f32.mrf.mxu0
      %v2829 = vadd.f32 0.0, %v2828
      %v2830 = vpop.f32.mrf.mxu0
      %2831 = vmatprep.mubr.bf16.mxu0 0
      %2832 = vmatmul.mubr.bf16.gmra.mxu0 %v2614
      %v2833 = vpop.f32.mrf.mxu0
      %v2834 = vadd.f32 0.0, %v2833
      %v2835 = vpop.f32.mrf.mxu0
      %v2836 = vpop.f32.mrf.mxu0
      %v2837 = vadd.f32 0.0, %v2836
      %v2838 = vpop.f32.mrf.mxu0
      %2839 = vdwg.mxu0
      %v2840 = vld [vmem:[#allocation3] sm:$0xff]
      %v2841 = vld [vmem:[#allocation3 + $0x8] sm:$0xff]
      %v2842 = vld [vmem:[#allocation3 + $0x10] sm:$0xff]
      %v2843 = vld [vmem:[#allocation3 + $0x18] sm:$0xff]
      %v2844 = vld [vmem:[#allocation3 + $0x20] sm:$0xff]
      %v2845 = vld [vmem:[#allocation3 + $0x28] sm:$0xff]
      %v2846 = vld [vmem:[#allocation3 + $0x30] sm:$0xff]
      %v2847 = vld [vmem:[#allocation3 + $0x38] sm:$0xff]
      %v2848 = vld [vmem:[#allocation3 + $0x40] sm:$0xff]
      %v2849 = vld [vmem:[#allocation3 + $0x48] sm:$0xff]
      %v2850 = vld [vmem:[#allocation3 + $0x50] sm:$0xff]
      %v2851 = vld [vmem:[#allocation3 + $0x58] sm:$0xff]
      %v2852 = vld [vmem:[#allocation3 + $0x60] sm:$0xff]
      %v2853 = vld [vmem:[#allocation3 + $0x68] sm:$0xff]
      %v2854 = vld [vmem:[#allocation3 + $0x70] sm:$0xff]
      %v2855 = vld [vmem:[#allocation3 + $0x78] sm:$0xff]
      %v2856 = vld [vmem:[#allocation3 + $0x80] sm:$0xff]
      %v2857 = vld [vmem:[#allocation3 + $0x88] sm:$0xff]
      %v2858 = vld [vmem:[#allocation3 + $0x90] sm:$0xff]
      %v2859 = vld [vmem:[#allocation3 + $0x98] sm:$0xff]
      %v2860 = vld [vmem:[#allocation3 + $0xa0] sm:$0xff]
      %v2861 = vld [vmem:[#allocation3 + $0xa8] sm:$0xff]
      %v2862 = vld [vmem:[#allocation3 + $0xb0] sm:$0xff]
      %v2863 = vld [vmem:[#allocation3 + $0xb8] sm:$0xff]
      %v2864 = vld [vmem:[#allocation3 + $0xc0] sm:$0xff]
      %v2865 = vld [vmem:[#allocation3 + $0xc8] sm:$0xff]
      %v2866 = vld [vmem:[#allocation3 + $0xd0] sm:$0xff]
      %v2867 = vld [vmem:[#allocation3 + $0xd8] sm:$0xff]
      %v2868 = vld [vmem:[#allocation3 + $0xe0] sm:$0xff]
      %v2869 = vld [vmem:[#allocation3 + $0xe8] sm:$0xff]
      %v2870 = vld [vmem:[#allocation3 + $0xf0] sm:$0xff]
      %v2871 = vld [vmem:[#allocation3 + $0xf8] sm:$0xff]
      %v2872 = vadd.f32 %v2840, %v2714
      %v2873 = vadd.f32 %v2841, %v2717
      %v2874 = vadd.f32 %v2842, %v2722
      %v2875 = vadd.f32 %v2843, %v2725
      %v2876 = vadd.f32 %v2844, %v2730
      %v2877 = vadd.f32 %v2845, %v2733
      %v2878 = vadd.f32 %v2846, %v2738
      %v2879 = vadd.f32 %v2847, %v2741
      %v2880 = vadd.f32 %v2848, %v2746
      %v2881 = vadd.f32 %v2849, %v2749
      %v2882 = vadd.f32 %v2850, %v2754
      %v2883 = vadd.f32 %v2851, %v2757
      %v2884 = vadd.f32 %v2852, %v2762
      %v2885 = vadd.f32 %v2853, %v2765
      %v2886 = vadd.f32 %v2854, %v2770
      %v2887 = vadd.f32 %v2855, %v2773
      %v2888 = vadd.f32 %v2856, %v2778
      %v2889 = vadd.f32 %v2857, %v2781
      %v2890 = vadd.f32 %v2858, %v2786
      %v2891 = vadd.f32 %v2859, %v2789
      %v2892 = vadd.f32 %v2860, %v2794
      %v2893 = vadd.f32 %v2861, %v2797
      %v2894 = vadd.f32 %v2862, %v2802
      %v2895 = vadd.f32 %v2863, %v2805
      %v2896 = vadd.f32 %v2864, %v2810
      %v2897 = vadd.f32 %v2865, %v2813
      %v2898 = vadd.f32 %v2866, %v2818
      %v2899 = vadd.f32 %v2867, %v2821
      %v2900 = vadd.f32 %v2868, %v2826
      %v2901 = vadd.f32 %v2869, %v2829
      %v2902 = vadd.f32 %v2870, %v2834
      %v2903 = vadd.f32 %v2871, %v2837
      %2904 = vst [vmem:[#allocation3] sm:$0xff] %v2872
      %2905 = vst [vmem:[#allocation3 + $0x8] sm:$0xff] %v2873
      %2906 = vst [vmem:[#allocation3 + $0x10] sm:$0xff] %v2874
      %2907 = vst [vmem:[#allocation3 + $0x18] sm:$0xff] %v2875
      %2908 = vst [vmem:[#allocation3 + $0x20] sm:$0xff] %v2876
      %2909 = vst [vmem:[#allocation3 + $0x28] sm:$0xff] %v2877
      %2910 = vst [vmem:[#allocation3 + $0x30] sm:$0xff] %v2878
      %2911 = vst [vmem:[#allocation3 + $0x38] sm:$0xff] %v2879
      %2912 = vst [vmem:[#allocation3 + $0x40] sm:$0xff] %v2880
      %2913 = vst [vmem:[#allocation3 + $0x48] sm:$0xff] %v2881
      %2914 = vst [vmem:[#allocation3 + $0x50] sm:$0xff] %v2882
      %2915 = vst [vmem:[#allocation3 + $0x58] sm:$0xff] %v2883
      %2916 = vst [vmem:[#allocation3 + $0x60] sm:$0xff] %v2884
      %2917 = vst [vmem:[#allocation3 + $0x68] sm:$0xff] %v2885
      %2918 = vst [vmem:[#allocation3 + $0x70] sm:$0xff] %v2886
      %2919 = vst [vmem:[#allocation3 + $0x78] sm:$0xff] %v2887
      %2920 = vst [vmem:[#allocation3 + $0x80] sm:$0xff] %v2888
      %2921 = vst [vmem:[#allocation3 + $0x88] sm:$0xff] %v2889
      %2922 = vst [vmem:[#allocation3 + $0x90] sm:$0xff] %v2890
      %2923 = vst [vmem:[#allocation3 + $0x98] sm:$0xff] %v2891
      %2924 = vst [vmem:[#allocation3 + $0xa0] sm:$0xff] %v2892
      %2925 = vst [vmem:[#allocation3 + $0xa8] sm:$0xff] %v2893
      %2926 = vst [vmem:[#allocation3 + $0xb0] sm:$0xff] %v2894
      %2927 = vst [vmem:[#allocation3 + $0xb8] sm:$0xff] %v2895
      %2928 = vst [vmem:[#allocation3 + $0xc0] sm:$0xff] %v2896
      %2929 = vst [vmem:[#allocation3 + $0xc8] sm:$0xff] %v2897
      %2930 = vst [vmem:[#allocation3 + $0xd0] sm:$0xff] %v2898
      %2931 = vst [vmem:[#allocation3 + $0xd8] sm:$0xff] %v2899
      %2932 = vst [vmem:[#allocation3 + $0xe0] sm:$0xff] %v2900
      %2933 = vst [vmem:[#allocation3 + $0xe8] sm:$0xff] %v2901
      %2934 = vst [vmem:[#allocation3 + $0xf0] sm:$0xff] %v2902
      %2935 = vst [vmem:[#allocation3 + $0xf8] sm:$0xff] %v2903
      %v2937 = vshrl.u32 %v2157, 16
      %v2939 = vrot.slane %v2937, 4
      %v2940 = vshll.u32 %v2157, 16
      %v2942 = vrot.slane %v2940, 5
      %v2943 = vor.u32 %v2939, %v2942
      %v2944 = vrot.slane %v2943, 4
      %v2946 = vshll.u32 %v2158, 16
      %v2948 = vrot.slane %v2946, 5
      %v2949 = vsel %vm2165, %v2944, %v2948
      %v2950 = vshrl.u32 %v2158, 16
      %v2952 = vrot.slane %v2950, 4
      %v2953 = vor.u32 %v2952, %v2948
      %v2954 = vrot.slane %v2953, 4
      %v2956 = vshll.u32 %v2159, 16
      %v2958 = vrot.slane %v2956, 5
      %v2959 = vsel %vm2165, %v2954, %v2958
      %s2960 = scalar_lea.vmem %s1, 256
      %v2961 = vld [vmem:[%s2960] sm:$0xf]
      %v2962 = vld [vmem:[%s2960 + $0x4] sm:$0xf]
      %v2963 = vld [vmem:[%s2960 + $0x8] sm:$0xf]
      %v2964 = vld [vmem:[%s2960 + $0xc] sm:$0xf]
      %v2965 = vld [vmem:[%s2960 + $0x10] sm:$0xf]
      %v2966 = vld [vmem:[%s2960 + $0x14] sm:$0xf]
      %v2967 = vld [vmem:[%s2960 + $0x18] sm:$0xf]
      %v2968 = vld [vmem:[%s2960 + $0x1c] sm:$0xf]
      %v2969 = vld [vmem:[%s2960 + $0x20] sm:$0xf]
      %v2970 = vld [vmem:[%s2960 + $0x24] sm:$0xf]
      %v2971 = vld [vmem:[%s2960 + $0x28] sm:$0xf]
      %v2972 = vld [vmem:[%s2960 + $0x2c] sm:$0xf]
      %v2973 = vld [vmem:[%s2960 + $0x30] sm:$0xf]
      %v2974 = vld [vmem:[%s2960 + $0x34] sm:$0xf]
      %v2975 = vld [vmem:[%s2960 + $0x38] sm:$0xf]
      %v2976 = vld [vmem:[%s2960 + $0x3c] sm:$0xf]
      %v2977 = vunpack.c.l.b16 %v2949
      %v2978 = vunpack.c.l.b16 %v2959
      %v2979 = vpack.c.b16 %v2978, %v2977
      %v2997 = vunpack.c.l.b16 %v2961
      %v2998 = vunpack.c.l.b16 %v2962
      %v2999 = vunpack.c.l.b16 %v2963
      %v3000 = vunpack.c.l.b16 %v2964
      %v3001 = vunpack.c.l.b16 %v2965
      %v3002 = vunpack.c.l.b16 %v2966
      %v3003 = vunpack.c.l.b16 %v2967
      %v3004 = vunpack.c.l.b16 %v2968
      %v3005 = vunpack.c.l.b16 %v2969
      %v3006 = vunpack.c.l.b16 %v2970
      %v3007 = vunpack.c.l.b16 %v2971
      %v3008 = vunpack.c.l.b16 %v2972
      %v3009 = vunpack.c.l.b16 %v2973
      %v3010 = vunpack.c.l.b16 %v2974
      %v3011 = vunpack.c.l.b16 %v2975
      %v3012 = vunpack.c.l.b16 %v2976
      %v3013 = vpack.c.b16 %v2998, %v2997
      %v3014 = vpack.c.b16 %v3000, %v2999
      %v3015 = vpack.c.b16 %v3002, %v3001
      %v3016 = vpack.c.b16 %v3004, %v3003
      %v3017 = vpack.c.b16 %v3006, %v3005
      %v3018 = vpack.c.b16 %v3008, %v3007
      %v3019 = vpack.c.b16 %v3010, %v3009
      %v3020 = vpack.c.b16 %v3012, %v3011
      %3029 = vmatprep.subr.bf16.mxu0 0
      %3030 = vmatpush1.bf16.msra.mxu0 %v3020
      %3031 = vmatprep.subr.bf16.mxu0 0
      %3032 = vmatpush1.bf16.msra.mxu0 %v3019
      %3033 = vmatprep.subr.bf16.mxu0 0
      %3034 = vmatpush1.bf16.msra.mxu0 %v3018
      %3035 = vmatprep.subr.bf16.mxu0 0
      %3036 = vmatpush1.bf16.msra.mxu0 %v3017
      %3037 = vmatprep.subr.bf16.mxu0 0
      %3038 = vmatpush1.bf16.msra.mxu0 %v3016
      %3039 = vmatprep.subr.bf16.mxu0 0
      %3040 = vmatpush1.bf16.msra.mxu0 %v3015
      %3041 = vmatprep.subr.bf16.mxu0 0
      %3042 = vmatpush1.bf16.msra.mxu0 %v3014
      %3043 = vmatprep.subr.bf16.mxu0 0
      %3044 = vmatpush1.bf16.msra.mxu0 %v3013
      %3045 = vmatprep.subr.bf16.mxu0 0
      %3046 = vmatpush2.bf16.msra.mxu0 0
      %3047 = vmatprep.subr.bf16.mxu0 0
      %3048 = vmatpush2.bf16.msra.mxu0 0
      %3049 = vmatprep.subr.bf16.mxu0 0
      %3050 = vmatpush2.bf16.msra.mxu0 0
      %3051 = vmatprep.subr.bf16.mxu0 0
      %3052 = vmatpush2.bf16.msra.mxu0 0
      %3053 = vmatprep.subr.bf16.mxu0 0
      %3054 = vmatpush2.bf16.msra.mxu0 0
      %3055 = vmatprep.subr.bf16.mxu0 0
      %3056 = vmatpush2.bf16.msra.mxu0 0
      %3057 = vmatprep.subr.bf16.mxu0 0
      %3058 = vmatpush2.bf16.msra.mxu0 0
      %3059 = vmatprep.subr.bf16.mxu0 0
      %3060 = vmatpush2.bf16.msra.mxu0 0
      %3061 = vmatprep.mubr.bf16.mxu0 0
      %3062 = vmatmul.mubr.bf16.gmra.mxu0 %v2600
      %v3063 = vpop.f32.mrf.mxu0
      %v3064 = vadd.f32 0.0, %v3063
      %v3065 = vpop.f32.mrf.mxu0
      %v3066 = vpop.f32.mrf.mxu0
      %v3067 = vadd.f32 0.0, %v3066
      %v3068 = vpop.f32.mrf.mxu0
      %3069 = vmatprep.mubr.bf16.mxu0 0
      %3070 = vmatmul.mubr.bf16.gmra.mxu0 %v2601
      %v3071 = vpop.f32.mrf.mxu0
      %v3072 = vadd.f32 0.0, %v3071
      %v3073 = vpop.f32.mrf.mxu0
      %v3074 = vpop.f32.mrf.mxu0
      %v3075 = vadd.f32 0.0, %v3074
      %v3076 = vpop.f32.mrf.mxu0
      %3077 = vmatprep.mubr.bf16.mxu0 0
      %3078 = vmatmul.mubr.bf16.gmra.mxu0 %v2602
      %v3079 = vpop.f32.mrf.mxu0
      %v3080 = vadd.f32 0.0, %v3079
      %v3081 = vpop.f32.mrf.mxu0
      %v3082 = vpop.f32.mrf.mxu0
      %v3083 = vadd.f32 0.0, %v3082
      %v3084 = vpop.f32.mrf.mxu0
      %3085 = vmatprep.mubr.bf16.mxu0 0
      %3086 = vmatmul.mubr.bf16.gmra.mxu0 %v2603
      %v3087 = vpop.f32.mrf.mxu0
      %v3088 = vadd.f32 0.0, %v3087
      %v3089 = vpop.f32.mrf.mxu0
      %v3090 = vpop.f32.mrf.mxu0
      %v3091 = vadd.f32 0.0, %v3090
      %v3092 = vpop.f32.mrf.mxu0
      %3093 = vmatprep.mubr.bf16.mxu0 0
      %3094 = vmatmul.mubr.bf16.gmra.mxu0 %v2604
      %v3095 = vpop.f32.mrf.mxu0
      %v3096 = vadd.f32 0.0, %v3095
      %v3097 = vpop.f32.mrf.mxu0
      %v3098 = vpop.f32.mrf.mxu0
      %v3099 = vadd.f32 0.0, %v3098
      %v3100 = vpop.f32.mrf.mxu0
      %3101 = vmatprep.mubr.bf16.mxu0 0
      %3102 = vmatmul.mubr.bf16.gmra.mxu0 %v2605
      %v3103 = vpop.f32.mrf.mxu0
      %v3104 = vadd.f32 0.0, %v3103
      %v3105 = vpop.f32.mrf.mxu0
      %v3106 = vpop.f32.mrf.mxu0
      %v3107 = vadd.f32 0.0, %v3106
      %v3108 = vpop.f32.mrf.mxu0
      %3109 = vmatprep.mubr.bf16.mxu0 0
      %3110 = vmatmul.mubr.bf16.gmra.mxu0 %v2606
      %v3111 = vpop.f32.mrf.mxu0
      %v3112 = vadd.f32 0.0, %v3111
      %v3113 = vpop.f32.mrf.mxu0
      %v3114 = vpop.f32.mrf.mxu0
      %v3115 = vadd.f32 0.0, %v3114
      %v3116 = vpop.f32.mrf.mxu0
      %3117 = vmatprep.mubr.bf16.mxu0 0
      %3118 = vmatmul.mubr.bf16.gmra.mxu0 %v2607
      %v3119 = vpop.f32.mrf.mxu0
      %v3120 = vadd.f32 0.0, %v3119
      %v3121 = vpop.f32.mrf.mxu0
      %v3122 = vpop.f32.mrf.mxu0
      %v3123 = vadd.f32 0.0, %v3122
      %v3124 = vpop.f32.mrf.mxu0
      %3125 = vmatprep.mubr.bf16.mxu0 0
      %3126 = vmatmul.mubr.bf16.gmra.mxu0 %v2608
      %v3127 = vpop.f32.mrf.mxu0
      %v3128 = vadd.f32 0.0, %v3127
      %v3129 = vpop.f32.mrf.mxu0
      %v3130 = vpop.f32.mrf.mxu0
      %v3131 = vadd.f32 0.0, %v3130
      %v3132 = vpop.f32.mrf.mxu0
      %3133 = vmatprep.mubr.bf16.mxu0 0
      %3134 = vmatmul.mubr.bf16.gmra.mxu0 %v2609
      %v3135 = vpop.f32.mrf.mxu0
      %v3136 = vadd.f32 0.0, %v3135
      %v3137 = vpop.f32.mrf.mxu0
      %v3138 = vpop.f32.mrf.mxu0
      %v3139 = vadd.f32 0.0, %v3138
      %v3140 = vpop.f32.mrf.mxu0
      %3141 = vmatprep.mubr.bf16.mxu0 0
      %3142 = vmatmul.mubr.bf16.gmra.mxu0 %v2610
      %v3143 = vpop.f32.mrf.mxu0
      %v3144 = vadd.f32 0.0, %v3143
      %v3145 = vpop.f32.mrf.mxu0
      %v3146 = vpop.f32.mrf.mxu0
      %v3147 = vadd.f32 0.0, %v3146
      %v3148 = vpop.f32.mrf.mxu0
      %3149 = vmatprep.mubr.bf16.mxu0 0
      %3150 = vmatmul.mubr.bf16.gmra.mxu0 %v2611
      %v3151 = vpop.f32.mrf.mxu0
      %v3152 = vadd.f32 0.0, %v3151
      %v3153 = vpop.f32.mrf.mxu0
      %v3154 = vpop.f32.mrf.mxu0
      %v3155 = vadd.f32 0.0, %v3154
      %v3156 = vpop.f32.mrf.mxu0
      %3157 = vmatprep.mubr.bf16.mxu0 0
      %3158 = vmatmul.mubr.bf16.gmra.mxu0 %v2612
      %v3159 = vpop.f32.mrf.mxu0
      %v3160 = vadd.f32 0.0, %v3159
      %v3161 = vpop.f32.mrf.mxu0
      %v3162 = vpop.f32.mrf.mxu0
      %v3163 = vadd.f32 0.0, %v3162
      %v3164 = vpop.f32.mrf.mxu0
      %3165 = vmatprep.mubr.bf16.mxu0 0
      %3166 = vmatmul.mubr.bf16.gmra.mxu0 %v2613
      %v3167 = vpop.f32.mrf.mxu0
      %v3168 = vadd.f32 0.0, %v3167
      %v3169 = vpop.f32.mrf.mxu0
      %v3170 = vpop.f32.mrf.mxu0
      %v3171 = vadd.f32 0.0, %v3170
      %v3172 = vpop.f32.mrf.mxu0
      %3173 = vmatprep.mubr.bf16.mxu0 0
      %3174 = vmatmul.mubr.bf16.gmra.mxu0 %v2614
      %v3175 = vpop.f32.mrf.mxu0
      %v3176 = vadd.f32 0.0, %v3175
      %v3177 = vpop.f32.mrf.mxu0
      %v3178 = vpop.f32.mrf.mxu0
      %v3179 = vadd.f32 0.0, %v3178
      %v3180 = vpop.f32.mrf.mxu0
      %3181 = vmatprep.mubr.bf16.mxu0 0
      %3182 = vmatmul.mubr.bf16.gmra.mxu0 %v2979
      %v3183 = vpop.f32.mrf.mxu0
      %v3184 = vadd.f32 0.0, %v3183
      %v3185 = vpop.f32.mrf.mxu0
      %v3186 = vpop.f32.mrf.mxu0
      %v3187 = vadd.f32 0.0, %v3186
      %v3188 = vpop.f32.mrf.mxu0
      %3189 = vdwg.mxu0
      %v3190 = vld [vmem:[#allocation3] sm:$0xff]
      %v3191 = vld [vmem:[#allocation3 + $0x8] sm:$0xff]
      %v3192 = vld [vmem:[#allocation3 + $0x10] sm:$0xff]
      %v3193 = vld [vmem:[#allocation3 + $0x18] sm:$0xff]
      %v3194 = vld [vmem:[#allocation3 + $0x20] sm:$0xff]
      %v3195 = vld [vmem:[#allocation3 + $0x28] sm:$0xff]
      %v3196 = vld [vmem:[#allocation3 + $0x30] sm:$0xff]
      %v3197 = vld [vmem:[#allocation3 + $0x38] sm:$0xff]
      %v3198 = vld [vmem:[#allocation3 + $0x40] sm:$0xff]
      %v3199 = vld [vmem:[#allocation3 + $0x48] sm:$0xff]
      %v3200 = vld [vmem:[#allocation3 + $0x50] sm:$0xff]
      %v3201 = vld [vmem:[#allocation3 + $0x58] sm:$0xff]
      %v3202 = vld [vmem:[#allocation3 + $0x60] sm:$0xff]
      %v3203 = vld [vmem:[#allocation3 + $0x68] sm:$0xff]
      %v3204 = vld [vmem:[#allocation3 + $0x70] sm:$0xff]
      %v3205 = vld [vmem:[#allocation3 + $0x78] sm:$0xff]
      %v3206 = vld [vmem:[#allocation3 + $0x80] sm:$0xff]
      %v3207 = vld [vmem:[#allocation3 + $0x88] sm:$0xff]
      %v3208 = vld [vmem:[#allocation3 + $0x90] sm:$0xff]
      %v3209 = vld [vmem:[#allocation3 + $0x98] sm:$0xff]
      %v3210 = vld [vmem:[#allocation3 + $0xa0] sm:$0xff]
      %v3211 = vld [vmem:[#allocation3 + $0xa8] sm:$0xff]
      %v3212 = vld [vmem:[#allocation3 + $0xb0] sm:$0xff]
      %v3213 = vld [vmem:[#allocation3 + $0xb8] sm:$0xff]
      %v3214 = vld [vmem:[#allocation3 + $0xc0] sm:$0xff]
      %v3215 = vld [vmem:[#allocation3 + $0xc8] sm:$0xff]
      %v3216 = vld [vmem:[#allocation3 + $0xd0] sm:$0xff]
      %v3217 = vld [vmem:[#allocation3 + $0xd8] sm:$0xff]
      %v3218 = vld [vmem:[#allocation3 + $0xe0] sm:$0xff]
      %v3219 = vld [vmem:[#allocation3 + $0xe8] sm:$0xff]
      %v3220 = vld [vmem:[#allocation3 + $0xf0] sm:$0xff]
      %v3221 = vld [vmem:[#allocation3 + $0xf8] sm:$0xff]
      %v3222 = vadd.f32 %v3190, %v3064
      %v3223 = vadd.f32 %v3191, %v3067
      %v3224 = vadd.f32 %v3192, %v3072
      %v3225 = vadd.f32 %v3193, %v3075
      %v3226 = vadd.f32 %v3194, %v3080
      %v3227 = vadd.f32 %v3195, %v3083
      %v3228 = vadd.f32 %v3196, %v3088
      %v3229 = vadd.f32 %v3197, %v3091
      %v3230 = vadd.f32 %v3198, %v3096
      %v3231 = vadd.f32 %v3199, %v3099
      %v3232 = vadd.f32 %v3200, %v3104
      %v3233 = vadd.f32 %v3201, %v3107
      %v3234 = vadd.f32 %v3202, %v3112
      %v3235 = vadd.f32 %v3203, %v3115
      %v3236 = vadd.f32 %v3204, %v3120
      %v3237 = vadd.f32 %v3205, %v3123
      %v3238 = vadd.f32 %v3206, %v3128
      %v3239 = vadd.f32 %v3207, %v3131
      %v3240 = vadd.f32 %v3208, %v3136
      %v3241 = vadd.f32 %v3209, %v3139
      %v3242 = vadd.f32 %v3210, %v3144
      %v3243 = vadd.f32 %v3211, %v3147
      %v3244 = vadd.f32 %v3212, %v3152
      %v3245 = vadd.f32 %v3213, %v3155
      %v3246 = vadd.f32 %v3214, %v3160
      %v3247 = vadd.f32 %v3215, %v3163
      %v3248 = vadd.f32 %v3216, %v3168
      %v3249 = vadd.f32 %v3217, %v3171
      %v3250 = vadd.f32 %v3218, %v3176
      %v3251 = vadd.f32 %v3219, %v3179
      %v3252 = vadd.f32 %v3220, %v3184
      %v3253 = vadd.f32 %v3221, %v3187
      %3254 = vst [vmem:[#allocation3] sm:$0xff] %v3222
      %3255 = vst [vmem:[#allocation3 + $0x8] sm:$0xff] %v3223
      %3256 = vst [vmem:[#allocation3 + $0x10] sm:$0xff] %v3224
      %3257 = vst [vmem:[#allocation3 + $0x18] sm:$0xff] %v3225
      %3258 = vst [vmem:[#allocation3 + $0x20] sm:$0xff] %v3226
      %3259 = vst [vmem:[#allocation3 + $0x28] sm:$0xff] %v3227
      %3260 = vst [vmem:[#allocation3 + $0x30] sm:$0xff] %v3228
      %3261 = vst [vmem:[#allocation3 + $0x38] sm:$0xff] %v3229
      %3262 = vst [vmem:[#allocation3 + $0x40] sm:$0xff] %v3230
      %3263 = vst [vmem:[#allocation3 + $0x48] sm:$0xff] %v3231
      %3264 = vst [vmem:[#allocation3 + $0x50] sm:$0xff] %v3232
      %3265 = vst [vmem:[#allocation3 + $0x58] sm:$0xff] %v3233
      %3266 = vst [vmem:[#allocation3 + $0x60] sm:$0xff] %v3234
      %3267 = vst [vmem:[#allocation3 + $0x68] sm:$0xff] %v3235
      %3268 = vst [vmem:[#allocation3 + $0x70] sm:$0xff] %v3236
      %3269 = vst [vmem:[#allocation3 + $0x78] sm:$0xff] %v3237
      %3270 = vst [vmem:[#allocation3 + $0x80] sm:$0xff] %v3238
      %3271 = vst [vmem:[#allocation3 + $0x88] sm:$0xff] %v3239
      %3272 = vst [vmem:[#allocation3 + $0x90] sm:$0xff] %v3240
      %3273 = vst [vmem:[#allocation3 + $0x98] sm:$0xff] %v3241
      %3274 = vst [vmem:[#allocation3 + $0xa0] sm:$0xff] %v3242
      %3275 = vst [vmem:[#allocation3 + $0xa8] sm:$0xff] %v3243
      %3276 = vst [vmem:[#allocation3 + $0xb0] sm:$0xff] %v3244
      %3277 = vst [vmem:[#allocation3 + $0xb8] sm:$0xff] %v3245
      %3278 = vst [vmem:[#allocation3 + $0xc0] sm:$0xff] %v3246
      %3279 = vst [vmem:[#allocation3 + $0xc8] sm:$0xff] %v3247
      %3280 = vst [vmem:[#allocation3 + $0xd0] sm:$0xff] %v3248
      %3281 = vst [vmem:[#allocation3 + $0xd8] sm:$0xff] %v3249
      %3282 = vst [vmem:[#allocation3 + $0xe0] sm:$0xff] %v3250
      %3283 = vst [vmem:[#allocation3 + $0xe8] sm:$0xff] %v3251
      %3284 = vst [vmem:[#allocation3 + $0xf0] sm:$0xff] %v3252
      %3285 = vst [vmem:[#allocation3 + $0xf8] sm:$0xff] %v3253
      %v3287 = vshrl.u32 %v2160, 16
      %v3289 = vrot.slane %v3287, 4
      %v3290 = vshll.u32 %v2160, 16
      %v3292 = vrot.slane %v3290, 5
      %v3293 = vor.u32 %v3289, %v3292
      %v3294 = vrot.slane %v3293, 4
      %v3296 = vshll.u32 %v2161, 16
      %v3298 = vrot.slane %v3296, 5
      %v3299 = vsel %vm2165, %v3294, %v3298
      %v3300 = vshrl.u32 %v2161, 16
      %v3302 = vrot.slane %v3300, 4
      %v3303 = vor.u32 %v3302, %v3298
      %v3304 = vrot.slane %v3303, 4
      %v3306 = vshll.u32 %v2162, 16
      %v3308 = vrot.slane %v3306, 5
      %v3309 = vsel %vm2165, %v3304, %v3308
      %s3310 = scalar_lea.vmem %s1, 448
      %v3311 = vld [vmem:[%s3310] sm:$0xf]
      %v3312 = vld [vmem:[%s3310 + $0x4] sm:$0xf]
      %v3313 = vld [vmem:[%s3310 + $0x8] sm:$0xf]
      %v3314 = vld [vmem:[%s3310 + $0xc] sm:$0xf]
      %v3315 = vld [vmem:[%s3310 + $0x10] sm:$0xf]
      %v3316 = vld [vmem:[%s3310 + $0x14] sm:$0xf]
      %v3317 = vld [vmem:[%s3310 + $0x18] sm:$0xf]
      %v3318 = vld [vmem:[%s3310 + $0x1c] sm:$0xf]
      %v3319 = vld [vmem:[%s3310 + $0x20] sm:$0xf]
      %v3320 = vld [vmem:[%s3310 + $0x24] sm:$0xf]
      %v3321 = vld [vmem:[%s3310 + $0x28] sm:$0xf]
      %v3322 = vld [vmem:[%s3310 + $0x2c] sm:$0xf]
      %v3323 = vld [vmem:[%s3310 + $0x30] sm:$0xf]
      %v3324 = vld [vmem:[%s3310 + $0x34] sm:$0xf]
      %v3325 = vld [vmem:[%s3310 + $0x38] sm:$0xf]
      %v3326 = vld [vmem:[%s3310 + $0x3c] sm:$0xf]
      %v3327 = vunpack.c.l.b16 %v3299
      %v3328 = vunpack.c.l.b16 %v3309
      %v3329 = vpack.c.b16 %v3328, %v3327
      %v3347 = vunpack.c.l.b16 %v3311
      %v3348 = vunpack.c.l.b16 %v3312
      %v3349 = vunpack.c.l.b16 %v3313
      %v3350 = vunpack.c.l.b16 %v3314
      %v3351 = vunpack.c.l.b16 %v3315
      %v3352 = vunpack.c.l.b16 %v3316
      %v3353 = vunpack.c.l.b16 %v3317
      %v3354 = vunpack.c.l.b16 %v3318
      %v3355 = vunpack.c.l.b16 %v3319
      %v3356 = vunpack.c.l.b16 %v3320
      %v3357 = vunpack.c.l.b16 %v3321
      %v3358 = vunpack.c.l.b16 %v3322
      %v3359 = vunpack.c.l.b16 %v3323
      %v3360 = vunpack.c.l.b16 %v3324
      %v3361 = vunpack.c.l.b16 %v3325
      %v3362 = vunpack.c.l.b16 %v3326
      %v3363 = vpack.c.b16 %v3348, %v3347
      %v3364 = vpack.c.b16 %v3350, %v3349
      %v3365 = vpack.c.b16 %v3352, %v3351
      %v3366 = vpack.c.b16 %v3354, %v3353
      %v3367 = vpack.c.b16 %v3356, %v3355
      %v3368 = vpack.c.b16 %v3358, %v3357
      %v3369 = vpack.c.b16 %v3360, %v3359
      %v3370 = vpack.c.b16 %v3362, %v3361
      %3379 = vmatprep.subr.bf16.mxu0 0
      %3380 = vmatpush1.bf16.msra.mxu0 %v3370
      %3381 = vmatprep.subr.bf16.mxu0 0
      %3382 = vmatpush1.bf16.msra.mxu0 %v3369
      %3383 = vmatprep.subr.bf16.mxu0 0
      %3384 = vmatpush1.bf16.msra.mxu0 %v3368
      %3385 = vmatprep.subr.bf16.mxu0 0
      %3386 = vmatpush1.bf16.msra.mxu0 %v3367
      %3387 = vmatprep.subr.bf16.mxu0 0
      %3388 = vmatpush1.bf16.msra.mxu0 %v3366
      %3389 = vmatprep.subr.bf16.mxu0 0
      %3390 = vmatpush1.bf16.msra.mxu0 %v3365
      %3391 = vmatprep.subr.bf16.mxu0 0
      %3392 = vmatpush1.bf16.msra.mxu0 %v3364
      %3393 = vmatprep.subr.bf16.mxu0 0
      %3394 = vmatpush1.bf16.msra.mxu0 %v3363
      %3395 = vmatprep.subr.bf16.mxu0 0
      %3396 = vmatpush2.bf16.msra.mxu0 0
      %3397 = vmatprep.subr.bf16.mxu0 0
      %3398 = vmatpush2.bf16.msra.mxu0 0
      %3399 = vmatprep.subr.bf16.mxu0 0
      %3400 = vmatpush2.bf16.msra.mxu0 0
      %3401 = vmatprep.subr.bf16.mxu0 0
      %3402 = vmatpush2.bf16.msra.mxu0 0
      %3403 = vmatprep.subr.bf16.mxu0 0
      %3404 = vmatpush2.bf16.msra.mxu0 0
      %3405 = vmatprep.subr.bf16.mxu0 0
      %3406 = vmatpush2.bf16.msra.mxu0 0
      %3407 = vmatprep.subr.bf16.mxu0 0
      %3408 = vmatpush2.bf16.msra.mxu0 0
      %3409 = vmatprep.subr.bf16.mxu0 0
      %3410 = vmatpush2.bf16.msra.mxu0 0
      %3411 = vmatprep.mubr.bf16.mxu0 0
      %3412 = vmatmul.mubr.bf16.gmra.mxu0 %v2601
      %v3413 = vpop.f32.mrf.mxu0
      %v3414 = vadd.f32 0.0, %v3413
      %v3415 = vpop.f32.mrf.mxu0
      %v3416 = vpop.f32.mrf.mxu0
      %v3417 = vadd.f32 0.0, %v3416
      %v3418 = vpop.f32.mrf.mxu0
      %3419 = vmatprep.mubr.bf16.mxu0 0
      %3420 = vmatmul.mubr.bf16.gmra.mxu0 %v2602
      %v3421 = vpop.f32.mrf.mxu0
      %v3422 = vadd.f32 0.0, %v3421
      %v3423 = vpop.f32.mrf.mxu0
      %v3424 = vpop.f32.mrf.mxu0
      %v3425 = vadd.f32 0.0, %v3424
      %v3426 = vpop.f32.mrf.mxu0
      %3427 = vmatprep.mubr.bf16.mxu0 0
      %3428 = vmatmul.mubr.bf16.gmra.mxu0 %v2603
      %v3429 = vpop.f32.mrf.mxu0
      %v3430 = vadd.f32 0.0, %v3429
      %v3431 = vpop.f32.mrf.mxu0
      %v3432 = vpop.f32.mrf.mxu0
      %v3433 = vadd.f32 0.0, %v3432
      %v3434 = vpop.f32.mrf.mxu0
      %3435 = vmatprep.mubr.bf16.mxu0 0
      %3436 = vmatmul.mubr.bf16.gmra.mxu0 %v2604
      %v3437 = vpop.f32.mrf.mxu0
      %v3438 = vadd.f32 0.0, %v3437
      %v3439 = vpop.f32.mrf.mxu0
      %v3440 = vpop.f32.mrf.mxu0
      %v3441 = vadd.f32 0.0, %v3440
      %v3442 = vpop.f32.mrf.mxu0
      %3443 = vmatprep.mubr.bf16.mxu0 0
      %3444 = vmatmul.mubr.bf16.gmra.mxu0 %v2605
      %v3445 = vpop.f32.mrf.mxu0
      %v3446 = vadd.f32 0.0, %v3445
      %v3447 = vpop.f32.mrf.mxu0
      %v3448 = vpop.f32.mrf.mxu0
      %v3449 = vadd.f32 0.0, %v3448
      %v3450 = vpop.f32.mrf.mxu0
      %3451 = vmatprep.mubr.bf16.mxu0 0
      %3452 = vmatmul.mubr.bf16.gmra.mxu0 %v2606
      %v3453 = vpop.f32.mrf.mxu0
      %v3454 = vadd.f32 0.0, %v3453
      %v3455 = vpop.f32.mrf.mxu0
      %v3456 = vpop.f32.mrf.mxu0
      %v3457 = vadd.f32 0.0, %v3456
      %v3458 = vpop.f32.mrf.mxu0
      %3459 = vmatprep.mubr.bf16.mxu0 0
      %3460 = vmatmul.mubr.bf16.gmra.mxu0 %v2607
      %v3461 = vpop.f32.mrf.mxu0
      %v3462 = vadd.f32 0.0, %v3461
      %v3463 = vpop.f32.mrf.mxu0
      %v3464 = vpop.f32.mrf.mxu0
      %v3465 = vadd.f32 0.0, %v3464
      %v3466 = vpop.f32.mrf.mxu0
      %3467 = vmatprep.mubr.bf16.mxu0 0
      %3468 = vmatmul.mubr.bf16.gmra.mxu0 %v2608
      %v3469 = vpop.f32.mrf.mxu0
      %v3470 = vadd.f32 0.0, %v3469
      %v3471 = vpop.f32.mrf.mxu0
      %v3472 = vpop.f32.mrf.mxu0
      %v3473 = vadd.f32 0.0, %v3472
      %v3474 = vpop.f32.mrf.mxu0
      %3475 = vmatprep.mubr.bf16.mxu0 0
      %3476 = vmatmul.mubr.bf16.gmra.mxu0 %v2609
      %v3477 = vpop.f32.mrf.mxu0
      %v3478 = vadd.f32 0.0, %v3477
      %v3479 = vpop.f32.mrf.mxu0
      %v3480 = vpop.f32.mrf.mxu0
      %v3481 = vadd.f32 0.0, %v3480
      %v3482 = vpop.f32.mrf.mxu0
      %3483 = vmatprep.mubr.bf16.mxu0 0
      %3484 = vmatmul.mubr.bf16.gmra.mxu0 %v2610
      %v3485 = vpop.f32.mrf.mxu0
      %v3486 = vadd.f32 0.0, %v3485
      %v3487 = vpop.f32.mrf.mxu0
      %v3488 = vpop.f32.mrf.mxu0
      %v3489 = vadd.f32 0.0, %v3488
      %v3490 = vpop.f32.mrf.mxu0
      %3491 = vmatprep.mubr.bf16.mxu0 0
      %3492 = vmatmul.mubr.bf16.gmra.mxu0 %v2611
      %v3493 = vpop.f32.mrf.mxu0
      %v3494 = vadd.f32 0.0, %v3493
      %v3495 = vpop.f32.mrf.mxu0
      %v3496 = vpop.f32.mrf.mxu0
      %v3497 = vadd.f32 0.0, %v3496
      %v3498 = vpop.f32.mrf.mxu0
      %3499 = vmatprep.mubr.bf16.mxu0 0
      %3500 = vmatmul.mubr.bf16.gmra.mxu0 %v2612
      %v3501 = vpop.f32.mrf.mxu0
      %v3502 = vadd.f32 0.0, %v3501
      %v3503 = vpop.f32.mrf.mxu0
      %v3504 = vpop.f32.mrf.mxu0
      %v3505 = vadd.f32 0.0, %v3504
      %v3506 = vpop.f32.mrf.mxu0
      %3507 = vmatprep.mubr.bf16.mxu0 0
      %3508 = vmatmul.mubr.bf16.gmra.mxu0 %v2613
      %v3509 = vpop.f32.mrf.mxu0
      %v3510 = vadd.f32 0.0, %v3509
      %v3511 = vpop.f32.mrf.mxu0
      %v3512 = vpop.f32.mrf.mxu0
      %v3513 = vadd.f32 0.0, %v3512
      %v3514 = vpop.f32.mrf.mxu0
      %3515 = vmatprep.mubr.bf16.mxu0 0
      %3516 = vmatmul.mubr.bf16.gmra.mxu0 %v2614
      %v3517 = vpop.f32.mrf.mxu0
      %v3518 = vadd.f32 0.0, %v3517
      %v3519 = vpop.f32.mrf.mxu0
      %v3520 = vpop.f32.mrf.mxu0
      %v3521 = vadd.f32 0.0, %v3520
      %v3522 = vpop.f32.mrf.mxu0
      %3523 = vmatprep.mubr.bf16.mxu0 0
      %3524 = vmatmul.mubr.bf16.gmra.mxu0 %v2979
      %v3525 = vpop.f32.mrf.mxu0
      %v3526 = vadd.f32 0.0, %v3525
      %v3527 = vpop.f32.mrf.mxu0
      %v3528 = vpop.f32.mrf.mxu0
      %v3529 = vadd.f32 0.0, %v3528
      %v3530 = vpop.f32.mrf.mxu0
      %3531 = vmatprep.mubr.bf16.mxu0 0
      %3532 = vmatmul.mubr.bf16.gmra.mxu0 %v3329
      %v3533 = vpop.f32.mrf.mxu0
      %v3534 = vadd.f32 0.0, %v3533
      %v3535 = vpop.f32.mrf.mxu0
      %v3536 = vpop.f32.mrf.mxu0
      %v3537 = vadd.f32 0.0, %v3536
      %v3538 = vpop.f32.mrf.mxu0
      %3539 = vdwg.mxu0
      %v3540 = vld [vmem:[#allocation3] sm:$0xff]
      %v3541 = vld [vmem:[#allocation3 + $0x8] sm:$0xff]
      %v3542 = vld [vmem:[#allocation3 + $0x10] sm:$0xff]
      %v3543 = vld [vmem:[#allocation3 + $0x18] sm:$0xff]
      %v3544 = vld [vmem:[#allocation3 + $0x20] sm:$0xff]
      %v3545 = vld [vmem:[#allocation3 + $0x28] sm:$0xff]
      %v3546 = vld [vmem:[#allocation3 + $0x30] sm:$0xff]
      %v3547 = vld [vmem:[#allocation3 + $0x38] sm:$0xff]
      %v3548 = vld [vmem:[#allocation3 + $0x40] sm:$0xff]
      %v3549 = vld [vmem:[#allocation3 + $0x48] sm:$0xff]
      %v3550 = vld [vmem:[#allocation3 + $0x50] sm:$0xff]
      %v3551 = vld [vmem:[#allocation3 + $0x58] sm:$0xff]
      %v3552 = vld [vmem:[#allocation3 + $0x60] sm:$0xff]
      %v3553 = vld [vmem:[#allocation3 + $0x68] sm:$0xff]
      %v3554 = vld [vmem:[#allocation3 + $0x70] sm:$0xff]
      %v3555 = vld [vmem:[#allocation3 + $0x78] sm:$0xff]
      %v3556 = vld [vmem:[#allocation3 + $0x80] sm:$0xff]
      %v3557 = vld [vmem:[#allocation3 + $0x88] sm:$0xff]
      %v3558 = vld [vmem:[#allocation3 + $0x90] sm:$0xff]
      %v3559 = vld [vmem:[#allocation3 + $0x98] sm:$0xff]
      %v3560 = vld [vmem:[#allocation3 + $0xa0] sm:$0xff]
      %v3561 = vld [vmem:[#allocation3 + $0xa8] sm:$0xff]
      %v3562 = vld [vmem:[#allocation3 + $0xb0] sm:$0xff]
      %v3563 = vld [vmem:[#allocation3 + $0xb8] sm:$0xff]
      %v3564 = vld [vmem:[#allocation3 + $0xc0] sm:$0xff]
      %v3565 = vld [vmem:[#allocation3 + $0xc8] sm:$0xff]
      %v3566 = vld [vmem:[#allocation3 + $0xd0] sm:$0xff]
      %v3567 = vld [vmem:[#allocation3 + $0xd8] sm:$0xff]
      %v3568 = vld [vmem:[#allocation3 + $0xe0] sm:$0xff]
      %v3569 = vld [vmem:[#allocation3 + $0xe8] sm:$0xff]
      %v3570 = vld [vmem:[#allocation3 + $0xf0] sm:$0xff]
      %v3571 = vld [vmem:[#allocation3 + $0xf8] sm:$0xff]
      %v3572 = vadd.f32 %v3540, %v3414
      %v3573 = vadd.f32 %v3541, %v3417
      %v3574 = vadd.f32 %v3542, %v3422
      %v3575 = vadd.f32 %v3543, %v3425
      %v3576 = vadd.f32 %v3544, %v3430
      %v3577 = vadd.f32 %v3545, %v3433
      %v3578 = vadd.f32 %v3546, %v3438
      %v3579 = vadd.f32 %v3547, %v3441
      %v3580 = vadd.f32 %v3548, %v3446
      %v3581 = vadd.f32 %v3549, %v3449
      %v3582 = vadd.f32 %v3550, %v3454
      %v3583 = vadd.f32 %v3551, %v3457
      %v3584 = vadd.f32 %v3552, %v3462
      %v3585 = vadd.f32 %v3553, %v3465
      %v3586 = vadd.f32 %v3554, %v3470
      %v3587 = vadd.f32 %v3555, %v3473
      %v3588 = vadd.f32 %v3556, %v3478
      %v3589 = vadd.f32 %v3557, %v3481
      %v3590 = vadd.f32 %v3558, %v3486
      %v3591 = vadd.f32 %v3559, %v3489
      %v3592 = vadd.f32 %v3560, %v3494
      %v3593 = vadd.f32 %v3561, %v3497
      %v3594 = vadd.f32 %v3562, %v3502
      %v3595 = vadd.f32 %v3563, %v3505
      %v3596 = vadd.f32 %v3564, %v3510
      %v3597 = vadd.f32 %v3565, %v3513
      %v3598 = vadd.f32 %v3566, %v3518
      %v3599 = vadd.f32 %v3567, %v3521
      %v3600 = vadd.f32 %v3568, %v3526
      %v3601 = vadd.f32 %v3569, %v3529
      %v3602 = vadd.f32 %v3570, %v3534
      %v3603 = vadd.f32 %v3571, %v3537
      %3604 = vst [vmem:[#allocation3] sm:$0xff] %v3572
      %3605 = vst [vmem:[#allocation3 + $0x8] sm:$0xff] %v3573
      %3606 = vst [vmem:[#allocation3 + $0x10] sm:$0xff] %v3574
      %3607 = vst [vmem:[#allocation3 + $0x18] sm:$0xff] %v3575
      %3608 = vst [vmem:[#allocation3 + $0x20] sm:$0xff] %v3576
      %3609 = vst [vmem:[#allocation3 + $0x28] sm:$0xff] %v3577
      %3610 = vst [vmem:[#allocation3 + $0x30] sm:$0xff] %v3578
      %3611 = vst [vmem:[#allocation3 + $0x38] sm:$0xff] %v3579
      %3612 = vst [vmem:[#allocation3 + $0x40] sm:$0xff] %v3580
      %3613 = vst [vmem:[#allocation3 + $0x48] sm:$0xff] %v3581
      %3614 = vst [vmem:[#allocation3 + $0x50] sm:$0xff] %v3582
      %3615 = vst [vmem:[#allocation3 + $0x58] sm:$0xff] %v3583
      %3616 = vst [vmem:[#allocation3 + $0x60] sm:$0xff] %v3584
      %3617 = vst [vmem:[#allocation3 + $0x68] sm:$0xff] %v3585
      %3618 = vst [vmem:[#allocation3 + $0x70] sm:$0xff] %v3586
      %3619 = vst [vmem:[#allocation3 + $0x78] sm:$0xff] %v3587
      %3620 = vst [vmem:[#allocation3 + $0x80] sm:$0xff] %v3588
      %3621 = vst [vmem:[#allocation3 + $0x88] sm:$0xff] %v3589
      %3622 = vst [vmem:[#allocation3 + $0x90] sm:$0xff] %v3590
      %3623 = vst [vmem:[#allocation3 + $0x98] sm:$0xff] %v3591
      %3624 = vst [vmem:[#allocation3 + $0xa0] sm:$0xff] %v3592
      %3625 = vst [vmem:[#allocation3 + $0xa8] sm:$0xff] %v3593
      %3626 = vst [vmem:[#allocation3 + $0xb0] sm:$0xff] %v3594
      %3627 = vst [vmem:[#allocation3 + $0xb8] sm:$0xff] %v3595
      %3628 = vst [vmem:[#allocation3 + $0xc0] sm:$0xff] %v3596
      %3629 = vst [vmem:[#allocation3 + $0xc8] sm:$0xff] %v3597
      %3630 = vst [vmem:[#allocation3 + $0xd0] sm:$0xff] %v3598
      %3631 = vst [vmem:[#allocation3 + $0xd8] sm:$0xff] %v3599
      %3632 = vst [vmem:[#allocation3 + $0xe0] sm:$0xff] %v3600
      %3633 = vst [vmem:[#allocation3 + $0xe8] sm:$0xff] %v3601
      %3634 = vst [vmem:[#allocation3 + $0xf0] sm:$0xff] %v3602
      %3635 = vst [vmem:[#allocation3 + $0xf8] sm:$0xff] %v3603
      %v3636 = vld [vmem:[#allocation2] sm:$0xe]
      %v3637 = vld [vmem:[#allocation2 + $0x4] sm:$0xf]
      %v3638 = vld [vmem:[#allocation2 + $0x8] sm:$0x1]
      %v3639 = vld [vmem:[#allocation2 + $0xc] sm:$0xe]
      %v3640 = vld [vmem:[#allocation2 + $0x10] sm:$0xf]
      %v3641 = vld [vmem:[#allocation2 + $0x14] sm:$0x1]
      %v3642 = vld [vmem:[#allocation2 + $0x18] sm:$0xe]
      %v3643 = vld [vmem:[#allocation2 + $0x1c] sm:$0xf]
      %v3644 = vld [vmem:[#allocation2 + $0x20] sm:$0x1]
      %v3645 = vld [vmem:[#allocation2 + $0x24] sm:$0xe]
      %v3646 = vld [vmem:[#allocation2 + $0x28] sm:$0xf]
      %v3647 = vld [vmem:[#allocation2 + $0x2c] sm:$0x1]
      %v3648 = vld [vmem:[#allocation2 + $0x30] sm:$0xe]
      %v3649 = vld [vmem:[#allocation2 + $0x34] sm:$0xf]
      %v3650 = vld [vmem:[#allocation2 + $0x38] sm:$0x1]
      %v3651 = vld [vmem:[#allocation2 + $0x3c] sm:$0xe]
      %v3652 = vld [vmem:[#allocation2 + $0x40] sm:$0xf]
      %v3653 = vld [vmem:[#allocation2 + $0x44] sm:$0x1]
      %v3654 = vld [vmem:[#allocation2 + $0x48] sm:$0xe]
      %v3655 = vld [vmem:[#allocation2 + $0x4c] sm:$0xf]
      %v3656 = vld [vmem:[#allocation2 + $0x50] sm:$0x1]
      %v3657 = vld [vmem:[#allocation2 + $0x54] sm:$0xe]
      %v3658 = vld [vmem:[#allocation2 + $0x58] sm:$0xf]
      %v3659 = vld [vmem:[#allocation2 + $0x5c] sm:$0x1]
      %v3660 = vld [vmem:[#allocation2 + $0x60] sm:$0xe]
      %v3661 = vld [vmem:[#allocation2 + $0x64] sm:$0xf]
      %v3662 = vld [vmem:[#allocation2 + $0x68] sm:$0x1]
      %v3663 = vld [vmem:[#allocation2 + $0x6c] sm:$0xe]
      %v3664 = vld [vmem:[#allocation2 + $0x70] sm:$0xf]
      %v3665 = vld [vmem:[#allocation2 + $0x74] sm:$0x1]
      %v3666 = vld [vmem:[#allocation2 + $0x78] sm:$0xe]
      %v3667 = vld [vmem:[#allocation2 + $0x7c] sm:$0xf]
      %v3668 = vld [vmem:[#allocation2 + $0x80] sm:$0x1]
      %v3669 = vld [vmem:[#allocation2 + $0x84] sm:$0xe]
      %v3670 = vld [vmem:[#allocation2 + $0x88] sm:$0xf]
      %v3671 = vld [vmem:[#allocation2 + $0x8c] sm:$0x1]
      %v3672 = vld [vmem:[#allocation2 + $0x90] sm:$0xe]
      %v3673 = vld [vmem:[#allocation2 + $0x94] sm:$0xf]
      %v3674 = vld [vmem:[#allocation2 + $0x98] sm:$0x1]
      %v3675 = vld [vmem:[#allocation2 + $0x9c] sm:$0xe]
      %v3676 = vld [vmem:[#allocation2 + $0xa0] sm:$0xf]
      %v3677 = vld [vmem:[#allocation2 + $0xa4] sm:$0x1]
      %v3678 = vld [vmem:[#allocation2 + $0xa8] sm:$0xe]
      %v3679 = vld [vmem:[#allocation2 + $0xac] sm:$0xf]
      %v3680 = vld [vmem:[#allocation2 + $0xb0] sm:$0x1]
      %v3681 = vld [vmem:[#allocation2 + $0xb4] sm:$0xe]
      %v3682 = vld [vmem:[#allocation2 + $0xb8] sm:$0xf]
      %v3683 = vld [vmem:[#allocation2 + $0xbc] sm:$0x1]
      %v3684 = vld [vmem:[#allocation2 + $0xc0] sm:$0xe]
      %v3685 = vld [vmem:[#allocation2 + $0xc4] sm:$0xf]
      %v3686 = vld [vmem:[#allocation2 + $0xc8] sm:$0x1]
      %v3687 = vld [vmem:[#allocation2 + $0xcc] sm:$0xe]
      %v3688 = vld [vmem:[#allocation2 + $0xd0] sm:$0xf]
      %v3689 = vld [vmem:[#allocation2 + $0xd4] sm:$0x1]
      %vm3738 = vcmask 1042432
      %vm3739 = vcmask 1046532
      %vm3740 = vmor %vm3738, %vm3739
      %v3741 = vrot.slane %v3636, 5
      %v3742 = vrot.slane %v3741, 4
      %v3743 = vrot.slane %v3637, 5
      %v3744 = vsel %vm3740, %v3742, %v3743
      %v3745 = vrot.slane %v3743, 4
      %v3746 = vrot.slane %v3638, 5
      %v3747 = vsel %vm3740, %v3745, %v3746
      %v3748 = vrot.slane %v3639, 5
      %v3749 = vrot.slane %v3748, 4
      %v3750 = vrot.slane %v3640, 5
      %v3751 = vsel %vm3740, %v3749, %v3750
      %v3752 = vrot.slane %v3750, 4
      %v3753 = vrot.slane %v3641, 5
      %v3754 = vsel %vm3740, %v3752, %v3753
      %v3755 = vrot.slane %v3642, 5
      %v3756 = vrot.slane %v3755, 4
      %v3757 = vrot.slane %v3643, 5
      %v3758 = vsel %vm3740, %v3756, %v3757
      %v3759 = vrot.slane %v3757, 4
      %v3760 = vrot.slane %v3644, 5
      %v3761 = vsel %vm3740, %v3759, %v3760
      %v3762 = vrot.slane %v3645, 5
      %v3763 = vrot.slane %v3762, 4
      %v3764 = vrot.slane %v3646, 5
      %v3765 = vsel %vm3740, %v3763, %v3764
      %v3766 = vrot.slane %v3764, 4
      %v3767 = vrot.slane %v3647, 5
      %v3768 = vsel %vm3740, %v3766, %v3767
      %v3769 = vrot.slane %v3648, 5
      %v3770 = vrot.slane %v3769, 4
      %v3771 = vrot.slane %v3649, 5
      %v3772 = vsel %vm3740, %v3770, %v3771
      %v3773 = vrot.slane %v3771, 4
      %v3774 = vrot.slane %v3650, 5
      %v3775 = vsel %vm3740, %v3773, %v3774
      %v3776 = vrot.slane %v3651, 5
      %v3777 = vrot.slane %v3776, 4
      %v3778 = vrot.slane %v3652, 5
      %v3779 = vsel %vm3740, %v3777, %v3778
      %v3780 = vrot.slane %v3778, 4
      %v3781 = vrot.slane %v3653, 5
      %v3782 = vsel %vm3740, %v3780, %v3781
      %v3783 = vrot.slane %v3654, 5
      %v3784 = vrot.slane %v3783, 4
      %v3785 = vrot.slane %v3655, 5
      %v3786 = vsel %vm3740, %v3784, %v3785
      %v3787 = vrot.slane %v3785, 4
      %v3788 = vrot.slane %v3656, 5
      %v3789 = vsel %vm3740, %v3787, %v3788
      %v3790 = vrot.slane %v3657, 5
      %v3791 = vrot.slane %v3790, 4
      %v3792 = vrot.slane %v3658, 5
      %v3793 = vsel %vm3740, %v3791, %v3792
      %v3794 = vrot.slane %v3792, 4
      %v3795 = vrot.slane %v3659, 5
      %v3796 = vsel %vm3740, %v3794, %v3795
      %v3797 = vrot.slane %v3660, 5
      %v3798 = vrot.slane %v3797, 4
      %v3799 = vrot.slane %v3661, 5
      %v3800 = vsel %vm3740, %v3798, %v3799
      %v3801 = vrot.slane %v3799, 4
      %v3802 = vrot.slane %v3662, 5
      %v3803 = vsel %vm3740, %v3801, %v3802
      %v3804 = vrot.slane %v3663, 5
      %v3805 = vrot.slane %v3804, 4
      %v3806 = vrot.slane %v3664, 5
      %v3807 = vsel %vm3740, %v3805, %v3806
      %v3808 = vrot.slane %v3806, 4
      %v3809 = vrot.slane %v3665, 5
      %v3810 = vsel %vm3740, %v3808, %v3809
      %v3811 = vrot.slane %v3666, 5
      %v3812 = vrot.slane %v3811, 4
      %v3813 = vrot.slane %v3667, 5
      %v3814 = vsel %vm3740, %v3812, %v3813
      %v3815 = vrot.slane %v3813, 4
      %v3816 = vrot.slane %v3668, 5
      %v3817 = vsel %vm3740, %v3815, %v3816
      %v3818 = vrot.slane %v3669, 5
      %v3819 = vrot.slane %v3818, 4
      %v3820 = vrot.slane %v3670, 5
      %v3821 = vsel %vm3740, %v3819, %v3820
      %v3822 = vrot.slane %v3820, 4
      %v3823 = vrot.slane %v3671, 5
      %v3824 = vsel %vm3740, %v3822, %v3823
      %v3825 = vrot.slane %v3672, 5
      %v3826 = vrot.slane %v3825, 4
      %v3827 = vrot.slane %v3673, 5
      %v3828 = vsel %vm3740, %v3826, %v3827
      %v3829 = vrot.slane %v3827, 4
      %v3830 = vrot.slane %v3674, 5
      %v3831 = vsel %vm3740, %v3829, %v3830
      %v3832 = vrot.slane %v3675, 5
      %v3833 = vrot.slane %v3832, 4
      %v3834 = vrot.slane %v3676, 5
      %v3835 = vsel %vm3740, %v3833, %v3834
      %v3836 = vrot.slane %v3834, 4
      %v3837 = vrot.slane %v3677, 5
      %v3838 = vsel %vm3740, %v3836, %v3837
      %v3839 = vrot.slane %v3678, 5
      %v3840 = vrot.slane %v3839, 4
      %v3841 = vrot.slane %v3679, 5
      %v3842 = vsel %vm3740, %v3840, %v3841
      %v3843 = vrot.slane %v3841, 4
      %v3844 = vrot.slane %v3680, 5
      %v3845 = vsel %vm3740, %v3843, %v3844
      %v3846 = vrot.slane %v3681, 5
      %v3847 = vrot.slane %v3846, 4
      %v3848 = vrot.slane %v3682, 5
      %v3849 = vsel %vm3740, %v3847, %v3848
      %v3850 = vrot.slane %v3848, 4
      %v3851 = vrot.slane %v3683, 5
      %v3852 = vsel %vm3740, %v3850, %v3851
      %s3853 = scalar_lea.vmem %s1, 128
      %v3854 = vld [vmem:[%s3853] sm:$0xf]
      %v3855 = vld [vmem:[%s3853 + $0x4] sm:$0xf]
      %v3856 = vld [vmem:[%s3853 + $0x8] sm:$0xf]
      %v3857 = vld [vmem:[%s3853 + $0xc] sm:$0xf]
      %v3858 = vld [vmem:[%s3853 + $0x10] sm:$0xf]
      %v3859 = vld [vmem:[%s3853 + $0x14] sm:$0xf]
      %v3860 = vld [vmem:[%s3853 + $0x18] sm:$0xf]
      %v3861 = vld [vmem:[%s3853 + $0x1c] sm:$0xf]
      %v3862 = vld [vmem:[%s3853 + $0x20] sm:$0xf]
      %v3863 = vld [vmem:[%s3853 + $0x24] sm:$0xf]
      %v3864 = vld [vmem:[%s3853 + $0x28] sm:$0xf]
      %v3865 = vld [vmem:[%s3853 + $0x2c] sm:$0xf]
      %v3866 = vld [vmem:[%s3853 + $0x30] sm:$0xf]
      %v3867 = vld [vmem:[%s3853 + $0x34] sm:$0xf]
      %v3868 = vld [vmem:[%s3853 + $0x38] sm:$0xf]
      %v3869 = vld [vmem:[%s3853 + $0x3c] sm:$0xf]
      %v3870 = vunpack.c.l.b16 %v3744
      %v3871 = vunpack.c.l.b16 %v3747
      %v3872 = vunpack.c.l.b16 %v3751
      %v3873 = vunpack.c.l.b16 %v3754
      %v3874 = vunpack.c.l.b16 %v3758
      %v3875 = vunpack.c.l.b16 %v3761
      %v3876 = vunpack.c.l.b16 %v3765
      %v3877 = vunpack.c.l.b16 %v3768
      %v3878 = vunpack.c.l.b16 %v3772
      %v3879 = vunpack.c.l.b16 %v3775
      %v3880 = vunpack.c.l.b16 %v3779
      %v3881 = vunpack.c.l.b16 %v3782
      %v3882 = vunpack.c.l.b16 %v3786
      %v3883 = vunpack.c.l.b16 %v3789
      %v3884 = vunpack.c.l.b16 %v3793
      %v3885 = vunpack.c.l.b16 %v3796
      %v3886 = vunpack.c.l.b16 %v3800
      %v3887 = vunpack.c.l.b16 %v3803
      %v3888 = vunpack.c.l.b16 %v3807
      %v3889 = vunpack.c.l.b16 %v3810
      %v3890 = vunpack.c.l.b16 %v3814
      %v3891 = vunpack.c.l.b16 %v3817
      %v3892 = vunpack.c.l.b16 %v3821
      %v3893 = vunpack.c.l.b16 %v3824
      %v3894 = vunpack.c.l.b16 %v3828
      %v3895 = vunpack.c.l.b16 %v3831
      %v3896 = vunpack.c.l.b16 %v3835
      %v3897 = vunpack.c.l.b16 %v3838
      %v3898 = vunpack.c.l.b16 %v3842
      %v3899 = vunpack.c.l.b16 %v3845
      %v3900 = vunpack.c.l.b16 %v3849
      %v3901 = vunpack.c.l.b16 %v3852
      %v3902 = vpack.c.b16 %v3871, %v3870
      %v3903 = vpack.c.b16 %v3873, %v3872
      %v3904 = vpack.c.b16 %v3875, %v3874
      %v3905 = vpack.c.b16 %v3877, %v3876
      %v3906 = vpack.c.b16 %v3879, %v3878
      %v3907 = vpack.c.b16 %v3881, %v3880
      %v3908 = vpack.c.b16 %v3883, %v3882
      %v3909 = vpack.c.b16 %v3885, %v3884
      %v3910 = vpack.c.b16 %v3887, %v3886
      %v3911 = vpack.c.b16 %v3889, %v3888
      %v3912 = vpack.c.b16 %v3891, %v3890
      %v3913 = vpack.c.b16 %v3893, %v3892
      %v3914 = vpack.c.b16 %v3895, %v3894
      %v3915 = vpack.c.b16 %v3897, %v3896
      %v3916 = vpack.c.b16 %v3899, %v3898
      %v3917 = vpack.c.b16 %v3901, %v3900
      %v3950 = vunpack.c.l.b16 %v3854
      %v3951 = vunpack.c.l.b16 %v3855
      %v3952 = vunpack.c.l.b16 %v3856
      %v3953 = vunpack.c.l.b16 %v3857
      %v3954 = vunpack.c.l.b16 %v3858
      %v3955 = vunpack.c.l.b16 %v3859
      %v3956 = vunpack.c.l.b16 %v3860
      %v3957 = vunpack.c.l.b16 %v3861
      %v3958 = vunpack.c.l.b16 %v3862
      %v3959 = vunpack.c.l.b16 %v3863
      %v3960 = vunpack.c.l.b16 %v3864
      %v3961 = vunpack.c.l.b16 %v3865
      %v3962 = vunpack.c.l.b16 %v3866
      %v3963 = vunpack.c.l.b16 %v3867
      %v3964 = vunpack.c.l.b16 %v3868
      %v3965 = vunpack.c.l.b16 %v3869
      %v3966 = vpack.c.b16 %v3951, %v3950
      %v3967 = vpack.c.b16 %v3953, %v3952
      %v3968 = vpack.c.b16 %v3955, %v3954
      %v3969 = vpack.c.b16 %v3957, %v3956
      %v3970 = vpack.c.b16 %v3959, %v3958
      %v3971 = vpack.c.b16 %v3961, %v3960
      %v3972 = vpack.c.b16 %v3963, %v3962
      %v3973 = vpack.c.b16 %v3965, %v3964
      %3982 = vmatprep.subr.bf16.mxu0 0
      %3983 = vmatpush1.bf16.msra.mxu0 %v3973
      %3984 = vmatprep.subr.bf16.mxu0 0
      %3985 = vmatpush1.bf16.msra.mxu0 %v3972
      %3986 = vmatprep.subr.bf16.mxu0 0
      %3987 = vmatpush1.bf16.msra.mxu0 %v3971
      %3988 = vmatprep.subr.bf16.mxu0 0
      %3989 = vmatpush1.bf16.msra.mxu0 %v3970
      %3990 = vmatprep.subr.bf16.mxu0 0
      %3991 = vmatpush1.bf16.msra.mxu0 %v3969
      %3992 = vmatprep.subr.bf16.mxu0 0
      %3993 = vmatpush1.bf16.msra.mxu0 %v3968
      %3994 = vmatprep.subr.bf16.mxu0 0
      %3995 = vmatpush1.bf16.msra.mxu0 %v3967
      %3996 = vmatprep.subr.bf16.mxu0 0
      %3997 = vmatpush1.bf16.msra.mxu0 %v3966
      %3998 = vmatprep.subr.bf16.mxu0 0
      %3999 = vmatpush2.bf16.msra.mxu0 0
      %4000 = vmatprep.subr.bf16.mxu0 0
      %4001 = vmatpush2.bf16.msra.mxu0 0
      %4002 = vmatprep.subr.bf16.mxu0 0
      %4003 = vmatpush2.bf16.msra.mxu0 0
      %4004 = vmatprep.subr.bf16.mxu0 0
      %4005 = vmatpush2.bf16.msra.mxu0 0
      %4006 = vmatprep.subr.bf16.mxu0 0
      %4007 = vmatpush2.bf16.msra.mxu0 0
      %4008 = vmatprep.subr.bf16.mxu0 0
      %4009 = vmatpush2.bf16.msra.mxu0 0
      %4010 = vmatprep.subr.bf16.mxu0 0
      %4011 = vmatpush2.bf16.msra.mxu0 0
      %4012 = vmatprep.subr.bf16.mxu0 0
      %4013 = vmatpush2.bf16.msra.mxu0 0
      %4014 = vmatprep.mubr.bf16.mxu0 0
      %4015 = vmatmul.mubr.bf16.gmra.mxu0 %v3902
      %v4016 = vpop.f32.mrf.mxu0
      %v4017 = vadd.f32 0.0, %v4016
      %v4018 = vpop.f32.mrf.mxu0
      %v4019 = vpop.f32.mrf.mxu0
      %v4020 = vadd.f32 0.0, %v4019
      %v4021 = vpop.f32.mrf.mxu0
      %4022 = vmatprep.mubr.bf16.mxu0 0
      %4023 = vmatmul.mubr.bf16.gmra.mxu0 %v3903
      %v4024 = vpop.f32.mrf.mxu0
      %v4025 = vadd.f32 0.0, %v4024
      %v4026 = vpop.f32.mrf.mxu0
      %v4027 = vpop.f32.mrf.mxu0
      %v4028 = vadd.f32 0.0, %v4027
      %v4029 = vpop.f32.mrf.mxu0
      %4030 = vmatprep.mubr.bf16.mxu0 0
      %4031 = vmatmul.mubr.bf16.gmra.mxu0 %v3904
      %v4032 = vpop.f32.mrf.mxu0
      %v4033 = vadd.f32 0.0, %v4032
      %v4034 = vpop.f32.mrf.mxu0
      %v4035 = vpop.f32.mrf.mxu0
      %v4036 = vadd.f32 0.0, %v4035
      %v4037 = vpop.f32.mrf.mxu0
      %4038 = vmatprep.mubr.bf16.mxu0 0
      %4039 = vmatmul.mubr.bf16.gmra.mxu0 %v3905
      %v4040 = vpop.f32.mrf.mxu0
      %v4041 = vadd.f32 0.0, %v4040
      %v4042 = vpop.f32.mrf.mxu0
      %v4043 = vpop.f32.mrf.mxu0
      %v4044 = vadd.f32 0.0, %v4043
      %v4045 = vpop.f32.mrf.mxu0
      %4046 = vmatprep.mubr.bf16.mxu0 0
      %4047 = vmatmul.mubr.bf16.gmra.mxu0 %v3906
      %v4048 = vpop.f32.mrf.mxu0
      %v4049 = vadd.f32 0.0, %v4048
      %v4050 = vpop.f32.mrf.mxu0
      %v4051 = vpop.f32.mrf.mxu0
      %v4052 = vadd.f32 0.0, %v4051
      %v4053 = vpop.f32.mrf.mxu0
      %4054 = vmatprep.mubr.bf16.mxu0 0
      %4055 = vmatmul.mubr.bf16.gmra.mxu0 %v3907
      %v4056 = vpop.f32.mrf.mxu0
      %v4057 = vadd.f32 0.0, %v4056
      %v4058 = vpop.f32.mrf.mxu0
      %v4059 = vpop.f32.mrf.mxu0
      %v4060 = vadd.f32 0.0, %v4059
      %v4061 = vpop.f32.mrf.mxu0
      %4062 = vmatprep.mubr.bf16.mxu0 0
      %4063 = vmatmul.mubr.bf16.gmra.mxu0 %v3908
      %v4064 = vpop.f32.mrf.mxu0
      %v4065 = vadd.f32 0.0, %v4064
      %v4066 = vpop.f32.mrf.mxu0
      %v4067 = vpop.f32.mrf.mxu0
      %v4068 = vadd.f32 0.0, %v4067
      %v4069 = vpop.f32.mrf.mxu0
      %4070 = vmatprep.mubr.bf16.mxu0 0
      %4071 = vmatmul.mubr.bf16.gmra.mxu0 %v3909
      %v4072 = vpop.f32.mrf.mxu0
      %v4073 = vadd.f32 0.0, %v4072
      %v4074 = vpop.f32.mrf.mxu0
      %v4075 = vpop.f32.mrf.mxu0
      %v4076 = vadd.f32 0.0, %v4075
      %v4077 = vpop.f32.mrf.mxu0
      %4078 = vmatprep.mubr.bf16.mxu0 0
      %4079 = vmatmul.mubr.bf16.gmra.mxu0 %v3910
      %v4080 = vpop.f32.mrf.mxu0
      %v4081 = vadd.f32 0.0, %v4080
      %v4082 = vpop.f32.mrf.mxu0
      %v4083 = vpop.f32.mrf.mxu0
      %v4084 = vadd.f32 0.0, %v4083
      %v4085 = vpop.f32.mrf.mxu0
      %4086 = vmatprep.mubr.bf16.mxu0 0
      %4087 = vmatmul.mubr.bf16.gmra.mxu0 %v3911
      %v4088 = vpop.f32.mrf.mxu0
      %v4089 = vadd.f32 0.0, %v4088
      %v4090 = vpop.f32.mrf.mxu0
      %v4091 = vpop.f32.mrf.mxu0
      %v4092 = vadd.f32 0.0, %v4091
      %v4093 = vpop.f32.mrf.mxu0
      %4094 = vmatprep.mubr.bf16.mxu0 0
      %4095 = vmatmul.mubr.bf16.gmra.mxu0 %v3912
      %v4096 = vpop.f32.mrf.mxu0
      %v4097 = vadd.f32 0.0, %v4096
      %v4098 = vpop.f32.mrf.mxu0
      %v4099 = vpop.f32.mrf.mxu0
      %v4100 = vadd.f32 0.0, %v4099
      %v4101 = vpop.f32.mrf.mxu0
      %4102 = vmatprep.mubr.bf16.mxu0 0
      %4103 = vmatmul.mubr.bf16.gmra.mxu0 %v3913
      %v4104 = vpop.f32.mrf.mxu0
      %v4105 = vadd.f32 0.0, %v4104
      %v4106 = vpop.f32.mrf.mxu0
      %v4107 = vpop.f32.mrf.mxu0
      %v4108 = vadd.f32 0.0, %v4107
      %v4109 = vpop.f32.mrf.mxu0
      %4110 = vmatprep.mubr.bf16.mxu0 0
      %4111 = vmatmul.mubr.bf16.gmra.mxu0 %v3914
      %v4112 = vpop.f32.mrf.mxu0
      %v4113 = vadd.f32 0.0, %v4112
      %v4114 = vpop.f32.mrf.mxu0
      %v4115 = vpop.f32.mrf.mxu0
      %v4116 = vadd.f32 0.0, %v4115
      %v4117 = vpop.f32.mrf.mxu0
      %4118 = vmatprep.mubr.bf16.mxu0 0
      %4119 = vmatmul.mubr.bf16.gmra.mxu0 %v3915
      %v4120 = vpop.f32.mrf.mxu0
      %v4121 = vadd.f32 0.0, %v4120
      %v4122 = vpop.f32.mrf.mxu0
      %v4123 = vpop.f32.mrf.mxu0
      %v4124 = vadd.f32 0.0, %v4123
      %v4125 = vpop.f32.mrf.mxu0
      %4126 = vmatprep.mubr.bf16.mxu0 0
      %4127 = vmatmul.mubr.bf16.gmra.mxu0 %v3916
      %v4128 = vpop.f32.mrf.mxu0
      %v4129 = vadd.f32 0.0, %v4128
      %v4130 = vpop.f32.mrf.mxu0
      %v4131 = vpop.f32.mrf.mxu0
      %v4132 = vadd.f32 0.0, %v4131
      %v4133 = vpop.f32.mrf.mxu0
      %4134 = vmatprep.mubr.bf16.mxu0 0
      %4135 = vmatmul.mubr.bf16.gmra.mxu0 %v3917
      %v4136 = vpop.f32.mrf.mxu0
      %v4137 = vadd.f32 0.0, %v4136
      %v4138 = vpop.f32.mrf.mxu0
      %v4139 = vpop.f32.mrf.mxu0
      %v4140 = vadd.f32 0.0, %v4139
      %v4141 = vpop.f32.mrf.mxu0
      %4142 = vdwg.mxu0
      %v4143 = vld [vmem:[#allocation3] sm:$0xff]
      %v4144 = vld [vmem:[#allocation3 + $0x8] sm:$0xff]
      %v4145 = vld [vmem:[#allocation3 + $0x10] sm:$0xff]
      %v4146 = vld [vmem:[#allocation3 + $0x18] sm:$0xff]
      %v4147 = vld [vmem:[#allocation3 + $0x20] sm:$0xff]
      %v4148 = vld [vmem:[#allocation3 + $0x28] sm:$0xff]
      %v4149 = vld [vmem:[#allocation3 + $0x30] sm:$0xff]
      %v4150 = vld [vmem:[#allocation3 + $0x38] sm:$0xff]
      %v4151 = vld [vmem:[#allocation3 + $0x40] sm:$0xff]
      %v4152 = vld [vmem:[#allocation3 + $0x48] sm:$0xff]
      %v4153 = vld [vmem:[#allocation3 + $0x50] sm:$0xff]
      %v4154 = vld [vmem:[#allocation3 + $0x58] sm:$0xff]
      %v4155 = vld [vmem:[#allocation3 + $0x60] sm:$0xff]
      %v4156 = vld [vmem:[#allocation3 + $0x68] sm:$0xff]
      %v4157 = vld [vmem:[#allocation3 + $0x70] sm:$0xff]
      %v4158 = vld [vmem:[#allocation3 + $0x78] sm:$0xff]
      %v4159 = vld [vmem:[#allocation3 + $0x80] sm:$0xff]
      %v4160 = vld [vmem:[#allocation3 + $0x88] sm:$0xff]
      %v4161 = vld [vmem:[#allocation3 + $0x90] sm:$0xff]
      %v4162 = vld [vmem:[#allocation3 + $0x98] sm:$0xff]
      %v4163 = vld [vmem:[#allocation3 + $0xa0] sm:$0xff]
      %v4164 = vld [vmem:[#allocation3 + $0xa8] sm:$0xff]
      %v4165 = vld [vmem:[#allocation3 + $0xb0] sm:$0xff]
      %v4166 = vld [vmem:[#allocation3 + $0xb8] sm:$0xff]
      %v4167 = vld [vmem:[#allocation3 + $0xc0] sm:$0xff]
      %v4168 = vld [vmem:[#allocation3 + $0xc8] sm:$0xff]
      %v4169 = vld [vmem:[#allocation3 + $0xd0] sm:$0xff]
      %v4170 = vld [vmem:[#allocation3 + $0xd8] sm:$0xff]
      %v4171 = vld [vmem:[#allocation3 + $0xe0] sm:$0xff]
      %v4172 = vld [vmem:[#allocation3 + $0xe8] sm:$0xff]
      %v4173 = vld [vmem:[#allocation3 + $0xf0] sm:$0xff]
      %v4174 = vld [vmem:[#allocation3 + $0xf8] sm:$0xff]
      %v4175 = vadd.f32 %v4143, %v4017
      %v4176 = vadd.f32 %v4144, %v4020
      %v4177 = vadd.f32 %v4145, %v4025
      %v4178 = vadd.f32 %v4146, %v4028
      %v4179 = vadd.f32 %v4147, %v4033
      %v4180 = vadd.f32 %v4148, %v4036
      %v4181 = vadd.f32 %v4149, %v4041
      %v4182 = vadd.f32 %v4150, %v4044
      %v4183 = vadd.f32 %v4151, %v4049
      %v4184 = vadd.f32 %v4152, %v4052
      %v4185 = vadd.f32 %v4153, %v4057
      %v4186 = vadd.f32 %v4154, %v4060
      %v4187 = vadd.f32 %v4155, %v4065
      %v4188 = vadd.f32 %v4156, %v4068
      %v4189 = vadd.f32 %v4157, %v4073
      %v4190 = vadd.f32 %v4158, %v4076
      %v4191 = vadd.f32 %v4159, %v4081
      %v4192 = vadd.f32 %v4160, %v4084
      %v4193 = vadd.f32 %v4161, %v4089
      %v4194 = vadd.f32 %v4162, %v4092
      %v4195 = vadd.f32 %v4163, %v4097
      %v4196 = vadd.f32 %v4164, %v4100
      %v4197 = vadd.f32 %v4165, %v4105
      %v4198 = vadd.f32 %v4166, %v4108
      %v4199 = vadd.f32 %v4167, %v4113
      %v4200 = vadd.f32 %v4168, %v4116
      %v4201 = vadd.f32 %v4169, %v4121
      %v4202 = vadd.f32 %v4170, %v4124
      %v4203 = vadd.f32 %v4171, %v4129
      %v4204 = vadd.f32 %v4172, %v4132
      %v4205 = vadd.f32 %v4173, %v4137
      %v4206 = vadd.f32 %v4174, %v4140
      %4207 = vst [vmem:[#allocation3] sm:$0xff] %v4175
      %4208 = vst [vmem:[#allocation3 + $0x8] sm:$0xff] %v4176
      %4209 = vst [vmem:[#allocation3 + $0x10] sm:$0xff] %v4177
      %4210 = vst [vmem:[#allocation3 + $0x18] sm:$0xff] %v4178
      %4211 = vst [vmem:[#allocation3 + $0x20] sm:$0xff] %v4179
      %4212 = vst [vmem:[#allocation3 + $0x28] sm:$0xff] %v4180
      %4213 = vst [vmem:[#allocation3 + $0x30] sm:$0xff] %v4181
      %4214 = vst [vmem:[#allocation3 + $0x38] sm:$0xff] %v4182
      %4215 = vst [vmem:[#allocation3 + $0x40] sm:$0xff] %v4183
      %4216 = vst [vmem:[#allocation3 + $0x48] sm:$0xff] %v4184
      %4217 = vst [vmem:[#allocation3 + $0x50] sm:$0xff] %v4185
      %4218 = vst [vmem:[#allocation3 + $0x58] sm:$0xff] %v4186
      %4219 = vst [vmem:[#allocation3 + $0x60] sm:$0xff] %v4187
      %4220 = vst [vmem:[#allocation3 + $0x68] sm:$0xff] %v4188
      %4221 = vst [vmem:[#allocation3 + $0x70] sm:$0xff] %v4189
      %4222 = vst [vmem:[#allocation3 + $0x78] sm:$0xff] %v4190
      %4223 = vst [vmem:[#allocation3 + $0x80] sm:$0xff] %v4191
      %4224 = vst [vmem:[#allocation3 + $0x88] sm:$0xff] %v4192
      %4225 = vst [vmem:[#allocation3 + $0x90] sm:$0xff] %v4193
      %4226 = vst [vmem:[#allocation3 + $0x98] sm:$0xff] %v4194
      %4227 = vst [vmem:[#allocation3 + $0xa0] sm:$0xff] %v4195
      %4228 = vst [vmem:[#allocation3 + $0xa8] sm:$0xff] %v4196
      %4229 = vst [vmem:[#allocation3 + $0xb0] sm:$0xff] %v4197
      %4230 = vst [vmem:[#allocation3 + $0xb8] sm:$0xff] %v4198
      %4231 = vst [vmem:[#allocation3 + $0xc0] sm:$0xff] %v4199
      %4232 = vst [vmem:[#allocation3 + $0xc8] sm:$0xff] %v4200
      %4233 = vst [vmem:[#allocation3 + $0xd0] sm:$0xff] %v4201
      %4234 = vst [vmem:[#allocation3 + $0xd8] sm:$0xff] %v4202
      %4235 = vst [vmem:[#allocation3 + $0xe0] sm:$0xff] %v4203
      %4236 = vst [vmem:[#allocation3 + $0xe8] sm:$0xff] %v4204
      %4237 = vst [vmem:[#allocation3 + $0xf0] sm:$0xff] %v4205
      %4238 = vst [vmem:[#allocation3 + $0xf8] sm:$0xff] %v4206
      %v4242 = vrot.slane %v3684, 5
      %v4243 = vrot.slane %v4242, 4
      %v4244 = vrot.slane %v3685, 5
      %v4245 = vsel %vm3740, %v4243, %v4244
      %v4246 = vrot.slane %v4244, 4
      %v4247 = vrot.slane %v3686, 5
      %v4248 = vsel %vm3740, %v4246, %v4247
      %s4249 = scalar_lea.vmem %s1, 320
      %v4250 = vld [vmem:[%s4249] sm:$0xf]
      %v4251 = vld [vmem:[%s4249 + $0x4] sm:$0xf]
      %v4252 = vld [vmem:[%s4249 + $0x8] sm:$0xf]
      %v4253 = vld [vmem:[%s4249 + $0xc] sm:$0xf]
      %v4254 = vld [vmem:[%s4249 + $0x10] sm:$0xf]
      %v4255 = vld [vmem:[%s4249 + $0x14] sm:$0xf]
      %v4256 = vld [vmem:[%s4249 + $0x18] sm:$0xf]
      %v4257 = vld [vmem:[%s4249 + $0x1c] sm:$0xf]
      %v4258 = vld [vmem:[%s4249 + $0x20] sm:$0xf]
      %v4259 = vld [vmem:[%s4249 + $0x24] sm:$0xf]
      %v4260 = vld [vmem:[%s4249 + $0x28] sm:$0xf]
      %v4261 = vld [vmem:[%s4249 + $0x2c] sm:$0xf]
      %v4262 = vld [vmem:[%s4249 + $0x30] sm:$0xf]
      %v4263 = vld [vmem:[%s4249 + $0x34] sm:$0xf]
      %v4264 = vld [vmem:[%s4249 + $0x38] sm:$0xf]
      %v4265 = vld [vmem:[%s4249 + $0x3c] sm:$0xf]
      %v4266 = vunpack.c.l.b16 %v4245
      %v4267 = vunpack.c.l.b16 %v4248
      %v4268 = vpack.c.b16 %v4267, %v4266
      %v4286 = vunpack.c.l.b16 %v4250
      %v4287 = vunpack.c.l.b16 %v4251
      %v4288 = vunpack.c.l.b16 %v4252
      %v4289 = vunpack.c.l.b16 %v4253
      %v4290 = vunpack.c.l.b16 %v4254
      %v4291 = vunpack.c.l.b16 %v4255
      %v4292 = vunpack.c.l.b16 %v4256
      %v4293 = vunpack.c.l.b16 %v4257
      %v4294 = vunpack.c.l.b16 %v4258
      %v4295 = vunpack.c.l.b16 %v4259
      %v4296 = vunpack.c.l.b16 %v4260
      %v4297 = vunpack.c.l.b16 %v4261
      %v4298 = vunpack.c.l.b16 %v4262
      %v4299 = vunpack.c.l.b16 %v4263
      %v4300 = vunpack.c.l.b16 %v4264
      %v4301 = vunpack.c.l.b16 %v4265
      %v4302 = vpack.c.b16 %v4287, %v4286
      %v4303 = vpack.c.b16 %v4289, %v4288
      %v4304 = vpack.c.b16 %v4291, %v4290
      %v4305 = vpack.c.b16 %v4293, %v4292
      %v4306 = vpack.c.b16 %v4295, %v4294
      %v4307 = vpack.c.b16 %v4297, %v4296
      %v4308 = vpack.c.b16 %v4299, %v4298
      %v4309 = vpack.c.b16 %v4301, %v4300
      %4318 = vmatprep.subr.bf16.mxu0 0
      %4319 = vmatpush1.bf16.msra.mxu0 %v4309
      %4320 = vmatprep.subr.bf16.mxu0 0
      %4321 = vmatpush1.bf16.msra.mxu0 %v4308
      %4322 = vmatprep.subr.bf16.mxu0 0
      %4323 = vmatpush1.bf16.msra.mxu0 %v4307
      %4324 = vmatprep.subr.bf16.mxu0 0
      %4325 = vmatpush1.bf16.msra.mxu0 %v4306
      %4326 = vmatprep.subr.bf16.mxu0 0
      %4327 = vmatpush1.bf16.msra.mxu0 %v4305
      %4328 = vmatprep.subr.bf16.mxu0 0
      %4329 = vmatpush1.bf16.msra.mxu0 %v4304
      %4330 = vmatprep.subr.bf16.mxu0 0
      %4331 = vmatpush1.bf16.msra.mxu0 %v4303
      %4332 = vmatprep.subr.bf16.mxu0 0
      %4333 = vmatpush1.bf16.msra.mxu0 %v4302
      %4334 = vmatprep.subr.bf16.mxu0 0
      %4335 = vmatpush2.bf16.msra.mxu0 0
      %4336 = vmatprep.subr.bf16.mxu0 0
      %4337 = vmatpush2.bf16.msra.mxu0 0
      %4338 = vmatprep.subr.bf16.mxu0 0
      %4339 = vmatpush2.bf16.msra.mxu0 0
      %4340 = vmatprep.subr.bf16.mxu0 0
      %4341 = vmatpush2.bf16.msra.mxu0 0
      %4342 = vmatprep.subr.bf16.mxu0 0
      %4343 = vmatpush2.bf16.msra.mxu0 0
      %4344 = vmatprep.subr.bf16.mxu0 0
      %4345 = vmatpush2.bf16.msra.mxu0 0
      %4346 = vmatprep.subr.bf16.mxu0 0
      %4347 = vmatpush2.bf16.msra.mxu0 0
      %4348 = vmatprep.subr.bf16.mxu0 0
      %4349 = vmatpush2.bf16.msra.mxu0 0
      %4350 = vmatprep.mubr.bf16.mxu0 0
      %4351 = vmatmul.mubr.bf16.gmra.mxu0 %v3903
      %v4352 = vpop.f32.mrf.mxu0
      %v4353 = vadd.f32 0.0, %v4352
      %v4354 = vpop.f32.mrf.mxu0
      %v4355 = vpop.f32.mrf.mxu0
      %v4356 = vadd.f32 0.0, %v4355
      %v4357 = vpop.f32.mrf.mxu0
      %4358 = vmatprep.mubr.bf16.mxu0 0
      %4359 = vmatmul.mubr.bf16.gmra.mxu0 %v3904
      %v4360 = vpop.f32.mrf.mxu0
      %v4361 = vadd.f32 0.0, %v4360
      %v4362 = vpop.f32.mrf.mxu0
      %v4363 = vpop.f32.mrf.mxu0
      %v4364 = vadd.f32 0.0, %v4363
      %v4365 = vpop.f32.mrf.mxu0
      %4366 = vmatprep.mubr.bf16.mxu0 0
      %4367 = vmatmul.mubr.bf16.gmra.mxu0 %v3905
      %v4368 = vpop.f32.mrf.mxu0
      %v4369 = vadd.f32 0.0, %v4368
      %v4370 = vpop.f32.mrf.mxu0
      %v4371 = vpop.f32.mrf.mxu0
      %v4372 = vadd.f32 0.0, %v4371
      %v4373 = vpop.f32.mrf.mxu0
      %4374 = vmatprep.mubr.bf16.mxu0 0
      %4375 = vmatmul.mubr.bf16.gmra.mxu0 %v3906
      %v4376 = vpop.f32.mrf.mxu0
      %v4377 = vadd.f32 0.0, %v4376
      %v4378 = vpop.f32.mrf.mxu0
      %v4379 = vpop.f32.mrf.mxu0
      %v4380 = vadd.f32 0.0, %v4379
      %v4381 = vpop.f32.mrf.mxu0
      %4382 = vmatprep.mubr.bf16.mxu0 0
      %4383 = vmatmul.mubr.bf16.gmra.mxu0 %v3907
      %v4384 = vpop.f32.mrf.mxu0
      %v4385 = vadd.f32 0.0, %v4384
      %v4386 = vpop.f32.mrf.mxu0
      %v4387 = vpop.f32.mrf.mxu0
      %v4388 = vadd.f32 0.0, %v4387
      %v4389 = vpop.f32.mrf.mxu0
      %4390 = vmatprep.mubr.bf16.mxu0 0
      %4391 = vmatmul.mubr.bf16.gmra.mxu0 %v3908
      %v4392 = vpop.f32.mrf.mxu0
      %v4393 = vadd.f32 0.0, %v4392
      %v4394 = vpop.f32.mrf.mxu0
      %v4395 = vpop.f32.mrf.mxu0
      %v4396 = vadd.f32 0.0, %v4395
      %v4397 = vpop.f32.mrf.mxu0
      %4398 = vmatprep.mubr.bf16.mxu0 0
      %4399 = vmatmul.mubr.bf16.gmra.mxu0 %v3909
      %v4400 = vpop.f32.mrf.mxu0
      %v4401 = vadd.f32 0.0, %v4400
      %v4402 = vpop.f32.mrf.mxu0
      %v4403 = vpop.f32.mrf.mxu0
      %v4404 = vadd.f32 0.0, %v4403
      %v4405 = vpop.f32.mrf.mxu0
      %4406 = vmatprep.mubr.bf16.mxu0 0
      %4407 = vmatmul.mubr.bf16.gmra.mxu0 %v3910
      %v4408 = vpop.f32.mrf.mxu0
      %v4409 = vadd.f32 0.0, %v4408
      %v4410 = vpop.f32.mrf.mxu0
      %v4411 = vpop.f32.mrf.mxu0
      %v4412 = vadd.f32 0.0, %v4411
      %v4413 = vpop.f32.mrf.mxu0
      %4414 = vmatprep.mubr.bf16.mxu0 0
      %4415 = vmatmul.mubr.bf16.gmra.mxu0 %v3911
      %v4416 = vpop.f32.mrf.mxu0
      %v4417 = vadd.f32 0.0, %v4416
      %v4418 = vpop.f32.mrf.mxu0
      %v4419 = vpop.f32.mrf.mxu0
      %v4420 = vadd.f32 0.0, %v4419
      %v4421 = vpop.f32.mrf.mxu0
      %4422 = vmatprep.mubr.bf16.mxu0 0
      %4423 = vmatmul.mubr.bf16.gmra.mxu0 %v3912
      %v4424 = vpop.f32.mrf.mxu0
      %v4425 = vadd.f32 0.0, %v4424
      %v4426 = vpop.f32.mrf.mxu0
      %v4427 = vpop.f32.mrf.mxu0
      %v4428 = vadd.f32 0.0, %v4427
      %v4429 = vpop.f32.mrf.mxu0
      %4430 = vmatprep.mubr.bf16.mxu0 0
      %4431 = vmatmul.mubr.bf16.gmra.mxu0 %v3913
      %v4432 = vpop.f32.mrf.mxu0
      %v4433 = vadd.f32 0.0, %v4432
      %v4434 = vpop.f32.mrf.mxu0
      %v4435 = vpop.f32.mrf.mxu0
      %v4436 = vadd.f32 0.0, %v4435
      %v4437 = vpop.f32.mrf.mxu0
      %4438 = vmatprep.mubr.bf16.mxu0 0
      %4439 = vmatmul.mubr.bf16.gmra.mxu0 %v3914
      %v4440 = vpop.f32.mrf.mxu0
      %v4441 = vadd.f32 0.0, %v4440
      %v4442 = vpop.f32.mrf.mxu0
      %v4443 = vpop.f32.mrf.mxu0
      %v4444 = vadd.f32 0.0, %v4443
      %v4445 = vpop.f32.mrf.mxu0
      %4446 = vmatprep.mubr.bf16.mxu0 0
      %4447 = vmatmul.mubr.bf16.gmra.mxu0 %v3915
      %v4448 = vpop.f32.mrf.mxu0
      %v4449 = vadd.f32 0.0, %v4448
      %v4450 = vpop.f32.mrf.mxu0
      %v4451 = vpop.f32.mrf.mxu0
      %v4452 = vadd.f32 0.0, %v4451
      %v4453 = vpop.f32.mrf.mxu0
      %4454 = vmatprep.mubr.bf16.mxu0 0
      %4455 = vmatmul.mubr.bf16.gmra.mxu0 %v3916
      %v4456 = vpop.f32.mrf.mxu0
      %v4457 = vadd.f32 0.0, %v4456
      %v4458 = vpop.f32.mrf.mxu0
      %v4459 = vpop.f32.mrf.mxu0
      %v4460 = vadd.f32 0.0, %v4459
      %v4461 = vpop.f32.mrf.mxu0
      %4462 = vmatprep.mubr.bf16.mxu0 0
      %4463 = vmatmul.mubr.bf16.gmra.mxu0 %v3917
      %v4464 = vpop.f32.mrf.mxu0
      %v4465 = vadd.f32 0.0, %v4464
      %v4466 = vpop.f32.mrf.mxu0
      %v4467 = vpop.f32.mrf.mxu0
      %v4468 = vadd.f32 0.0, %v4467
      %v4469 = vpop.f32.mrf.mxu0
      %4470 = vmatprep.mubr.bf16.mxu0 0
      %4471 = vmatmul.mubr.bf16.gmra.mxu0 %v4268
      %v4472 = vpop.f32.mrf.mxu0
      %v4473 = vadd.f32 0.0, %v4472
      %v4474 = vpop.f32.mrf.mxu0
      %v4475 = vpop.f32.mrf.mxu0
      %v4476 = vadd.f32 0.0, %v4475
      %v4477 = vpop.f32.mrf.mxu0
      %4478 = vdwg.mxu0
      %v4479 = vld [vmem:[#allocation3] sm:$0xff]
      %v4480 = vld [vmem:[#allocation3 + $0x8] sm:$0xff]
      %v4481 = vld [vmem:[#allocation3 + $0x10] sm:$0xff]
      %v4482 = vld [vmem:[#allocation3 + $0x18] sm:$0xff]
      %v4483 = vld [vmem:[#allocation3 + $0x20] sm:$0xff]
      %v4484 = vld [vmem:[#allocation3 + $0x28] sm:$0xff]
      %v4485 = vld [vmem:[#allocation3 + $0x30] sm:$0xff]
      %v4486 = vld [vmem:[#allocation3 + $0x38] sm:$0xff]
      %v4487 = vld [vmem:[#allocation3 + $0x40] sm:$0xff]
      %v4488 = vld [vmem:[#allocation3 + $0x48] sm:$0xff]
      %v4489 = vld [vmem:[#allocation3 + $0x50] sm:$0xff]
      %v4490 = vld [vmem:[#allocation3 + $0x58] sm:$0xff]
      %v4491 = vld [vmem:[#allocation3 + $0x60] sm:$0xff]
      %v4492 = vld [vmem:[#allocation3 + $0x68] sm:$0xff]
      %v4493 = vld [vmem:[#allocation3 + $0x70] sm:$0xff]
      %v4494 = vld [vmem:[#allocation3 + $0x78] sm:$0xff]
      %v4495 = vld [vmem:[#allocation3 + $0x80] sm:$0xff]
      %v4496 = vld [vmem:[#allocation3 + $0x88] sm:$0xff]
      %v4497 = vld [vmem:[#allocation3 + $0x90] sm:$0xff]
      %v4498 = vld [vmem:[#allocation3 + $0x98] sm:$0xff]
      %v4499 = vld [vmem:[#allocation3 + $0xa0] sm:$0xff]
      %v4500 = vld [vmem:[#allocation3 + $0xa8] sm:$0xff]
      %v4501 = vld [vmem:[#allocation3 + $0xb0] sm:$0xff]
      %v4502 = vld [vmem:[#allocation3 + $0xb8] sm:$0xff]
      %v4503 = vld [vmem:[#allocation3 + $0xc0] sm:$0xff]
      %v4504 = vld [vmem:[#allocation3 + $0xc8] sm:$0xff]
      %v4505 = vld [vmem:[#allocation3 + $0xd0] sm:$0xff]
      %v4506 = vld [vmem:[#allocation3 + $0xd8] sm:$0xff]
      %v4507 = vld [vmem:[#allocation3 + $0xe0] sm:$0xff]
      %v4508 = vld [vmem:[#allocation3 + $0xe8] sm:$0xff]
      %v4509 = vld [vmem:[#allocation3 + $0xf0] sm:$0xff]
      %v4510 = vld [vmem:[#allocation3 + $0xf8] sm:$0xff]
      %v4511 = vadd.f32 %v4479, %v4353
      %v4512 = vadd.f32 %v4480, %v4356
      %v4513 = vadd.f32 %v4481, %v4361
      %v4514 = vadd.f32 %v4482, %v4364
      %v4515 = vadd.f32 %v4483, %v4369
      %v4516 = vadd.f32 %v4484, %v4372
      %v4517 = vadd.f32 %v4485, %v4377
      %v4518 = vadd.f32 %v4486, %v4380
      %v4519 = vadd.f32 %v4487, %v4385
      %v4520 = vadd.f32 %v4488, %v4388
      %v4521 = vadd.f32 %v4489, %v4393
      %v4522 = vadd.f32 %v4490, %v4396
      %v4523 = vadd.f32 %v4491, %v4401
      %v4524 = vadd.f32 %v4492, %v4404
      %v4525 = vadd.f32 %v4493, %v4409
      %v4526 = vadd.f32 %v4494, %v4412
      %v4527 = vadd.f32 %v4495, %v4417
      %v4528 = vadd.f32 %v4496, %v4420
      %v4529 = vadd.f32 %v4497, %v4425
      %v4530 = vadd.f32 %v4498, %v4428
      %v4531 = vadd.f32 %v4499, %v4433
      %v4532 = vadd.f32 %v4500, %v4436
      %v4533 = vadd.f32 %v4501, %v4441
      %v4534 = vadd.f32 %v4502, %v4444
      %v4535 = vadd.f32 %v4503, %v4449
      %v4536 = vadd.f32 %v4504, %v4452
      %v4537 = vadd.f32 %v4505, %v4457
      %v4538 = vadd.f32 %v4506, %v4460
      %v4539 = vadd.f32 %v4507, %v4465
      %v4540 = vadd.f32 %v4508, %v4468
      %v4541 = vadd.f32 %v4509, %v4473
      %v4542 = vadd.f32 %v4510, %v4476
      %4543 = vst [vmem:[#allocation3] sm:$0xff] %v4511
      %4544 = vst [vmem:[#allocation3 + $0x8] sm:$0xff] %v4512
      %4545 = vst [vmem:[#allocation3 + $0x10] sm:$0xff] %v4513
      %4546 = vst [vmem:[#allocation3 + $0x18] sm:$0xff] %v4514
      %4547 = vst [vmem:[#allocation3 + $0x20] sm:$0xff] %v4515
      %4548 = vst [vmem:[#allocation3 + $0x28] sm:$0xff] %v4516
      %4549 = vst [vmem:[#allocation3 + $0x30] sm:$0xff] %v4517
      %4550 = vst [vmem:[#allocation3 + $0x38] sm:$0xff] %v4518
      %4551 = vst [vmem:[#allocation3 + $0x40] sm:$0xff] %v4519
      %4552 = vst [vmem:[#allocation3 + $0x48] sm:$0xff] %v4520
      %4553 = vst [vmem:[#allocation3 + $0x50] sm:$0xff] %v4521
      %4554 = vst [vmem:[#allocation3 + $0x58] sm:$0xff] %v4522
      %4555 = vst [vmem:[#allocation3 + $0x60] sm:$0xff] %v4523
      %4556 = vst [vmem:[#allocation3 + $0x68] sm:$0xff] %v4524
      %4557 = vst [vmem:[#allocation3 + $0x70] sm:$0xff] %v4525
      %4558 = vst [vmem:[#allocation3 + $0x78] sm:$0xff] %v4526
      %4559 = vst [vmem:[#allocation3 + $0x80] sm:$0xff] %v4527
      %4560 = vst [vmem:[#allocation3 + $0x88] sm:$0xff] %v4528
      %4561 = vst [vmem:[#allocation3 + $0x90] sm:$0xff] %v4529
      %4562 = vst [vmem:[#allocation3 + $0x98] sm:$0xff] %v4530
      %4563 = vst [vmem:[#allocation3 + $0xa0] sm:$0xff] %v4531
      %4564 = vst [vmem:[#allocation3 + $0xa8] sm:$0xff] %v4532
      %4565 = vst [vmem:[#allocation3 + $0xb0] sm:$0xff] %v4533
      %4566 = vst [vmem:[#allocation3 + $0xb8] sm:$0xff] %v4534
      %4567 = vst [vmem:[#allocation3 + $0xc0] sm:$0xff] %v4535
      %4568 = vst [vmem:[#allocation3 + $0xc8] sm:$0xff] %v4536
      %4569 = vst [vmem:[#allocation3 + $0xd0] sm:$0xff] %v4537
      %4570 = vst [vmem:[#allocation3 + $0xd8] sm:$0xff] %v4538
      %4571 = vst [vmem:[#allocation3 + $0xe0] sm:$0xff] %v4539
      %4572 = vst [vmem:[#allocation3 + $0xe8] sm:$0xff] %v4540
      %4573 = vst [vmem:[#allocation3 + $0xf0] sm:$0xff] %v4541
      %4574 = vst [vmem:[#allocation3 + $0xf8] sm:$0xff] %v4542
      %v4578 = vrot.slane %v3687, 5
      %v4579 = vrot.slane %v4578, 4
      %v4580 = vrot.slane %v3688, 5
      %v4581 = vsel %vm3740, %v4579, %v4580
      %v4582 = vrot.slane %v4580, 4
      %v4583 = vrot.slane %v3689, 5
      %v4584 = vsel %vm3740, %v4582, %v4583
      %s4585 = scalar_lea.vmem %s1, 512
      %v4586 = vld [vmem:[%s4585] sm:$0xf]
      %v4587 = vld [vmem:[%s4585 + $0x4] sm:$0xf]
      %v4588 = vld [vmem:[%s4585 + $0x8] sm:$0xf]
      %v4589 = vld [vmem:[%s4585 + $0xc] sm:$0xf]
      %v4590 = vld [vmem:[%s4585 + $0x10] sm:$0xf]
      %v4591 = vld [vmem:[%s4585 + $0x14] sm:$0xf]
      %v4592 = vld [vmem:[%s4585 + $0x18] sm:$0xf]
      %v4593 = vld [vmem:[%s4585 + $0x1c] sm:$0xf]
      %v4594 = vld [vmem:[%s4585 + $0x20] sm:$0xf]
      %v4595 = vld [vmem:[%s4585 + $0x24] sm:$0xf]
      %v4596 = vld [vmem:[%s4585 + $0x28] sm:$0xf]
      %v4597 = vld [vmem:[%s4585 + $0x2c] sm:$0xf]
      %v4598 = vld [vmem:[%s4585 + $0x30] sm:$0xf]
      %v4599 = vld [vmem:[%s4585 + $0x34] sm:$0xf]
      %v4600 = vld [vmem:[%s4585 + $0x38] sm:$0xf]
      %v4601 = vld [vmem:[%s4585 + $0x3c] sm:$0xf]
      %v4602 = vunpack.c.l.b16 %v4581
      %v4603 = vunpack.c.l.b16 %v4584
      %v4604 = vpack.c.b16 %v4603, %v4602
      %v4622 = vunpack.c.l.b16 %v4586
      %v4623 = vunpack.c.l.b16 %v4587
      %v4624 = vunpack.c.l.b16 %v4588
      %v4625 = vunpack.c.l.b16 %v4589
      %v4626 = vunpack.c.l.b16 %v4590
      %v4627 = vunpack.c.l.b16 %v4591
      %v4628 = vunpack.c.l.b16 %v4592
      %v4629 = vunpack.c.l.b16 %v4593
      %v4630 = vunpack.c.l.b16 %v4594
      %v4631 = vunpack.c.l.b16 %v4595
      %v4632 = vunpack.c.l.b16 %v4596
      %v4633 = vunpack.c.l.b16 %v4597
      %v4634 = vunpack.c.l.b16 %v4598
      %v4635 = vunpack.c.l.b16 %v4599
      %v4636 = vunpack.c.l.b16 %v4600
      %v4637 = vunpack.c.l.b16 %v4601
      %v4638 = vpack.c.b16 %v4623, %v4622
      %v4639 = vpack.c.b16 %v4625, %v4624
      %v4640 = vpack.c.b16 %v4627, %v4626
      %v4641 = vpack.c.b16 %v4629, %v4628
      %v4642 = vpack.c.b16 %v4631, %v4630
      %v4643 = vpack.c.b16 %v4633, %v4632
      %v4644 = vpack.c.b16 %v4635, %v4634
      %v4645 = vpack.c.b16 %v4637, %v4636
      %4654 = vmatprep.subr.bf16.mxu0 0
      %4655 = vmatpush1.bf16.msra.mxu0 %v4645
      %4656 = vmatprep.subr.bf16.mxu0 0
      %4657 = vmatpush1.bf16.msra.mxu0 %v4644
      %4658 = vmatprep.subr.bf16.mxu0 0
      %4659 = vmatpush1.bf16.msra.mxu0 %v4643
      %4660 = vmatprep.subr.bf16.mxu0 0
      %4661 = vmatpush1.bf16.msra.mxu0 %v4642
      %4662 = vmatprep.subr.bf16.mxu0 0
      %4663 = vmatpush1.bf16.msra.mxu0 %v4641
      %4664 = vmatprep.subr.bf16.mxu0 0
      %4665 = vmatpush1.bf16.msra.mxu0 %v4640
      %4666 = vmatprep.subr.bf16.mxu0 0
      %4667 = vmatpush1.bf16.msra.mxu0 %v4639
      %4668 = vmatprep.subr.bf16.mxu0 0
      %4669 = vmatpush1.bf16.msra.mxu0 %v4638
      %4670 = vmatprep.subr.bf16.mxu0 0
      %4671 = vmatpush2.bf16.msra.mxu0 0
      %4672 = vmatprep.subr.bf16.mxu0 0
      %4673 = vmatpush2.bf16.msra.mxu0 0
      %4674 = vmatprep.subr.bf16.mxu0 0
      %4675 = vmatpush2.bf16.msra.mxu0 0
      %4676 = vmatprep.subr.bf16.mxu0 0
      %4677 = vmatpush2.bf16.msra.mxu0 0
      %4678 = vmatprep.subr.bf16.mxu0 0
      %4679 = vmatpush2.bf16.msra.mxu0 0
      %4680 = vmatprep.subr.bf16.mxu0 0
      %4681 = vmatpush2.bf16.msra.mxu0 0
      %4682 = vmatprep.subr.bf16.mxu0 0
      %4683 = vmatpush2.bf16.msra.mxu0 0
      %4684 = vmatprep.subr.bf16.mxu0 0
      %4685 = vmatpush2.bf16.msra.mxu0 0
      %4686 = vmatprep.mubr.bf16.mxu0 0
      %4687 = vmatmul.mubr.bf16.gmra.mxu0 %v3904
      %v4688 = vpop.f32.mrf.mxu0
      %v4689 = vadd.f32 0.0, %v4688
      %v4690 = vpop.f32.mrf.mxu0
      %v4691 = vpop.f32.mrf.mxu0
      %v4692 = vadd.f32 0.0, %v4691
      %v4693 = vpop.f32.mrf.mxu0
      %4694 = vmatprep.mubr.bf16.mxu0 0
      %4695 = vmatmul.mubr.bf16.gmra.mxu0 %v3905
      %v4696 = vpop.f32.mrf.mxu0
      %v4697 = vadd.f32 0.0, %v4696
      %v4698 = vpop.f32.mrf.mxu0
      %v4699 = vpop.f32.mrf.mxu0
      %v4700 = vadd.f32 0.0, %v4699
      %v4701 = vpop.f32.mrf.mxu0
      %4702 = vmatprep.mubr.bf16.mxu0 0
      %4703 = vmatmul.mubr.bf16.gmra.mxu0 %v3906
      %v4704 = vpop.f32.mrf.mxu0
      %v4705 = vadd.f32 0.0, %v4704
      %v4706 = vpop.f32.mrf.mxu0
      %v4707 = vpop.f32.mrf.mxu0
      %v4708 = vadd.f32 0.0, %v4707
      %v4709 = vpop.f32.mrf.mxu0
      %4710 = vmatprep.mubr.bf16.mxu0 0
      %4711 = vmatmul.mubr.bf16.gmra.mxu0 %v3907
      %v4712 = vpop.f32.mrf.mxu0
      %v4713 = vadd.f32 0.0, %v4712
      %v4714 = vpop.f32.mrf.mxu0
      %v4715 = vpop.f32.mrf.mxu0
      %v4716 = vadd.f32 0.0, %v4715
      %v4717 = vpop.f32.mrf.mxu0
      %4718 = vmatprep.mubr.bf16.mxu0 0
      %4719 = vmatmul.mubr.bf16.gmra.mxu0 %v3908
      %v4720 = vpop.f32.mrf.mxu0
      %v4721 = vadd.f32 0.0, %v4720
      %v4722 = vpop.f32.mrf.mxu0
      %v4723 = vpop.f32.mrf.mxu0
      %v4724 = vadd.f32 0.0, %v4723
      %v4725 = vpop.f32.mrf.mxu0
      %4726 = vmatprep.mubr.bf16.mxu0 0
      %4727 = vmatmul.mubr.bf16.gmra.mxu0 %v3909
      %v4728 = vpop.f32.mrf.mxu0
      %v4729 = vadd.f32 0.0, %v4728
      %v4730 = vpop.f32.mrf.mxu0
      %v4731 = vpop.f32.mrf.mxu0
      %v4732 = vadd.f32 0.0, %v4731
      %v4733 = vpop.f32.mrf.mxu0
      %4734 = vmatprep.mubr.bf16.mxu0 0
      %4735 = vmatmul.mubr.bf16.gmra.mxu0 %v3910
      %v4736 = vpop.f32.mrf.mxu0
      %v4737 = vadd.f32 0.0, %v4736
      %v4738 = vpop.f32.mrf.mxu0
      %v4739 = vpop.f32.mrf.mxu0
      %v4740 = vadd.f32 0.0, %v4739
      %v4741 = vpop.f32.mrf.mxu0
      %4742 = vmatprep.mubr.bf16.mxu0 0
      %4743 = vmatmul.mubr.bf16.gmra.mxu0 %v3911
      %v4744 = vpop.f32.mrf.mxu0
      %v4745 = vadd.f32 0.0, %v4744
      %v4746 = vpop.f32.mrf.mxu0
      %v4747 = vpop.f32.mrf.mxu0
      %v4748 = vadd.f32 0.0, %v4747
      %v4749 = vpop.f32.mrf.mxu0
      %4750 = vmatprep.mubr.bf16.mxu0 0
      %4751 = vmatmul.mubr.bf16.gmra.mxu0 %v3912
      %v4752 = vpop.f32.mrf.mxu0
      %v4753 = vadd.f32 0.0, %v4752
      %v4754 = vpop.f32.mrf.mxu0
      %v4755 = vpop.f32.mrf.mxu0
      %v4756 = vadd.f32 0.0, %v4755
      %v4757 = vpop.f32.mrf.mxu0
      %4758 = vmatprep.mubr.bf16.mxu0 0
      %4759 = vmatmul.mubr.bf16.gmra.mxu0 %v3913
      %v4760 = vpop.f32.mrf.mxu0
      %v4761 = vadd.f32 0.0, %v4760
      %v4762 = vpop.f32.mrf.mxu0
      %v4763 = vpop.f32.mrf.mxu0
      %v4764 = vadd.f32 0.0, %v4763
      %v4765 = vpop.f32.mrf.mxu0
      %4766 = vmatprep.mubr.bf16.mxu0 0
      %4767 = vmatmul.mubr.bf16.gmra.mxu0 %v3914
      %v4768 = vpop.f32.mrf.mxu0
      %v4769 = vadd.f32 0.0, %v4768
      %v4770 = vpop.f32.mrf.mxu0
      %v4771 = vpop.f32.mrf.mxu0
      %v4772 = vadd.f32 0.0, %v4771
      %v4773 = vpop.f32.mrf.mxu0
      %4774 = vmatprep.mubr.bf16.mxu0 0
      %4775 = vmatmul.mubr.bf16.gmra.mxu0 %v3915
      %v4776 = vpop.f32.mrf.mxu0
      %v4777 = vadd.f32 0.0, %v4776
      %v4778 = vpop.f32.mrf.mxu0
      %v4779 = vpop.f32.mrf.mxu0
      %v4780 = vadd.f32 0.0, %v4779
      %v4781 = vpop.f32.mrf.mxu0
      %4782 = vmatprep.mubr.bf16.mxu0 0
      %4783 = vmatmul.mubr.bf16.gmra.mxu0 %v3916
      %v4784 = vpop.f32.mrf.mxu0
      %v4785 = vadd.f32 0.0, %v4784
      %v4786 = vpop.f32.mrf.mxu0
      %v4787 = vpop.f32.mrf.mxu0
      %v4788 = vadd.f32 0.0, %v4787
      %v4789 = vpop.f32.mrf.mxu0
      %4790 = vmatprep.mubr.bf16.mxu0 0
      %4791 = vmatmul.mubr.bf16.gmra.mxu0 %v3917
      %v4792 = vpop.f32.mrf.mxu0
      %v4793 = vadd.f32 0.0, %v4792
      %v4794 = vpop.f32.mrf.mxu0
      %v4795 = vpop.f32.mrf.mxu0
      %v4796 = vadd.f32 0.0, %v4795
      %v4797 = vpop.f32.mrf.mxu0
      %4798 = vmatprep.mubr.bf16.mxu0 0
      %4799 = vmatmul.mubr.bf16.gmra.mxu0 %v4268
      %v4800 = vpop.f32.mrf.mxu0
      %v4801 = vadd.f32 0.0, %v4800
      %v4802 = vpop.f32.mrf.mxu0
      %v4803 = vpop.f32.mrf.mxu0
      %v4804 = vadd.f32 0.0, %v4803
      %v4805 = vpop.f32.mrf.mxu0
      %4806 = vmatprep.mubr.bf16.mxu0 0
      %4807 = vmatmul.mubr.bf16.gmra.mxu0 %v4604
      %v4808 = vpop.f32.mrf.mxu0
      %v4809 = vadd.f32 0.0, %v4808
      %v4810 = vpop.f32.mrf.mxu0
      %v4811 = vpop.f32.mrf.mxu0
      %v4812 = vadd.f32 0.0, %v4811
      %v4813 = vpop.f32.mrf.mxu0
      %4814 = vdwg.mxu0
      %v4815 = vld [vmem:[#allocation3] sm:$0xff]
      %v4816 = vld [vmem:[#allocation3 + $0x8] sm:$0xff]
      %v4817 = vld [vmem:[#allocation3 + $0x10] sm:$0xff]
      %v4818 = vld [vmem:[#allocation3 + $0x18] sm:$0xff]
      %v4819 = vld [vmem:[#allocation3 + $0x20] sm:$0xff]
      %v4820 = vld [vmem:[#allocation3 + $0x28] sm:$0xff]
      %v4821 = vld [vmem:[#allocation3 + $0x30] sm:$0xff]
      %v4822 = vld [vmem:[#allocation3 + $0x38] sm:$0xff]
      %v4823 = vld [vmem:[#allocation3 + $0x40] sm:$0xff]
      %v4824 = vld [vmem:[#allocation3 + $0x48] sm:$0xff]
      %v4825 = vld [vmem:[#allocation3 + $0x50] sm:$0xff]
      %v4826 = vld [vmem:[#allocation3 + $0x58] sm:$0xff]
      %v4827 = vld [vmem:[#allocation3 + $0x60] sm:$0xff]
      %v4828 = vld [vmem:[#allocation3 + $0x68] sm:$0xff]
      %v4829 = vld [vmem:[#allocation3 + $0x70] sm:$0xff]
      %v4830 = vld [vmem:[#allocation3 + $0x78] sm:$0xff]
      %v4831 = vld [vmem:[#allocation3 + $0x80] sm:$0xff]
      %v4832 = vld [vmem:[#allocation3 + $0x88] sm:$0xff]
      %v4833 = vld [vmem:[#allocation3 + $0x90] sm:$0xff]
      %v4834 = vld [vmem:[#allocation3 + $0x98] sm:$0xff]
      %v4835 = vld [vmem:[#allocation3 + $0xa0] sm:$0xff]
      %v4836 = vld [vmem:[#allocation3 + $0xa8] sm:$0xff]
      %v4837 = vld [vmem:[#allocation3 + $0xb0] sm:$0xff]
      %v4838 = vld [vmem:[#allocation3 + $0xb8] sm:$0xff]
      %v4839 = vld [vmem:[#allocation3 + $0xc0] sm:$0xff]
      %v4840 = vld [vmem:[#allocation3 + $0xc8] sm:$0xff]
      %v4841 = vld [vmem:[#allocation3 + $0xd0] sm:$0xff]
      %v4842 = vld [vmem:[#allocation3 + $0xd8] sm:$0xff]
      %v4843 = vld [vmem:[#allocation3 + $0xe0] sm:$0xff]
      %v4844 = vld [vmem:[#allocation3 + $0xe8] sm:$0xff]
      %v4845 = vld [vmem:[#allocation3 + $0xf0] sm:$0xff]
      %v4846 = vld [vmem:[#allocation3 + $0xf8] sm:$0xff]
      %v4847 = vadd.f32 %v4815, %v4689
      %v4848 = vadd.f32 %v4816, %v4692
      %v4849 = vadd.f32 %v4817, %v4697
      %v4850 = vadd.f32 %v4818, %v4700
      %v4851 = vadd.f32 %v4819, %v4705
      %v4852 = vadd.f32 %v4820, %v4708
      %v4853 = vadd.f32 %v4821, %v4713
      %v4854 = vadd.f32 %v4822, %v4716
      %v4855 = vadd.f32 %v4823, %v4721
      %v4856 = vadd.f32 %v4824, %v4724
      %v4857 = vadd.f32 %v4825, %v4729
      %v4858 = vadd.f32 %v4826, %v4732
      %v4859 = vadd.f32 %v4827, %v4737
      %v4860 = vadd.f32 %v4828, %v4740
      %v4861 = vadd.f32 %v4829, %v4745
      %v4862 = vadd.f32 %v4830, %v4748
      %v4863 = vadd.f32 %v4831, %v4753
      %v4864 = vadd.f32 %v4832, %v4756
      %v4865 = vadd.f32 %v4833, %v4761
      %v4866 = vadd.f32 %v4834, %v4764
      %v4867 = vadd.f32 %v4835, %v4769
      %v4868 = vadd.f32 %v4836, %v4772
      %v4869 = vadd.f32 %v4837, %v4777
      %v4870 = vadd.f32 %v4838, %v4780
      %v4871 = vadd.f32 %v4839, %v4785
      %v4872 = vadd.f32 %v4840, %v4788
      %v4873 = vadd.f32 %v4841, %v4793
      %v4874 = vadd.f32 %v4842, %v4796
      %v4875 = vadd.f32 %v4843, %v4801
      %v4876 = vadd.f32 %v4844, %v4804
      %v4877 = vadd.f32 %v4845, %v4809
      %v4878 = vadd.f32 %v4846, %v4812
      %4879 = vst [vmem:[#allocation3] sm:$0xff] %v4847
      %4880 = vst [vmem:[#allocation3 + $0x8] sm:$0xff] %v4848
      %4881 = vst [vmem:[#allocation3 + $0x10] sm:$0xff] %v4849
      %4882 = vst [vmem:[#allocation3 + $0x18] sm:$0xff] %v4850
      %4883 = vst [vmem:[#allocation3 + $0x20] sm:$0xff] %v4851
      %4884 = vst [vmem:[#allocation3 + $0x28] sm:$0xff] %v4852
      %4885 = vst [vmem:[#allocation3 + $0x30] sm:$0xff] %v4853
      %4886 = vst [vmem:[#allocation3 + $0x38] sm:$0xff] %v4854
      %4887 = vst [vmem:[#allocation3 + $0x40] sm:$0xff] %v4855
      %4888 = vst [vmem:[#allocation3 + $0x48] sm:$0xff] %v4856
      %4889 = vst [vmem:[#allocation3 + $0x50] sm:$0xff] %v4857
      %4890 = vst [vmem:[#allocation3 + $0x58] sm:$0xff] %v4858
      %4891 = vst [vmem:[#allocation3 + $0x60] sm:$0xff] %v4859
      %4892 = vst [vmem:[#allocation3 + $0x68] sm:$0xff] %v4860
      %4893 = vst [vmem:[#allocation3 + $0x70] sm:$0xff] %v4861
      %4894 = vst [vmem:[#allocation3 + $0x78] sm:$0xff] %v4862
      %4895 = vst [vmem:[#allocation3 + $0x80] sm:$0xff] %v4863
      %4896 = vst [vmem:[#allocation3 + $0x88] sm:$0xff] %v4864
      %4897 = vst [vmem:[#allocation3 + $0x90] sm:$0xff] %v4865
      %4898 = vst [vmem:[#allocation3 + $0x98] sm:$0xff] %v4866
      %4899 = vst [vmem:[#allocation3 + $0xa0] sm:$0xff] %v4867
      %4900 = vst [vmem:[#allocation3 + $0xa8] sm:$0xff] %v4868
      %4901 = vst [vmem:[#allocation3 + $0xb0] sm:$0xff] %v4869
      %4902 = vst [vmem:[#allocation3 + $0xb8] sm:$0xff] %v4870
      %4903 = vst [vmem:[#allocation3 + $0xc0] sm:$0xff] %v4871
      %4904 = vst [vmem:[#allocation3 + $0xc8] sm:$0xff] %v4872
      %4905 = vst [vmem:[#allocation3 + $0xd0] sm:$0xff] %v4873
      %4906 = vst [vmem:[#allocation3 + $0xd8] sm:$0xff] %v4874
      %4907 = vst [vmem:[#allocation3 + $0xe0] sm:$0xff] %v4875
      %4908 = vst [vmem:[#allocation3 + $0xe8] sm:$0xff] %v4876
      %4909 = vst [vmem:[#allocation3 + $0xf0] sm:$0xff] %v4877
      %4910 = vst [vmem:[#allocation3 + $0xf8] sm:$0xff] %v4878
      %v4911 = vld [vmem:[#allocation3] sm:$0xff]
      %v4912 = vld [vmem:[#allocation3 + $0x8] sm:$0xff]
      %v4913 = vld [vmem:[#allocation3 + $0x10] sm:$0xff]
      %v4914 = vld [vmem:[#allocation3 + $0x18] sm:$0xff]
      %v4915 = vld [vmem:[#allocation3 + $0x20] sm:$0xff]
      %v4916 = vld [vmem:[#allocation3 + $0x28] sm:$0xff]
      %v4917 = vld [vmem:[#allocation3 + $0x30] sm:$0xff]
      %v4918 = vld [vmem:[#allocation3 + $0x38] sm:$0xff]
      %v4919 = vld [vmem:[#allocation3 + $0x40] sm:$0xff]
      %v4920 = vld [vmem:[#allocation3 + $0x48] sm:$0xff]
      %v4921 = vld [vmem:[#allocation3 + $0x50] sm:$0xff]
      %v4922 = vld [vmem:[#allocation3 + $0x58] sm:$0xff]
      %v4923 = vld [vmem:[#allocation3 + $0x60] sm:$0xff]
      %v4924 = vld [vmem:[#allocation3 + $0x68] sm:$0xff]
      %v4925 = vld [vmem:[#allocation3 + $0x70] sm:$0xff]
      %v4926 = vld [vmem:[#allocation3 + $0x78] sm:$0xff]
      %v4927 = vld [vmem:[#allocation3 + $0x80] sm:$0xff]
      %v4928 = vld [vmem:[#allocation3 + $0x88] sm:$0xff]
      %v4929 = vld [vmem:[#allocation3 + $0x90] sm:$0xff]
      %v4930 = vld [vmem:[#allocation3 + $0x98] sm:$0xff]
      %v4931 = vld [vmem:[#allocation3 + $0xa0] sm:$0xff]
      %v4932 = vld [vmem:[#allocation3 + $0xa8] sm:$0xff]
      %v4933 = vld [vmem:[#allocation3 + $0xb0] sm:$0xff]
      %v4934 = vld [vmem:[#allocation3 + $0xb8] sm:$0xff]
      %v4935 = vld [vmem:[#allocation3 + $0xc0] sm:$0xff]
      %v4936 = vld [vmem:[#allocation3 + $0xc8] sm:$0xff]
      %v4937 = vld [vmem:[#allocation3 + $0xd0] sm:$0xff]
      %v4938 = vld [vmem:[#allocation3 + $0xd8] sm:$0xff]
      %v4939 = vld [vmem:[#allocation3 + $0xe0] sm:$0xff]
      %v4940 = vld [vmem:[#allocation3 + $0xe8] sm:$0xff]
      %v4941 = vld [vmem:[#allocation3 + $0xf0] sm:$0xff]
      %v4942 = vld [vmem:[#allocation3 + $0xf8] sm:$0xff]
      %v4943 = vpack.c.bf16 %v4912, %v4911
      %v4944 = vpack.c.bf16 %v4914, %v4913
      %v4945 = vpack.c.bf16 %v4916, %v4915
      %v4946 = vpack.c.bf16 %v4918, %v4917
      %v4947 = vpack.c.bf16 %v4920, %v4919
      %v4948 = vpack.c.bf16 %v4922, %v4921
      %v4949 = vpack.c.bf16 %v4924, %v4923
      %v4950 = vpack.c.bf16 %v4926, %v4925
      %v4951 = vpack.c.bf16 %v4928, %v4927
      %v4952 = vpack.c.bf16 %v4930, %v4929
      %v4953 = vpack.c.bf16 %v4932, %v4931
      %v4954 = vpack.c.bf16 %v4934, %v4933
      %v4955 = vpack.c.bf16 %v4936, %v4935
      %v4956 = vpack.c.bf16 %v4938, %v4937
      %v4957 = vpack.c.bf16 %v4940, %v4939
      %v4958 = vpack.c.bf16 %v4942, %v4941
      %v4975 = vunpack.c.l.b16 %v4943
      %v4976 = vunpack.c.h.b16 %v4943
      %v4977 = vunpack.c.l.b16 %v4944
      %v4978 = vunpack.c.h.b16 %v4944
      %v4979 = vunpack.c.l.b16 %v4945
      %v4980 = vunpack.c.h.b16 %v4945
      %v4981 = vunpack.c.l.b16 %v4946
      %v4982 = vunpack.c.h.b16 %v4946
      %v4983 = vunpack.c.l.b16 %v4947
      %v4984 = vunpack.c.h.b16 %v4947
      %v4985 = vunpack.c.l.b16 %v4948
      %v4986 = vunpack.c.h.b16 %v4948
      %v4987 = vunpack.c.l.b16 %v4949
      %v4988 = vunpack.c.h.b16 %v4949
      %v4989 = vunpack.c.l.b16 %v4950
      %v4990 = vunpack.c.h.b16 %v4950
      %v4991 = vunpack.c.l.b16 %v4951
      %v4992 = vunpack.c.h.b16 %v4951
      %v4993 = vunpack.c.l.b16 %v4952
      %v4994 = vunpack.c.h.b16 %v4952
      %v4995 = vunpack.c.l.b16 %v4953
      %v4996 = vunpack.c.h.b16 %v4953
      %v4997 = vunpack.c.l.b16 %v4954
      %v4998 = vunpack.c.h.b16 %v4954
      %v4999 = vunpack.c.l.b16 %v4955
      %v5000 = vunpack.c.h.b16 %v4955
      %v5001 = vunpack.c.l.b16 %v4956
      %v5002 = vunpack.c.h.b16 %v4956
      %v5003 = vunpack.c.l.b16 %v4957
      %v5004 = vunpack.c.h.b16 %v4957
      %v5005 = vunpack.c.l.b16 %v4958
      %v5006 = vunpack.c.h.b16 %v4958
      %v5007 = vpack.c.b16 %v4975, %v4975
      %v5008 = vpack.c.b16 %v4976, %v4976
      %v5009 = vpack.c.b16 %v4977, %v4977
      %v5010 = vpack.c.b16 %v4978, %v4978
      %v5011 = vpack.c.b16 %v4979, %v4979
      %v5012 = vpack.c.b16 %v4980, %v4980
      %v5013 = vpack.c.b16 %v4981, %v4981
      %v5014 = vpack.c.b16 %v4982, %v4982
      %v5015 = vpack.c.b16 %v4983, %v4983
      %v5016 = vpack.c.b16 %v4984, %v4984
      %v5017 = vpack.c.b16 %v4985, %v4985
      %v5018 = vpack.c.b16 %v4986, %v4986
      %v5019 = vpack.c.b16 %v4987, %v4987
      %v5020 = vpack.c.b16 %v4988, %v4988
      %v5021 = vpack.c.b16 %v4989, %v4989
      %v5022 = vpack.c.b16 %v4990, %v4990
      %v5023 = vpack.c.b16 %v4991, %v4991
      %v5024 = vpack.c.b16 %v4992, %v4992
      %v5025 = vpack.c.b16 %v4993, %v4993
      %v5026 = vpack.c.b16 %v4994, %v4994
      %v5027 = vpack.c.b16 %v4995, %v4995
      %v5028 = vpack.c.b16 %v4996, %v4996
      %v5029 = vpack.c.b16 %v4997, %v4997
      %v5030 = vpack.c.b16 %v4998, %v4998
      %v5031 = vpack.c.b16 %v4999, %v4999
      %v5032 = vpack.c.b16 %v5000, %v5000
      %v5033 = vpack.c.b16 %v5001, %v5001
      %v5034 = vpack.c.b16 %v5002, %v5002
      %v5035 = vpack.c.b16 %v5003, %v5003
      %v5036 = vpack.c.b16 %v5004, %v5004
      %v5037 = vpack.c.b16 %v5005, %v5005
      %v5038 = vpack.c.b16 %v5006, %v5006
      %5071 = vst [vmem:[%s231] sm:$0xf] %v5007
      %5072 = vst [vmem:[%s231 + $0x4] sm:$0xf] %v5008
      %5073 = vst [vmem:[%s231 + $0x8] sm:$0xf] %v5009
      %5074 = vst [vmem:[%s231 + $0xc] sm:$0xf] %v5010
      %5075 = vst [vmem:[%s231 + $0x10] sm:$0xf] %v5011
      %5076 = vst [vmem:[%s231 + $0x14] sm:$0xf] %v5012
      %5077 = vst [vmem:[%s231 + $0x18] sm:$0xf] %v5013
      %5078 = vst [vmem:[%s231 + $0x1c] sm:$0xf] %v5014
      %5079 = vst [vmem:[%s231 + $0x20] sm:$0xf] %v5015
      %5080 = vst [vmem:[%s231 + $0x24] sm:$0xf] %v5016
      %5081 = vst [vmem:[%s231 + $0x28] sm:$0xf] %v5017
      %5082 = vst [vmem:[%s231 + $0x2c] sm:$0xf] %v5018
      %5083 = vst [vmem:[%s231 + $0x30] sm:$0xf] %v5019
      %5084 = vst [vmem:[%s231 + $0x34] sm:$0xf] %v5020
      %5085 = vst [vmem:[%s231 + $0x38] sm:$0xf] %v5021
      %5086 = vst [vmem:[%s231 + $0x3c] sm:$0xf] %v5022
      %5087 = vst [vmem:[%s231 + $0x40] sm:$0xf] %v5023
      %5088 = vst [vmem:[%s231 + $0x44] sm:$0xf] %v5024
      %5089 = vst [vmem:[%s231 + $0x48] sm:$0xf] %v5025
      %5090 = vst [vmem:[%s231 + $0x4c] sm:$0xf] %v5026
      %5091 = vst [vmem:[%s231 + $0x50] sm:$0xf] %v5027
      %5092 = vst [vmem:[%s231 + $0x54] sm:$0xf] %v5028
      %5093 = vst [vmem:[%s231 + $0x58] sm:$0xf] %v5029
      %5094 = vst [vmem:[%s231 + $0x5c] sm:$0xf] %v5030
      %5095 = vst [vmem:[%s231 + $0x60] sm:$0xf] %v5031
      %5096 = vst [vmem:[%s231 + $0x64] sm:$0xf] %v5032
      %5097 = vst [vmem:[%s231 + $0x68] sm:$0xf] %v5033
      %5098 = vst [vmem:[%s231 + $0x6c] sm:$0xf] %v5034
      %5099 = vst [vmem:[%s231 + $0x70] sm:$0xf] %v5035
      %5100 = vst [vmem:[%s231 + $0x74] sm:$0xf] %v5036
      %5101 = vst [vmem:[%s231 + $0x78] sm:$0xf] %v5037
      %5102 = vst [vmem:[%s231 + $0x7c] sm:$0xf] %v5038
      %v5103 = vadd.f32 %v4911, %v4912
      %v5104 = vadd.f32 %v5103, %v4913
      %v5105 = vadd.f32 %v5104, %v4914
      %v5106 = vadd.f32 %v5105, %v4915
      %v5107 = vadd.f32 %v5106, %v4916
      %v5108 = vadd.f32 %v5107, %v4917
      %v5109 = vadd.f32 %v5108, %v4918
      %v5110 = vadd.f32 %v5109, %v4919
      %v5111 = vadd.f32 %v5110, %v4920
      %v5112 = vadd.f32 %v5111, %v4921
      %v5113 = vadd.f32 %v5112, %v4922
      %v5114 = vadd.f32 %v5113, %v4923
      %v5115 = vadd.f32 %v5114, %v4924
      %v5116 = vadd.f32 %v5115, %v4925
      %v5117 = vadd.f32 %v5116, %v4926
      %v5118 = vadd.f32 %v5117, %v4927
      %v5119 = vadd.f32 %v5118, %v4928
      %v5120 = vadd.f32 %v5119, %v4929
      %v5121 = vadd.f32 %v5120, %v4930
      %v5122 = vadd.f32 %v5121, %v4931
      %v5123 = vadd.f32 %v5122, %v4932
      %v5124 = vadd.f32 %v5123, %v4933
      %v5125 = vadd.f32 %v5124, %v4934
      %v5126 = vadd.f32 %v5125, %v4935
      %v5127 = vadd.f32 %v5126, %v4936
      %v5128 = vadd.f32 %v5127, %v4937
      %v5129 = vadd.f32 %v5128, %v4938
      %v5130 = vadd.f32 %v5129, %v4939
      %v5131 = vadd.f32 %v5130, %v4940
      %v5132 = vadd.f32 %v5131, %v4941
      %v5133 = vadd.f32 %v5132, %v4942
      %v5134 = vrot.slane %v5133, 4
      %v5135 = vadd.f32 %v5133, %v5134
      %v5136 = vrot.slane %v5135, 2
      %v5137 = vadd.f32 %v5135, %v5136
      %v5138 = vrot.slane %v5137, 1
      %v5139 = vadd.f32 %v5137, %v5138
      %5140 = vst [vmem:[%s235] sm:$0x1] %v5139
      %v5141 = vmul.f32 %v4911, %v4911
      %v5142 = vmul.f32 %v4912, %v4912
      %v5143 = vmul.f32 %v4913, %v4913
      %v5144 = vmul.f32 %v4914, %v4914
      %v5145 = vmul.f32 %v4915, %v4915
      %v5146 = vmul.f32 %v4916, %v4916
      %v5147 = vmul.f32 %v4917, %v4917
      %v5148 = vmul.f32 %v4918, %v4918
      %v5149 = vmul.f32 %v4919, %v4919
      %v5150 = vmul.f32 %v4920, %v4920
      %v5151 = vmul.f32 %v4921, %v4921
      %v5152 = vmul.f32 %v4922, %v4922
      %v5153 = vmul.f32 %v4923, %v4923
      %v5154 = vmul.f32 %v4924, %v4924
      %v5155 = vmul.f32 %v4925, %v4925
      %v5156 = vmul.f32 %v4926, %v4926
      %v5157 = vmul.f32 %v4927, %v4927
      %v5158 = vmul.f32 %v4928, %v4928
      %v5159 = vmul.f32 %v4929, %v4929
      %v5160 = vmul.f32 %v4930, %v4930
      %v5161 = vmul.f32 %v4931, %v4931
      %v5162 = vmul.f32 %v4932, %v4932
      %v5163 = vmul.f32 %v4933, %v4933
      %v5164 = vmul.f32 %v4934, %v4934
      %v5165 = vmul.f32 %v4935, %v4935
      %v5166 = vmul.f32 %v4936, %v4936
      %v5167 = vmul.f32 %v4937, %v4937
      %v5168 = vmul.f32 %v4938, %v4938
      %v5169 = vmul.f32 %v4939, %v4939
      %v5170 = vmul.f32 %v4940, %v4940
      %v5171 = vmul.f32 %v4941, %v4941
      %v5172 = vmul.f32 %v4942, %v4942
      %v5173 = vadd.f32 %v5141, %v5142
      %v5174 = vadd.f32 %v5173, %v5143
      %v5175 = vadd.f32 %v5174, %v5144
      %v5176 = vadd.f32 %v5175, %v5145
      %v5177 = vadd.f32 %v5176, %v5146
      %v5178 = vadd.f32 %v5177, %v5147
      %v5179 = vadd.f32 %v5178, %v5148
      %v5180 = vadd.f32 %v5179, %v5149
      %v5181 = vadd.f32 %v5180, %v5150
      %v5182 = vadd.f32 %v5181, %v5151
      %v5183 = vadd.f32 %v5182, %v5152
      %v5184 = vadd.f32 %v5183, %v5153
      %v5185 = vadd.f32 %v5184, %v5154
      %v5186 = vadd.f32 %v5185, %v5155
      %v5187 = vadd.f32 %v5186, %v5156
      %v5188 = vadd.f32 %v5187, %v5157
      %v5189 = vadd.f32 %v5188, %v5158
      %v5190 = vadd.f32 %v5189, %v5159
      %v5191 = vadd.f32 %v5190, %v5160
      %v5192 = vadd.f32 %v5191, %v5161
      %v5193 = vadd.f32 %v5192, %v5162
      %v5194 = vadd.f32 %v5193, %v5163
      %v5195 = vadd.f32 %v5194, %v5164
      %v5196 = vadd.f32 %v5195, %v5165
      %v5197 = vadd.f32 %v5196, %v5166
      %v5198 = vadd.f32 %v5197, %v5167
      %v5199 = vadd.f32 %v5198, %v5168
      %v5200 = vadd.f32 %v5199, %v5169
      %v5201 = vadd.f32 %v5200, %v5170
      %v5202 = vadd.f32 %v5201, %v5171
      %v5203 = vadd.f32 %v5202, %v5172
      %v5204 = vrot.slane %v5203, 4
      %v5205 = vadd.f32 %v5203, %v5204
      %v5206 = vrot.slane %v5205, 2
      %v5207 = vadd.f32 %v5205, %v5206
      %v5208 = vrot.slane %v5207, 1
      %v5209 = vadd.f32 %v5207, %v5208
      %5210 = vst [vmem:[%s235 + $0x1] sm:$0x1] %v5209
      %p5211 = scmp.lt.s32.totalorder %s17, 1
      %s5212 = scalar_select %p5211, %s17, 1
      %s5213 = smul.addr %s5212, 32
      %s5214 = smul.addr %s5213, 4
      %s5215 = scalar_lea.vmem %s4, %s5214
      %p5216 = scmp.lt.s32.totalorder %s17, 1
      %s5217 = scalar_select %p5216, %s17, 1
      %s5218 = smul.addr %s5217, 2
      %s5219 = scalar_lea.vmem %s5, %s5218
      // Predicated region
      $region37: #{unet_block_a.4} parent=35 // pred_check
        %p5220 = pneg %p124
      $region38: #{unet_block_a.4} parent=35 // pred_check_branch
        %5222 = sbr.rel (%p5220) target = $region40
      $region39: #{unet_block_a.4} parent=35 // pred_region
        _
      $region40: #{unet_block_a.4} parent=35 // pred_fallthru
        _
      // Predicated region
      $region41: #{unet_block_a.4} parent=35 // pred_check
        %p5223 = pneg %p150
      $region42: #{unet_block_a.4} parent=35 // pred_check_branch
        %5225 = sbr.rel (%p5223) target = $region44
      $region43: #{unet_block_a.4} parent=35 // pred_region
        _
      $region44: #{unet_block_a.4} parent=35 // pred_fallthru
        _
    $region36: #{unet_block_a.4} parent=5 // pred_fallthru
      _
    %p5226 = scmp.le.s32.totalorder 2, %s12
    // Predicated region
    $region45: #{unet_block_a.4} parent=5 // pred_check
      %p5227 = pneg %p5226
    $region46: #{unet_block_a.4} parent=5 // pred_check_branch
      %5229 = sbr.rel (%p5227) target = $region48
    $region47: #{unet_block_a.4} parent=5 // pred_region
      %s5230 = ssub.s32 %s12, 2
      // Predicated region
      $region49: #{unet_block_a.4} parent=47 // pred_check
        %p5231 = pneg %p130
      $region50: #{unet_block_a.4} parent=47 // pred_check_branch
        %5233 = sbr.rel (%p5231) target = $region52
      $region51: #{unet_block_a.4} parent=47 // pred_region
        %p5234 = scmp.lt.s32.totalorder %s18, 1
        %s5235 = scalar_select %p5234, %s18, 1
        %s5236 = smul.addr %s5235, 32
        %s5237 = smul.addr %s5236, 4
        %s5238 = scalar_lea.vmem %s4, %s5237
      $region52: #{unet_block_a.4} parent=47 // pred_fallthru
        _
      // Predicated region
      $region53: #{unet_block_a.4} parent=47 // pred_check
        %p5239 = pneg %p156
      $region54: #{unet_block_a.4} parent=47 // pred_check_branch
        %5241 = sbr.rel (%p5239) target = $region56
      $region55: #{unet_block_a.4} parent=47 // pred_region
        %p5242 = scmp.lt.s32.totalorder %s18, 1
        %s5243 = scalar_select %p5242, %s18, 1
        %s5244 = smul.addr %s5243, 2
        %s5245 = scalar_lea.vmem %s5, %s5244
      $region56: #{unet_block_a.4} parent=47 // pred_fallthru
        _
    $region48: #{unet_block_a.4} parent=5 // pred_fallthru
      _
  $region6: #{unet_block_a.4} parent=0 // loop_footer
    %s16 = sadd.s32 1, %s12
  $region7: #{unet_block_a.4} parent=0 // loop_footer_branch
    %11 = sbr.rel target = $region3
  $region8: #{unet_block_a.4} parent=0 // loop_exit
    _

</llo_original>
